<compile_context>
chip_gen: v5e
topology: v5e:2x2
jax: 0.10.0
libtpu: 0.0.40
codegen_flags: <defaults>
</compile_context>

<pallas_src>
import functools

import numpy as np
import jax
import jax.numpy as jnp
from jax.experimental import pallas as pl
from jax.experimental.pallas import tpu as pltpu

D_MODEL = 384
IN_FEATURES = 124
N_HEAD = 4
N_LAYER = 6
OUT_FEATURES = 128
MAX_LEN = 5000
DIM_FEEDFORWARD = 2048   # nn.TransformerEncoderLayer default
LN_EPS = 1e-5            # nn.LayerNorm default
DH = D_MODEL // N_HEAD   # 96 (true head dim, used for the softmax scale)
DHP = 128                # padded head dim (lane aligned)

_VMEM_LIMIT = 40 * 1024 * 1024   # raised scoped-VMEM limit (safe on v5e/v6e/v7x)


# ----------------------------------------------------------------------------- utilities
def _pick_tile(dim, prefs, min_blocks=1):
    """Largest preferred tile dividing `dim` that leaves >= min_blocks blocks, else dim."""
    for p in prefs:
        if dim % p == 0 and dim // p >= min_blocks:
            return p
    return dim


def make_positional_encoding(d_model=D_MODEL, max_len=MAX_LEN):
    """Same math as the torch PositionalEncoding buffer: (max_len, 1, d_model)."""
    position = np.arange(0, max_len, dtype=np.float32)[:, None]
    div_term = np.exp(np.arange(0, d_model, 2, dtype=np.float32)
                      * (-np.log(10000.0) / d_model))
    pe = np.zeros((max_len, d_model), dtype=np.float32)
    pe[:, 0::2] = np.sin(position * div_term)
    pe[:, 1::2] = np.cos(position * div_term)
    return jnp.asarray(pe[:, None, :])


# ----------------------------------------------------------------------------- encoder + PE (fused)
def _encoder_pe_kernel(x_ref, w_ref, b_ref, pe_ref, o_ref):
    # x_ref: (1, S, K); w: (K, D); b: (1, D); pe: (1, 1, D) -> the PE row for this batch.
    y = jnp.dot(x_ref[0], w_ref[...], preferred_element_type=jnp.float32)
    o_ref[0] = (y + b_ref[...] + pe_ref[0]).astype(o_ref.dtype)


def encoder_pe(x, w, b, pe_full):
    """x: (B, S, K) -> Linear + pe_full[:B] broadcast over seq (torch semantics)."""
    B, S, K = x.shape
    D = w.shape[1]
    return pl.pallas_call(
        _encoder_pe_kernel,
        out_shape=jax.ShapeDtypeStruct((B, S, D), x.dtype),
        grid_spec=pltpu.PrefetchScalarGridSpec(
            num_scalar_prefetch=0,
            grid=(B,),
            in_specs=[
                pl.BlockSpec((1, S, K), lambda bi: (bi, 0, 0)),
                pl.BlockSpec((K, D), lambda bi: (0, 0)),
                pl.BlockSpec((1, D), lambda bi: (0, 0)),
                pl.BlockSpec((1, 1, D), lambda bi: (bi, 0, 0)),
            ],
            out_specs=pl.BlockSpec((1, S, D), lambda bi: (bi, 0, 0)),
        ),
        compiler_params=pltpu.CompilerParams(
            dimension_semantics=("parallel",),
            vmem_limit_bytes=_VMEM_LIMIT),
    )(x, w, b, pe_full)


# ----------------------------------------------------------------------------- attention block (fused)
def _attn_block_kernel(x_ref, wqkv_ref, bqkv_ref, wo_ref, bo_ref, g_ref, bb_ref,
                       o_ref, *, n_head, dhp, scale, eps):
    x = x_ref[0]                                                     # (S, D)
    qkv = (jnp.dot(x, wqkv_ref[...], preferred_element_type=jnp.float32)
           + bqkv_ref[...])                                          # (S, 3*H*dhp)

    heads = []
    for h in range(n_head):                                          # static unroll, H = 4
        q = qkv[:, h * dhp:(h + 1) * dhp] * scale                    # pre-scale q (S*dhp ops)
        k = qkv[:, (n_head + h) * dhp:(n_head + h + 1) * dhp]
        v = qkv[:, (2 * n_head + h) * dhp:(2 * n_head + h + 1) * dhp]
        s = jax.lax.dot_general(q, k, (((1,), (1,)), ((), ())),
                                preferred_element_type=jnp.float32)  # (S, S)
        m = jnp.max(s, axis=-1, keepdims=True)
        p = jnp.exp(s - m)
        l = jnp.sum(p, axis=-1, keepdims=True)
        o_h = jnp.dot(p, v, preferred_element_type=jnp.float32)
        heads.append(o_h * pl.reciprocal(l, approx=True))            # EUP reciprocal
    a = jnp.concatenate(heads, axis=-1)                              # (S, H*dhp), lane-aligned
    a = jnp.dot(a, wo_ref[...], preferred_element_type=jnp.float32) + bo_ref[...]

    # residual add + LayerNorm fused in the epilogue
    y = x + a
    mean = jnp.mean(y, axis=-1, keepdims=True)
    c = y - mean
    var = jnp.mean(c * c, axis=-1, keepdims=True)
    inv = jax.lax.rsqrt(var + eps)
    o_ref[0] = (c * inv * g_ref[...] + bb_ref[...]).astype(o_ref.dtype)


def attention_block(h, lyr):
    """h: (B, S, D) -> LayerNorm(h + MHA(h)), one grid step per batch element."""
    B, S, D = h.shape
    qkv_n = 3 * N_HEAD * DHP
    kernel = functools.partial(
        _attn_block_kernel,
        n_head=N_HEAD, dhp=DHP,
        scale=1.0 / float(np.sqrt(DH)),   # scale uses the TRUE head dim (96)
        eps=LN_EPS)
    const2 = lambda bi: (0, 0)
    return pl.pallas_call(
        kernel,
        out_shape=jax.ShapeDtypeStruct((B, S, D), h.dtype),
        grid_spec=pltpu.PrefetchScalarGridSpec(
            num_scalar_prefetch=0,
            grid=(B,),
            in_specs=[
                pl.BlockSpec((1, S, D), lambda bi: (bi, 0, 0)),   # h (this batch)
                pl.BlockSpec((D, qkv_n), const2),                 # padded QKV weight
                pl.BlockSpec((1, qkv_n), const2),                 # padded QKV bias
                pl.BlockSpec((N_HEAD * DHP, D), const2),          # padded out-proj weight
                pl.BlockSpec((1, D), const2),                     # out-proj bias
                pl.BlockSpec((1, D), const2),                     # ln1 gamma
                pl.BlockSpec((1, D), const2),                     # ln1 beta
            ],
            out_specs=pl.BlockSpec((1, S, D), lambda bi: (bi, 0, 0)),
        ),
        compiler_params=pltpu.CompilerParams(
            dimension_semantics=("parallel",),
            vmem_limit_bytes=_VMEM_LIMIT),
    )(h, lyr["qkvp_w"], lyr["qkvp_b"], lyr["outp_w"], lyr["out_b"],
      lyr["ln1_g"], lyr["ln1_b"])


# ----------------------------------------------------------------------------- FFN block (fused)
def _ffn_block_kernel(x_ref, w1_ref, b1_ref, w2_ref, b2_ref, g_ref, bb_ref, o_ref, *, eps):
    x = x_ref[...]                                                   # (tm, D)
    hid = (jnp.dot(x, w1_ref[...], preferred_element_type=jnp.float32)
           + b1_ref[...])                                            # (tm, 2048) stays in VMEM
    hid = jnp.maximum(hid, 0.0)                                      # ReLU
    f = (jnp.dot(hid, w2_ref[...], preferred_element_type=jnp.float32)
         + b2_ref[...])                                              # (tm, D)
    y = x + f                                                        # residual
    mean = jnp.mean(y, axis=-1, keepdims=True)
    c = y - mean
    var = jnp.mean(c * c, axis=-1, keepdims=True)
    inv = jax.lax.rsqrt(var + eps)
    o_ref[...] = (c * inv * g_ref[...] + bb_ref[...]).astype(o_ref.dtype)


def ffn_block(x, lyr):
    """x: (M, D) -> LayerNorm(x + FF2(ReLU(FF1(x)))). 2048-wide intermediate never leaves VMEM."""
    M, D = x.shape
    F = DIM_FEEDFORWARD
    tm = _pick_tile(M, (256, 128, 64, 32, 16, 8), min_blocks=2)   # >=2 blocks for v7x megacore
    kernel = functools.partial(_ffn_block_kernel, eps=LN_EPS)
    const2 = lambda i: (0, 0)
    return pl.pallas_call(
        kernel,
        out_shape=jax.ShapeDtypeStruct((M, D), x.dtype),
        grid_spec=pltpu.PrefetchScalarGridSpec(
            num_scalar_prefetch=0,
            grid=(M // tm,),
            in_specs=[
                pl.BlockSpec((tm, D), lambda i: (i, 0)),
                pl.BlockSpec((D, F), const2),
                pl.BlockSpec((1, F), const2),
                pl.BlockSpec((F, D), const2),
                pl.BlockSpec((1, D), const2),
                pl.BlockSpec((1, D), const2),
                pl.BlockSpec((1, D), const2),
            ],
            out_specs=pl.BlockSpec((tm, D), lambda i: (i, 0)),
        ),
        compiler_params=pltpu.CompilerParams(
            dimension_semantics=("parallel",),
            vmem_limit_bytes=_VMEM_LIMIT),
    )(x, lyr["ff1_w"], lyr["ff1_b"], lyr["ff2_w"], lyr["ff2_b"],
      lyr["ln2_g"], lyr["ln2_b"])


# ----------------------------------------------------------------------------- generic linear (decoder)
def _linear_kernel(x_ref, w_ref, b_ref, o_ref, acc_ref):
    @pl.when(pl.program_id(2) == 0)
    def _init():
        acc_ref[...] = jnp.zeros_like(acc_ref)

    acc_ref[...] += jnp.dot(x_ref[...], w_ref[...], preferred_element_type=jnp.float32)

    @pl.when(pl.program_id(2) == pl.num_programs(2) - 1)
    def _finalize():
        o_ref[...] = (acc_ref[...] + b_ref[...]).astype(o_ref.dtype)


def linear(x, w, b):
    """x: (M, K), w: (K, N), b: (1, N) -> (M, N)."""
    M, K = x.shape
    _, N = w.shape
    tm = _pick_tile(M, (256, 128, 64, 32, 16, 8), min_blocks=2)
    tn = _pick_tile(N, (512, 384, 256, 128))
    tk = _pick_tile(K, (512, 384, 256, 128))
    grid = (M // tm, N // tn, K // tk)
    return pl.pallas_call(
        _linear_kernel,
        out_shape=jax.ShapeDtypeStruct((M, N), x.dtype),
        grid_spec=pltpu.PrefetchScalarGridSpec(
            num_scalar_prefetch=0,
            grid=grid,
            in_specs=[
                pl.BlockSpec((tm, tk), lambda i, j, k: (i, k)),
                pl.BlockSpec((tk, tn), lambda i, j, k: (k, j)),
                pl.BlockSpec((1, tn), lambda i, j, k: (0, j)),
            ],
            out_specs=pl.BlockSpec((tm, tn), lambda i, j, k: (i, j)),
            scratch_shapes=[pltpu.VMEM((tm, tn), jnp.float32)],
        ),
        compiler_params=pltpu.CompilerParams(
            dimension_semantics=("parallel", "parallel", "arbitrary"),
            vmem_limit_bytes=_VMEM_LIMIT),
    )(x, w, b)


# ----------------------------------------------------------------------------- model forward
def transformer_forward(x, pparams):
    """Pallas-kernel forward of TransformerModel (eval mode). x: (B, S, IN_FEATURES).
    Takes *prepared* (head-padded) params from prepare_pallas_params()."""
    B, S, _ = x.shape
    D = D_MODEL

    h = encoder_pe(x, pparams["enc_w"], pparams["enc_b"], pparams["pe"])      # (B, S, D)
    for lyr in pparams["layers"]:
        h = attention_block(h, lyr)                                           # (B, S, D)
        h = ffn_block(h.reshape(B * S, D), lyr).reshape(B, S, D)              # (B, S, D)
    out = linear(h.reshape(B * S, D), pparams["dec_w"], pparams["dec_b"])     # (B*S, OUT)
    return out.reshape(B, S, OUT_FEATURES)


# ----------------------------------------------------------------------------- param preparation
def prepare_pallas_params(params):
    """Restructure natural (torch-layout) params for the Pallas kernels:
    head dim zero-padded 96 -> 128 (exact: padded q/k/v columns and out-proj rows are zero)."""
    D, H, dh, dhp = D_MODEL, N_HEAD, DH, DHP
    out = dict(enc_w=params["enc_w"], enc_b=params["enc_b"],
               dec_w=params["dec_w"], dec_b=params["dec_b"],
               pe=params["pe"], layers=[])
    for lyr in params["layers"]:
        w = lyr["qkv_w"].reshape(D, 3, H, dh)
        w = jnp.pad(w, ((0, 0), (0, 0), (0, 0), (0, dhp - dh))).reshape(D, 3 * H * dhp)
        b = lyr["qkv_b"].reshape(1, 3, H, dh)
        b = jnp.pad(b, ((0, 0), (0, 0), (0, 0), (0, dhp - dh))).reshape(1, 3 * H * dhp)
        ow = lyr["out_w"].reshape(H, dh, D)
        ow = jnp.pad(ow, ((0, 0), (0, dhp - dh), (0, 0))).reshape(H * dhp, D)
        out["layers"].append(dict(
            qkvp_w=w, qkvp_b=b, outp_w=ow, out_b=lyr["out_b"],
            ff1_w=lyr["ff1_w"], ff1_b=lyr["ff1_b"],
            ff2_w=lyr["ff2_w"], ff2_b=lyr["ff2_b"],
            ln1_g=lyr["ln1_g"], ln1_b=lyr["ln1_b"],
            ln2_g=lyr["ln2_g"], ln2_b=lyr["ln2_b"]))
    return out


# ----------------------------------------------------------------------------- pure-JAX reference
def _ref_layernorm(x, g, b, eps=LN_EPS):
    m = jnp.mean(x, axis=-1, keepdims=True)
    c = x - m
    v = jnp.mean(c * c, axis=-1, keepdims=True)
    return c * jax.lax.rsqrt(v + eps) * g + b


def _ref_linear(x, w, b, activation=None):
    y = jnp.dot(x, w, preferred_element_type=jnp.float32) + b
    if activation == "relu":
        y = jnp.maximum(y, 0.0)
    return y


def transformer_forward_ref(x, params):
    B, S, _ = x.shape
    D, H = D_MODEL, N_HEAD
    dh = D // H
    h = _ref_linear(x.reshape(B * S, -1), params["enc_w"], params["enc_b"]).reshape(B, S, D)
    h = h + params["pe"][:B]                       # pe[:x.size(0)] broadcast (torch semantics)
    h2 = h.reshape(B * S, D)
    for lyr in params["layers"]:
        qkv = _ref_linear(h2, lyr["qkv_w"], lyr["qkv_b"]).reshape(B, S, 3, H, dh)
        q = qkv[:, :, 0].transpose(0, 2, 1, 3)
        k = qkv[:, :, 1].transpose(0, 2, 1, 3)
        v = qkv[:, :, 2].transpose(0, 2, 1, 3)
        s = jnp.einsum("bhqd,bhkd->bhqk", q, k) / np.sqrt(dh)
        p = jax.nn.softmax(s, axis=-1)
        a = jnp.einsum("bhqk,bhkd->bhqd", p, v)
        a = a.transpose(0, 2, 1, 3).reshape(B * S, D)
        a = _ref_linear(a, lyr["out_w"], lyr["out_b"])
        h2 = _ref_layernorm(h2 + a, lyr["ln1_g"], lyr["ln1_b"])
        f = _ref_linear(h2, lyr["ff1_w"], lyr["ff1_b"], "relu")
        f = _ref_linear(f, lyr["ff2_w"], lyr["ff2_b"])
        h2 = _ref_layernorm(h2 + f, lyr["ln2_g"], lyr["ln2_b"])
    out = _ref_linear(h2, params["dec_w"], params["dec_b"])
    return out.reshape(B, S, OUT_FEATURES)


# ----------------------------------------------------------------------------- params
def init_params(key):
    keys = iter(jax.random.split(key, 128))

    def dense(fan_in, fan_out):
        w = jax.random.normal(next(keys), (fan_in, fan_out), jnp.float32) / np.sqrt(fan_in)
        b = 0.02 * jax.random.normal(next(keys), (1, fan_out), jnp.float32)
        return w, b

    def ln():
        g = 1.0 + 0.05 * jax.random.normal(next(keys), (1, D_MODEL), jnp.float32)
        b = 0.05 * jax.random.normal(next(keys), (1, D_MODEL), jnp.float32)
        return g, b

    enc_w, enc_b = dense(IN_FEATURES, D_MODEL)
    dec_w, dec_b = dense(D_MODEL, OUT_FEATURES)
    layers = []
    for _ in range(N_LAYER):
        qkv_w, qkv_b = dense(D_MODEL, 3 * D_MODEL)
        out_w, out_b = dense(D_MODEL, D_MODEL)
        ff1_w, ff1_b = dense(D_MODEL, DIM_FEEDFORWARD)
        ff2_w, ff2_b = dense(DIM_FEEDFORWARD, D_MODEL)
        ln1_g, ln1_b = ln()
        ln2_g, ln2_b = ln()
        layers.append(dict(qkv_w=qkv_w, qkv_b=qkv_b, out_w=out_w, out_b=out_b,
                           ff1_w=ff1_w, ff1_b=ff1_b, ff2_w=ff2_w, ff2_b=ff2_b,
                           ln1_g=ln1_g, ln1_b=ln1_b, ln2_g=ln2_g, ln2_b=ln2_b))
    return dict(enc_w=enc_w, enc_b=enc_b, dec_w=dec_w, dec_b=dec_b,
                pe=make_positional_encoding(), layers=layers)


# ----------------------------------------------------------------------------- main
if __name__ == "__main__":
    key = jax.random.PRNGKey(0)
    k_x, k_p = jax.random.split(key)

    B, S = 2, 8
    x = jax.random.normal(k_x, (B, S, IN_FEATURES), dtype=jnp.float32)
    params = init_params(k_p)
    pparams = prepare_pallas_params(params)   # one-time head-padding / layout prep (outside jit)

    fwd = jax.jit(transformer_forward)
    out = jax.block_until_ready(fwd(x, pparams))

    ref = jax.block_until_ready(jax.jit(transformer_forward_ref)(x, params))
    np.testing.assert_allclose(np.asarray(out), np.asarray(ref), rtol=3e-2, atol=3e-2)

    print("KERNEL_OK")
</pallas_src>

<mosaic_0001>
module attributes {stable_mosaic.version = 11 : i64} {
  func.func @_attn_block_kernel(%arg0: i32, %arg1: memref<1x8x384xf32, #tpu.memory_space<vmem>>, %arg2: memref<384x1536xf32, #tpu.memory_space<vmem>>, %arg3: memref<1x1536xf32, #tpu.memory_space<vmem>>, %arg4: memref<512x384xf32, #tpu.memory_space<vmem>>, %arg5: memref<1x384xf32, #tpu.memory_space<vmem>>, %arg6: memref<1x384xf32, #tpu.memory_space<vmem>>, %arg7: memref<1x384xf32, #tpu.memory_space<vmem>>, %arg8: memref<1x8x384xf32, #tpu.memory_space<vmem>>) attributes {dimension_semantics = [#tpu.dimension_semantics<parallel>], iteration_bounds = array<i64: 2>, scalar_prefetch = 0 : i64, scratch_operands = 0 : i64, tpu.core_type = #tpu.core_type<tc>, window_params = [{transform_indices = @transform_0, window_bounds = array<i64: 1, 8, 384>}, {pipeline_mode = #tpu.pipeline_mode<synchronous>, transform_indices = @transform_1, window_bounds = array<i64: 384, 1536>}, {pipeline_mode = #tpu.pipeline_mode<synchronous>, transform_indices = @transform_2, window_bounds = array<i64: 1, 1536>}, {pipeline_mode = #tpu.pipeline_mode<synchronous>, transform_indices = @transform_3, window_bounds = array<i64: 512, 384>}, {pipeline_mode = #tpu.pipeline_mode<synchronous>, transform_indices = @transform_4, window_bounds = array<i64: 1, 384>}, {pipeline_mode = #tpu.pipeline_mode<synchronous>, transform_indices = @transform_5, window_bounds = array<i64: 1, 384>}, {pipeline_mode = #tpu.pipeline_mode<synchronous>, transform_indices = @transform_6, window_bounds = array<i64: 1, 384>}, {transform_indices = @transform_7, window_bounds = array<i64: 1, 8, 384>}]} {
    %c0 = arith.constant 0 : index
    %c0_0 = arith.constant 0 : index
    %c0_1 = arith.constant 0 : index
    %0 = vector.load %arg1[%c0, %c0_0, %c0_1] : memref<1x8x384xf32, #tpu.memory_space<vmem>>, vector<1x8x384xf32>
    %1 = vector.shape_cast %0 : vector<1x8x384xf32> to vector<8x384xf32>
    %c0_2 = arith.constant 0 : index
    %c0_3 = arith.constant 0 : index
    %2 = vector.load %arg2[%c0_2, %c0_3] : memref<384x1536xf32, #tpu.memory_space<vmem>>, vector<384x1536xf32>
    %cst = arith.constant dense<0.000000e+00> : vector<8x1536xf32>
    %3 = tpu.matmul %1, %2, %cst {dimension_numbers = #tpu.dot_dimension_numbers<[1], [0], [0], [1], [0, 0, 1, 1], [], []>} : vector<8x384xf32>, vector<384x1536xf32>, vector<8x1536xf32> -> vector<8x1536xf32>
    %c0_4 = arith.constant 0 : index
    %c0_5 = arith.constant 0 : index
    %4 = vector.load %arg3[%c0_4, %c0_5] : memref<1x1536xf32, #tpu.memory_space<vmem>>, vector<1x1536xf32>
    %5 = vector.broadcast %4 : vector<1x1536xf32> to vector<8x1536xf32>
    %6 = arith.addf %3, %5 : vector<8x1536xf32>
    %7 = vector.extract_strided_slice %6 {offsets = [0, 0], sizes = [8, 128], strides = [1, 1]} : vector<8x1536xf32> to vector<8x128xf32>
    %cst_6 = arith.constant 0.102062076 : f32
    %8 = vector.broadcast %cst_6 : f32 to vector<8x128xf32>
    %9 = arith.mulf %7, %8 : vector<8x128xf32>
    %10 = vector.extract_strided_slice %6 {offsets = [0, 512], sizes = [8, 128], strides = [1, 1]} : vector<8x1536xf32> to vector<8x128xf32>
    %11 = vector.extract_strided_slice %6 {offsets = [0, 1024], sizes = [8, 128], strides = [1, 1]} : vector<8x1536xf32> to vector<8x128xf32>
    %cst_7 = arith.constant dense<0.000000e+00> : vector<8x8xf32>
    %12 = tpu.matmul %9, %10, %cst_7 {dimension_numbers = #tpu.dot_dimension_numbers<[1], [1], [0], [0], [0, 0, 1, 0], [], []>} : vector<8x128xf32>, vector<8x128xf32>, vector<8x8xf32> -> vector<8x8xf32>
    %cst_8 = arith.constant dense<0xFF800000> : vector<8xf32>
    %13 = vector.multi_reduction <maximumf>, %12, %cst_8 [1] : vector<8x8xf32> to vector<8xf32>
    %14 = vector.shape_cast %13 : vector<8xf32> to vector<8x1xf32>
    %15 = vector.broadcast %14 : vector<8x1xf32> to vector<8x8xf32>
    %16 = arith.subf %12, %15 : vector<8x8xf32>
    %17 = math.exp %16 : vector<8x8xf32>
    %cst_9 = arith.constant dense<0.000000e+00> : vector<8xf32>
    %18 = vector.multi_reduction <add>, %17, %cst_9 [1] : vector<8x8xf32> to vector<8xf32>
    %19 = vector.shape_cast %18 : vector<8xf32> to vector<8x1xf32>
    %cst_10 = arith.constant dense<0.000000e+00> : vector<8x128xf32>
    %20 = tpu.matmul %17, %11, %cst_10 {dimension_numbers = #tpu.dot_dimension_numbers<[1], [0], [0], [1], [0, 0, 1, 1], [], []>} : vector<8x8xf32>, vector<8x128xf32>, vector<8x128xf32> -> vector<8x128xf32>
    %21 = tpu.reciprocal %19 {approx = true} : vector<8x1xf32> -> vector<8x1xf32>
    %22 = vector.broadcast %21 : vector<8x1xf32> to vector<8x128xf32>
    %23 = arith.mulf %20, %22 : vector<8x128xf32>
    %24 = vector.extract_strided_slice %6 {offsets = [0, 128], sizes = [8, 128], strides = [1, 1]} : vector<8x1536xf32> to vector<8x128xf32>
    %cst_11 = arith.constant 0.102062076 : f32
    %25 = vector.broadcast %cst_11 : f32 to vector<8x128xf32>
    %26 = arith.mulf %24, %25 : vector<8x128xf32>
    %27 = vector.extract_strided_slice %6 {offsets = [0, 640], sizes = [8, 128], strides = [1, 1]} : vector<8x1536xf32> to vector<8x128xf32>
    %28 = vector.extract_strided_slice %6 {offsets = [0, 1152], sizes = [8, 128], strides = [1, 1]} : vector<8x1536xf32> to vector<8x128xf32>
    %cst_12 = arith.constant dense<0.000000e+00> : vector<8x8xf32>
    %29 = tpu.matmul %26, %27, %cst_12 {dimension_numbers = #tpu.dot_dimension_numbers<[1], [1], [0], [0], [0, 0, 1, 0], [], []>} : vector<8x128xf32>, vector<8x128xf32>, vector<8x8xf32> -> vector<8x8xf32>
    %cst_13 = arith.constant dense<0xFF800000> : vector<8xf32>
    %30 = vector.multi_reduction <maximumf>, %29, %cst_13 [1] : vector<8x8xf32> to vector<8xf32>
    %31 = vector.shape_cast %30 : vector<8xf32> to vector<8x1xf32>
    %32 = vector.broadcast %31 : vector<8x1xf32> to vector<8x8xf32>
    %33 = arith.subf %29, %32 : vector<8x8xf32>
    %34 = math.exp %33 : vector<8x8xf32>
    %cst_14 = arith.constant dense<0.000000e+00> : vector<8xf32>
    %35 = vector.multi_reduction <add>, %34, %cst_14 [1] : vector<8x8xf32> to vector<8xf32>
    %36 = vector.shape_cast %35 : vector<8xf32> to vector<8x1xf32>
    %cst_15 = arith.constant dense<0.000000e+00> : vector<8x128xf32>
    %37 = tpu.matmul %34, %28, %cst_15 {dimension_numbers = #tpu.dot_dimension_numbers<[1], [0], [0], [1], [0, 0, 1, 1], [], []>} : vector<8x8xf32>, vector<8x128xf32>, vector<8x128xf32> -> vector<8x128xf32>
    %38 = tpu.reciprocal %36 {approx = true} : vector<8x1xf32> -> vector<8x1xf32>
    %39 = vector.broadcast %38 : vector<8x1xf32> to vector<8x128xf32>
    %40 = arith.mulf %37, %39 : vector<8x128xf32>
    %41 = vector.extract_strided_slice %6 {offsets = [0, 256], sizes = [8, 128], strides = [1, 1]} : vector<8x1536xf32> to vector<8x128xf32>
    %cst_16 = arith.constant 0.102062076 : f32
    %42 = vector.broadcast %cst_16 : f32 to vector<8x128xf32>
    %43 = arith.mulf %41, %42 : vector<8x128xf32>
    %44 = vector.extract_strided_slice %6 {offsets = [0, 768], sizes = [8, 128], strides = [1, 1]} : vector<8x1536xf32> to vector<8x128xf32>
    %45 = vector.extract_strided_slice %6 {offsets = [0, 1280], sizes = [8, 128], strides = [1, 1]} : vector<8x1536xf32> to vector<8x128xf32>
    %cst_17 = arith.constant dense<0.000000e+00> : vector<8x8xf32>
    %46 = tpu.matmul %43, %44, %cst_17 {dimension_numbers = #tpu.dot_dimension_numbers<[1], [1], [0], [0], [0, 0, 1, 0], [], []>} : vector<8x128xf32>, vector<8x128xf32>, vector<8x8xf32> -> vector<8x8xf32>
    %cst_18 = arith.constant dense<0xFF800000> : vector<8xf32>
    %47 = vector.multi_reduction <maximumf>, %46, %cst_18 [1] : vector<8x8xf32> to vector<8xf32>
    %48 = vector.shape_cast %47 : vector<8xf32> to vector<8x1xf32>
    %49 = vector.broadcast %48 : vector<8x1xf32> to vector<8x8xf32>
    %50 = arith.subf %46, %49 : vector<8x8xf32>
    %51 = math.exp %50 : vector<8x8xf32>
    %cst_19 = arith.constant dense<0.000000e+00> : vector<8xf32>
    %52 = vector.multi_reduction <add>, %51, %cst_19 [1] : vector<8x8xf32> to vector<8xf32>
    %53 = vector.shape_cast %52 : vector<8xf32> to vector<8x1xf32>
    %cst_20 = arith.constant dense<0.000000e+00> : vector<8x128xf32>
    %54 = tpu.matmul %51, %45, %cst_20 {dimension_numbers = #tpu.dot_dimension_numbers<[1], [0], [0], [1], [0, 0, 1, 1], [], []>} : vector<8x8xf32>, vector<8x128xf32>, vector<8x128xf32> -> vector<8x128xf32>
    %55 = tpu.reciprocal %53 {approx = true} : vector<8x1xf32> -> vector<8x1xf32>
    %56 = vector.broadcast %55 : vector<8x1xf32> to vector<8x128xf32>
    %57 = arith.mulf %54, %56 : vector<8x128xf32>
    %58 = vector.extract_strided_slice %6 {offsets = [0, 384], sizes = [8, 128], strides = [1, 1]} : vector<8x1536xf32> to vector<8x128xf32>
    %cst_21 = arith.constant 0.102062076 : f32
    %59 = vector.broadcast %cst_21 : f32 to vector<8x128xf32>
    %60 = arith.mulf %58, %59 : vector<8x128xf32>
    %61 = vector.extract_strided_slice %6 {offsets = [0, 896], sizes = [8, 128], strides = [1, 1]} : vector<8x1536xf32> to vector<8x128xf32>
    %62 = vector.extract_strided_slice %6 {offsets = [0, 1408], sizes = [8, 128], strides = [1, 1]} : vector<8x1536xf32> to vector<8x128xf32>
    %cst_22 = arith.constant dense<0.000000e+00> : vector<8x8xf32>
    %63 = tpu.matmul %60, %61, %cst_22 {dimension_numbers = #tpu.dot_dimension_numbers<[1], [1], [0], [0], [0, 0, 1, 0], [], []>} : vector<8x128xf32>, vector<8x128xf32>, vector<8x8xf32> -> vector<8x8xf32>
    %cst_23 = arith.constant dense<0xFF800000> : vector<8xf32>
    %64 = vector.multi_reduction <maximumf>, %63, %cst_23 [1] : vector<8x8xf32> to vector<8xf32>
    %65 = vector.shape_cast %64 : vector<8xf32> to vector<8x1xf32>
    %66 = vector.broadcast %65 : vector<8x1xf32> to vector<8x8xf32>
    %67 = arith.subf %63, %66 : vector<8x8xf32>
    %68 = math.exp %67 : vector<8x8xf32>
    %cst_24 = arith.constant dense<0.000000e+00> : vector<8xf32>
    %69 = vector.multi_reduction <add>, %68, %cst_24 [1] : vector<8x8xf32> to vector<8xf32>
    %70 = vector.shape_cast %69 : vector<8xf32> to vector<8x1xf32>
    %cst_25 = arith.constant dense<0.000000e+00> : vector<8x128xf32>
    %71 = tpu.matmul %68, %62, %cst_25 {dimension_numbers = #tpu.dot_dimension_numbers<[1], [0], [0], [1], [0, 0, 1, 1], [], []>} : vector<8x8xf32>, vector<8x128xf32>, vector<8x128xf32> -> vector<8x128xf32>
    %72 = tpu.reciprocal %70 {approx = true} : vector<8x1xf32> -> vector<8x1xf32>
    %73 = vector.broadcast %72 : vector<8x1xf32> to vector<8x128xf32>
    %74 = arith.mulf %71, %73 : vector<8x128xf32>
    %75 = tpu.concatenate %23, %40, %57, %74 in 1 : vector<8x128xf32>, vector<8x128xf32>, vector<8x128xf32>, vector<8x128xf32> -> vector<8x512xf32>
    %c0_26 = arith.constant 0 : index
    %c0_27 = arith.constant 0 : index
    %76 = vector.load %arg4[%c0_26, %c0_27] : memref<512x384xf32, #tpu.memory_space<vmem>>, vector<512x384xf32>
    %cst_28 = arith.constant dense<0.000000e+00> : vector<8x384xf32>
    %77 = tpu.matmul %75, %76, %cst_28 {dimension_numbers = #tpu.dot_dimension_numbers<[1], [0], [0], [1], [0, 0, 1, 1], [], []>} : vector<8x512xf32>, vector<512x384xf32>, vector<8x384xf32> -> vector<8x384xf32>
    %c0_29 = arith.constant 0 : index
    %c0_30 = arith.constant 0 : index
    %78 = vector.load %arg5[%c0_29, %c0_30] : memref<1x384xf32, #tpu.memory_space<vmem>>, vector<1x384xf32>
    %79 = vector.broadcast %78 : vector<1x384xf32> to vector<8x384xf32>
    %80 = arith.addf %77, %79 : vector<8x384xf32>
    %81 = arith.addf %1, %80 : vector<8x384xf32>
    %cst_31 = arith.constant dense<0.000000e+00> : vector<8xf32>
    %82 = vector.multi_reduction <add>, %81, %cst_31 [1] : vector<8x384xf32> to vector<8xf32>
    %83 = vector.shape_cast %82 : vector<8xf32> to vector<8x1xf32>
    %cst_32 = arith.constant 3.840000e+02 : f32
    %84 = vector.broadcast %cst_32 : f32 to vector<8x1xf32>
    %85 = arith.divf %83, %84 : vector<8x1xf32>
    %86 = vector.broadcast %85 : vector<8x1xf32> to vector<8x384xf32>
    %87 = arith.subf %81, %86 : vector<8x384xf32>
    %88 = arith.mulf %87, %87 : vector<8x384xf32>
    %cst_33 = arith.constant dense<0.000000e+00> : vector<8xf32>
    %89 = vector.multi_reduction <add>, %88, %cst_33 [1] : vector<8x384xf32> to vector<8xf32>
    %90 = vector.shape_cast %89 : vector<8xf32> to vector<8x1xf32>
    %cst_34 = arith.constant 3.840000e+02 : f32
    %91 = vector.broadcast %cst_34 : f32 to vector<8x1xf32>
    %92 = arith.divf %90, %91 : vector<8x1xf32>
    %cst_35 = arith.constant 9.99999974E-6 : f32
    %93 = vector.broadcast %cst_35 : f32 to vector<8x1xf32>
    %94 = arith.addf %92, %93 : vector<8x1xf32>
    %95 = math.rsqrt %94 : vector<8x1xf32>
    %96 = vector.broadcast %95 : vector<8x1xf32> to vector<8x384xf32>
    %97 = arith.mulf %87, %96 : vector<8x384xf32>
    %c0_36 = arith.constant 0 : index
    %c0_37 = arith.constant 0 : index
    %98 = vector.load %arg6[%c0_36, %c0_37] : memref<1x384xf32, #tpu.memory_space<vmem>>, vector<1x384xf32>
    %99 = vector.broadcast %98 : vector<1x384xf32> to vector<8x384xf32>
    %100 = arith.mulf %97, %99 : vector<8x384xf32>
    %c0_38 = arith.constant 0 : index
    %c0_39 = arith.constant 0 : index
    %101 = vector.load %arg7[%c0_38, %c0_39] : memref<1x384xf32, #tpu.memory_space<vmem>>, vector<1x384xf32>
    %102 = vector.broadcast %101 : vector<1x384xf32> to vector<8x384xf32>
    %103 = arith.addf %100, %102 : vector<8x384xf32>
    %c0_40 = arith.constant 0 : index
    %c0_41 = arith.constant 0 : index
    %c0_42 = arith.constant 0 : index
    %104 = vector.load %arg8[%c0_40, %c0_41, %c0_42] : memref<1x8x384xf32, #tpu.memory_space<vmem>>, vector<1x8x384xf32>
    %105 = vector.shape_cast %104 : vector<1x8x384xf32> to vector<8x384xf32>
    %106 = vector.shape_cast %103 : vector<8x384xf32> to vector<1x8x384xf32>
    tpu.vector_store %arg8[%c0_40, %c0_41, %c0_42], %106 {strides = array<i32>} : memref<1x8x384xf32, #tpu.memory_space<vmem>>, vector<1x8x384xf32>,
    return
  }
  func.func @transform_0(%arg0: i32) -> (i32, i32, i32) {
    %c0_i32 = arith.constant 0 : i32
    %c0_i32_0 = arith.constant 0 : i32
    %c0_i32_1 = arith.constant 0 : i32
    return %arg0, %c0_i32, %c0_i32_0 : i32, i32, i32
  }
  func.func @transform_1(%arg0: i32) -> (i32, i32) {
    %c0_i32 = arith.constant 0 : i32
    %c0_i32_0 = arith.constant 0 : i32
    %c0_i32_1 = arith.constant 0 : i32
    return %c0_i32, %c0_i32_0 : i32, i32
  }
  func.func @transform_2(%arg0: i32) -> (i32, i32) {
    %c0_i32 = arith.constant 0 : i32
    %c0_i32_0 = arith.constant 0 : i32
    %c0_i32_1 = arith.constant 0 : i32
    return %c0_i32, %c0_i32_0 : i32, i32
  }
  func.func @transform_3(%arg0: i32) -> (i32, i32) {
    %c0_i32 = arith.constant 0 : i32
    %c0_i32_0 = arith.constant 0 : i32
    %c0_i32_1 = arith.constant 0 : i32
    return %c0_i32, %c0_i32_0 : i32, i32
  }
  func.func @transform_4(%arg0: i32) -> (i32, i32) {
    %c0_i32 = arith.constant 0 : i32
    %c0_i32_0 = arith.constant 0 : i32
    %c0_i32_1 = arith.constant 0 : i32
    return %c0_i32, %c0_i32_0 : i32, i32
  }
  func.func @transform_5(%arg0: i32) -> (i32, i32) {
    %c0_i32 = arith.constant 0 : i32
    %c0_i32_0 = arith.constant 0 : i32
    %c0_i32_1 = arith.constant 0 : i32
    return %c0_i32, %c0_i32_0 : i32, i32
  }
  func.func @transform_6(%arg0: i32) -> (i32, i32) {
    %c0_i32 = arith.constant 0 : i32
    %c0_i32_0 = arith.constant 0 : i32
    %c0_i32_1 = arith.constant 0 : i32
    return %c0_i32, %c0_i32_0 : i32, i32
  }
  func.func @transform_7(%arg0: i32) -> (i32, i32, i32) {
    %c0_i32 = arith.constant 0 : i32
    %c0_i32_0 = arith.constant 0 : i32
    %c0_i32_1 = arith.constant 0 : i32
    return %arg0, %c0_i32, %c0_i32_0 : i32, i32, i32
  }
}

module attributes {stable_mosaic.version = 11 : i64} {
  func.func @_encoder_pe_kernel(%arg0: i32, %arg1: memref<1x8x124xf32, #tpu.memory_space<vmem>>, %arg2: memref<124x384xf32, #tpu.memory_space<vmem>>, %arg3: memref<1x384xf32, #tpu.memory_space<vmem>>, %arg4: memref<1x1x384xf32, #tpu.memory_space<vmem>>, %arg5: memref<1x8x384xf32, #tpu.memory_space<vmem>>) attributes {dimension_semantics = [#tpu.dimension_semantics<parallel>], iteration_bounds = array<i64: 2>, scalar_prefetch = 0 : i64, scratch_operands = 0 : i64, tpu.core_type = #tpu.core_type<tc>, window_params = [{transform_indices = @transform_0, window_bounds = array<i64: 1, 8, 124>}, {pipeline_mode = #tpu.pipeline_mode<synchronous>, transform_indices = @transform_1, window_bounds = array<i64: 124, 384>}, {pipeline_mode = #tpu.pipeline_mode<synchronous>, transform_indices = @transform_2, window_bounds = array<i64: 1, 384>}, {transform_indices = @transform_3, window_bounds = array<i64: 1, 1, 384>}, {transform_indices = @transform_4, window_bounds = array<i64: 1, 8, 384>}]} {
    %c0 = arith.constant 0 : index
    %c0_0 = arith.constant 0 : index
    %c0_1 = arith.constant 0 : index
    %0 = vector.load %arg1[%c0, %c0_0, %c0_1] : memref<1x8x124xf32, #tpu.memory_space<vmem>>, vector<1x8x124xf32>
    %1 = vector.shape_cast %0 : vector<1x8x124xf32> to vector<8x124xf32>
    %c0_2 = arith.constant 0 : index
    %c0_3 = arith.constant 0 : index
    %2 = vector.load %arg2[%c0_2, %c0_3] : memref<124x384xf32, #tpu.memory_space<vmem>>, vector<124x384xf32>
    %cst = arith.constant dense<0.000000e+00> : vector<8x384xf32>
    %3 = tpu.matmul %1, %2, %cst {dimension_numbers = #tpu.dot_dimension_numbers<[1], [0], [0], [1], [0, 0, 1, 1], [], []>} : vector<8x124xf32>, vector<124x384xf32>, vector<8x384xf32> -> vector<8x384xf32>
    %c0_4 = arith.constant 0 : index
    %c0_5 = arith.constant 0 : index
    %4 = vector.load %arg3[%c0_4, %c0_5] : memref<1x384xf32, #tpu.memory_space<vmem>>, vector<1x384xf32>
    %5 = vector.broadcast %4 : vector<1x384xf32> to vector<8x384xf32>
    %6 = arith.addf %3, %5 : vector<8x384xf32>
    %c0_6 = arith.constant 0 : index
    %c0_7 = arith.constant 0 : index
    %c0_8 = arith.constant 0 : index
    %7 = vector.load %arg4[%c0_6, %c0_7, %c0_8] : memref<1x1x384xf32, #tpu.memory_space<vmem>>, vector<1x1x384xf32>
    %8 = vector.shape_cast %7 : vector<1x1x384xf32> to vector<1x384xf32>
    %9 = vector.broadcast %8 : vector<1x384xf32> to vector<8x384xf32>
    %10 = arith.addf %6, %9 : vector<8x384xf32>
    %c0_9 = arith.constant 0 : index
    %c0_10 = arith.constant 0 : index
    %c0_11 = arith.constant 0 : index
    %11 = vector.load %arg5[%c0_9, %c0_10, %c0_11] : memref<1x8x384xf32, #tpu.memory_space<vmem>>, vector<1x8x384xf32>
    %12 = vector.shape_cast %11 : vector<1x8x384xf32> to vector<8x384xf32>
    %13 = vector.shape_cast %10 : vector<8x384xf32> to vector<1x8x384xf32>
    tpu.vector_store %arg5[%c0_9, %c0_10, %c0_11], %13 {strides = array<i32>} : memref<1x8x384xf32, #tpu.memory_space<vmem>>, vector<1x8x384xf32>,
    return
  }
  func.func @transform_0(%arg0: i32) -> (i32, i32, i32) {
    %c0_i32 = arith.constant 0 : i32
    %c0_i32_0 = arith.constant 0 : i32
    %c0_i32_1 = arith.constant 0 : i32
    return %arg0, %c0_i32, %c0_i32_0 : i32, i32, i32
  }
  func.func @transform_1(%arg0: i32) -> (i32, i32) {
    %c0_i32 = arith.constant 0 : i32
    %c0_i32_0 = arith.constant 0 : i32
    %c0_i32_1 = arith.constant 0 : i32
    return %c0_i32, %c0_i32_0 : i32, i32
  }
  func.func @transform_2(%arg0: i32) -> (i32, i32) {
    %c0_i32 = arith.constant 0 : i32
    %c0_i32_0 = arith.constant 0 : i32
    %c0_i32_1 = arith.constant 0 : i32
    return %c0_i32, %c0_i32_0 : i32, i32
  }
  func.func @transform_3(%arg0: i32) -> (i32, i32, i32) {
    %c0_i32 = arith.constant 0 : i32
    %c0_i32_0 = arith.constant 0 : i32
    %c0_i32_1 = arith.constant 0 : i32
    return %arg0, %c0_i32, %c0_i32_0 : i32, i32, i32
  }
  func.func @transform_4(%arg0: i32) -> (i32, i32, i32) {
    %c0_i32 = arith.constant 0 : i32
    %c0_i32_0 = arith.constant 0 : i32
    %c0_i32_1 = arith.constant 0 : i32
    return %arg0, %c0_i32, %c0_i32_0 : i32, i32, i32
  }
}

module attributes {stable_mosaic.version = 11 : i64} {
  func.func @_linear_kernel(%arg0: i32, %arg1: i32, %arg2: i32, %arg3: memref<8x384xf32, #tpu.memory_space<vmem>>, %arg4: memref<384x128xf32, #tpu.memory_space<vmem>>, %arg5: memref<1x128xf32, #tpu.memory_space<vmem>>, %arg6: memref<8x128xf32, #tpu.memory_space<vmem>>, %arg7: memref<8x128xf32, #tpu.memory_space<vmem>>) attributes {dimension_semantics = [#tpu.dimension_semantics<parallel>, #tpu.dimension_semantics<parallel>, #tpu.dimension_semantics<arbitrary>], iteration_bounds = array<i64: 2, 1, 1>, scalar_prefetch = 0 : i64, scratch_operands = 1 : i64, tpu.core_type = #tpu.core_type<tc>, window_params = [{transform_indices = @transform_0, window_bounds = array<i64: 8, 384>}, {transform_indices = @transform_1, window_bounds = array<i64: 384, 128>}, {transform_indices = @transform_2, window_bounds = array<i64: 1, 128>}, {transform_indices = @transform_3, window_bounds = array<i64: 8, 128>}]} {
    %c0_i32 = arith.constant 0 : i32
    %0 = arith.cmpi eq, %arg2, %c0_i32 : i32
    %1 = arith.extui %0 : i1 to i32
    %c0_i32_0 = arith.constant 0 : i32
    %2 = arith.cmpi ne, %1, %c0_i32_0 : i32
    scf.if %2 {
      %cst_10 = arith.constant 0.000000e+00 : f32
      %12 = vector.broadcast %cst_10 : f32 to vector<8x128xf32>
      %c0_11 = arith.constant 0 : index
      %c0_12 = arith.constant 0 : index
      %13 = vector.load %arg7[%c0_11, %c0_12] : memref<8x128xf32, #tpu.memory_space<vmem>>, vector<8x128xf32>
      tpu.vector_store %arg7[%c0_11, %c0_12], %12 {strides = array<i32>} : memref<8x128xf32, #tpu.memory_space<vmem>>, vector<8x128xf32>,
    } else {
    }
    %c0 = arith.constant 0 : index
    %c0_1 = arith.constant 0 : index
    %3 = vector.load %arg7[%c0, %c0_1] : memref<8x128xf32, #tpu.memory_space<vmem>>, vector<8x128xf32>
    %c0_2 = arith.constant 0 : index
    %c0_3 = arith.constant 0 : index
    %4 = vector.load %arg3[%c0_2, %c0_3] : memref<8x384xf32, #tpu.memory_space<vmem>>, vector<8x384xf32>
    %c0_4 = arith.constant 0 : index
    %c0_5 = arith.constant 0 : index
    %5 = vector.load %arg4[%c0_4, %c0_5] : memref<384x128xf32, #tpu.memory_space<vmem>>, vector<384x128xf32>
    %cst = arith.constant dense<0.000000e+00> : vector<8x128xf32>
    %6 = tpu.matmul %4, %5, %cst {dimension_numbers = #tpu.dot_dimension_numbers<[1], [0], [0], [1], [0, 0, 1, 1], [], []>} : vector<8x384xf32>, vector<384x128xf32>, vector<8x128xf32> -> vector<8x128xf32>
    %7 = arith.addf %3, %6 : vector<8x128xf32>
    %c0_6 = arith.constant 0 : index
    %c0_7 = arith.constant 0 : index
    %8 = vector.load %arg7[%c0_6, %c0_7] : memref<8x128xf32, #tpu.memory_space<vmem>>, vector<8x128xf32>
    tpu.vector_store %arg7[%c0_6, %c0_7], %7 {strides = array<i32>} : memref<8x128xf32, #tpu.memory_space<vmem>>, vector<8x128xf32>,
    %c0_i32_8 = arith.constant 0 : i32
    %9 = arith.cmpi eq, %arg2, %c0_i32_8 : i32
    %10 = arith.extui %9 : i1 to i32
    %c0_i32_9 = arith.constant 0 : i32
    %11 = arith.cmpi ne, %10, %c0_i32_9 : i32
    scf.if %11 {
      %c0_10 = arith.constant 0 : index
      %c0_11 = arith.constant 0 : index
      %12 = vector.load %arg7[%c0_10, %c0_11] : memref<8x128xf32, #tpu.memory_space<vmem>>, vector<8x128xf32>
      %c0_12 = arith.constant 0 : index
      %c0_13 = arith.constant 0 : index
      %13 = vector.load %arg5[%c0_12, %c0_13] : memref<1x128xf32, #tpu.memory_space<vmem>>, vector<1x128xf32>
      %14 = vector.broadcast %13 : vector<1x128xf32> to vector<8x128xf32>
      %15 = arith.addf %12, %14 : vector<8x128xf32>
      %c0_14 = arith.constant 0 : index
      %c0_15 = arith.constant 0 : index
      %16 = vector.load %arg6[%c0_14, %c0_15] : memref<8x128xf32, #tpu.memory_space<vmem>>, vector<8x128xf32>
      tpu.vector_store %arg6[%c0_14, %c0_15], %15 {strides = array<i32>} : memref<8x128xf32, #tpu.memory_space<vmem>>, vector<8x128xf32>,
    } else {
    }
    return
  }
  func.func @transform_0(%arg0: i32, %arg1: i32, %arg2: i32) -> (i32, i32) {
    %c0_i32 = arith.constant 0 : i32
    return %arg0, %arg2 : i32, i32
  }
  func.func @transform_1(%arg0: i32, %arg1: i32, %arg2: i32) -> (i32, i32) {
    %c0_i32 = arith.constant 0 : i32
    return %arg2, %arg1 : i32, i32
  }
  func.func @transform_2(%arg0: i32, %arg1: i32, %arg2: i32) -> (i32, i32) {
    %c0_i32 = arith.constant 0 : i32
    %c0_i32_0 = arith.constant 0 : i32
    return %c0_i32, %arg1 : i32, i32
  }
  func.func @transform_3(%arg0: i32, %arg1: i32, %arg2: i32) -> (i32, i32) {
    %c0_i32 = arith.constant 0 : i32
    return %arg0, %arg1 : i32, i32
  }
}

module attributes {stable_mosaic.version = 11 : i64} {
  func.func @_ffn_block_kernel(%arg0: i32, %arg1: memref<8x384xf32, #tpu.memory_space<vmem>>, %arg2: memref<384x2048xf32, #tpu.memory_space<vmem>>, %arg3: memref<1x2048xf32, #tpu.memory_space<vmem>>, %arg4: memref<2048x384xf32, #tpu.memory_space<vmem>>, %arg5: memref<1x384xf32, #tpu.memory_space<vmem>>, %arg6: memref<1x384xf32, #tpu.memory_space<vmem>>, %arg7: memref<1x384xf32, #tpu.memory_space<vmem>>, %arg8: memref<8x384xf32, #tpu.memory_space<vmem>>) attributes {dimension_semantics = [#tpu.dimension_semantics<parallel>], iteration_bounds = array<i64: 2>, scalar_prefetch = 0 : i64, scratch_operands = 0 : i64, tpu.core_type = #tpu.core_type<tc>, window_params = [{transform_indices = @transform_0, window_bounds = array<i64: 8, 384>}, {pipeline_mode = #tpu.pipeline_mode<synchronous>, transform_indices = @transform_1, window_bounds = array<i64: 384, 2048>}, {pipeline_mode = #tpu.pipeline_mode<synchronous>, transform_indices = @transform_2, window_bounds = array<i64: 1, 2048>}, {pipeline_mode = #tpu.pipeline_mode<synchronous>, transform_indices = @transform_3, window_bounds = array<i64: 2048, 384>}, {pipeline_mode = #tpu.pipeline_mode<synchronous>, transform_indices = @transform_4, window_bounds = array<i64: 1, 384>}, {pipeline_mode = #tpu.pipeline_mode<synchronous>, transform_indices = @transform_5, window_bounds = array<i64: 1, 384>}, {pipeline_mode = #tpu.pipeline_mode<synchronous>, transform_indices = @transform_6, window_bounds = array<i64: 1, 384>}, {transform_indices = @transform_7, window_bounds = array<i64: 8, 384>}]} {
    %c0 = arith.constant 0 : index
    %c0_0 = arith.constant 0 : index
    %0 = vector.load %arg1[%c0, %c0_0] : memref<8x384xf32, #tpu.memory_space<vmem>>, vector<8x384xf32>
    %c0_1 = arith.constant 0 : index
    %c0_2 = arith.constant 0 : index
    %1 = vector.load %arg2[%c0_1, %c0_2] : memref<384x2048xf32, #tpu.memory_space<vmem>>, vector<384x2048xf32>
    %cst = arith.constant dense<0.000000e+00> : vector<8x2048xf32>
    %2 = tpu.matmul %0, %1, %cst {dimension_numbers = #tpu.dot_dimension_numbers<[1], [0], [0], [1], [0, 0, 1, 1], [], []>} : vector<8x384xf32>, vector<384x2048xf32>, vector<8x2048xf32> -> vector<8x2048xf32>
    %c0_3 = arith.constant 0 : index
    %c0_4 = arith.constant 0 : index
    %3 = vector.load %arg3[%c0_3, %c0_4] : memref<1x2048xf32, #tpu.memory_space<vmem>>, vector<1x2048xf32>
    %4 = vector.broadcast %3 : vector<1x2048xf32> to vector<8x2048xf32>
    %5 = arith.addf %2, %4 : vector<8x2048xf32>
    %cst_5 = arith.constant 0.000000e+00 : f32
    %6 = vector.broadcast %cst_5 : f32 to vector<8x2048xf32>
    %7 = arith.maximumf %5, %6 : vector<8x2048xf32>
    %c0_6 = arith.constant 0 : index
    %c0_7 = arith.constant 0 : index
    %8 = vector.load %arg4[%c0_6, %c0_7] : memref<2048x384xf32, #tpu.memory_space<vmem>>, vector<2048x384xf32>
    %cst_8 = arith.constant dense<0.000000e+00> : vector<8x384xf32>
    %9 = tpu.matmul %7, %8, %cst_8 {dimension_numbers = #tpu.dot_dimension_numbers<[1], [0], [0], [1], [0, 0, 1, 1], [], []>} : vector<8x2048xf32>, vector<2048x384xf32>, vector<8x384xf32> -> vector<8x384xf32>
    %c0_9 = arith.constant 0 : index
    %c0_10 = arith.constant 0 : index
    %10 = vector.load %arg5[%c0_9, %c0_10] : memref<1x384xf32, #tpu.memory_space<vmem>>, vector<1x384xf32>
    %11 = vector.broadcast %10 : vector<1x384xf32> to vector<8x384xf32>
    %12 = arith.addf %9, %11 : vector<8x384xf32>
    %13 = arith.addf %0, %12 : vector<8x384xf32>
    %cst_11 = arith.constant dense<0.000000e+00> : vector<8xf32>
    %14 = vector.multi_reduction <add>, %13, %cst_11 [1] : vector<8x384xf32> to vector<8xf32>
    %15 = vector.shape_cast %14 : vector<8xf32> to vector<8x1xf32>
    %cst_12 = arith.constant 3.840000e+02 : f32
    %16 = vector.broadcast %cst_12 : f32 to vector<8x1xf32>
    %17 = arith.divf %15, %16 : vector<8x1xf32>
    %18 = vector.broadcast %17 : vector<8x1xf32> to vector<8x384xf32>
    %19 = arith.subf %13, %18 : vector<8x384xf32>
    %20 = arith.mulf %19, %19 : vector<8x384xf32>
    %cst_13 = arith.constant dense<0.000000e+00> : vector<8xf32>
    %21 = vector.multi_reduction <add>, %20, %cst_13 [1] : vector<8x384xf32> to vector<8xf32>
    %22 = vector.shape_cast %21 : vector<8xf32> to vector<8x1xf32>
    %cst_14 = arith.constant 3.840000e+02 : f32
    %23 = vector.broadcast %cst_14 : f32 to vector<8x1xf32>
    %24 = arith.divf %22, %23 : vector<8x1xf32>
    %cst_15 = arith.constant 9.99999974E-6 : f32
    %25 = vector.broadcast %cst_15 : f32 to vector<8x1xf32>
    %26 = arith.addf %24, %25 : vector<8x1xf32>
    %27 = math.rsqrt %26 : vector<8x1xf32>
    %28 = vector.broadcast %27 : vector<8x1xf32> to vector<8x384xf32>
    %29 = arith.mulf %19, %28 : vector<8x384xf32>
    %c0_16 = arith.constant 0 : index
    %c0_17 = arith.constant 0 : index
    %30 = vector.load %arg6[%c0_16, %c0_17] : memref<1x384xf32, #tpu.memory_space<vmem>>, vector<1x384xf32>
    %31 = vector.broadcast %30 : vector<1x384xf32> to vector<8x384xf32>
    %32 = arith.mulf %29, %31 : vector<8x384xf32>
    %c0_18 = arith.constant 0 : index
    %c0_19 = arith.constant 0 : index
    %33 = vector.load %arg7[%c0_18, %c0_19] : memref<1x384xf32, #tpu.memory_space<vmem>>, vector<1x384xf32>
    %34 = vector.broadcast %33 : vector<1x384xf32> to vector<8x384xf32>
    %35 = arith.addf %32, %34 : vector<8x384xf32>
    %c0_20 = arith.constant 0 : index
    %c0_21 = arith.constant 0 : index
    %36 = vector.load %arg8[%c0_20, %c0_21] : memref<8x384xf32, #tpu.memory_space<vmem>>, vector<8x384xf32>
    tpu.vector_store %arg8[%c0_20, %c0_21], %35 {strides = array<i32>} : memref<8x384xf32, #tpu.memory_space<vmem>>, vector<8x384xf32>,
    return
  }
  func.func @transform_0(%arg0: i32) -> (i32, i32) {
    %c0_i32 = arith.constant 0 : i32
    %c0_i32_0 = arith.constant 0 : i32
    return %arg0, %c0_i32 : i32, i32
  }
  func.func @transform_1(%arg0: i32) -> (i32, i32) {
    %c0_i32 = arith.constant 0 : i32
    %c0_i32_0 = arith.constant 0 : i32
    %c0_i32_1 = arith.constant 0 : i32
    return %c0_i32, %c0_i32_0 : i32, i32
  }
  func.func @transform_2(%arg0: i32) -> (i32, i32) {
    %c0_i32 = arith.constant 0 : i32
    %c0_i32_0 = arith.constant 0 : i32
    %c0_i32_1 = arith.constant 0 : i32
    return %c0_i32, %c0_i32_0 : i32, i32
  }
  func.func @transform_3(%arg0: i32) -> (i32, i32) {
    %c0_i32 = arith.constant 0 : i32
    %c0_i32_0 = arith.constant 0 : i32
    %c0_i32_1 = arith.constant 0 : i32
    return %c0_i32, %c0_i32_0 : i32, i32
  }
  func.func @transform_4(%arg0: i32) -> (i32, i32) {
    %c0_i32 = arith.constant 0 : i32
    %c0_i32_0 = arith.constant 0 : i32
    %c0_i32_1 = arith.constant 0 : i32
    return %c0_i32, %c0_i32_0 : i32, i32
  }
  func.func @transform_5(%arg0: i32) -> (i32, i32) {
    %c0_i32 = arith.constant 0 : i32
    %c0_i32_0 = arith.constant 0 : i32
    %c0_i32_1 = arith.constant 0 : i32
    return %c0_i32, %c0_i32_0 : i32, i32
  }
  func.func @transform_6(%arg0: i32) -> (i32, i32) {
    %c0_i32 = arith.constant 0 : i32
    %c0_i32_0 = arith.constant 0 : i32
    %c0_i32_1 = arith.constant 0 : i32
    return %c0_i32, %c0_i32_0 : i32, i32
  }
  func.func @transform_7(%arg0: i32) -> (i32, i32) {
    %c0_i32 = arith.constant 0 : i32
    %c0_i32_0 = arith.constant 0 : i32
    return %arg0, %c0_i32 : i32, i32
  }
}

</mosaic_0001>

<llo_original>
// kernel: transformer_forward.14
$region0: #{transformer_forward.14}
  #allocation0 [shape = 'u32[]', space=smem, size = 0x4, offset = 0x4, fixed_abs, tag = 'smem constant byte address 0x4 - core index']
  #allocation1 [shape = 'u32[72,128]{1,0:T(1,128)}', space=vmem, size = 0x9000, scoped, tag = 'internal scratch']
  %s0 = inlined_call_operand.hbm [shape: f32[2,8,124], index: 0, kind: input, shape index: {}]
  %s1 = inlined_call_operand.hbm [shape: f32[124,384], index: 1, kind: input, shape index: {}]
  %s2 = inlined_call_operand.hbm [shape: f32[1,384], index: 2, kind: input, shape index: {}]
  %s3 = inlined_call_operand.hbm [shape: f32[5000,1,384], index: 3, kind: input, shape index: {}]
  %s4 = inlined_call_operand.vmem [shape: f32[2,8,384], index: 4, kind: output, shape index: {}]
  %s5 = sld [smem:[#allocation0]]
  $region65: #{transformer_forward.14} parent=0
    _
  %s7 = ssub.s32 1, %s5
  %s8 = scalar_select 0, %s7, %s5
  $region1: #{transformer_forward.14} parent=0
    #allocation2 [shape = 'u8[8192]{0}', space=vmem, size = 0x2000, scoped, tag = 'input window, operand 0']
    #allocation3 [shape = 's32[2]{0}', space=sflag, size = 0x8, scoped, tag = 'scoped memory for transformer_forward.14']
    #allocation4 [shape = 'u8[196608]{0}', space=vmem, size = 0x30000, scoped, tag = 'input window, operand 1, single buffered']
    #allocation5 [shape = 's32[1]{0}', space=sflag, size = 0x4, scoped, tag = 'scoped memory for transformer_forward.14']
    #allocation6 [shape = 'u8[1536]{0}', space=vmem, size = 0x800, scoped, tag = 'input window, operand 2, single buffered']
    #allocation7 [shape = 'u8[3072]{0}', space=vmem, size = 0xc00, scoped, tag = 'input window, operand 3']
    #allocation8 [shape = 's32[2]{0}', space=sflag, size = 0x8, scoped, tag = 'scoped memory for transformer_forward.14']
    %9 = vsyncpa [#allocation3], 0
    %s10 = scalar_lea.sflag [#allocation3], 1
    %11 = vsyncpa %s10, 0
    %12 = vsyncpa [#allocation5], 0
    %13 = vsyncpa [#allocation8], 0
    %s14 = scalar_lea.sflag [#allocation8], 1
    %15 = vsyncpa %s14, 0
    loop: start=0, step=1, limit=4
    $region2: #{transformer_forward.14} parent=1 // loop_pre_header
      _
    $region3: #{transformer_forward.14} parent=1 // loop_header
      %s17 = sphi 0, %s21
      %p18 = scmp.ge.s32.totalorder %s17, 4
      %s27 = sphi 0, %s29
      %s30 = sphi 0, %s27
      %s31 = sphi 0, %s30
      %s47 = sphi 0, %s31
      %s51 = sphi 0, %s51
      %s53 = sphi 0, %s51
      %s54 = sphi 0, %s53
      %s68 = sphi 0, %s54
      %s72 = sphi 0, %s72
      %s74 = sphi 0, %s72
      %s75 = sphi 0, %s74
      %s89 = sphi 0, %s75
      %s95 = sphi 0, %s97
      %s98 = sphi 0, %s95
      %s99 = sphi 0, %s98
      %s115 = sphi 0, %s99
      %s121 = sphi 0, %s123
      %s124 = sphi 0, %s121
      %s125 = sphi 0, %s124
      %s141 = sphi 0, %s125
    $region4: #{transformer_forward.14} parent=1 // loop_header_branch
      %20 = sbr.rel (%p18) target = $region8
    $region5: #{transformer_forward.14} parent=1 // loop_body
      %s22 = ssub.s32 %s17, 1
      %s23 = ssub.s32 %s17, 2
      %s24 = sadd.s32 %s17, 1
      %s25 = ssub.s32 %s17, %s24
      %p26 = scmp.eq.s32.totalorder %s25, 0
      %s28 = sadd.s32 %s27, 1
      %s29 = scalar_select %p26, %s27, %s28
      %p32 = pneg %p26
      %p33 = scmp.eq.s32.totalorder %s17, 1
      %p34 = por %p32, %p33
      %p35 = scmp.ne.s32.totalorder %s27, %s30
      %p36 = scmp.eq.s32.totalorder %s17, 0
      %p37 = por %p35, %p36
      %p38 = scmp.ne.s32.totalorder %s27, %s30
      %p39 = scmp.eq.s32.totalorder %s22, 1
      %p40 = por %p38, %p39
      %p41 = scmp.ne.s32.totalorder %s30, %s31
      %p42 = scmp.eq.s32.totalorder %s22, 0
      %p43 = por %p41, %p42
      %p44 = scmp.ne.s32.totalorder %s30, %s31
      %p45 = scmp.eq.s32.totalorder %s23, 1
      %p46 = por %p44, %p45
      %p48 = scmp.ne.s32.totalorder %s31, %s47
      %p49 = scmp.eq.s32.totalorder %s23, 0
      %p50 = por %p48, %p49
      %s52 = sadd.s32 %s51, 1
      %p55 = scmp.eq.s32.totalorder %s17, 1
      %p56 = scmp.ne.s32.totalorder %s51, %s53
      %p57 = scmp.eq.s32.totalorder %s17, 0
      %p58 = por %p56, %p57
      %p59 = scmp.ne.s32.totalorder %s51, %s53
      %p60 = scmp.eq.s32.totalorder %s22, 1
      %p61 = por %p59, %p60
      %p62 = scmp.ne.s32.totalorder %s53, %s54
      %p63 = scmp.eq.s32.totalorder %s22, 0
      %p64 = por %p62, %p63
      %p65 = scmp.ne.s32.totalorder %s53, %s54
      %p66 = scmp.eq.s32.totalorder %s23, 1
      %p67 = por %p65, %p66
      %p69 = scmp.ne.s32.totalorder %s54, %s68
      %p70 = scmp.eq.s32.totalorder %s23, 0
      %p71 = por %p69, %p70
      %s73 = sadd.s32 %s72, 1
      %p76 = scmp.eq.s32.totalorder %s17, 1
      %p77 = scmp.ne.s32.totalorder %s72, %s74
      %p78 = scmp.eq.s32.totalorder %s17, 0
      %p79 = por %p77, %p78
      %p80 = scmp.ne.s32.totalorder %s72, %s74
      %p81 = scmp.eq.s32.totalorder %s22, 1
      %p82 = por %p80, %p81
      %p83 = scmp.ne.s32.totalorder %s74, %s75
      %p84 = scmp.eq.s32.totalorder %s22, 0
      %p85 = por %p83, %p84
      %p86 = scmp.ne.s32.totalorder %s74, %s75
      %p87 = scmp.eq.s32.totalorder %s23, 1
      %p88 = por %p86, %p87
      %p90 = scmp.ne.s32.totalorder %s75, %s89
      %p91 = scmp.eq.s32.totalorder %s23, 0
      %p92 = por %p90, %p91
      %s93 = ssub.s32 %s17, %s24
      %p94 = scmp.eq.s32.totalorder %s93, 0
      %s96 = sadd.s32 %s95, 1
      %s97 = scalar_select %p94, %s95, %s96
      %p100 = pneg %p94
      %p101 = scmp.eq.s32.totalorder %s17, 1
      %p102 = por %p100, %p101
      %p103 = scmp.ne.s32.totalorder %s95, %s98
      %p104 = scmp.eq.s32.totalorder %s17, 0
      %p105 = por %p103, %p104
      %p106 = scmp.ne.s32.totalorder %s95, %s98
      %p107 = scmp.eq.s32.totalorder %s22, 1
      %p108 = por %p106, %p107
      %p109 = scmp.ne.s32.totalorder %s98, %s99
      %p110 = scmp.eq.s32.totalorder %s22, 0
      %p111 = por %p109, %p110
      %p112 = scmp.ne.s32.totalorder %s98, %s99
      %p113 = scmp.eq.s32.totalorder %s23, 1
      %p114 = por %p112, %p113
      %p116 = scmp.ne.s32.totalorder %s99, %s115
      %p117 = scmp.eq.s32.totalorder %s23, 0
      %p118 = por %p116, %p117
      %s119 = ssub.s32 %s17, %s24
      %p120 = scmp.eq.s32.totalorder %s119, 0
      %s122 = sadd.s32 %s121, 1
      %s123 = scalar_select %p120, %s121, %s122
      %p126 = pneg %p120
      %p127 = scmp.eq.s32.totalorder %s17, 1
      %p128 = por %p126, %p127
      %p129 = scmp.ne.s32.totalorder %s121, %s124
      %p130 = scmp.eq.s32.totalorder %s17, 0
      %p131 = por %p129, %p130
      %p132 = scmp.ne.s32.totalorder %s121, %s124
      %p133 = scmp.eq.s32.totalorder %s22, 1
      %p134 = por %p132, %p133
      %p135 = scmp.ne.s32.totalorder %s124, %s125
      %p136 = scmp.eq.s32.totalorder %s22, 0
      %p137 = por %p135, %p136
      %p138 = scmp.ne.s32.totalorder %s124, %s125
      %p139 = scmp.eq.s32.totalorder %s23, 1
      %p140 = por %p138, %p139
      %p142 = scmp.ne.s32.totalorder %s125, %s141
      %p143 = scmp.eq.s32.totalorder %s23, 0
      %p144 = por %p142, %p143
      %p145 = scmp.le.s32.totalorder 1, %s17
      %p146 = scmp.lt.s32.totalorder %s17, 3
      %p147 = pnand %p145, %p146
      %p148 = pneg %p147
      // Predicated region
      $region9: #{transformer_forward.14} parent=5 // pred_check
        _
      $region10: #{transformer_forward.14} parent=5 // pred_check_branch
        %150 = sbr.rel (%p147) target = $region12
      $region11: #{transformer_forward.14} parent=5 // pred_region
        %s151 = ssub.s32 %s17, 1
        // Predicated region
        $region13: #{transformer_forward.14} parent=11 // pred_check
          %p152 = pneg %p64
        $region14: #{transformer_forward.14} parent=11 // pred_check_branch
          %154 = sbr.rel (%p152) target = $region16
        $region15: #{transformer_forward.14} parent=11 // pred_region
          %156 = vsyncadd [#allocation5], 0
          %s157 = sshll.u32 %s1, 4
          %s158 = int_to_ptr.hbm [resolvable:$true] %s157
          %s159 = sshll.u32 [#allocation4], 4
          %s160 = int_to_ptr.vmem [resolvable:$true] %s159
          %165 = dma.hbm_to_vmem [thread:$0]  %s158, 6144, %s160, [#allocation5], 384, 384, 24
        $region16: #{transformer_forward.14} parent=11 // pred_fallthru
          _
        // Predicated region
        $region17: #{transformer_forward.14} parent=11 // pred_check
          %p166 = pneg %p85
        $region18: #{transformer_forward.14} parent=11 // pred_check_branch
          %168 = sbr.rel (%p166) target = $region20
        $region19: #{transformer_forward.14} parent=11 // pred_region
          %170 = vsyncadd [#allocation5], 0
          %s172 = sshll.u32 %s2, 4
          %s173 = int_to_ptr.hbm [resolvable:$true] %s172
          %s174 = sshll.u32 [#allocation6], 4
          %s175 = int_to_ptr.vmem [resolvable:$true] %s174
          %177 = dma.hbm_to_vmem [thread:$0]  %s173, 48, %s175, [#allocation5]
        $region20: #{transformer_forward.14} parent=11 // pred_fallthru
          _
      $region12: #{transformer_forward.14} parent=5 // pred_fallthru
        _
      %p178 = scmp.lt.s32.totalorder %s17, 2
      // Predicated region
      $region21: #{transformer_forward.14} parent=5 // pred_check
        %p179 = pneg %p178
      $region22: #{transformer_forward.14} parent=5 // pred_check_branch
        %181 = sbr.rel (%p179) target = $region24
      $region23: #{transformer_forward.14} parent=5 // pred_region
        // Predicated region
        $region25: #{transformer_forward.14} parent=23 // pred_check
          %p182 = pneg %p37
        $region26: #{transformer_forward.14} parent=23 // pred_check_branch
          %184 = sbr.rel (%p182) target = $region28
        $region27: #{transformer_forward.14} parent=23 // pred_region
          %s185 = sand.u32 %s27, 1
          %s186 = scalar_lea.sflag [#allocation3], %s185
          %s187 = sand.u32 %s27, 1
          %s188 = smul.addr %s187, 8
          %s189 = scalar_lea.vmem [#allocation2], %s188
          %191 = vsyncadd %s186, 0
          %s192 = smul.addr %s17, 8
          %s193 = scalar_lea.hbm %s0, %s192
          %s195 = sshll.u32 %s193, 4
          %s196 = int_to_ptr.hbm [resolvable:$true] %s195
          %s197 = sshll.u32 %s189, 4
          %s198 = int_to_ptr.vmem [resolvable:$true] %s197
          %200 = dma.hbm_to_vmem [thread:$0]  %s196, 128, %s198, %s186
        $region28: #{transformer_forward.14} parent=23 // pred_fallthru
          _
        // Predicated region
        $region29: #{transformer_forward.14} parent=23 // pred_check
          %p201 = pneg %p105
        $region30: #{transformer_forward.14} parent=23 // pred_check_branch
          %203 = sbr.rel (%p201) target = $region32
        $region31: #{transformer_forward.14} parent=23 // pred_region
          %s204 = sand.u32 %s95, 1
          %s205 = scalar_lea.sflag [#allocation8], %s204
          %s206 = sand.u32 %s95, 1
          %s207 = smul.addr %s206, 3
          %s208 = scalar_lea.vmem [#allocation7], %s207
          %210 = vsyncadd %s205, 0
          %s211 = smul.addr %s17, 3
          %s212 = scalar_lea.hbm %s3, %s211
          %s214 = sshll.u32 %s212, 4
          %s215 = int_to_ptr.hbm [resolvable:$true] %s214
          %s216 = sshll.u32 %s208, 4
          %s217 = int_to_ptr.vmem [resolvable:$true] %s216
          %219 = dma.hbm_to_vmem [thread:$0]  %s215, 48, %s217, %s205
        $region32: #{transformer_forward.14} parent=23 // pred_fallthru
          _
      $region24: #{transformer_forward.14} parent=5 // pred_fallthru
        _
      %p220 = scmp.le.s32.totalorder 1, %s17
      %p221 = scmp.lt.s32.totalorder %s17, 3
      %p222 = pnand %p220, %p221
      %p223 = pneg %p222
      // Predicated region
      $region33: #{transformer_forward.14} parent=5 // pred_check
        _
      $region34: #{transformer_forward.14} parent=5 // pred_check_branch
        %225 = sbr.rel (%p222) target = $region36
      $region35: #{transformer_forward.14} parent=5 // pred_region
        %s226 = ssub.s32 %s17, 1
        %s227 = sand.u32 %s30, 1
        %s228 = scalar_lea.sflag [#allocation3], %s227
        %s229 = sand.u32 %s30, 1
        %s230 = smul.addr %s229, 8
        %s231 = scalar_lea.vmem [#allocation2], %s230
        // Predicated region
        $region37: #{transformer_forward.14} parent=35 // pred_check
          %p232 = pneg %p43
        $region38: #{transformer_forward.14} parent=35 // pred_check_branch
          %234 = sbr.rel (%p232) target = $region40
        $region39: #{transformer_forward.14} parent=35 // pred_region
          %236 = dma.done %s228, 128
        $region40: #{transformer_forward.14} parent=35 // pred_fallthru
          _
        // Predicated region
        $region41: #{transformer_forward.14} parent=35 // pred_check
          %p237 = pneg %p64
        $region42: #{transformer_forward.14} parent=35 // pred_check_branch
          %239 = sbr.rel (%p237) target = $region44
        $region43: #{transformer_forward.14} parent=35 // pred_region
          %241 = dma.done [#allocation5], 6144
        $region44: #{transformer_forward.14} parent=35 // pred_fallthru
          _
        // Predicated region
        $region45: #{transformer_forward.14} parent=35 // pred_check
          %p242 = pneg %p85
        $region46: #{transformer_forward.14} parent=35 // pred_check_branch
          %244 = sbr.rel (%p242) target = $region48
        $region47: #{transformer_forward.14} parent=35 // pred_region
          %246 = dma.done [#allocation5], 48
        $region48: #{transformer_forward.14} parent=35 // pred_fallthru
          _
        %s247 = sand.u32 %s98, 1
        %s248 = scalar_lea.sflag [#allocation8], %s247
        %s249 = sand.u32 %s98, 1
        %s250 = smul.addr %s249, 3
        %s251 = scalar_lea.vmem [#allocation7], %s250
        // Predicated region
        $region49: #{transformer_forward.14} parent=35 // pred_check
          %p252 = pneg %p111
        $region50: #{transformer_forward.14} parent=35 // pred_check_branch
          %254 = sbr.rel (%p252) target = $region52
        $region51: #{transformer_forward.14} parent=35 // pred_region
          %256 = dma.done %s248, 48
        $region52: #{transformer_forward.14} parent=35 // pred_fallthru
          _
        %s257 = sand.u32 %s30, 1
        %s258 = scalar_lea.sflag [#allocation3], %s257
        %s259 = sand.u32 %s30, 1
        %s260 = smul.addr %s259, 8
        %s261 = scalar_lea.vmem [#allocation2], %s260
        %p262 = pneg %p43
        %p263 = pneg %p40
        %p264 = pneg %p64
        %p265 = pneg %p61
        %p266 = pneg %p85
        %p267 = pneg %p82
        %s268 = sand.u32 %s98, 1
        %s269 = scalar_lea.sflag [#allocation8], %s268
        %s270 = sand.u32 %s98, 1
        %s271 = smul.addr %s270, 3
        %s272 = scalar_lea.vmem [#allocation7], %s271
        %p273 = pneg %p111
        %p274 = pneg %p108
        %p275 = pneg %p137
        %p276 = pneg %p134
        %p277 = scmp.lt.s32.totalorder %s22, 1
        %s278 = scalar_select %p277, %s22, 1
        %s279 = smul.addr %s278, 3
        %s280 = smul.addr %s279, 8
        %s281 = scalar_lea.vmem %s4, %s280
        %p282 = scmp.lt.s32.totalorder %s22, 1
        %s283 = scalar_select %p282, %s22, 1
        %s284 = smul.addr %s283, 3
        %s285 = smul.addr %s284, 8
        %s286 = scalar_lea.vmem %s4, %s285
        %v287 = vld [vmem:[%s231] sm:$0xff]
        %v288 = vld [vmem:[#allocation4] sm:$0xff]
        %v289 = vld [vmem:[#allocation4 + $0x8] sm:$0xff]
        %v290 = vld [vmem:[#allocation4 + $0x10] sm:$0xff]
        %v291 = vld [vmem:[#allocation4 + $0x18] sm:$0xff]
        %v292 = vld [vmem:[#allocation4 + $0x20] sm:$0xff]
        %v293 = vld [vmem:[#allocation4 + $0x28] sm:$0xff]
        %v294 = vld [vmem:[#allocation4 + $0x30] sm:$0xff]
        %v295 = vld [vmem:[#allocation4 + $0x38] sm:$0xff]
        %v296 = vld [vmem:[#allocation4 + $0x40] sm:$0xff]
        %v297 = vld [vmem:[#allocation4 + $0x48] sm:$0xff]
        %v298 = vld [vmem:[#allocation4 + $0x50] sm:$0xff]
        %v299 = vld [vmem:[#allocation4 + $0x58] sm:$0xff]
        %v300 = vld [vmem:[#allocation4 + $0x60] sm:$0xff]
        %v301 = vld [vmem:[#allocation4 + $0x68] sm:$0xff]
        %v302 = vld [vmem:[#allocation4 + $0x70] sm:$0xff]
        %v303 = vld [vmem:[#allocation4 + $0x78] sm:$0xff]
        %v304 = vld [vmem:[#allocation4 + $0x80] sm:$0xff]
        %v305 = vld [vmem:[#allocation4 + $0x88] sm:$0xff]
        %v306 = vld [vmem:[#allocation4 + $0x90] sm:$0xff]
        %v307 = vld [vmem:[#allocation4 + $0x98] sm:$0xff]
        %v308 = vld [vmem:[#allocation4 + $0xa0] sm:$0xff]
        %v309 = vld [vmem:[#allocation4 + $0xa8] sm:$0xff]
        %v310 = vld [vmem:[#allocation4 + $0xb0] sm:$0xff]
        %v311 = vld [vmem:[#allocation4 + $0xb8] sm:$0xff]
        %v312 = vld [vmem:[#allocation4 + $0xc0] sm:$0xff]
        %v313 = vld [vmem:[#allocation4 + $0xc8] sm:$0xff]
        %v314 = vld [vmem:[#allocation4 + $0xd0] sm:$0xff]
        %v315 = vld [vmem:[#allocation4 + $0xd8] sm:$0xff]
        %v316 = vld [vmem:[#allocation4 + $0xe0] sm:$0xff]
        %v317 = vld [vmem:[#allocation4 + $0xe8] sm:$0xff]
        %v318 = vld [vmem:[#allocation4 + $0xf0] sm:$0xff]
        %v319 = vld [vmem:[#allocation4 + $0xf8] sm:$0xff]
        %v320 = vld [vmem:[#allocation4 + $0x100] sm:$0xff]
        %v321 = vld [vmem:[#allocation4 + $0x108] sm:$0xff]
        %v322 = vld [vmem:[#allocation4 + $0x110] sm:$0xff]
        %v323 = vld [vmem:[#allocation4 + $0x118] sm:$0xff]
        %v324 = vld [vmem:[#allocation4 + $0x120] sm:$0xff]
        %v325 = vld [vmem:[#allocation4 + $0x128] sm:$0xff]
        %v326 = vld [vmem:[#allocation4 + $0x130] sm:$0xff]
        %v327 = vld [vmem:[#allocation4 + $0x138] sm:$0xff]
        %v328 = vld [vmem:[#allocation4 + $0x140] sm:$0xff]
        %v329 = vld [vmem:[#allocation4 + $0x148] sm:$0xff]
        %v330 = vld [vmem:[#allocation4 + $0x150] sm:$0xff]
        %v331 = vld [vmem:[#allocation4 + $0x158] sm:$0xff]
        %v332 = vld [vmem:[#allocation4 + $0x160] sm:$0xff]
        %v333 = vld [vmem:[#allocation4 + $0x168] sm:$0xf]
        %v334 = vld [vmem:[#allocation4 + $0x170] sm:$0xf]
        %v335 = vld [vmem:[#allocation4 + $0x178] sm:$0xf]
        %v336 = vld [vmem:[#allocation6] sm:$0x7]
        %v338 = vperm.slane %v336, 0
        %v339 = vperm.slane %v336, 1
        %v340 = vperm.slane %v336, 2
        %vm344 = vcmask 1014784
        %v346 = vsel %vm344, %v287, 0
        %vm348 = vcmask 1043456
        %v350 = vsel %vm348, %v333, 0
        %v353 = vsel %vm348, %v334, 0
        %v356 = vsel %vm348, %v335, 0
        %358 = vmatpush.msra.mxu0 %v350
        %359 = vmatpush.msra.mxu0 %v330
        %360 = vmatpush.msra.mxu0 %v327
        %361 = vmatpush.msra.mxu0 %v324
        %362 = vmatpush.msra.mxu0 %v321
        %363 = vmatpush.msra.mxu0 %v318
        %364 = vmatpush.msra.mxu0 %v315
        %365 = vmatpush.msra.mxu0 %v312
        %366 = vmatpush.msra.mxu0 %v309
        %367 = vmatpush.msra.mxu0 %v306
        %368 = vmatpush.msra.mxu0 %v303
        %369 = vmatpush.msra.mxu0 %v300
        %370 = vmatpush.msra.mxu0 %v297
        %371 = vmatpush.msra.mxu0 %v294
        %372 = vmatpush.msra.mxu0 %v291
        %373 = vmatpush.msra.mxu0 %v288
        %374 = vmatmul.f32.gmra.mxu0 %v346
        %v375 = vpop.f32.mrf.mxu0
        %v376 = vadd.f32 %v338, %v375
        %377 = vdwg.mxu0
        %378 = vmatpush.msra.mxu0 %v353
        %379 = vmatpush.msra.mxu0 %v331
        %380 = vmatpush.msra.mxu0 %v328
        %381 = vmatpush.msra.mxu0 %v325
        %382 = vmatpush.msra.mxu0 %v322
        %383 = vmatpush.msra.mxu0 %v319
        %384 = vmatpush.msra.mxu0 %v316
        %385 = vmatpush.msra.mxu0 %v313
        %386 = vmatpush.msra.mxu0 %v310
        %387 = vmatpush.msra.mxu0 %v307
        %388 = vmatpush.msra.mxu0 %v304
        %389 = vmatpush.msra.mxu0 %v301
        %390 = vmatpush.msra.mxu0 %v298
        %391 = vmatpush.msra.mxu0 %v295
        %392 = vmatpush.msra.mxu0 %v292
        %393 = vmatpush.msra.mxu0 %v289
        %394 = vmatmul.f32.gmra.mxu0 %v346
        %v395 = vpop.f32.mrf.mxu0
        %v396 = vadd.f32 %v339, %v395
        %397 = vdwg.mxu0
        %398 = vmatpush.msra.mxu0 %v356
        %399 = vmatpush.msra.mxu0 %v332
        %400 = vmatpush.msra.mxu0 %v329
        %401 = vmatpush.msra.mxu0 %v326
        %402 = vmatpush.msra.mxu0 %v323
        %403 = vmatpush.msra.mxu0 %v320
        %404 = vmatpush.msra.mxu0 %v317
        %405 = vmatpush.msra.mxu0 %v314
        %406 = vmatpush.msra.mxu0 %v311
        %407 = vmatpush.msra.mxu0 %v308
        %408 = vmatpush.msra.mxu0 %v305
        %409 = vmatpush.msra.mxu0 %v302
        %410 = vmatpush.msra.mxu0 %v299
        %411 = vmatpush.msra.mxu0 %v296
        %412 = vmatpush.msra.mxu0 %v293
        %413 = vmatpush.msra.mxu0 %v290
        %414 = vmatmul.f32.gmra.mxu0 %v346
        %v415 = vpop.f32.mrf.mxu0
        %v416 = vadd.f32 %v340, %v415
        %417 = vdwg.mxu0
        %v418 = vld [vmem:[%s251] sm:$0x7]
        %v420 = vperm.slane %v418, 0
        %v421 = vperm.slane %v418, 1
        %v422 = vperm.slane %v418, 2
        %v426 = vadd.f32 %v376, %v420
        %v427 = vadd.f32 %v396, %v421
        %v428 = vadd.f32 %v416, %v422
        %429 = vst [vmem:[%s286] sm:$0xff] %v426
        %430 = vst [vmem:[%s286 + $0x8] sm:$0xff] %v427
        %431 = vst [vmem:[%s286 + $0x10] sm:$0xff] %v428
        %p432 = scmp.lt.s32.totalorder %s22, 1
        %s433 = scalar_select %p432, %s22, 1
        %s434 = smul.addr %s433, 3
        %s435 = smul.addr %s434, 8
        %s436 = scalar_lea.vmem %s4, %s435
        // Predicated region
        $region53: #{transformer_forward.14} parent=35 // pred_check
          %p437 = pneg %p134
        $region54: #{transformer_forward.14} parent=35 // pred_check_branch
          %439 = sbr.rel (%p437) target = $region56
        $region55: #{transformer_forward.14} parent=35 // pred_region
          _
        $region56: #{transformer_forward.14} parent=35 // pred_fallthru
          _
      $region36: #{transformer_forward.14} parent=5 // pred_fallthru
        _
      %p440 = scmp.le.s32.totalorder 2, %s17
      // Predicated region
      $region57: #{transformer_forward.14} parent=5 // pred_check
        %p441 = pneg %p440
      $region58: #{transformer_forward.14} parent=5 // pred_check_branch
        %443 = sbr.rel (%p441) target = $region60
      $region59: #{transformer_forward.14} parent=5 // pred_region
        %s444 = ssub.s32 %s17, 2
        // Predicated region
        $region61: #{transformer_forward.14} parent=59 // pred_check
          %p445 = pneg %p140
        $region62: #{transformer_forward.14} parent=59 // pred_check_branch
          %447 = sbr.rel (%p445) target = $region64
        $region63: #{transformer_forward.14} parent=59 // pred_region
          %p448 = scmp.lt.s32.totalorder %s23, 1
          %s449 = scalar_select %p448, %s23, 1
          %s450 = smul.addr %s449, 3
          %s451 = smul.addr %s450, 8
          %s452 = scalar_lea.vmem %s4, %s451
        $region64: #{transformer_forward.14} parent=59 // pred_fallthru
          _
      $region60: #{transformer_forward.14} parent=5 // pred_fallthru
        _
    $region6: #{transformer_forward.14} parent=1 // loop_footer
      %s21 = sadd.s32 1, %s17
    $region7: #{transformer_forward.14} parent=1 // loop_footer_branch
      %16 = sbr.rel target = $region3
    $region8: #{transformer_forward.14} parent=1 // loop_exit
      _
    %453 = vsyncpa [#allocation3], 1
    %s454 = scalar_lea.sflag [#allocation3], 1
    %455 = vsyncpa %s454, 1
    %456 = vsyncpa [#allocation5], 1
    %457 = vsyncpa [#allocation8], 1
    %s458 = scalar_lea.sflag [#allocation8], 1
    %459 = vsyncpa %s458, 1

// kernel: transformer_forward.27
$region0: #{transformer_forward.27}
  #allocation0 [shape = 'u32[]', space=smem, size = 0x4, offset = 0x4, fixed_abs, tag = 'smem constant byte address 0x4 - core index']
  #allocation1 [shape = 'u32[72,128]{1,0:T(1,128)}', space=vmem, size = 0x9000, scoped, tag = 'internal scratch']
  #allocation2 [shape = 'f32[8,128]{1,0:T(8,128)}', space=vmem, size = 0x1000, scoped, tag = 'scratch operand']
  %s0 = inlined_call_operand.vmem [shape: f32[16,384], index: 0, kind: input, shape index: {}]
  %s1 = inlined_call_operand.hbm [shape: f32[384,128], index: 1, kind: input, shape index: {}]
  %s2 = inlined_call_operand.hbm [shape: f32[1,128], index: 2, kind: input, shape index: {}]
  %s3 = inlined_call_operand.hbm [shape: f32[16,128], index: 3, kind: output, shape index: {}]
  %s4 = sld [smem:[#allocation0]]
  $region61: #{transformer_forward.27} parent=0
    _
  %s6 = ssub.s32 1, %s4
  %s7 = scalar_select 0, %s6, %s4
  $region1: #{transformer_forward.27} parent=0
    #allocation3 [shape = 'u8[196608]{0}', space=vmem, size = 0x30000, scoped, tag = 'input window, operand 1, single buffered']
    #allocation4 [shape = 's32[2]{0}', space=sflag, size = 0x8, scoped, tag = 'scoped memory for transformer_forward.27']
    #allocation5 [shape = 's32[2]{0}', space=sflag, size = 0x8, scoped, tag = 'scoped memory for transformer_forward.27']
    #allocation6 [shape = 'u8[512]{0}', space=vmem, size = 0x400, scoped, tag = 'input window, operand 2, single buffered']
    #allocation7 [shape = 's32[1]{0}', space=sflag, size = 0x4, scoped, tag = 'scoped memory for transformer_forward.27']
    #allocation8 [shape = 'u8[8192]{0}', space=vmem, size = 0x2000, scoped, tag = 'output window, operand 0']
    %8 = vsyncpa [#allocation4], 0
    %9 = vsyncpa [#allocation7], 0
    %10 = vsyncpa [#allocation5], 0
    %s11 = scalar_lea.sflag [#allocation5], 1
    %12 = vsyncpa %s11, 0
    loop: start=0, step=1, limit=4
    $region2: #{transformer_forward.27} parent=1 // loop_pre_header
      _
    $region3: #{transformer_forward.27} parent=1 // loop_header
      %s14 = sphi 0, %s18
      %p15 = scmp.ge.s32.totalorder %s14, 4
      %s21 = sphi 0, %s40
      %s22 = sphi 0, %s36
      %s23 = sphi 0, %s32
      %s24 = sphi 0, %s21
      %s25 = sphi 0, %s22
      %s26 = sphi 0, %s23
      %s27 = sphi 0, %s24
      %s28 = sphi 0, %s25
      %s29 = sphi 0, %s26
      %s45 = sphi 0, %s47
      %s48 = sphi 0, %s45
      %s49 = sphi 0, %s48
      %s65 = sphi 0, %s49
      %s73 = sphi 0, %s75
      %s76 = sphi 0, %s73
      %s77 = sphi 0, %s76
      %s93 = sphi 0, %s77
      %s99 = sphi 0, %s101
      %s102 = sphi 0, %s99
      %s103 = sphi 0, %s102
      %s119 = sphi 0, %s103
      %s127 = sphi 0, %s129
      %s130 = sphi 0, %s127
      %s131 = sphi 0, %s130
      %s147 = sphi 0, %s131
    $region4: #{transformer_forward.27} parent=1 // loop_header_branch
      %17 = sbr.rel (%p15) target = $region8
    $region5: #{transformer_forward.27} parent=1 // loop_body
      %s19 = ssub.s32 %s14, 1
      %s20 = ssub.s32 %s14, 2
      %s30 = sadd.s32 1, %s23
      %p31 = scmp.ge.s32.totalorder %s30, 1
      %s32 = scalar_select %p31, 0, %s30
      %s33 = sadd.s32 1, %s22
      %s34 = scalar_select %p31, %s33, %s22
      %p35 = scmp.ge.s32.totalorder %s34, 1
      %s36 = scalar_select %p35, 0, %s34
      %s37 = sadd.s32 1, %s21
      %s38 = scalar_select %p35, %s37, %s21
      %p39 = scmp.ge.s32.totalorder %s38, 2
      %s40 = scalar_select %p39, 0, %s38
      %s41 = ssub.s32 %s21, %s40
      %s42 = ssub.s32 %s23, %s32
      %s43 = sor.u32 %s41, %s42
      %p44 = scmp.eq.s32.totalorder %s43, 0
      %s46 = sadd.s32 %s45, 1
      %s47 = scalar_select %p44, %s45, %s46
      %p50 = pneg %p44
      %p51 = scmp.eq.s32.totalorder %s14, 1
      %p52 = por %p50, %p51
      %p53 = scmp.ne.s32.totalorder %s45, %s48
      %p54 = scmp.eq.s32.totalorder %s14, 0
      %p55 = por %p53, %p54
      %p56 = scmp.ne.s32.totalorder %s45, %s48
      %p57 = scmp.eq.s32.totalorder %s19, 1
      %p58 = por %p56, %p57
      %p59 = scmp.ne.s32.totalorder %s48, %s49
      %p60 = scmp.eq.s32.totalorder %s19, 0
      %p61 = por %p59, %p60
      %p62 = scmp.ne.s32.totalorder %s48, %s49
      %p63 = scmp.eq.s32.totalorder %s20, 1
      %p64 = por %p62, %p63
      %p66 = scmp.ne.s32.totalorder %s49, %s65
      %p67 = scmp.eq.s32.totalorder %s20, 0
      %p68 = por %p66, %p67
      %s69 = ssub.s32 %s23, %s32
      %s70 = ssub.s32 %s22, %s36
      %s71 = sor.u32 %s69, %s70
      %p72 = scmp.eq.s32.totalorder %s71, 0
      %s74 = sadd.s32 %s73, 1
      %s75 = scalar_select %p72, %s73, %s74
      %p78 = pneg %p72
      %p79 = scmp.eq.s32.totalorder %s14, 1
      %p80 = por %p78, %p79
      %p81 = scmp.ne.s32.totalorder %s73, %s76
      %p82 = scmp.eq.s32.totalorder %s14, 0
      %p83 = por %p81, %p82
      %p84 = scmp.ne.s32.totalorder %s73, %s76
      %p85 = scmp.eq.s32.totalorder %s19, 1
      %p86 = por %p84, %p85
      %p87 = scmp.ne.s32.totalorder %s76, %s77
      %p88 = scmp.eq.s32.totalorder %s19, 0
      %p89 = por %p87, %p88
      %p90 = scmp.ne.s32.totalorder %s76, %s77
      %p91 = scmp.eq.s32.totalorder %s20, 1
      %p92 = por %p90, %p91
      %p94 = scmp.ne.s32.totalorder %s77, %s93
      %p95 = scmp.eq.s32.totalorder %s20, 0
      %p96 = por %p94, %p95
      %s97 = ssub.s32 %s22, %s36
      %p98 = scmp.eq.s32.totalorder %s97, 0
      %s100 = sadd.s32 %s99, 1
      %s101 = scalar_select %p98, %s99, %s100
      %p104 = pneg %p98
      %p105 = scmp.eq.s32.totalorder %s14, 1
      %p106 = por %p104, %p105
      %p107 = scmp.ne.s32.totalorder %s99, %s102
      %p108 = scmp.eq.s32.totalorder %s14, 0
      %p109 = por %p107, %p108
      %p110 = scmp.ne.s32.totalorder %s99, %s102
      %p111 = scmp.eq.s32.totalorder %s19, 1
      %p112 = por %p110, %p111
      %p113 = scmp.ne.s32.totalorder %s102, %s103
      %p114 = scmp.eq.s32.totalorder %s19, 0
      %p115 = por %p113, %p114
      %p116 = scmp.ne.s32.totalorder %s102, %s103
      %p117 = scmp.eq.s32.totalorder %s20, 1
      %p118 = por %p116, %p117
      %p120 = scmp.ne.s32.totalorder %s103, %s119
      %p121 = scmp.eq.s32.totalorder %s20, 0
      %p122 = por %p120, %p121
      %s123 = ssub.s32 %s21, %s40
      %s124 = ssub.s32 %s22, %s36
      %s125 = sor.u32 %s123, %s124
      %p126 = scmp.eq.s32.totalorder %s125, 0
      %s128 = sadd.s32 %s127, 1
      %s129 = scalar_select %p126, %s127, %s128
      %p132 = pneg %p126
      %p133 = scmp.eq.s32.totalorder %s14, 1
      %p134 = por %p132, %p133
      %p135 = scmp.ne.s32.totalorder %s127, %s130
      %p136 = scmp.eq.s32.totalorder %s14, 0
      %p137 = por %p135, %p136
      %p138 = scmp.ne.s32.totalorder %s127, %s130
      %p139 = scmp.eq.s32.totalorder %s19, 1
      %p140 = por %p138, %p139
      %p141 = scmp.ne.s32.totalorder %s130, %s131
      %p142 = scmp.eq.s32.totalorder %s19, 0
      %p143 = por %p141, %p142
      %p144 = scmp.ne.s32.totalorder %s130, %s131
      %p145 = scmp.eq.s32.totalorder %s20, 1
      %p146 = por %p144, %p145
      %p148 = scmp.ne.s32.totalorder %s131, %s147
      %p149 = scmp.eq.s32.totalorder %s20, 0
      %p150 = por %p148, %p149
      %p151 = scmp.le.s32.totalorder 1, %s14
      %p152 = scmp.lt.s32.totalorder %s14, 3
      %p153 = pnand %p151, %p152
      %p154 = pneg %p153
      // Predicated region
      $region9: #{transformer_forward.27} parent=5 // pred_check
        _
      $region10: #{transformer_forward.27} parent=5 // pred_check_branch
        %156 = sbr.rel (%p153) target = $region12
      $region11: #{transformer_forward.27} parent=5 // pred_region
        %s157 = ssub.s32 %s14, 1
        // Predicated region
        $region13: #{transformer_forward.27} parent=11 // pred_check
          %p158 = pneg %p89
        $region14: #{transformer_forward.27} parent=11 // pred_check_branch
          %160 = sbr.rel (%p158) target = $region16
        $region15: #{transformer_forward.27} parent=11 // pred_region
          %s161 = smul.u32 48, %s26
          %163 = vsyncadd [#allocation4], 0
          %s164 = sadd.s32 %s25, %s161
          %s165 = smul.addr %s164, 8
          %s166 = scalar_lea.hbm %s1, %s165
          %s167 = sshll.u32 %s166, 4
          %s168 = int_to_ptr.hbm [resolvable:$true] %s167
          %s169 = sshll.u32 [#allocation3], 4
          %s170 = int_to_ptr.vmem [resolvable:$true] %s169
          %175 = dma.hbm_to_vmem [thread:$0]  %s168, 6144, %s170, [#allocation4], 128, 128, 8
        $region16: #{transformer_forward.27} parent=11 // pred_fallthru
          _
        // Predicated region
        $region17: #{transformer_forward.27} parent=11 // pred_check
          %p176 = pneg %p115
        $region18: #{transformer_forward.27} parent=11 // pred_check_branch
          %178 = sbr.rel (%p176) target = $region20
        $region19: #{transformer_forward.27} parent=11 // pred_region
          %180 = vsyncadd [#allocation7], 0
          %s181 = scalar_lea.hbm %s2, %s25
          %s183 = sshll.u32 %s181, 4
          %s184 = int_to_ptr.hbm [resolvable:$true] %s183
          %s185 = sshll.u32 [#allocation6], 4
          %s186 = int_to_ptr.vmem [resolvable:$true] %s185
          %188 = dma.hbm_to_vmem [thread:$0]  %s184, 16, %s186, [#allocation7]
        $region20: #{transformer_forward.27} parent=11 // pred_fallthru
          _
      $region12: #{transformer_forward.27} parent=5 // pred_fallthru
        _
      %p189 = scmp.lt.s32.totalorder %s14, 2
      // Predicated region
      $region21: #{transformer_forward.27} parent=5 // pred_check
        %p190 = pneg %p189
      $region22: #{transformer_forward.27} parent=5 // pred_check_branch
        %192 = sbr.rel (%p190) target = $region24
      $region23: #{transformer_forward.27} parent=5 // pred_region
        // Predicated region
        $region25: #{transformer_forward.27} parent=23 // pred_check
          %p193 = pneg %p55
        $region26: #{transformer_forward.27} parent=23 // pred_check_branch
          %195 = sbr.rel (%p193) target = $region28
        $region27: #{transformer_forward.27} parent=23 // pred_region
          %s196 = smul.u32 3, %s23
          %p197 = scmp.lt.s32.totalorder %s21, 1
          %s198 = scalar_select %p197, %s21, 1
          %p199 = scmp.lt.s32.totalorder %s196, 2
          %s200 = scalar_select %p199, %s196, 2
          %s201 = smul.addr %s198, 3
          %s202 = sadd.s32 %s200, %s201
          %s203 = smul.addr %s202, 8
          %s204 = scalar_lea.vmem %s0, %s203
          %s205 = smul.u32 3, %s23
        $region28: #{transformer_forward.27} parent=23 // pred_fallthru
          _
      $region24: #{transformer_forward.27} parent=5 // pred_fallthru
        _
      %p206 = scmp.le.s32.totalorder 1, %s14
      %p207 = scmp.lt.s32.totalorder %s14, 3
      %p208 = pnand %p206, %p207
      %p209 = pneg %p208
      // Predicated region
      $region29: #{transformer_forward.27} parent=5 // pred_check
        _
      $region30: #{transformer_forward.27} parent=5 // pred_check_branch
        %211 = sbr.rel (%p208) target = $region32
      $region31: #{transformer_forward.27} parent=5 // pred_region
        %s212 = ssub.s32 %s14, 1
        // Predicated region
        $region33: #{transformer_forward.27} parent=31 // pred_check
          %p213 = pneg %p89
        $region34: #{transformer_forward.27} parent=31 // pred_check_branch
          %215 = sbr.rel (%p213) target = $region36
        $region35: #{transformer_forward.27} parent=31 // pred_region
          %217 = dma.done [#allocation4], 6144
        $region36: #{transformer_forward.27} parent=31 // pred_fallthru
          _
        // Predicated region
        $region37: #{transformer_forward.27} parent=31 // pred_check
          %p218 = pneg %p115
        $region38: #{transformer_forward.27} parent=31 // pred_check_branch
          %220 = sbr.rel (%p218) target = $region40
        $region39: #{transformer_forward.27} parent=31 // pred_region
          %222 = dma.done [#allocation7], 16
        $region40: #{transformer_forward.27} parent=31 // pred_fallthru
          _
        %s223 = smul.u32 3, %s26
        %p224 = scmp.lt.s32.totalorder %s24, 1
        %s225 = scalar_select %p224, %s24, 1
        %p226 = scmp.lt.s32.totalorder %s223, 2
        %s227 = scalar_select %p226, %s223, 2
        %s228 = smul.addr %s225, 3
        %s229 = sadd.s32 %s227, %s228
        %s230 = smul.addr %s229, 8
        %s231 = scalar_lea.vmem %s0, %s230
        %p232 = pneg %p61
        %p233 = pneg %p58
        %p234 = pneg %p89
        %p235 = pneg %p86
        %p236 = pneg %p115
        %p237 = pneg %p112
        %p238 = pneg %p143
        %p239 = pneg %p140
        %s240 = sand.u32 %s130, 1
        %s241 = scalar_lea.sflag [#allocation5], %s240
        %s242 = sand.u32 %s130, 1
        %s243 = smul.addr %s242, 8
        %s244 = scalar_lea.vmem [#allocation8], %s243
        %s245 = smul.u32 3, %s26
        %p246 = scmp.lt.s32.totalorder %s24, 1
        %s247 = scalar_select %p246, %s24, 1
        %p248 = scmp.lt.s32.totalorder %s245, 2
        %s249 = scalar_select %p248, %s245, 2
        %s250 = smul.addr %s247, 3
        %s251 = sadd.s32 %s249, %s250
        %s252 = smul.addr %s251, 8
        %s253 = scalar_lea.vmem %s0, %s252
        %s254 = smul.u32 3, %s26
        %s255 = smul.u32 48, %s26
        %p256 = scmp.eq.s32.totalorder %s26, 0
        // Predicated region
        $region41: #{transformer_forward.27} parent=31 // pred_check
          %p257 = pneg %p256
        $region42: #{transformer_forward.27} parent=31 // pred_check_branch
          %259 = sbr.rel (%p257) target = $region44
        $region43: #{transformer_forward.27} parent=31 // pred_region
          %260 = vst [vmem:[#allocation2] sm:$0xff] 0.0
        $region44: #{transformer_forward.27} parent=31 // pred_fallthru
          _
        %v261 = vld [vmem:[#allocation2] sm:$0xff]
        %v262 = vld [vmem:[%s253] sm:$0xff]
        %v263 = vld [vmem:[%s253 + $0x8] sm:$0xff]
        %v264 = vld [vmem:[%s253 + $0x10] sm:$0xff]
        %v265 = vld [vmem:[#allocation3] sm:$0xff]
        %v266 = vld [vmem:[#allocation3 + $0x8] sm:$0xff]
        %v267 = vld [vmem:[#allocation3 + $0x10] sm:$0xff]
        %v268 = vld [vmem:[#allocation3 + $0x18] sm:$0xff]
        %v269 = vld [vmem:[#allocation3 + $0x20] sm:$0xff]
        %v270 = vld [vmem:[#allocation3 + $0x28] sm:$0xff]
        %v271 = vld [vmem:[#allocation3 + $0x30] sm:$0xff]
        %v272 = vld [vmem:[#allocation3 + $0x38] sm:$0xff]
        %v273 = vld [vmem:[#allocation3 + $0x40] sm:$0xff]
        %v274 = vld [vmem:[#allocation3 + $0x48] sm:$0xff]
        %v275 = vld [vmem:[#allocation3 + $0x50] sm:$0xff]
        %v276 = vld [vmem:[#allocation3 + $0x58] sm:$0xff]
        %v277 = vld [vmem:[#allocation3 + $0x60] sm:$0xff]
        %v278 = vld [vmem:[#allocation3 + $0x68] sm:$0xff]
        %v279 = vld [vmem:[#allocation3 + $0x70] sm:$0xff]
        %v280 = vld [vmem:[#allocation3 + $0x78] sm:$0xff]
        %v281 = vld [vmem:[#allocation3 + $0x80] sm:$0xff]
        %v282 = vld [vmem:[#allocation3 + $0x88] sm:$0xff]
        %v283 = vld [vmem:[#allocation3 + $0x90] sm:$0xff]
        %v284 = vld [vmem:[#allocation3 + $0x98] sm:$0xff]
        %v285 = vld [vmem:[#allocation3 + $0xa0] sm:$0xff]
        %v286 = vld [vmem:[#allocation3 + $0xa8] sm:$0xff]
        %v287 = vld [vmem:[#allocation3 + $0xb0] sm:$0xff]
        %v288 = vld [vmem:[#allocation3 + $0xb8] sm:$0xff]
        %v289 = vld [vmem:[#allocation3 + $0xc0] sm:$0xff]
        %v290 = vld [vmem:[#allocation3 + $0xc8] sm:$0xff]
        %v291 = vld [vmem:[#allocation3 + $0xd0] sm:$0xff]
        %v292 = vld [vmem:[#allocation3 + $0xd8] sm:$0xff]
        %v293 = vld [vmem:[#allocation3 + $0xe0] sm:$0xff]
        %v294 = vld [vmem:[#allocation3 + $0xe8] sm:$0xff]
        %v295 = vld [vmem:[#allocation3 + $0xf0] sm:$0xff]
        %v296 = vld [vmem:[#allocation3 + $0xf8] sm:$0xff]
        %v297 = vld [vmem:[#allocation3 + $0x100] sm:$0xff]
        %v298 = vld [vmem:[#allocation3 + $0x108] sm:$0xff]
        %v299 = vld [vmem:[#allocation3 + $0x110] sm:$0xff]
        %v300 = vld [vmem:[#allocation3 + $0x118] sm:$0xff]
        %v301 = vld [vmem:[#allocation3 + $0x120] sm:$0xff]
        %v302 = vld [vmem:[#allocation3 + $0x128] sm:$0xff]
        %v303 = vld [vmem:[#allocation3 + $0x130] sm:$0xff]
        %v304 = vld [vmem:[#allocation3 + $0x138] sm:$0xff]
        %v305 = vld [vmem:[#allocation3 + $0x140] sm:$0xff]
        %v306 = vld [vmem:[#allocation3 + $0x148] sm:$0xff]
        %v307 = vld [vmem:[#allocation3 + $0x150] sm:$0xff]
        %v308 = vld [vmem:[#allocation3 + $0x158] sm:$0xff]
        %v309 = vld [vmem:[#allocation3 + $0x160] sm:$0xff]
        %v310 = vld [vmem:[#allocation3 + $0x168] sm:$0xff]
        %v311 = vld [vmem:[#allocation3 + $0x170] sm:$0xff]
        %v312 = vld [vmem:[#allocation3 + $0x178] sm:$0xff]
        %313 = vmatpush.msra.mxu0 %v280
        %314 = vmatpush.msra.mxu0 %v279
        %315 = vmatpush.msra.mxu0 %v278
        %316 = vmatpush.msra.mxu0 %v277
        %317 = vmatpush.msra.mxu0 %v276
        %318 = vmatpush.msra.mxu0 %v275
        %319 = vmatpush.msra.mxu0 %v274
        %320 = vmatpush.msra.mxu0 %v273
        %321 = vmatpush.msra.mxu0 %v272
        %322 = vmatpush.msra.mxu0 %v271
        %323 = vmatpush.msra.mxu0 %v270
        %324 = vmatpush.msra.mxu0 %v269
        %325 = vmatpush.msra.mxu0 %v268
        %326 = vmatpush.msra.mxu0 %v267
        %327 = vmatpush.msra.mxu0 %v266
        %328 = vmatpush.msra.mxu0 %v265
        %329 = vmatmul.f32.gmra.mxu0 %v262
        %v330 = vpop.f32.mrf.mxu0
        %v331 = vadd.f32 0.0, %v330
        %332 = vdwg.mxu0
        %333 = vmatpush.msra.mxu0 %v296
        %334 = vmatpush.msra.mxu0 %v295
        %335 = vmatpush.msra.mxu0 %v294
        %336 = vmatpush.msra.mxu0 %v293
        %337 = vmatpush.msra.mxu0 %v292
        %338 = vmatpush.msra.mxu0 %v291
        %339 = vmatpush.msra.mxu0 %v290
        %340 = vmatpush.msra.mxu0 %v289
        %341 = vmatpush.msra.mxu0 %v288
        %342 = vmatpush.msra.mxu0 %v287
        %343 = vmatpush.msra.mxu0 %v286
        %344 = vmatpush.msra.mxu0 %v285
        %345 = vmatpush.msra.mxu0 %v284
        %346 = vmatpush.msra.mxu0 %v283
        %347 = vmatpush.msra.mxu0 %v282
        %348 = vmatpush.msra.mxu0 %v281
        %349 = vmatmul.f32.gmra.mxu0 %v263
        %v350 = vpop.f32.mrf.mxu0
        %v351 = vadd.f32 %v331, %v350
        %352 = vdwg.mxu0
        %353 = vmatpush.msra.mxu0 %v312
        %354 = vmatpush.msra.mxu0 %v311
        %355 = vmatpush.msra.mxu0 %v310
        %356 = vmatpush.msra.mxu0 %v309
        %357 = vmatpush.msra.mxu0 %v308
        %358 = vmatpush.msra.mxu0 %v307
        %359 = vmatpush.msra.mxu0 %v306
        %360 = vmatpush.msra.mxu0 %v305
        %361 = vmatpush.msra.mxu0 %v304
        %362 = vmatpush.msra.mxu0 %v303
        %363 = vmatpush.msra.mxu0 %v302
        %364 = vmatpush.msra.mxu0 %v301
        %365 = vmatpush.msra.mxu0 %v300
        %366 = vmatpush.msra.mxu0 %v299
        %367 = vmatpush.msra.mxu0 %v298
        %368 = vmatpush.msra.mxu0 %v297
        %369 = vmatmul.f32.gmra.mxu0 %v264
        %v370 = vpop.f32.mrf.mxu0
        %v371 = vadd.f32 %v351, %v370
        %372 = vdwg.mxu0
        %v373 = vadd.f32 %v261, %v371
        %374 = vst [vmem:[#allocation2] sm:$0xff] %v373
        // Predicated region
        $region45: #{transformer_forward.27} parent=31 // pred_check
          %p375 = pneg %p256
        $region46: #{transformer_forward.27} parent=31 // pred_check_branch
          %377 = sbr.rel (%p375) target = $region48
        $region47: #{transformer_forward.27} parent=31 // pred_region
          %v378 = vld [vmem:[#allocation2] sm:$0xff]
          %v379 = vld [vmem:[#allocation6] sm:$0x1]
          %v381 = vperm.slane %v379, 0
          %v383 = vadd.f32 %v378, %v381
          %384 = vst [vmem:[%s244] sm:$0xff] %v383
        $region48: #{transformer_forward.27} parent=31 // pred_fallthru
          _
        %s385 = sand.u32 %s130, 1
        %s386 = scalar_lea.sflag [#allocation5], %s385
        %s387 = sand.u32 %s130, 1
        %s388 = smul.addr %s387, 8
        %s389 = scalar_lea.vmem [#allocation8], %s388
        // Predicated region
        $region49: #{transformer_forward.27} parent=31 // pred_check
          %p390 = pneg %p140
        $region50: #{transformer_forward.27} parent=31 // pred_check_branch
          %392 = sbr.rel (%p390) target = $region52
        $region51: #{transformer_forward.27} parent=31 // pred_region
          %394 = vsyncadd %s386, 0
          %s395 = sadd.s32 %s25, %s24
          %s396 = smul.addr %s395, 8
          %s397 = scalar_lea.hbm %s3, %s396
          %s399 = sshll.u32 %s389, 4
          %s400 = int_to_ptr.vmem [resolvable:$true] %s399
          %s401 = sshll.u32 %s397, 4
          %s402 = int_to_ptr.hbm [resolvable:$true] %s401
          %404 = dma.vmem_to_hbm [thread:$0]  %s400, 128, %s402, %s386
        $region52: #{transformer_forward.27} parent=31 // pred_fallthru
          _
      $region32: #{transformer_forward.27} parent=5 // pred_fallthru
        _
      %p405 = scmp.le.s32.totalorder 2, %s14
      // Predicated region
      $region53: #{transformer_forward.27} parent=5 // pred_check
        %p406 = pneg %p405
      $region54: #{transformer_forward.27} parent=5 // pred_check_branch
        %408 = sbr.rel (%p406) target = $region56
      $region55: #{transformer_forward.27} parent=5 // pred_region
        %s409 = ssub.s32 %s14, 2
        // Predicated region
        $region57: #{transformer_forward.27} parent=55 // pred_check
          %p410 = pneg %p146
        $region58: #{transformer_forward.27} parent=55 // pred_check_branch
          %412 = sbr.rel (%p410) target = $region60
        $region59: #{transformer_forward.27} parent=55 // pred_region
          %s413 = sand.u32 %s131, 1
          %s414 = scalar_lea.sflag [#allocation5], %s413
          %s415 = sand.u32 %s131, 1
          %s416 = smul.addr %s415, 8
          %s417 = scalar_lea.vmem [#allocation8], %s416
          %419 = dma.done %s414, 128
        $region60: #{transformer_forward.27} parent=55 // pred_fallthru
          _
      $region56: #{transformer_forward.27} parent=5 // pred_fallthru
        _
    $region6: #{transformer_forward.27} parent=1 // loop_footer
      %s18 = sadd.s32 1, %s14
    $region7: #{transformer_forward.27} parent=1 // loop_footer_branch
      %13 = sbr.rel target = $region3
    $region8: #{transformer_forward.27} parent=1 // loop_exit
      _
    %420 = vsyncpa [#allocation4], 1
    %s421 = scalar_lea.sflag [#allocation4], 1
    %422 = vsyncpa %s421, 1
    %423 = vsyncpa [#allocation7], 1
    %424 = vsyncpa [#allocation5], 1
    %s425 = scalar_lea.sflag [#allocation5], 1
    %426 = vsyncpa %s425, 1

// kernel: transformer_forward.15
$region0: #{transformer_forward.15}
  #allocation0 [shape = 'u32[]', space=smem, size = 0x4, offset = 0x4, fixed_abs, tag = 'smem constant byte address 0x4 - core index']
  #allocation1 [shape = 'u32[72,128]{1,0:T(1,128)}', space=vmem, size = 0x9000, scoped, tag = 'internal scratch']
  %s0 = inlined_call_operand.vmem [shape: f32[2,8,384], index: 0, kind: input, shape index: {}]
  %s1 = inlined_call_operand.hbm [shape: f32[384,1536], index: 1, kind: input, shape index: {}]
  %s2 = inlined_call_operand.hbm [shape: f32[1,1536], index: 2, kind: input, shape index: {}]
  %s3 = inlined_call_operand.hbm [shape: f32[512,384], index: 3, kind: input, shape index: {}]
  %s4 = inlined_call_operand.hbm [shape: f32[1,384], index: 4, kind: input, shape index: {}]
  %s5 = inlined_call_operand.hbm [shape: f32[1,384], index: 5, kind: input, shape index: {}]
  %s6 = inlined_call_operand.hbm [shape: f32[1,384], index: 6, kind: input, shape index: {}]
  %s7 = inlined_call_operand.vmem [shape: f32[2,8,384], index: 7, kind: output, shape index: {}]
  %s8 = sld [smem:[#allocation0]]
  $region85: #{transformer_forward.15} parent=0
    _
  %s10 = ssub.s32 1, %s8
  %s11 = scalar_select 0, %s10, %s8
  $region1: #{transformer_forward.15} parent=0
    #allocation2 [shape = 'u8[2359296]{0}', space=vmem, size = 0x240000, scoped, tag = 'input window, operand 1, single buffered']
    #allocation3 [shape = 's32[2]{0}', space=sflag, size = 0x8, scoped, tag = 'scoped memory for transformer_forward.15']
    #allocation4 [shape = 'u8[6144]{0}', space=vmem, size = 0x1800, scoped, tag = 'input window, operand 2, single buffered']
    #allocation5 [shape = 's32[1]{0}', space=sflag, size = 0x4, scoped, tag = 'scoped memory for transformer_forward.15']
    #allocation6 [shape = 'u8[786432]{0}', space=vmem, size = 0xc0000, scoped, tag = 'input window, operand 3, single buffered']
    #allocation7 [shape = 'u8[1536]{0}', space=vmem, size = 0x800, scoped, tag = 'input window, operand 4, single buffered']
    #allocation8 [shape = 's32[1]{0}', space=sflag, size = 0x4, scoped, tag = 'scoped memory for transformer_forward.15']
    #allocation9 [shape = 'u8[1536]{0}', space=vmem, size = 0x800, scoped, tag = 'input window, operand 5, single buffered']
    #allocation10 [shape = 'u8[1536]{0}', space=vmem, size = 0x800, scoped, tag = 'input window, operand 6, single buffered']
    #allocation11 [shape = 's32[1]{0}', space=sflag, size = 0x4, scoped, tag = 'scoped memory for transformer_forward.15']
    %12 = vsyncpa [#allocation3], 0
    %13 = vsyncpa [#allocation5], 0
    %14 = vsyncpa [#allocation8], 0
    %15 = vsyncpa [#allocation11], 0
    loop: start=0, step=1, limit=4
    $region2: #{transformer_forward.15} parent=1 // loop_pre_header
      _
    $region3: #{transformer_forward.15} parent=1 // loop_header
      %s17 = sphi 0, %s21
      %p18 = scmp.ge.s32.totalorder %s17, 4
      %s27 = sphi 0, %s29
      %s30 = sphi 0, %s27
      %s31 = sphi 0, %s30
      %s47 = sphi 0, %s31
      %s51 = sphi 0, %s51
      %s53 = sphi 0, %s51
      %s54 = sphi 0, %s53
      %s68 = sphi 0, %s54
      %s72 = sphi 0, %s72
      %s74 = sphi 0, %s72
      %s75 = sphi 0, %s74
      %s89 = sphi 0, %s75
      %s93 = sphi 0, %s93
      %s95 = sphi 0, %s93
      %s96 = sphi 0, %s95
      %s110 = sphi 0, %s96
      %s114 = sphi 0, %s114
      %s116 = sphi 0, %s114
      %s117 = sphi 0, %s116
      %s131 = sphi 0, %s117
      %s135 = sphi 0, %s135
      %s137 = sphi 0, %s135
      %s138 = sphi 0, %s137
      %s152 = sphi 0, %s138
      %s156 = sphi 0, %s156
      %s158 = sphi 0, %s156
      %s159 = sphi 0, %s158
      %s173 = sphi 0, %s159
      %s179 = sphi 0, %s181
      %s182 = sphi 0, %s179
      %s183 = sphi 0, %s182
      %s199 = sphi 0, %s183
    $region4: #{transformer_forward.15} parent=1 // loop_header_branch
      %20 = sbr.rel (%p18) target = $region8
    $region5: #{transformer_forward.15} parent=1 // loop_body
      %s22 = ssub.s32 %s17, 1
      %s23 = ssub.s32 %s17, 2
      %s24 = sadd.s32 %s17, 1
      %s25 = ssub.s32 %s17, %s24
      %p26 = scmp.eq.s32.totalorder %s25, 0
      %s28 = sadd.s32 %s27, 1
      %s29 = scalar_select %p26, %s27, %s28
      %p32 = pneg %p26
      %p33 = scmp.eq.s32.totalorder %s17, 1
      %p34 = por %p32, %p33
      %p35 = scmp.ne.s32.totalorder %s27, %s30
      %p36 = scmp.eq.s32.totalorder %s17, 0
      %p37 = por %p35, %p36
      %p38 = scmp.ne.s32.totalorder %s27, %s30
      %p39 = scmp.eq.s32.totalorder %s22, 1
      %p40 = por %p38, %p39
      %p41 = scmp.ne.s32.totalorder %s30, %s31
      %p42 = scmp.eq.s32.totalorder %s22, 0
      %p43 = por %p41, %p42
      %p44 = scmp.ne.s32.totalorder %s30, %s31
      %p45 = scmp.eq.s32.totalorder %s23, 1
      %p46 = por %p44, %p45
      %p48 = scmp.ne.s32.totalorder %s31, %s47
      %p49 = scmp.eq.s32.totalorder %s23, 0
      %p50 = por %p48, %p49
      %s52 = sadd.s32 %s51, 1
      %p55 = scmp.eq.s32.totalorder %s17, 1
      %p56 = scmp.ne.s32.totalorder %s51, %s53
      %p57 = scmp.eq.s32.totalorder %s17, 0
      %p58 = por %p56, %p57
      %p59 = scmp.ne.s32.totalorder %s51, %s53
      %p60 = scmp.eq.s32.totalorder %s22, 1
      %p61 = por %p59, %p60
      %p62 = scmp.ne.s32.totalorder %s53, %s54
      %p63 = scmp.eq.s32.totalorder %s22, 0
      %p64 = por %p62, %p63
      %p65 = scmp.ne.s32.totalorder %s53, %s54
      %p66 = scmp.eq.s32.totalorder %s23, 1
      %p67 = por %p65, %p66
      %p69 = scmp.ne.s32.totalorder %s54, %s68
      %p70 = scmp.eq.s32.totalorder %s23, 0
      %p71 = por %p69, %p70
      %s73 = sadd.s32 %s72, 1
      %p76 = scmp.eq.s32.totalorder %s17, 1
      %p77 = scmp.ne.s32.totalorder %s72, %s74
      %p78 = scmp.eq.s32.totalorder %s17, 0
      %p79 = por %p77, %p78
      %p80 = scmp.ne.s32.totalorder %s72, %s74
      %p81 = scmp.eq.s32.totalorder %s22, 1
      %p82 = por %p80, %p81
      %p83 = scmp.ne.s32.totalorder %s74, %s75
      %p84 = scmp.eq.s32.totalorder %s22, 0
      %p85 = por %p83, %p84
      %p86 = scmp.ne.s32.totalorder %s74, %s75
      %p87 = scmp.eq.s32.totalorder %s23, 1
      %p88 = por %p86, %p87
      %p90 = scmp.ne.s32.totalorder %s75, %s89
      %p91 = scmp.eq.s32.totalorder %s23, 0
      %p92 = por %p90, %p91
      %s94 = sadd.s32 %s93, 1
      %p97 = scmp.eq.s32.totalorder %s17, 1
      %p98 = scmp.ne.s32.totalorder %s93, %s95
      %p99 = scmp.eq.s32.totalorder %s17, 0
      %p100 = por %p98, %p99
      %p101 = scmp.ne.s32.totalorder %s93, %s95
      %p102 = scmp.eq.s32.totalorder %s22, 1
      %p103 = por %p101, %p102
      %p104 = scmp.ne.s32.totalorder %s95, %s96
      %p105 = scmp.eq.s32.totalorder %s22, 0
      %p106 = por %p104, %p105
      %p107 = scmp.ne.s32.totalorder %s95, %s96
      %p108 = scmp.eq.s32.totalorder %s23, 1
      %p109 = por %p107, %p108
      %p111 = scmp.ne.s32.totalorder %s96, %s110
      %p112 = scmp.eq.s32.totalorder %s23, 0
      %p113 = por %p111, %p112
      %s115 = sadd.s32 %s114, 1
      %p118 = scmp.eq.s32.totalorder %s17, 1
      %p119 = scmp.ne.s32.totalorder %s114, %s116
      %p120 = scmp.eq.s32.totalorder %s17, 0
      %p121 = por %p119, %p120
      %p122 = scmp.ne.s32.totalorder %s114, %s116
      %p123 = scmp.eq.s32.totalorder %s22, 1
      %p124 = por %p122, %p123
      %p125 = scmp.ne.s32.totalorder %s116, %s117
      %p126 = scmp.eq.s32.totalorder %s22, 0
      %p127 = por %p125, %p126
      %p128 = scmp.ne.s32.totalorder %s116, %s117
      %p129 = scmp.eq.s32.totalorder %s23, 1
      %p130 = por %p128, %p129
      %p132 = scmp.ne.s32.totalorder %s117, %s131
      %p133 = scmp.eq.s32.totalorder %s23, 0
      %p134 = por %p132, %p133
      %s136 = sadd.s32 %s135, 1
      %p139 = scmp.eq.s32.totalorder %s17, 1
      %p140 = scmp.ne.s32.totalorder %s135, %s137
      %p141 = scmp.eq.s32.totalorder %s17, 0
      %p142 = por %p140, %p141
      %p143 = scmp.ne.s32.totalorder %s135, %s137
      %p144 = scmp.eq.s32.totalorder %s22, 1
      %p145 = por %p143, %p144
      %p146 = scmp.ne.s32.totalorder %s137, %s138
      %p147 = scmp.eq.s32.totalorder %s22, 0
      %p148 = por %p146, %p147
      %p149 = scmp.ne.s32.totalorder %s137, %s138
      %p150 = scmp.eq.s32.totalorder %s23, 1
      %p151 = por %p149, %p150
      %p153 = scmp.ne.s32.totalorder %s138, %s152
      %p154 = scmp.eq.s32.totalorder %s23, 0
      %p155 = por %p153, %p154
      %s157 = sadd.s32 %s156, 1
      %p160 = scmp.eq.s32.totalorder %s17, 1
      %p161 = scmp.ne.s32.totalorder %s156, %s158
      %p162 = scmp.eq.s32.totalorder %s17, 0
      %p163 = por %p161, %p162
      %p164 = scmp.ne.s32.totalorder %s156, %s158
      %p165 = scmp.eq.s32.totalorder %s22, 1
      %p166 = por %p164, %p165
      %p167 = scmp.ne.s32.totalorder %s158, %s159
      %p168 = scmp.eq.s32.totalorder %s22, 0
      %p169 = por %p167, %p168
      %p170 = scmp.ne.s32.totalorder %s158, %s159
      %p171 = scmp.eq.s32.totalorder %s23, 1
      %p172 = por %p170, %p171
      %p174 = scmp.ne.s32.totalorder %s159, %s173
      %p175 = scmp.eq.s32.totalorder %s23, 0
      %p176 = por %p174, %p175
      %s177 = ssub.s32 %s17, %s24
      %p178 = scmp.eq.s32.totalorder %s177, 0
      %s180 = sadd.s32 %s179, 1
      %s181 = scalar_select %p178, %s179, %s180
      %p184 = pneg %p178
      %p185 = scmp.eq.s32.totalorder %s17, 1
      %p186 = por %p184, %p185
      %p187 = scmp.ne.s32.totalorder %s179, %s182
      %p188 = scmp.eq.s32.totalorder %s17, 0
      %p189 = por %p187, %p188
      %p190 = scmp.ne.s32.totalorder %s179, %s182
      %p191 = scmp.eq.s32.totalorder %s22, 1
      %p192 = por %p190, %p191
      %p193 = scmp.ne.s32.totalorder %s182, %s183
      %p194 = scmp.eq.s32.totalorder %s22, 0
      %p195 = por %p193, %p194
      %p196 = scmp.ne.s32.totalorder %s182, %s183
      %p197 = scmp.eq.s32.totalorder %s23, 1
      %p198 = por %p196, %p197
      %p200 = scmp.ne.s32.totalorder %s183, %s199
      %p201 = scmp.eq.s32.totalorder %s23, 0
      %p202 = por %p200, %p201
      %p203 = scmp.le.s32.totalorder 1, %s17
      %p204 = scmp.lt.s32.totalorder %s17, 3
      %p205 = pnand %p203, %p204
      %p206 = pneg %p205
      // Predicated region
      $region9: #{transformer_forward.15} parent=5 // pred_check
        _
      $region10: #{transformer_forward.15} parent=5 // pred_check_branch
        %208 = sbr.rel (%p205) target = $region12
      $region11: #{transformer_forward.15} parent=5 // pred_region
        %s209 = ssub.s32 %s17, 1
        // Predicated region
        $region13: #{transformer_forward.15} parent=11 // pred_check
          %p210 = pneg %p64
        $region14: #{transformer_forward.15} parent=11 // pred_check_branch
          %212 = sbr.rel (%p210) target = $region16
        $region15: #{transformer_forward.15} parent=11 // pred_region
          %214 = vsyncadd [#allocation3], 0
          %s215 = sshll.u32 %s1, 4
          %s216 = int_to_ptr.hbm [resolvable:$true] %s215
          %s217 = sshll.u32 [#allocation2], 4
          %s218 = int_to_ptr.vmem [resolvable:$true] %s217
          %223 = dma.hbm_to_vmem [thread:$0]  %s216, 73728, %s218, [#allocation3], 1536, 1536, 96
        $region16: #{transformer_forward.15} parent=11 // pred_fallthru
          _
        // Predicated region
        $region17: #{transformer_forward.15} parent=11 // pred_check
          %p224 = pneg %p85
        $region18: #{transformer_forward.15} parent=11 // pred_check_branch
          %226 = sbr.rel (%p224) target = $region20
        $region19: #{transformer_forward.15} parent=11 // pred_region
          %228 = vsyncadd [#allocation5], 0
          %s230 = sshll.u32 %s2, 4
          %s231 = int_to_ptr.hbm [resolvable:$true] %s230
          %s232 = sshll.u32 [#allocation4], 4
          %s233 = int_to_ptr.vmem [resolvable:$true] %s232
          %235 = dma.hbm_to_vmem [thread:$0]  %s231, 192, %s233, [#allocation5]
        $region20: #{transformer_forward.15} parent=11 // pred_fallthru
          _
        // Predicated region
        $region21: #{transformer_forward.15} parent=11 // pred_check
          %p236 = pneg %p106
        $region22: #{transformer_forward.15} parent=11 // pred_check_branch
          %238 = sbr.rel (%p236) target = $region24
        $region23: #{transformer_forward.15} parent=11 // pred_region
          %240 = vsyncadd [#allocation5], 0
          %s241 = sshll.u32 %s3, 4
          %s242 = int_to_ptr.hbm [resolvable:$true] %s241
          %s243 = sshll.u32 [#allocation6], 4
          %s244 = int_to_ptr.vmem [resolvable:$true] %s243
          %249 = dma.hbm_to_vmem [thread:$0]  %s242, 24576, %s244, [#allocation5], 384, 384, 24
        $region24: #{transformer_forward.15} parent=11 // pred_fallthru
          _
        // Predicated region
        $region25: #{transformer_forward.15} parent=11 // pred_check
          %p250 = pneg %p127
        $region26: #{transformer_forward.15} parent=11 // pred_check_branch
          %252 = sbr.rel (%p250) target = $region28
        $region27: #{transformer_forward.15} parent=11 // pred_region
          %254 = vsyncadd [#allocation8], 0
          %s256 = sshll.u32 %s4, 4
          %s257 = int_to_ptr.hbm [resolvable:$true] %s256
          %s258 = sshll.u32 [#allocation7], 4
          %s259 = int_to_ptr.vmem [resolvable:$true] %s258
          %261 = dma.hbm_to_vmem [thread:$0]  %s257, 48, %s259, [#allocation8]
        $region28: #{transformer_forward.15} parent=11 // pred_fallthru
          _
        // Predicated region
        $region29: #{transformer_forward.15} parent=11 // pred_check
          %p262 = pneg %p148
        $region30: #{transformer_forward.15} parent=11 // pred_check_branch
          %264 = sbr.rel (%p262) target = $region32
        $region31: #{transformer_forward.15} parent=11 // pred_region
          %266 = vsyncadd [#allocation8], 0
          %s268 = sshll.u32 %s5, 4
          %s269 = int_to_ptr.hbm [resolvable:$true] %s268
          %s270 = sshll.u32 [#allocation9], 4
          %s271 = int_to_ptr.vmem [resolvable:$true] %s270
          %273 = dma.hbm_to_vmem [thread:$0]  %s269, 48, %s271, [#allocation8]
        $region32: #{transformer_forward.15} parent=11 // pred_fallthru
          _
        // Predicated region
        $region33: #{transformer_forward.15} parent=11 // pred_check
          %p274 = pneg %p169
        $region34: #{transformer_forward.15} parent=11 // pred_check_branch
          %276 = sbr.rel (%p274) target = $region36
        $region35: #{transformer_forward.15} parent=11 // pred_region
          %278 = vsyncadd [#allocation11], 0
          %s280 = sshll.u32 %s6, 4
          %s281 = int_to_ptr.hbm [resolvable:$true] %s280
          %s282 = sshll.u32 [#allocation10], 4
          %s283 = int_to_ptr.vmem [resolvable:$true] %s282
          %285 = dma.hbm_to_vmem [thread:$0]  %s281, 48, %s283, [#allocation11]
        $region36: #{transformer_forward.15} parent=11 // pred_fallthru
          _
      $region12: #{transformer_forward.15} parent=5 // pred_fallthru
        _
      %p286 = scmp.lt.s32.totalorder %s17, 2
      // Predicated region
      $region37: #{transformer_forward.15} parent=5 // pred_check
        %p287 = pneg %p286
      $region38: #{transformer_forward.15} parent=5 // pred_check_branch
        %289 = sbr.rel (%p287) target = $region40
      $region39: #{transformer_forward.15} parent=5 // pred_region
        // Predicated region
        $region41: #{transformer_forward.15} parent=39 // pred_check
          %p290 = pneg %p37
        $region42: #{transformer_forward.15} parent=39 // pred_check_branch
          %292 = sbr.rel (%p290) target = $region44
        $region43: #{transformer_forward.15} parent=39 // pred_region
          %p293 = scmp.lt.s32.totalorder %s17, 1
          %s294 = scalar_select %p293, %s17, 1
          %s295 = smul.addr %s294, 3
          %s296 = smul.addr %s295, 8
          %s297 = scalar_lea.vmem %s0, %s296
        $region44: #{transformer_forward.15} parent=39 // pred_fallthru
          _
      $region40: #{transformer_forward.15} parent=5 // pred_fallthru
        _
      %p298 = scmp.le.s32.totalorder 1, %s17
      %p299 = scmp.lt.s32.totalorder %s17, 3
      %p300 = pnand %p298, %p299
      %p301 = pneg %p300
      // Predicated region
      $region45: #{transformer_forward.15} parent=5 // pred_check
        _
      $region46: #{transformer_forward.15} parent=5 // pred_check_branch
        %303 = sbr.rel (%p300) target = $region48
      $region47: #{transformer_forward.15} parent=5 // pred_region
        %s304 = ssub.s32 %s17, 1
        // Predicated region
        $region49: #{transformer_forward.15} parent=47 // pred_check
          %p305 = pneg %p64
        $region50: #{transformer_forward.15} parent=47 // pred_check_branch
          %307 = sbr.rel (%p305) target = $region52
        $region51: #{transformer_forward.15} parent=47 // pred_region
          %309 = dma.done [#allocation3], 73728
        $region52: #{transformer_forward.15} parent=47 // pred_fallthru
          _
        // Predicated region
        $region53: #{transformer_forward.15} parent=47 // pred_check
          %p310 = pneg %p85
        $region54: #{transformer_forward.15} parent=47 // pred_check_branch
          %312 = sbr.rel (%p310) target = $region56
        $region55: #{transformer_forward.15} parent=47 // pred_region
          %314 = dma.done [#allocation5], 192
        $region56: #{transformer_forward.15} parent=47 // pred_fallthru
          _
        // Predicated region
        $region57: #{transformer_forward.15} parent=47 // pred_check
          %p315 = pneg %p106
        $region58: #{transformer_forward.15} parent=47 // pred_check_branch
          %317 = sbr.rel (%p315) target = $region60
        $region59: #{transformer_forward.15} parent=47 // pred_region
          %319 = dma.done [#allocation5], 24576
        $region60: #{transformer_forward.15} parent=47 // pred_fallthru
          _
        // Predicated region
        $region61: #{transformer_forward.15} parent=47 // pred_check
          %p320 = pneg %p127
        $region62: #{transformer_forward.15} parent=47 // pred_check_branch
          %322 = sbr.rel (%p320) target = $region64
        $region63: #{transformer_forward.15} parent=47 // pred_region
          %324 = dma.done [#allocation8], 48
        $region64: #{transformer_forward.15} parent=47 // pred_fallthru
          _
        // Predicated region
        $region65: #{transformer_forward.15} parent=47 // pred_check
          %p325 = pneg %p148
        $region66: #{transformer_forward.15} parent=47 // pred_check_branch
          %327 = sbr.rel (%p325) target = $region68
        $region67: #{transformer_forward.15} parent=47 // pred_region
          %329 = dma.done [#allocation8], 48
        $region68: #{transformer_forward.15} parent=47 // pred_fallthru
          _
        // Predicated region
        $region69: #{transformer_forward.15} parent=47 // pred_check
          %p330 = pneg %p169
        $region70: #{transformer_forward.15} parent=47 // pred_check_branch
          %332 = sbr.rel (%p330) target = $region72
        $region71: #{transformer_forward.15} parent=47 // pred_region
          %334 = dma.done [#allocation11], 48
        $region72: #{transformer_forward.15} parent=47 // pred_fallthru
          _
        %p335 = scmp.lt.s32.totalorder %s22, 1
        %s336 = scalar_select %p335, %s22, 1
        %s337 = smul.addr %s336, 3
        %s338 = smul.addr %s337, 8
        %s339 = scalar_lea.vmem %s0, %s338
        %p340 = pneg %p43
        %p341 = pneg %p40
        %p342 = pneg %p64
        %p343 = pneg %p61
        %p344 = pneg %p85
        %p345 = pneg %p82
        %p346 = pneg %p106
        %p347 = pneg %p103
        %p348 = pneg %p127
        %p349 = pneg %p124
        %p350 = pneg %p148
        %p351 = pneg %p145
        %p352 = pneg %p169
        %p353 = pneg %p166
        %p354 = pneg %p195
        %p355 = pneg %p192
        %p356 = scmp.lt.s32.totalorder %s22, 1
        %s357 = scalar_select %p356, %s22, 1
        %s358 = smul.addr %s357, 3
        %s359 = smul.addr %s358, 8
        %s360 = scalar_lea.vmem %s7, %s359
        %p361 = scmp.lt.s32.totalorder %s22, 1
        %s362 = scalar_select %p361, %s22, 1
        %s363 = smul.addr %s362, 3
        %s364 = smul.addr %s363, 8
        %s365 = scalar_lea.vmem %s0, %s364
        %p366 = scmp.lt.s32.totalorder %s22, 1
        %s367 = scalar_select %p366, %s22, 1
        %s368 = smul.addr %s367, 3
        %s369 = smul.addr %s368, 8
        %s370 = scalar_lea.vmem %s7, %s369
        %v371 = vld [vmem:[%s365] sm:$0xff]
        %v372 = vld [vmem:[%s365 + $0x8] sm:$0xff]
        %v373 = vld [vmem:[%s365 + $0x10] sm:$0xff]
        %v374 = vld [vmem:[#allocation2] sm:$0xff]
        %v375 = vld [vmem:[#allocation2 + $0x8] sm:$0xff]
        %v376 = vld [vmem:[#allocation2 + $0x10] sm:$0xff]
        %v377 = vld [vmem:[#allocation2 + $0x18] sm:$0xff]
        %v378 = vld [vmem:[#allocation2 + $0x20] sm:$0xff]
        %v379 = vld [vmem:[#allocation2 + $0x28] sm:$0xff]
        %v380 = vld [vmem:[#allocation2 + $0x30] sm:$0xff]
        %v381 = vld [vmem:[#allocation2 + $0x38] sm:$0xff]
        %v382 = vld [vmem:[#allocation2 + $0x40] sm:$0xff]
        %v383 = vld [vmem:[#allocation2 + $0x48] sm:$0xff]
        %v384 = vld [vmem:[#allocation2 + $0x50] sm:$0xff]
        %v385 = vld [vmem:[#allocation2 + $0x58] sm:$0xff]
        %v386 = vld [vmem:[#allocation2 + $0x60] sm:$0xff]
        %v387 = vld [vmem:[#allocation2 + $0x68] sm:$0xff]
        %v388 = vld [vmem:[#allocation2 + $0x70] sm:$0xff]
        %v389 = vld [vmem:[#allocation2 + $0x78] sm:$0xff]
        %v390 = vld [vmem:[#allocation2 + $0x80] sm:$0xff]
        %v391 = vld [vmem:[#allocation2 + $0x88] sm:$0xff]
        %v392 = vld [vmem:[#allocation2 + $0x90] sm:$0xff]
        %v393 = vld [vmem:[#allocation2 + $0x98] sm:$0xff]
        %v394 = vld [vmem:[#allocation2 + $0xa0] sm:$0xff]
        %v395 = vld [vmem:[#allocation2 + $0xa8] sm:$0xff]
        %v396 = vld [vmem:[#allocation2 + $0xb0] sm:$0xff]
        %v397 = vld [vmem:[#allocation2 + $0xb8] sm:$0xff]
        %v398 = vld [vmem:[#allocation2 + $0xc0] sm:$0xff]
        %v399 = vld [vmem:[#allocation2 + $0xc8] sm:$0xff]
        %v400 = vld [vmem:[#allocation2 + $0xd0] sm:$0xff]
        %v401 = vld [vmem:[#allocation2 + $0xd8] sm:$0xff]
        %v402 = vld [vmem:[#allocation2 + $0xe0] sm:$0xff]
        %v403 = vld [vmem:[#allocation2 + $0xe8] sm:$0xff]
        %v404 = vld [vmem:[#allocation2 + $0xf0] sm:$0xff]
        %v405 = vld [vmem:[#allocation2 + $0xf8] sm:$0xff]
        %v406 = vld [vmem:[#allocation2 + $0x100] sm:$0xff]
        %v407 = vld [vmem:[#allocation2 + $0x108] sm:$0xff]
        %v408 = vld [vmem:[#allocation2 + $0x110] sm:$0xff]
        %v409 = vld [vmem:[#allocation2 + $0x118] sm:$0xff]
        %v410 = vld [vmem:[#allocation2 + $0x120] sm:$0xff]
        %v411 = vld [vmem:[#allocation2 + $0x128] sm:$0xff]
        %v412 = vld [vmem:[#allocation2 + $0x130] sm:$0xff]
        %v413 = vld [vmem:[#allocation2 + $0x138] sm:$0xff]
        %v414 = vld [vmem:[#allocation2 + $0x140] sm:$0xff]
        %v415 = vld [vmem:[#allocation2 + $0x148] sm:$0xff]
        %v416 = vld [vmem:[#allocation2 + $0x150] sm:$0xff]
        %v417 = vld [vmem:[#allocation2 + $0x158] sm:$0xff]
        %v418 = vld [vmem:[#allocation2 + $0x160] sm:$0xff]
        %v419 = vld [vmem:[#allocation2 + $0x168] sm:$0xff]
        %v420 = vld [vmem:[#allocation2 + $0x170] sm:$0xff]
        %v421 = vld [vmem:[#allocation2 + $0x178] sm:$0xff]
        %v422 = vld [vmem:[#allocation2 + $0x180] sm:$0xff]
        %v423 = vld [vmem:[#allocation2 + $0x188] sm:$0xff]
        %v424 = vld [vmem:[#allocation2 + $0x190] sm:$0xff]
        %v425 = vld [vmem:[#allocation2 + $0x198] sm:$0xff]
        %v426 = vld [vmem:[#allocation2 + $0x1a0] sm:$0xff]
        %v427 = vld [vmem:[#allocation2 + $0x1a8] sm:$0xff]
        %v428 = vld [vmem:[#allocation2 + $0x1b0] sm:$0xff]
        %v429 = vld [vmem:[#allocation2 + $0x1b8] sm:$0xff]
        %v430 = vld [vmem:[#allocation2 + $0x1c0] sm:$0xff]
        %v431 = vld [vmem:[#allocation2 + $0x1c8] sm:$0xff]
        %v432 = vld [vmem:[#allocation2 + $0x1d0] sm:$0xff]
        %v433 = vld [vmem:[#allocation2 + $0x1d8] sm:$0xff]
        %v434 = vld [vmem:[#allocation2 + $0x1e0] sm:$0xff]
        %v435 = vld [vmem:[#allocation2 + $0x1e8] sm:$0xff]
        %v436 = vld [vmem:[#allocation2 + $0x1f0] sm:$0xff]
        %v437 = vld [vmem:[#allocation2 + $0x1f8] sm:$0xff]
        %v438 = vld [vmem:[#allocation2 + $0x200] sm:$0xff]
        %v439 = vld [vmem:[#allocation2 + $0x208] sm:$0xff]
        %v440 = vld [vmem:[#allocation2 + $0x210] sm:$0xff]
        %v441 = vld [vmem:[#allocation2 + $0x218] sm:$0xff]
        %v442 = vld [vmem:[#allocation2 + $0x220] sm:$0xff]
        %v443 = vld [vmem:[#allocation2 + $0x228] sm:$0xff]
        %v444 = vld [vmem:[#allocation2 + $0x230] sm:$0xff]
        %v445 = vld [vmem:[#allocation2 + $0x238] sm:$0xff]
        %v446 = vld [vmem:[#allocation2 + $0x240] sm:$0xff]
        %v447 = vld [vmem:[#allocation2 + $0x248] sm:$0xff]
        %v448 = vld [vmem:[#allocation2 + $0x250] sm:$0xff]
        %v449 = vld [vmem:[#allocation2 + $0x258] sm:$0xff]
        %v450 = vld [vmem:[#allocation2 + $0x260] sm:$0xff]
        %v451 = vld [vmem:[#allocation2 + $0x268] sm:$0xff]
        %v452 = vld [vmem:[#allocation2 + $0x270] sm:$0xff]
        %v453 = vld [vmem:[#allocation2 + $0x278] sm:$0xff]
        %v454 = vld [vmem:[#allocation2 + $0x280] sm:$0xff]
        %v455 = vld [vmem:[#allocation2 + $0x288] sm:$0xff]
        %v456 = vld [vmem:[#allocation2 + $0x290] sm:$0xff]
        %v457 = vld [vmem:[#allocation2 + $0x298] sm:$0xff]
        %v458 = vld [vmem:[#allocation2 + $0x2a0] sm:$0xff]
        %v459 = vld [vmem:[#allocation2 + $0x2a8] sm:$0xff]
        %v460 = vld [vmem:[#allocation2 + $0x2b0] sm:$0xff]
        %v461 = vld [vmem:[#allocation2 + $0x2b8] sm:$0xff]
        %v462 = vld [vmem:[#allocation2 + $0x2c0] sm:$0xff]
        %v463 = vld [vmem:[#allocation2 + $0x2c8] sm:$0xff]
        %v464 = vld [vmem:[#allocation2 + $0x2d0] sm:$0xff]
        %v465 = vld [vmem:[#allocation2 + $0x2d8] sm:$0xff]
        %v466 = vld [vmem:[#allocation2 + $0x2e0] sm:$0xff]
        %v467 = vld [vmem:[#allocation2 + $0x2e8] sm:$0xff]
        %v468 = vld [vmem:[#allocation2 + $0x2f0] sm:$0xff]
        %v469 = vld [vmem:[#allocation2 + $0x2f8] sm:$0xff]
        %v470 = vld [vmem:[#allocation2 + $0x300] sm:$0xff]
        %v471 = vld [vmem:[#allocation2 + $0x308] sm:$0xff]
        %v472 = vld [vmem:[#allocation2 + $0x310] sm:$0xff]
        %v473 = vld [vmem:[#allocation2 + $0x318] sm:$0xff]
        %v474 = vld [vmem:[#allocation2 + $0x320] sm:$0xff]
        %v475 = vld [vmem:[#allocation2 + $0x328] sm:$0xff]
        %v476 = vld [vmem:[#allocation2 + $0x330] sm:$0xff]
        %v477 = vld [vmem:[#allocation2 + $0x338] sm:$0xff]
        %v478 = vld [vmem:[#allocation2 + $0x340] sm:$0xff]
        %v479 = vld [vmem:[#allocation2 + $0x348] sm:$0xff]
        %v480 = vld [vmem:[#allocation2 + $0x350] sm:$0xff]
        %v481 = vld [vmem:[#allocation2 + $0x358] sm:$0xff]
        %v482 = vld [vmem:[#allocation2 + $0x360] sm:$0xff]
        %v483 = vld [vmem:[#allocation2 + $0x368] sm:$0xff]
        %v484 = vld [vmem:[#allocation2 + $0x370] sm:$0xff]
        %v485 = vld [vmem:[#allocation2 + $0x378] sm:$0xff]
        %v486 = vld [vmem:[#allocation2 + $0x380] sm:$0xff]
        %v487 = vld [vmem:[#allocation2 + $0x388] sm:$0xff]
        %v488 = vld [vmem:[#allocation2 + $0x390] sm:$0xff]
        %v489 = vld [vmem:[#allocation2 + $0x398] sm:$0xff]
        %v490 = vld [vmem:[#allocation2 + $0x3a0] sm:$0xff]
        %v491 = vld [vmem:[#allocation2 + $0x3a8] sm:$0xff]
        %v492 = vld [vmem:[#allocation2 + $0x3b0] sm:$0xff]
        %v493 = vld [vmem:[#allocation2 + $0x3b8] sm:$0xff]
        %v494 = vld [vmem:[#allocation2 + $0x3c0] sm:$0xff]
        %v495 = vld [vmem:[#allocation2 + $0x3c8] sm:$0xff]
        %v496 = vld [vmem:[#allocation2 + $0x3d0] sm:$0xff]
        %v497 = vld [vmem:[#allocation2 + $0x3d8] sm:$0xff]
        %v498 = vld [vmem:[#allocation2 + $0x3e0] sm:$0xff]
        %v499 = vld [vmem:[#allocation2 + $0x3e8] sm:$0xff]
        %v500 = vld [vmem:[#allocation2 + $0x3f0] sm:$0xff]
        %v501 = vld [vmem:[#allocation2 + $0x3f8] sm:$0xff]
        %v502 = vld [vmem:[#allocation2 + $0x400] sm:$0xff]
        %v503 = vld [vmem:[#allocation2 + $0x408] sm:$0xff]
        %v504 = vld [vmem:[#allocation2 + $0x410] sm:$0xff]
        %v505 = vld [vmem:[#allocation2 + $0x418] sm:$0xff]
        %v506 = vld [vmem:[#allocation2 + $0x420] sm:$0xff]
        %v507 = vld [vmem:[#allocation2 + $0x428] sm:$0xff]
        %v508 = vld [vmem:[#allocation2 + $0x430] sm:$0xff]
        %v509 = vld [vmem:[#allocation2 + $0x438] sm:$0xff]
        %v510 = vld [vmem:[#allocation2 + $0x440] sm:$0xff]
        %v511 = vld [vmem:[#allocation2 + $0x448] sm:$0xff]
        %v512 = vld [vmem:[#allocation2 + $0x450] sm:$0xff]
        %v513 = vld [vmem:[#allocation2 + $0x458] sm:$0xff]
        %v514 = vld [vmem:[#allocation2 + $0x460] sm:$0xff]
        %v515 = vld [vmem:[#allocation2 + $0x468] sm:$0xff]
        %v516 = vld [vmem:[#allocation2 + $0x470] sm:$0xff]
        %v517 = vld [vmem:[#allocation2 + $0x478] sm:$0xff]
        %v518 = vld [vmem:[#allocation2 + $0x480] sm:$0xff]
        %v519 = vld [vmem:[#allocation2 + $0x488] sm:$0xff]
        %v520 = vld [vmem:[#allocation2 + $0x490] sm:$0xff]
        %v521 = vld [vmem:[#allocation2 + $0x498] sm:$0xff]
        %v522 = vld [vmem:[#allocation2 + $0x4a0] sm:$0xff]
        %v523 = vld [vmem:[#allocation2 + $0x4a8] sm:$0xff]
        %v524 = vld [vmem:[#allocation2 + $0x4b0] sm:$0xff]
        %v525 = vld [vmem:[#allocation2 + $0x4b8] sm:$0xff]
        %v526 = vld [vmem:[#allocation2 + $0x4c0] sm:$0xff]
        %v527 = vld [vmem:[#allocation2 + $0x4c8] sm:$0xff]
        %v528 = vld [vmem:[#allocation2 + $0x4d0] sm:$0xff]
        %v529 = vld [vmem:[#allocation2 + $0x4d8] sm:$0xff]
        %v530 = vld [vmem:[#allocation2 + $0x4e0] sm:$0xff]
        %v531 = vld [vmem:[#allocation2 + $0x4e8] sm:$0xff]
        %v532 = vld [vmem:[#allocation2 + $0x4f0] sm:$0xff]
        %v533 = vld [vmem:[#allocation2 + $0x4f8] sm:$0xff]
        %v534 = vld [vmem:[#allocation2 + $0x500] sm:$0xff]
        %v535 = vld [vmem:[#allocation2 + $0x508] sm:$0xff]
        %v536 = vld [vmem:[#allocation2 + $0x510] sm:$0xff]
        %v537 = vld [vmem:[#allocation2 + $0x518] sm:$0xff]
        %v538 = vld [vmem:[#allocation2 + $0x520] sm:$0xff]
        %v539 = vld [vmem:[#allocation2 + $0x528] sm:$0xff]
        %v540 = vld [vmem:[#allocation2 + $0x530] sm:$0xff]
        %v541 = vld [vmem:[#allocation2 + $0x538] sm:$0xff]
        %v542 = vld [vmem:[#allocation2 + $0x540] sm:$0xff]
        %v543 = vld [vmem:[#allocation2 + $0x548] sm:$0xff]
        %v544 = vld [vmem:[#allocation2 + $0x550] sm:$0xff]
        %v545 = vld [vmem:[#allocation2 + $0x558] sm:$0xff]
        %v546 = vld [vmem:[#allocation2 + $0x560] sm:$0xff]
        %v547 = vld [vmem:[#allocation2 + $0x568] sm:$0xff]
        %v548 = vld [vmem:[#allocation2 + $0x570] sm:$0xff]
        %v549 = vld [vmem:[#allocation2 + $0x578] sm:$0xff]
        %v550 = vld [vmem:[#allocation2 + $0x580] sm:$0xff]
        %v551 = vld [vmem:[#allocation2 + $0x588] sm:$0xff]
        %v552 = vld [vmem:[#allocation2 + $0x590] sm:$0xff]
        %v553 = vld [vmem:[#allocation2 + $0x598] sm:$0xff]
        %v554 = vld [vmem:[#allocation2 + $0x5a0] sm:$0xff]
        %v555 = vld [vmem:[#allocation2 + $0x5a8] sm:$0xff]
        %v556 = vld [vmem:[#allocation2 + $0x5b0] sm:$0xff]
        %v557 = vld [vmem:[#allocation2 + $0x5b8] sm:$0xff]
        %v558 = vld [vmem:[#allocation2 + $0x5c0] sm:$0xff]
        %v559 = vld [vmem:[#allocation2 + $0x5c8] sm:$0xff]
        %v560 = vld [vmem:[#allocation2 + $0x5d0] sm:$0xff]
        %v561 = vld [vmem:[#allocation2 + $0x5d8] sm:$0xff]
        %v562 = vld [vmem:[#allocation2 + $0x5e0] sm:$0xff]
        %v563 = vld [vmem:[#allocation2 + $0x5e8] sm:$0xff]
        %v564 = vld [vmem:[#allocation2 + $0x5f0] sm:$0xff]
        %v565 = vld [vmem:[#allocation2 + $0x5f8] sm:$0xff]
        %v566 = vld [vmem:[#allocation2 + $0x600] sm:$0xff]
        %v567 = vld [vmem:[#allocation2 + $0x608] sm:$0xff]
        %v568 = vld [vmem:[#allocation2 + $0x610] sm:$0xff]
        %v569 = vld [vmem:[#allocation2 + $0x618] sm:$0xff]
        %v570 = vld [vmem:[#allocation2 + $0x620] sm:$0xff]
        %v571 = vld [vmem:[#allocation2 + $0x628] sm:$0xff]
        %v572 = vld [vmem:[#allocation2 + $0x630] sm:$0xff]
        %v573 = vld [vmem:[#allocation2 + $0x638] sm:$0xff]
        %v574 = vld [vmem:[#allocation2 + $0x640] sm:$0xff]
        %v575 = vld [vmem:[#allocation2 + $0x648] sm:$0xff]
        %v576 = vld [vmem:[#allocation2 + $0x650] sm:$0xff]
        %v577 = vld [vmem:[#allocation2 + $0x658] sm:$0xff]
        %v578 = vld [vmem:[#allocation2 + $0x660] sm:$0xff]
        %v579 = vld [vmem:[#allocation2 + $0x668] sm:$0xff]
        %v580 = vld [vmem:[#allocation2 + $0x670] sm:$0xff]
        %v581 = vld [vmem:[#allocation2 + $0x678] sm:$0xff]
        %v582 = vld [vmem:[#allocation2 + $0x680] sm:$0xff]
        %v583 = vld [vmem:[#allocation2 + $0x688] sm:$0xff]
        %v584 = vld [vmem:[#allocation2 + $0x690] sm:$0xff]
        %v585 = vld [vmem:[#allocation2 + $0x698] sm:$0xff]
        %v586 = vld [vmem:[#allocation2 + $0x6a0] sm:$0xff]
        %v587 = vld [vmem:[#allocation2 + $0x6a8] sm:$0xff]
        %v588 = vld [vmem:[#allocation2 + $0x6b0] sm:$0xff]
        %v589 = vld [vmem:[#allocation2 + $0x6b8] sm:$0xff]
        %v590 = vld [vmem:[#allocation2 + $0x6c0] sm:$0xff]
        %v591 = vld [vmem:[#allocation2 + $0x6c8] sm:$0xff]
        %v592 = vld [vmem:[#allocation2 + $0x6d0] sm:$0xff]
        %v593 = vld [vmem:[#allocation2 + $0x6d8] sm:$0xff]
        %v594 = vld [vmem:[#allocation2 + $0x6e0] sm:$0xff]
        %v595 = vld [vmem:[#allocation2 + $0x6e8] sm:$0xff]
        %v596 = vld [vmem:[#allocation2 + $0x6f0] sm:$0xff]
        %v597 = vld [vmem:[#allocation2 + $0x6f8] sm:$0xff]
        %v598 = vld [vmem:[#allocation2 + $0x700] sm:$0xff]
        %v599 = vld [vmem:[#allocation2 + $0x708] sm:$0xff]
        %v600 = vld [vmem:[#allocation2 + $0x710] sm:$0xff]
        %v601 = vld [vmem:[#allocation2 + $0x718] sm:$0xff]
        %v602 = vld [vmem:[#allocation2 + $0x720] sm:$0xff]
        %v603 = vld [vmem:[#allocation2 + $0x728] sm:$0xff]
        %v604 = vld [vmem:[#allocation2 + $0x730] sm:$0xff]
        %v605 = vld [vmem:[#allocation2 + $0x738] sm:$0xff]
        %v606 = vld [vmem:[#allocation2 + $0x740] sm:$0xff]
        %v607 = vld [vmem:[#allocation2 + $0x748] sm:$0xff]
        %v608 = vld [vmem:[#allocation2 + $0x750] sm:$0xff]
        %v609 = vld [vmem:[#allocation2 + $0x758] sm:$0xff]
        %v610 = vld [vmem:[#allocation2 + $0x760] sm:$0xff]
        %v611 = vld [vmem:[#allocation2 + $0x768] sm:$0xff]
        %v612 = vld [vmem:[#allocation2 + $0x770] sm:$0xff]
        %v613 = vld [vmem:[#allocation2 + $0x778] sm:$0xff]
        %v614 = vld [vmem:[#allocation2 + $0x780] sm:$0xff]
        %v615 = vld [vmem:[#allocation2 + $0x788] sm:$0xff]
        %v616 = vld [vmem:[#allocation2 + $0x790] sm:$0xff]
        %v617 = vld [vmem:[#allocation2 + $0x798] sm:$0xff]
        %v618 = vld [vmem:[#allocation2 + $0x7a0] sm:$0xff]
        %v619 = vld [vmem:[#allocation2 + $0x7a8] sm:$0xff]
        %v620 = vld [vmem:[#allocation2 + $0x7b0] sm:$0xff]
        %v621 = vld [vmem:[#allocation2 + $0x7b8] sm:$0xff]
        %v622 = vld [vmem:[#allocation2 + $0x7c0] sm:$0xff]
        %v623 = vld [vmem:[#allocation2 + $0x7c8] sm:$0xff]
        %v624 = vld [vmem:[#allocation2 + $0x7d0] sm:$0xff]
        %v625 = vld [vmem:[#allocation2 + $0x7d8] sm:$0xff]
        %v626 = vld [vmem:[#allocation2 + $0x7e0] sm:$0xff]
        %v627 = vld [vmem:[#allocation2 + $0x7e8] sm:$0xff]
        %v628 = vld [vmem:[#allocation2 + $0x7f0] sm:$0xff]
        %v629 = vld [vmem:[#allocation2 + $0x7f8] sm:$0xff]
        %v630 = vld [vmem:[#allocation2 + $0x800] sm:$0xff]
        %v631 = vld [vmem:[#allocation2 + $0x808] sm:$0xff]
        %v632 = vld [vmem:[#allocation2 + $0x810] sm:$0xff]
        %v633 = vld [vmem:[#allocation2 + $0x818] sm:$0xff]
        %v634 = vld [vmem:[#allocation2 + $0x820] sm:$0xff]
        %v635 = vld [vmem:[#allocation2 + $0x828] sm:$0xff]
        %v636 = vld [vmem:[#allocation2 + $0x830] sm:$0xff]
        %v637 = vld [vmem:[#allocation2 + $0x838] sm:$0xff]
        %v638 = vld [vmem:[#allocation2 + $0x840] sm:$0xff]
        %v639 = vld [vmem:[#allocation2 + $0x848] sm:$0xff]
        %v640 = vld [vmem:[#allocation2 + $0x850] sm:$0xff]
        %v641 = vld [vmem:[#allocation2 + $0x858] sm:$0xff]
        %v642 = vld [vmem:[#allocation2 + $0x860] sm:$0xff]
        %v643 = vld [vmem:[#allocation2 + $0x868] sm:$0xff]
        %v644 = vld [vmem:[#allocation2 + $0x870] sm:$0xff]
        %v645 = vld [vmem:[#allocation2 + $0x878] sm:$0xff]
        %v646 = vld [vmem:[#allocation2 + $0x880] sm:$0xff]
        %v647 = vld [vmem:[#allocation2 + $0x888] sm:$0xff]
        %v648 = vld [vmem:[#allocation2 + $0x890] sm:$0xff]
        %v649 = vld [vmem:[#allocation2 + $0x898] sm:$0xff]
        %v650 = vld [vmem:[#allocation2 + $0x8a0] sm:$0xff]
        %v651 = vld [vmem:[#allocation2 + $0x8a8] sm:$0xff]
        %v652 = vld [vmem:[#allocation2 + $0x8b0] sm:$0xff]
        %v653 = vld [vmem:[#allocation2 + $0x8b8] sm:$0xff]
        %v654 = vld [vmem:[#allocation2 + $0x8c0] sm:$0xff]
        %v655 = vld [vmem:[#allocation2 + $0x8c8] sm:$0xff]
        %v656 = vld [vmem:[#allocation2 + $0x8d0] sm:$0xff]
        %v657 = vld [vmem:[#allocation2 + $0x8d8] sm:$0xff]
        %v658 = vld [vmem:[#allocation2 + $0x8e0] sm:$0xff]
        %v659 = vld [vmem:[#allocation2 + $0x8e8] sm:$0xff]
        %v660 = vld [vmem:[#allocation2 + $0x8f0] sm:$0xff]
        %v661 = vld [vmem:[#allocation2 + $0x8f8] sm:$0xff]
        %v662 = vld [vmem:[#allocation2 + $0x900] sm:$0xff]
        %v663 = vld [vmem:[#allocation2 + $0x908] sm:$0xff]
        %v664 = vld [vmem:[#allocation2 + $0x910] sm:$0xff]
        %v665 = vld [vmem:[#allocation2 + $0x918] sm:$0xff]
        %v666 = vld [vmem:[#allocation2 + $0x920] sm:$0xff]
        %v667 = vld [vmem:[#allocation2 + $0x928] sm:$0xff]
        %v668 = vld [vmem:[#allocation2 + $0x930] sm:$0xff]
        %v669 = vld [vmem:[#allocation2 + $0x938] sm:$0xff]
        %v670 = vld [vmem:[#allocation2 + $0x940] sm:$0xff]
        %v671 = vld [vmem:[#allocation2 + $0x948] sm:$0xff]
        %v672 = vld [vmem:[#allocation2 + $0x950] sm:$0xff]
        %v673 = vld [vmem:[#allocation2 + $0x958] sm:$0xff]
        %v674 = vld [vmem:[#allocation2 + $0x960] sm:$0xff]
        %v675 = vld [vmem:[#allocation2 + $0x968] sm:$0xff]
        %v676 = vld [vmem:[#allocation2 + $0x970] sm:$0xff]
        %v677 = vld [vmem:[#allocation2 + $0x978] sm:$0xff]
        %v678 = vld [vmem:[#allocation2 + $0x980] sm:$0xff]
        %v679 = vld [vmem:[#allocation2 + $0x988] sm:$0xff]
        %v680 = vld [vmem:[#allocation2 + $0x990] sm:$0xff]
        %v681 = vld [vmem:[#allocation2 + $0x998] sm:$0xff]
        %v682 = vld [vmem:[#allocation2 + $0x9a0] sm:$0xff]
        %v683 = vld [vmem:[#allocation2 + $0x9a8] sm:$0xff]
        %v684 = vld [vmem:[#allocation2 + $0x9b0] sm:$0xff]
        %v685 = vld [vmem:[#allocation2 + $0x9b8] sm:$0xff]
        %v686 = vld [vmem:[#allocation2 + $0x9c0] sm:$0xff]
        %v687 = vld [vmem:[#allocation2 + $0x9c8] sm:$0xff]
        %v688 = vld [vmem:[#allocation2 + $0x9d0] sm:$0xff]
        %v689 = vld [vmem:[#allocation2 + $0x9d8] sm:$0xff]
        %v690 = vld [vmem:[#allocation2 + $0x9e0] sm:$0xff]
        %v691 = vld [vmem:[#allocation2 + $0x9e8] sm:$0xff]
        %v692 = vld [vmem:[#allocation2 + $0x9f0] sm:$0xff]
        %v693 = vld [vmem:[#allocation2 + $0x9f8] sm:$0xff]
        %v694 = vld [vmem:[#allocation2 + $0xa00] sm:$0xff]
        %v695 = vld [vmem:[#allocation2 + $0xa08] sm:$0xff]
        %v696 = vld [vmem:[#allocation2 + $0xa10] sm:$0xff]
        %v697 = vld [vmem:[#allocation2 + $0xa18] sm:$0xff]
        %v698 = vld [vmem:[#allocation2 + $0xa20] sm:$0xff]
        %v699 = vld [vmem:[#allocation2 + $0xa28] sm:$0xff]
        %v700 = vld [vmem:[#allocation2 + $0xa30] sm:$0xff]
        %v701 = vld [vmem:[#allocation2 + $0xa38] sm:$0xff]
        %v702 = vld [vmem:[#allocation2 + $0xa40] sm:$0xff]
        %v703 = vld [vmem:[#allocation2 + $0xa48] sm:$0xff]
        %v704 = vld [vmem:[#allocation2 + $0xa50] sm:$0xff]
        %v705 = vld [vmem:[#allocation2 + $0xa58] sm:$0xff]
        %v706 = vld [vmem:[#allocation2 + $0xa60] sm:$0xff]
        %v707 = vld [vmem:[#allocation2 + $0xa68] sm:$0xff]
        %v708 = vld [vmem:[#allocation2 + $0xa70] sm:$0xff]
        %v709 = vld [vmem:[#allocation2 + $0xa78] sm:$0xff]
        %v710 = vld [vmem:[#allocation2 + $0xa80] sm:$0xff]
        %v711 = vld [vmem:[#allocation2 + $0xa88] sm:$0xff]
        %v712 = vld [vmem:[#allocation2 + $0xa90] sm:$0xff]
        %v713 = vld [vmem:[#allocation2 + $0xa98] sm:$0xff]
        %v714 = vld [vmem:[#allocation2 + $0xaa0] sm:$0xff]
        %v715 = vld [vmem:[#allocation2 + $0xaa8] sm:$0xff]
        %v716 = vld [vmem:[#allocation2 + $0xab0] sm:$0xff]
        %v717 = vld [vmem:[#allocation2 + $0xab8] sm:$0xff]
        %v718 = vld [vmem:[#allocation2 + $0xac0] sm:$0xff]
        %v719 = vld [vmem:[#allocation2 + $0xac8] sm:$0xff]
        %v720 = vld [vmem:[#allocation2 + $0xad0] sm:$0xff]
        %v721 = vld [vmem:[#allocation2 + $0xad8] sm:$0xff]
        %v722 = vld [vmem:[#allocation2 + $0xae0] sm:$0xff]
        %v723 = vld [vmem:[#allocation2 + $0xae8] sm:$0xff]
        %v724 = vld [vmem:[#allocation2 + $0xaf0] sm:$0xff]
        %v725 = vld [vmem:[#allocation2 + $0xaf8] sm:$0xff]
        %v726 = vld [vmem:[#allocation2 + $0xb00] sm:$0xff]
        %v727 = vld [vmem:[#allocation2 + $0xb08] sm:$0xff]
        %v728 = vld [vmem:[#allocation2 + $0xb10] sm:$0xff]
        %v729 = vld [vmem:[#allocation2 + $0xb18] sm:$0xff]
        %v730 = vld [vmem:[#allocation2 + $0xb20] sm:$0xff]
        %v731 = vld [vmem:[#allocation2 + $0xb28] sm:$0xff]
        %v732 = vld [vmem:[#allocation2 + $0xb30] sm:$0xff]
        %v733 = vld [vmem:[#allocation2 + $0xb38] sm:$0xff]
        %v734 = vld [vmem:[#allocation2 + $0xb40] sm:$0xff]
        %v735 = vld [vmem:[#allocation2 + $0xb48] sm:$0xff]
        %v736 = vld [vmem:[#allocation2 + $0xb50] sm:$0xff]
        %v737 = vld [vmem:[#allocation2 + $0xb58] sm:$0xff]
        %v738 = vld [vmem:[#allocation2 + $0xb60] sm:$0xff]
        %v739 = vld [vmem:[#allocation2 + $0xb68] sm:$0xff]
        %v740 = vld [vmem:[#allocation2 + $0xb70] sm:$0xff]
        %v741 = vld [vmem:[#allocation2 + $0xb78] sm:$0xff]
        %v742 = vld [vmem:[#allocation2 + $0xb80] sm:$0xff]
        %v743 = vld [vmem:[#allocation2 + $0xb88] sm:$0xff]
        %v744 = vld [vmem:[#allocation2 + $0xb90] sm:$0xff]
        %v745 = vld [vmem:[#allocation2 + $0xb98] sm:$0xff]
        %v746 = vld [vmem:[#allocation2 + $0xba0] sm:$0xff]
        %v747 = vld [vmem:[#allocation2 + $0xba8] sm:$0xff]
        %v748 = vld [vmem:[#allocation2 + $0xbb0] sm:$0xff]
        %v749 = vld [vmem:[#allocation2 + $0xbb8] sm:$0xff]
        %v750 = vld [vmem:[#allocation2 + $0xbc0] sm:$0xff]
        %v751 = vld [vmem:[#allocation2 + $0xbc8] sm:$0xff]
        %v752 = vld [vmem:[#allocation2 + $0xbd0] sm:$0xff]
        %v753 = vld [vmem:[#allocation2 + $0xbd8] sm:$0xff]
        %v754 = vld [vmem:[#allocation2 + $0xbe0] sm:$0xff]
        %v755 = vld [vmem:[#allocation2 + $0xbe8] sm:$0xff]
        %v756 = vld [vmem:[#allocation2 + $0xbf0] sm:$0xff]
        %v757 = vld [vmem:[#allocation2 + $0xbf8] sm:$0xff]
        %v758 = vld [vmem:[#allocation2 + $0xc00] sm:$0xff]
        %v759 = vld [vmem:[#allocation2 + $0xc08] sm:$0xff]
        %v760 = vld [vmem:[#allocation2 + $0xc10] sm:$0xff]
        %v761 = vld [vmem:[#allocation2 + $0xc18] sm:$0xff]
        %v762 = vld [vmem:[#allocation2 + $0xc20] sm:$0xff]
        %v763 = vld [vmem:[#allocation2 + $0xc28] sm:$0xff]
        %v764 = vld [vmem:[#allocation2 + $0xc30] sm:$0xff]
        %v765 = vld [vmem:[#allocation2 + $0xc38] sm:$0xff]
        %v766 = vld [vmem:[#allocation2 + $0xc40] sm:$0xff]
        %v767 = vld [vmem:[#allocation2 + $0xc48] sm:$0xff]
        %v768 = vld [vmem:[#allocation2 + $0xc50] sm:$0xff]
        %v769 = vld [vmem:[#allocation2 + $0xc58] sm:$0xff]
        %v770 = vld [vmem:[#allocation2 + $0xc60] sm:$0xff]
        %v771 = vld [vmem:[#allocation2 + $0xc68] sm:$0xff]
        %v772 = vld [vmem:[#allocation2 + $0xc70] sm:$0xff]
        %v773 = vld [vmem:[#allocation2 + $0xc78] sm:$0xff]
        %v774 = vld [vmem:[#allocation2 + $0xc80] sm:$0xff]
        %v775 = vld [vmem:[#allocation2 + $0xc88] sm:$0xff]
        %v776 = vld [vmem:[#allocation2 + $0xc90] sm:$0xff]
        %v777 = vld [vmem:[#allocation2 + $0xc98] sm:$0xff]
        %v778 = vld [vmem:[#allocation2 + $0xca0] sm:$0xff]
        %v779 = vld [vmem:[#allocation2 + $0xca8] sm:$0xff]
        %v780 = vld [vmem:[#allocation2 + $0xcb0] sm:$0xff]
        %v781 = vld [vmem:[#allocation2 + $0xcb8] sm:$0xff]
        %v782 = vld [vmem:[#allocation2 + $0xcc0] sm:$0xff]
        %v783 = vld [vmem:[#allocation2 + $0xcc8] sm:$0xff]
        %v784 = vld [vmem:[#allocation2 + $0xcd0] sm:$0xff]
        %v785 = vld [vmem:[#allocation2 + $0xcd8] sm:$0xff]
        %v786 = vld [vmem:[#allocation2 + $0xce0] sm:$0xff]
        %v787 = vld [vmem:[#allocation2 + $0xce8] sm:$0xff]
        %v788 = vld [vmem:[#allocation2 + $0xcf0] sm:$0xff]
        %v789 = vld [vmem:[#allocation2 + $0xcf8] sm:$0xff]
        %v790 = vld [vmem:[#allocation2 + $0xd00] sm:$0xff]
        %v791 = vld [vmem:[#allocation2 + $0xd08] sm:$0xff]
        %v792 = vld [vmem:[#allocation2 + $0xd10] sm:$0xff]
        %v793 = vld [vmem:[#allocation2 + $0xd18] sm:$0xff]
        %v794 = vld [vmem:[#allocation2 + $0xd20] sm:$0xff]
        %v795 = vld [vmem:[#allocation2 + $0xd28] sm:$0xff]
        %v796 = vld [vmem:[#allocation2 + $0xd30] sm:$0xff]
        %v797 = vld [vmem:[#allocation2 + $0xd38] sm:$0xff]
        %v798 = vld [vmem:[#allocation2 + $0xd40] sm:$0xff]
        %v799 = vld [vmem:[#allocation2 + $0xd48] sm:$0xff]
        %v800 = vld [vmem:[#allocation2 + $0xd50] sm:$0xff]
        %v801 = vld [vmem:[#allocation2 + $0xd58] sm:$0xff]
        %v802 = vld [vmem:[#allocation2 + $0xd60] sm:$0xff]
        %v803 = vld [vmem:[#allocation2 + $0xd68] sm:$0xff]
        %v804 = vld [vmem:[#allocation2 + $0xd70] sm:$0xff]
        %v805 = vld [vmem:[#allocation2 + $0xd78] sm:$0xff]
        %v806 = vld [vmem:[#allocation2 + $0xd80] sm:$0xff]
        %v807 = vld [vmem:[#allocation2 + $0xd88] sm:$0xff]
        %v808 = vld [vmem:[#allocation2 + $0xd90] sm:$0xff]
        %v809 = vld [vmem:[#allocation2 + $0xd98] sm:$0xff]
        %v810 = vld [vmem:[#allocation2 + $0xda0] sm:$0xff]
        %v811 = vld [vmem:[#allocation2 + $0xda8] sm:$0xff]
        %v812 = vld [vmem:[#allocation2 + $0xdb0] sm:$0xff]
        %v813 = vld [vmem:[#allocation2 + $0xdb8] sm:$0xff]
        %v814 = vld [vmem:[#allocation2 + $0xdc0] sm:$0xff]
        %v815 = vld [vmem:[#allocation2 + $0xdc8] sm:$0xff]
        %v816 = vld [vmem:[#allocation2 + $0xdd0] sm:$0xff]
        %v817 = vld [vmem:[#allocation2 + $0xdd8] sm:$0xff]
        %v818 = vld [vmem:[#allocation2 + $0xde0] sm:$0xff]
        %v819 = vld [vmem:[#allocation2 + $0xde8] sm:$0xff]
        %v820 = vld [vmem:[#allocation2 + $0xdf0] sm:$0xff]
        %v821 = vld [vmem:[#allocation2 + $0xdf8] sm:$0xff]
        %v822 = vld [vmem:[#allocation2 + $0xe00] sm:$0xff]
        %v823 = vld [vmem:[#allocation2 + $0xe08] sm:$0xff]
        %v824 = vld [vmem:[#allocation2 + $0xe10] sm:$0xff]
        %v825 = vld [vmem:[#allocation2 + $0xe18] sm:$0xff]
        %v826 = vld [vmem:[#allocation2 + $0xe20] sm:$0xff]
        %v827 = vld [vmem:[#allocation2 + $0xe28] sm:$0xff]
        %v828 = vld [vmem:[#allocation2 + $0xe30] sm:$0xff]
        %v829 = vld [vmem:[#allocation2 + $0xe38] sm:$0xff]
        %v830 = vld [vmem:[#allocation2 + $0xe40] sm:$0xff]
        %v831 = vld [vmem:[#allocation2 + $0xe48] sm:$0xff]
        %v832 = vld [vmem:[#allocation2 + $0xe50] sm:$0xff]
        %v833 = vld [vmem:[#allocation2 + $0xe58] sm:$0xff]
        %v834 = vld [vmem:[#allocation2 + $0xe60] sm:$0xff]
        %v835 = vld [vmem:[#allocation2 + $0xe68] sm:$0xff]
        %v836 = vld [vmem:[#allocation2 + $0xe70] sm:$0xff]
        %v837 = vld [vmem:[#allocation2 + $0xe78] sm:$0xff]
        %v838 = vld [vmem:[#allocation2 + $0xe80] sm:$0xff]
        %v839 = vld [vmem:[#allocation2 + $0xe88] sm:$0xff]
        %v840 = vld [vmem:[#allocation2 + $0xe90] sm:$0xff]
        %v841 = vld [vmem:[#allocation2 + $0xe98] sm:$0xff]
        %v842 = vld [vmem:[#allocation2 + $0xea0] sm:$0xff]
        %v843 = vld [vmem:[#allocation2 + $0xea8] sm:$0xff]
        %v844 = vld [vmem:[#allocation2 + $0xeb0] sm:$0xff]
        %v845 = vld [vmem:[#allocation2 + $0xeb8] sm:$0xff]
        %v846 = vld [vmem:[#allocation2 + $0xec0] sm:$0xff]
        %v847 = vld [vmem:[#allocation2 + $0xec8] sm:$0xff]
        %v848 = vld [vmem:[#allocation2 + $0xed0] sm:$0xff]
        %v849 = vld [vmem:[#allocation2 + $0xed8] sm:$0xff]
        %v850 = vld [vmem:[#allocation2 + $0xee0] sm:$0xff]
        %v851 = vld [vmem:[#allocation2 + $0xee8] sm:$0xff]
        %v852 = vld [vmem:[#allocation2 + $0xef0] sm:$0xff]
        %v853 = vld [vmem:[#allocation2 + $0xef8] sm:$0xff]
        %v854 = vld [vmem:[#allocation2 + $0xf00] sm:$0xff]
        %v855 = vld [vmem:[#allocation2 + $0xf08] sm:$0xff]
        %v856 = vld [vmem:[#allocation2 + $0xf10] sm:$0xff]
        %v857 = vld [vmem:[#allocation2 + $0xf18] sm:$0xff]
        %v858 = vld [vmem:[#allocation2 + $0xf20] sm:$0xff]
        %v859 = vld [vmem:[#allocation2 + $0xf28] sm:$0xff]
        %v860 = vld [vmem:[#allocation2 + $0xf30] sm:$0xff]
        %v861 = vld [vmem:[#allocation2 + $0xf38] sm:$0xff]
        %v862 = vld [vmem:[#allocation2 + $0xf40] sm:$0xff]
        %v863 = vld [vmem:[#allocation2 + $0xf48] sm:$0xff]
        %v864 = vld [vmem:[#allocation2 + $0xf50] sm:$0xff]
        %v865 = vld [vmem:[#allocation2 + $0xf58] sm:$0xff]
        %v866 = vld [vmem:[#allocation2 + $0xf60] sm:$0xff]
        %v867 = vld [vmem:[#allocation2 + $0xf68] sm:$0xff]
        %v868 = vld [vmem:[#allocation2 + $0xf70] sm:$0xff]
        %v869 = vld [vmem:[#allocation2 + $0xf78] sm:$0xff]
        %v870 = vld [vmem:[#allocation2 + $0xf80] sm:$0xff]
        %v871 = vld [vmem:[#allocation2 + $0xf88] sm:$0xff]
        %v872 = vld [vmem:[#allocation2 + $0xf90] sm:$0xff]
        %v873 = vld [vmem:[#allocation2 + $0xf98] sm:$0xff]
        %v874 = vld [vmem:[#allocation2 + $0xfa0] sm:$0xff]
        %v875 = vld [vmem:[#allocation2 + $0xfa8] sm:$0xff]
        %v876 = vld [vmem:[#allocation2 + $0xfb0] sm:$0xff]
        %v877 = vld [vmem:[#allocation2 + $0xfb8] sm:$0xff]
        %v878 = vld [vmem:[#allocation2 + $0xfc0] sm:$0xff]
        %v879 = vld [vmem:[#allocation2 + $0xfc8] sm:$0xff]
        %v880 = vld [vmem:[#allocation2 + $0xfd0] sm:$0xff]
        %v881 = vld [vmem:[#allocation2 + $0xfd8] sm:$0xff]
        %v882 = vld [vmem:[#allocation2 + $0xfe0] sm:$0xff]
        %v883 = vld [vmem:[#allocation2 + $0xfe8] sm:$0xff]
        %v884 = vld [vmem:[#allocation2 + $0xff0] sm:$0xff]
        %v885 = vld [vmem:[#allocation2 + $0xff8] sm:$0xff]
        %v886 = vld [vmem:[#allocation2 + $0x1000] sm:$0xff]
        %v887 = vld [vmem:[#allocation2 + $0x1008] sm:$0xff]
        %v888 = vld [vmem:[#allocation2 + $0x1010] sm:$0xff]
        %v889 = vld [vmem:[#allocation2 + $0x1018] sm:$0xff]
        %v890 = vld [vmem:[#allocation2 + $0x1020] sm:$0xff]
        %v891 = vld [vmem:[#allocation2 + $0x1028] sm:$0xff]
        %v892 = vld [vmem:[#allocation2 + $0x1030] sm:$0xff]
        %v893 = vld [vmem:[#allocation2 + $0x1038] sm:$0xff]
        %v894 = vld [vmem:[#allocation2 + $0x1040] sm:$0xff]
        %v895 = vld [vmem:[#allocation2 + $0x1048] sm:$0xff]
        %v896 = vld [vmem:[#allocation2 + $0x1050] sm:$0xff]
        %v897 = vld [vmem:[#allocation2 + $0x1058] sm:$0xff]
        %v898 = vld [vmem:[#allocation2 + $0x1060] sm:$0xff]
        %v899 = vld [vmem:[#allocation2 + $0x1068] sm:$0xff]
        %v900 = vld [vmem:[#allocation2 + $0x1070] sm:$0xff]
        %v901 = vld [vmem:[#allocation2 + $0x1078] sm:$0xff]
        %v902 = vld [vmem:[#allocation2 + $0x1080] sm:$0xff]
        %v903 = vld [vmem:[#allocation2 + $0x1088] sm:$0xff]
        %v904 = vld [vmem:[#allocation2 + $0x1090] sm:$0xff]
        %v905 = vld [vmem:[#allocation2 + $0x1098] sm:$0xff]
        %v906 = vld [vmem:[#allocation2 + $0x10a0] sm:$0xff]
        %v907 = vld [vmem:[#allocation2 + $0x10a8] sm:$0xff]
        %v908 = vld [vmem:[#allocation2 + $0x10b0] sm:$0xff]
        %v909 = vld [vmem:[#allocation2 + $0x10b8] sm:$0xff]
        %v910 = vld [vmem:[#allocation2 + $0x10c0] sm:$0xff]
        %v911 = vld [vmem:[#allocation2 + $0x10c8] sm:$0xff]
        %v912 = vld [vmem:[#allocation2 + $0x10d0] sm:$0xff]
        %v913 = vld [vmem:[#allocation2 + $0x10d8] sm:$0xff]
        %v914 = vld [vmem:[#allocation2 + $0x10e0] sm:$0xff]
        %v915 = vld [vmem:[#allocation2 + $0x10e8] sm:$0xff]
        %v916 = vld [vmem:[#allocation2 + $0x10f0] sm:$0xff]
        %v917 = vld [vmem:[#allocation2 + $0x10f8] sm:$0xff]
        %v918 = vld [vmem:[#allocation2 + $0x1100] sm:$0xff]
        %v919 = vld [vmem:[#allocation2 + $0x1108] sm:$0xff]
        %v920 = vld [vmem:[#allocation2 + $0x1110] sm:$0xff]
        %v921 = vld [vmem:[#allocation2 + $0x1118] sm:$0xff]
        %v922 = vld [vmem:[#allocation2 + $0x1120] sm:$0xff]
        %v923 = vld [vmem:[#allocation2 + $0x1128] sm:$0xff]
        %v924 = vld [vmem:[#allocation2 + $0x1130] sm:$0xff]
        %v925 = vld [vmem:[#allocation2 + $0x1138] sm:$0xff]
        %v926 = vld [vmem:[#allocation2 + $0x1140] sm:$0xff]
        %v927 = vld [vmem:[#allocation2 + $0x1148] sm:$0xff]
        %v928 = vld [vmem:[#allocation2 + $0x1150] sm:$0xff]
        %v929 = vld [vmem:[#allocation2 + $0x1158] sm:$0xff]
        %v930 = vld [vmem:[#allocation2 + $0x1160] sm:$0xff]
        %v931 = vld [vmem:[#allocation2 + $0x1168] sm:$0xff]
        %v932 = vld [vmem:[#allocation2 + $0x1170] sm:$0xff]
        %v933 = vld [vmem:[#allocation2 + $0x1178] sm:$0xff]
        %v934 = vld [vmem:[#allocation2 + $0x1180] sm:$0xff]
        %v935 = vld [vmem:[#allocation2 + $0x1188] sm:$0xff]
        %v936 = vld [vmem:[#allocation2 + $0x1190] sm:$0xff]
        %v937 = vld [vmem:[#allocation2 + $0x1198] sm:$0xff]
        %v938 = vld [vmem:[#allocation2 + $0x11a0] sm:$0xff]
        %v939 = vld [vmem:[#allocation2 + $0x11a8] sm:$0xff]
        %v940 = vld [vmem:[#allocation2 + $0x11b0] sm:$0xff]
        %v941 = vld [vmem:[#allocation2 + $0x11b8] sm:$0xff]
        %v942 = vld [vmem:[#allocation2 + $0x11c0] sm:$0xff]
        %v943 = vld [vmem:[#allocation2 + $0x11c8] sm:$0xff]
        %v944 = vld [vmem:[#allocation2 + $0x11d0] sm:$0xff]
        %v945 = vld [vmem:[#allocation2 + $0x11d8] sm:$0xff]
        %v946 = vld [vmem:[#allocation2 + $0x11e0] sm:$0xff]
        %v947 = vld [vmem:[#allocation2 + $0x11e8] sm:$0xff]
        %v948 = vld [vmem:[#allocation2 + $0x11f0] sm:$0xff]
        %v949 = vld [vmem:[#allocation2 + $0x11f8] sm:$0xff]
        %v950 = vld [vmem:[#allocation4] sm:$0xff]
        %v951 = vld [vmem:[#allocation4 + $0x8] sm:$0xf]
        %v954 = vperm.slane %v950, 0
        %v955 = vperm.slane %v950, 1
        %v956 = vperm.slane %v950, 2
        %v957 = vperm.slane %v950, 3
        %v958 = vperm.slane %v950, 4
        %v959 = vperm.slane %v950, 5
        %v960 = vperm.slane %v950, 6
        %v961 = vperm.slane %v950, 7
        %v962 = vperm.slane %v951, 0
        %v963 = vperm.slane %v951, 1
        %v964 = vperm.slane %v951, 2
        %v965 = vperm.slane %v951, 3
        %978 = vmatpush.msra.mxu0 %v554
        %979 = vmatpush.msra.mxu0 %v542
        %980 = vmatpush.msra.mxu0 %v530
        %981 = vmatpush.msra.mxu0 %v518
        %982 = vmatpush.msra.mxu0 %v506
        %983 = vmatpush.msra.mxu0 %v494
        %984 = vmatpush.msra.mxu0 %v482
        %985 = vmatpush.msra.mxu0 %v470
        %986 = vmatpush.msra.mxu0 %v458
        %987 = vmatpush.msra.mxu0 %v446
        %988 = vmatpush.msra.mxu0 %v434
        %989 = vmatpush.msra.mxu0 %v422
        %990 = vmatpush.msra.mxu0 %v410
        %991 = vmatpush.msra.mxu0 %v398
        %992 = vmatpush.msra.mxu0 %v386
        %993 = vmatpush.msra.mxu0 %v374
        %994 = vmatmul.f32.gmra.mxu0 %v371
        %v995 = vpop.f32.mrf.mxu0
        %v996 = vadd.f32 %v954, %v995
        %997 = vdwg.mxu0
        %998 = vmatpush.msra.mxu0 %v746
        %999 = vmatpush.msra.mxu0 %v734
        %1000 = vmatpush.msra.mxu0 %v722
        %1001 = vmatpush.msra.mxu0 %v710
        %1002 = vmatpush.msra.mxu0 %v698
        %1003 = vmatpush.msra.mxu0 %v686
        %1004 = vmatpush.msra.mxu0 %v674
        %1005 = vmatpush.msra.mxu0 %v662
        %1006 = vmatpush.msra.mxu0 %v650
        %1007 = vmatpush.msra.mxu0 %v638
        %1008 = vmatpush.msra.mxu0 %v626
        %1009 = vmatpush.msra.mxu0 %v614
        %1010 = vmatpush.msra.mxu0 %v602
        %1011 = vmatpush.msra.mxu0 %v590
        %1012 = vmatpush.msra.mxu0 %v578
        %1013 = vmatpush.msra.mxu0 %v566
        %1014 = vmatmul.f32.gmra.mxu0 %v372
        %v1015 = vpop.f32.mrf.mxu0
        %v1016 = vadd.f32 %v996, %v1015
        %1017 = vdwg.mxu0
        %1018 = vmatpush.msra.mxu0 %v938
        %1019 = vmatpush.msra.mxu0 %v926
        %1020 = vmatpush.msra.mxu0 %v914
        %1021 = vmatpush.msra.mxu0 %v902
        %1022 = vmatpush.msra.mxu0 %v890
        %1023 = vmatpush.msra.mxu0 %v878
        %1024 = vmatpush.msra.mxu0 %v866
        %1025 = vmatpush.msra.mxu0 %v854
        %1026 = vmatpush.msra.mxu0 %v842
        %1027 = vmatpush.msra.mxu0 %v830
        %1028 = vmatpush.msra.mxu0 %v818
        %1029 = vmatpush.msra.mxu0 %v806
        %1030 = vmatpush.msra.mxu0 %v794
        %1031 = vmatpush.msra.mxu0 %v782
        %1032 = vmatpush.msra.mxu0 %v770
        %1033 = vmatpush.msra.mxu0 %v758
        %1034 = vmatmul.f32.gmra.mxu0 %v373
        %v1035 = vpop.f32.mrf.mxu0
        %v1036 = vadd.f32 %v1016, %v1035
        %1037 = vdwg.mxu0
        %1038 = vmatpush.msra.mxu0 %v555
        %1039 = vmatpush.msra.mxu0 %v543
        %1040 = vmatpush.msra.mxu0 %v531
        %1041 = vmatpush.msra.mxu0 %v519
        %1042 = vmatpush.msra.mxu0 %v507
        %1043 = vmatpush.msra.mxu0 %v495
        %1044 = vmatpush.msra.mxu0 %v483
        %1045 = vmatpush.msra.mxu0 %v471
        %1046 = vmatpush.msra.mxu0 %v459
        %1047 = vmatpush.msra.mxu0 %v447
        %1048 = vmatpush.msra.mxu0 %v435
        %1049 = vmatpush.msra.mxu0 %v423
        %1050 = vmatpush.msra.mxu0 %v411
        %1051 = vmatpush.msra.mxu0 %v399
        %1052 = vmatpush.msra.mxu0 %v387
        %1053 = vmatpush.msra.mxu0 %v375
        %1054 = vmatmul.f32.gmra.mxu0 %v371
        %v1055 = vpop.f32.mrf.mxu0
        %v1056 = vadd.f32 %v955, %v1055
        %1057 = vdwg.mxu0
        %1058 = vmatpush.msra.mxu0 %v747
        %1059 = vmatpush.msra.mxu0 %v735
        %1060 = vmatpush.msra.mxu0 %v723
        %1061 = vmatpush.msra.mxu0 %v711
        %1062 = vmatpush.msra.mxu0 %v699
        %1063 = vmatpush.msra.mxu0 %v687
        %1064 = vmatpush.msra.mxu0 %v675
        %1065 = vmatpush.msra.mxu0 %v663
        %1066 = vmatpush.msra.mxu0 %v651
        %1067 = vmatpush.msra.mxu0 %v639
        %1068 = vmatpush.msra.mxu0 %v627
        %1069 = vmatpush.msra.mxu0 %v615
        %1070 = vmatpush.msra.mxu0 %v603
        %1071 = vmatpush.msra.mxu0 %v591
        %1072 = vmatpush.msra.mxu0 %v579
        %1073 = vmatpush.msra.mxu0 %v567
        %1074 = vmatmul.f32.gmra.mxu0 %v372
        %v1075 = vpop.f32.mrf.mxu0
        %v1076 = vadd.f32 %v1056, %v1075
        %1077 = vdwg.mxu0
        %1078 = vmatpush.msra.mxu0 %v939
        %1079 = vmatpush.msra.mxu0 %v927
        %1080 = vmatpush.msra.mxu0 %v915
        %1081 = vmatpush.msra.mxu0 %v903
        %1082 = vmatpush.msra.mxu0 %v891
        %1083 = vmatpush.msra.mxu0 %v879
        %1084 = vmatpush.msra.mxu0 %v867
        %1085 = vmatpush.msra.mxu0 %v855
        %1086 = vmatpush.msra.mxu0 %v843
        %1087 = vmatpush.msra.mxu0 %v831
        %1088 = vmatpush.msra.mxu0 %v819
        %1089 = vmatpush.msra.mxu0 %v807
        %1090 = vmatpush.msra.mxu0 %v795
        %1091 = vmatpush.msra.mxu0 %v783
        %1092 = vmatpush.msra.mxu0 %v771
        %1093 = vmatpush.msra.mxu0 %v759
        %1094 = vmatmul.f32.gmra.mxu0 %v373
        %v1095 = vpop.f32.mrf.mxu0
        %v1096 = vadd.f32 %v1076, %v1095
        %1097 = vdwg.mxu0
        %1098 = vmatpush.msra.mxu0 %v556
        %1099 = vmatpush.msra.mxu0 %v544
        %1100 = vmatpush.msra.mxu0 %v532
        %1101 = vmatpush.msra.mxu0 %v520
        %1102 = vmatpush.msra.mxu0 %v508
        %1103 = vmatpush.msra.mxu0 %v496
        %1104 = vmatpush.msra.mxu0 %v484
        %1105 = vmatpush.msra.mxu0 %v472
        %1106 = vmatpush.msra.mxu0 %v460
        %1107 = vmatpush.msra.mxu0 %v448
        %1108 = vmatpush.msra.mxu0 %v436
        %1109 = vmatpush.msra.mxu0 %v424
        %1110 = vmatpush.msra.mxu0 %v412
        %1111 = vmatpush.msra.mxu0 %v400
        %1112 = vmatpush.msra.mxu0 %v388
        %1113 = vmatpush.msra.mxu0 %v376
        %1114 = vmatmul.f32.gmra.mxu0 %v371
        %v1115 = vpop.f32.mrf.mxu0
        %v1116 = vadd.f32 %v956, %v1115
        %1117 = vdwg.mxu0
        %1118 = vmatpush.msra.mxu0 %v748
        %1119 = vmatpush.msra.mxu0 %v736
        %1120 = vmatpush.msra.mxu0 %v724
        %1121 = vmatpush.msra.mxu0 %v712
        %1122 = vmatpush.msra.mxu0 %v700
        %1123 = vmatpush.msra.mxu0 %v688
        %1124 = vmatpush.msra.mxu0 %v676
        %1125 = vmatpush.msra.mxu0 %v664
        %1126 = vmatpush.msra.mxu0 %v652
        %1127 = vmatpush.msra.mxu0 %v640
        %1128 = vmatpush.msra.mxu0 %v628
        %1129 = vmatpush.msra.mxu0 %v616
        %1130 = vmatpush.msra.mxu0 %v604
        %1131 = vmatpush.msra.mxu0 %v592
        %1132 = vmatpush.msra.mxu0 %v580
        %1133 = vmatpush.msra.mxu0 %v568
        %1134 = vmatmul.f32.gmra.mxu0 %v372
        %v1135 = vpop.f32.mrf.mxu0
        %v1136 = vadd.f32 %v1116, %v1135
        %1137 = vdwg.mxu0
        %1138 = vmatpush.msra.mxu0 %v940
        %1139 = vmatpush.msra.mxu0 %v928
        %1140 = vmatpush.msra.mxu0 %v916
        %1141 = vmatpush.msra.mxu0 %v904
        %1142 = vmatpush.msra.mxu0 %v892
        %1143 = vmatpush.msra.mxu0 %v880
        %1144 = vmatpush.msra.mxu0 %v868
        %1145 = vmatpush.msra.mxu0 %v856
        %1146 = vmatpush.msra.mxu0 %v844
        %1147 = vmatpush.msra.mxu0 %v832
        %1148 = vmatpush.msra.mxu0 %v820
        %1149 = vmatpush.msra.mxu0 %v808
        %1150 = vmatpush.msra.mxu0 %v796
        %1151 = vmatpush.msra.mxu0 %v784
        %1152 = vmatpush.msra.mxu0 %v772
        %1153 = vmatpush.msra.mxu0 %v760
        %1154 = vmatmul.f32.gmra.mxu0 %v373
        %v1155 = vpop.f32.mrf.mxu0
        %v1156 = vadd.f32 %v1136, %v1155
        %1157 = vdwg.mxu0
        %1158 = vmatpush.msra.mxu0 %v557
        %1159 = vmatpush.msra.mxu0 %v545
        %1160 = vmatpush.msra.mxu0 %v533
        %1161 = vmatpush.msra.mxu0 %v521
        %1162 = vmatpush.msra.mxu0 %v509
        %1163 = vmatpush.msra.mxu0 %v497
        %1164 = vmatpush.msra.mxu0 %v485
        %1165 = vmatpush.msra.mxu0 %v473
        %1166 = vmatpush.msra.mxu0 %v461
        %1167 = vmatpush.msra.mxu0 %v449
        %1168 = vmatpush.msra.mxu0 %v437
        %1169 = vmatpush.msra.mxu0 %v425
        %1170 = vmatpush.msra.mxu0 %v413
        %1171 = vmatpush.msra.mxu0 %v401
        %1172 = vmatpush.msra.mxu0 %v389
        %1173 = vmatpush.msra.mxu0 %v377
        %1174 = vmatmul.f32.gmra.mxu0 %v371
        %v1175 = vpop.f32.mrf.mxu0
        %v1176 = vadd.f32 %v957, %v1175
        %1177 = vdwg.mxu0
        %1178 = vmatpush.msra.mxu0 %v749
        %1179 = vmatpush.msra.mxu0 %v737
        %1180 = vmatpush.msra.mxu0 %v725
        %1181 = vmatpush.msra.mxu0 %v713
        %1182 = vmatpush.msra.mxu0 %v701
        %1183 = vmatpush.msra.mxu0 %v689
        %1184 = vmatpush.msra.mxu0 %v677
        %1185 = vmatpush.msra.mxu0 %v665
        %1186 = vmatpush.msra.mxu0 %v653
        %1187 = vmatpush.msra.mxu0 %v641
        %1188 = vmatpush.msra.mxu0 %v629
        %1189 = vmatpush.msra.mxu0 %v617
        %1190 = vmatpush.msra.mxu0 %v605
        %1191 = vmatpush.msra.mxu0 %v593
        %1192 = vmatpush.msra.mxu0 %v581
        %1193 = vmatpush.msra.mxu0 %v569
        %1194 = vmatmul.f32.gmra.mxu0 %v372
        %v1195 = vpop.f32.mrf.mxu0
        %v1196 = vadd.f32 %v1176, %v1195
        %1197 = vdwg.mxu0
        %1198 = vmatpush.msra.mxu0 %v941
        %1199 = vmatpush.msra.mxu0 %v929
        %1200 = vmatpush.msra.mxu0 %v917
        %1201 = vmatpush.msra.mxu0 %v905
        %1202 = vmatpush.msra.mxu0 %v893
        %1203 = vmatpush.msra.mxu0 %v881
        %1204 = vmatpush.msra.mxu0 %v869
        %1205 = vmatpush.msra.mxu0 %v857
        %1206 = vmatpush.msra.mxu0 %v845
        %1207 = vmatpush.msra.mxu0 %v833
        %1208 = vmatpush.msra.mxu0 %v821
        %1209 = vmatpush.msra.mxu0 %v809
        %1210 = vmatpush.msra.mxu0 %v797
        %1211 = vmatpush.msra.mxu0 %v785
        %1212 = vmatpush.msra.mxu0 %v773
        %1213 = vmatpush.msra.mxu0 %v761
        %1214 = vmatmul.f32.gmra.mxu0 %v373
        %v1215 = vpop.f32.mrf.mxu0
        %v1216 = vadd.f32 %v1196, %v1215
        %1217 = vdwg.mxu0
        %1218 = vmatpush.msra.mxu0 %v558
        %1219 = vmatpush.msra.mxu0 %v546
        %1220 = vmatpush.msra.mxu0 %v534
        %1221 = vmatpush.msra.mxu0 %v522
        %1222 = vmatpush.msra.mxu0 %v510
        %1223 = vmatpush.msra.mxu0 %v498
        %1224 = vmatpush.msra.mxu0 %v486
        %1225 = vmatpush.msra.mxu0 %v474
        %1226 = vmatpush.msra.mxu0 %v462
        %1227 = vmatpush.msra.mxu0 %v450
        %1228 = vmatpush.msra.mxu0 %v438
        %1229 = vmatpush.msra.mxu0 %v426
        %1230 = vmatpush.msra.mxu0 %v414
        %1231 = vmatpush.msra.mxu0 %v402
        %1232 = vmatpush.msra.mxu0 %v390
        %1233 = vmatpush.msra.mxu0 %v378
        %1234 = vmatmul.f32.gmra.mxu0 %v371
        %v1235 = vpop.f32.mrf.mxu0
        %v1236 = vadd.f32 %v958, %v1235
        %1237 = vdwg.mxu0
        %1238 = vmatpush.msra.mxu0 %v750
        %1239 = vmatpush.msra.mxu0 %v738
        %1240 = vmatpush.msra.mxu0 %v726
        %1241 = vmatpush.msra.mxu0 %v714
        %1242 = vmatpush.msra.mxu0 %v702
        %1243 = vmatpush.msra.mxu0 %v690
        %1244 = vmatpush.msra.mxu0 %v678
        %1245 = vmatpush.msra.mxu0 %v666
        %1246 = vmatpush.msra.mxu0 %v654
        %1247 = vmatpush.msra.mxu0 %v642
        %1248 = vmatpush.msra.mxu0 %v630
        %1249 = vmatpush.msra.mxu0 %v618
        %1250 = vmatpush.msra.mxu0 %v606
        %1251 = vmatpush.msra.mxu0 %v594
        %1252 = vmatpush.msra.mxu0 %v582
        %1253 = vmatpush.msra.mxu0 %v570
        %1254 = vmatmul.f32.gmra.mxu0 %v372
        %v1255 = vpop.f32.mrf.mxu0
        %v1256 = vadd.f32 %v1236, %v1255
        %1257 = vdwg.mxu0
        %1258 = vmatpush.msra.mxu0 %v942
        %1259 = vmatpush.msra.mxu0 %v930
        %1260 = vmatpush.msra.mxu0 %v918
        %1261 = vmatpush.msra.mxu0 %v906
        %1262 = vmatpush.msra.mxu0 %v894
        %1263 = vmatpush.msra.mxu0 %v882
        %1264 = vmatpush.msra.mxu0 %v870
        %1265 = vmatpush.msra.mxu0 %v858
        %1266 = vmatpush.msra.mxu0 %v846
        %1267 = vmatpush.msra.mxu0 %v834
        %1268 = vmatpush.msra.mxu0 %v822
        %1269 = vmatpush.msra.mxu0 %v810
        %1270 = vmatpush.msra.mxu0 %v798
        %1271 = vmatpush.msra.mxu0 %v786
        %1272 = vmatpush.msra.mxu0 %v774
        %1273 = vmatpush.msra.mxu0 %v762
        %1274 = vmatmul.f32.gmra.mxu0 %v373
        %v1275 = vpop.f32.mrf.mxu0
        %v1276 = vadd.f32 %v1256, %v1275
        %1277 = vdwg.mxu0
        %1278 = vmatpush.msra.mxu0 %v559
        %1279 = vmatpush.msra.mxu0 %v547
        %1280 = vmatpush.msra.mxu0 %v535
        %1281 = vmatpush.msra.mxu0 %v523
        %1282 = vmatpush.msra.mxu0 %v511
        %1283 = vmatpush.msra.mxu0 %v499
        %1284 = vmatpush.msra.mxu0 %v487
        %1285 = vmatpush.msra.mxu0 %v475
        %1286 = vmatpush.msra.mxu0 %v463
        %1287 = vmatpush.msra.mxu0 %v451
        %1288 = vmatpush.msra.mxu0 %v439
        %1289 = vmatpush.msra.mxu0 %v427
        %1290 = vmatpush.msra.mxu0 %v415
        %1291 = vmatpush.msra.mxu0 %v403
        %1292 = vmatpush.msra.mxu0 %v391
        %1293 = vmatpush.msra.mxu0 %v379
        %1294 = vmatmul.f32.gmra.mxu0 %v371
        %v1295 = vpop.f32.mrf.mxu0
        %v1296 = vadd.f32 %v959, %v1295
        %1297 = vdwg.mxu0
        %1298 = vmatpush.msra.mxu0 %v751
        %1299 = vmatpush.msra.mxu0 %v739
        %1300 = vmatpush.msra.mxu0 %v727
        %1301 = vmatpush.msra.mxu0 %v715
        %1302 = vmatpush.msra.mxu0 %v703
        %1303 = vmatpush.msra.mxu0 %v691
        %1304 = vmatpush.msra.mxu0 %v679
        %1305 = vmatpush.msra.mxu0 %v667
        %1306 = vmatpush.msra.mxu0 %v655
        %1307 = vmatpush.msra.mxu0 %v643
        %1308 = vmatpush.msra.mxu0 %v631
        %1309 = vmatpush.msra.mxu0 %v619
        %1310 = vmatpush.msra.mxu0 %v607
        %1311 = vmatpush.msra.mxu0 %v595
        %1312 = vmatpush.msra.mxu0 %v583
        %1313 = vmatpush.msra.mxu0 %v571
        %1314 = vmatmul.f32.gmra.mxu0 %v372
        %v1315 = vpop.f32.mrf.mxu0
        %v1316 = vadd.f32 %v1296, %v1315
        %1317 = vdwg.mxu0
        %1318 = vmatpush.msra.mxu0 %v943
        %1319 = vmatpush.msra.mxu0 %v931
        %1320 = vmatpush.msra.mxu0 %v919
        %1321 = vmatpush.msra.mxu0 %v907
        %1322 = vmatpush.msra.mxu0 %v895
        %1323 = vmatpush.msra.mxu0 %v883
        %1324 = vmatpush.msra.mxu0 %v871
        %1325 = vmatpush.msra.mxu0 %v859
        %1326 = vmatpush.msra.mxu0 %v847
        %1327 = vmatpush.msra.mxu0 %v835
        %1328 = vmatpush.msra.mxu0 %v823
        %1329 = vmatpush.msra.mxu0 %v811
        %1330 = vmatpush.msra.mxu0 %v799
        %1331 = vmatpush.msra.mxu0 %v787
        %1332 = vmatpush.msra.mxu0 %v775
        %1333 = vmatpush.msra.mxu0 %v763
        %1334 = vmatmul.f32.gmra.mxu0 %v373
        %v1335 = vpop.f32.mrf.mxu0
        %v1336 = vadd.f32 %v1316, %v1335
        %1337 = vdwg.mxu0
        %1338 = vmatpush.msra.mxu0 %v560
        %1339 = vmatpush.msra.mxu0 %v548
        %1340 = vmatpush.msra.mxu0 %v536
        %1341 = vmatpush.msra.mxu0 %v524
        %1342 = vmatpush.msra.mxu0 %v512
        %1343 = vmatpush.msra.mxu0 %v500
        %1344 = vmatpush.msra.mxu0 %v488
        %1345 = vmatpush.msra.mxu0 %v476
        %1346 = vmatpush.msra.mxu0 %v464
        %1347 = vmatpush.msra.mxu0 %v452
        %1348 = vmatpush.msra.mxu0 %v440
        %1349 = vmatpush.msra.mxu0 %v428
        %1350 = vmatpush.msra.mxu0 %v416
        %1351 = vmatpush.msra.mxu0 %v404
        %1352 = vmatpush.msra.mxu0 %v392
        %1353 = vmatpush.msra.mxu0 %v380
        %1354 = vmatmul.f32.gmra.mxu0 %v371
        %v1355 = vpop.f32.mrf.mxu0
        %v1356 = vadd.f32 %v960, %v1355
        %1357 = vdwg.mxu0
        %1358 = vmatpush.msra.mxu0 %v752
        %1359 = vmatpush.msra.mxu0 %v740
        %1360 = vmatpush.msra.mxu0 %v728
        %1361 = vmatpush.msra.mxu0 %v716
        %1362 = vmatpush.msra.mxu0 %v704
        %1363 = vmatpush.msra.mxu0 %v692
        %1364 = vmatpush.msra.mxu0 %v680
        %1365 = vmatpush.msra.mxu0 %v668
        %1366 = vmatpush.msra.mxu0 %v656
        %1367 = vmatpush.msra.mxu0 %v644
        %1368 = vmatpush.msra.mxu0 %v632
        %1369 = vmatpush.msra.mxu0 %v620
        %1370 = vmatpush.msra.mxu0 %v608
        %1371 = vmatpush.msra.mxu0 %v596
        %1372 = vmatpush.msra.mxu0 %v584
        %1373 = vmatpush.msra.mxu0 %v572
        %1374 = vmatmul.f32.gmra.mxu0 %v372
        %v1375 = vpop.f32.mrf.mxu0
        %v1376 = vadd.f32 %v1356, %v1375
        %1377 = vdwg.mxu0
        %1378 = vmatpush.msra.mxu0 %v944
        %1379 = vmatpush.msra.mxu0 %v932
        %1380 = vmatpush.msra.mxu0 %v920
        %1381 = vmatpush.msra.mxu0 %v908
        %1382 = vmatpush.msra.mxu0 %v896
        %1383 = vmatpush.msra.mxu0 %v884
        %1384 = vmatpush.msra.mxu0 %v872
        %1385 = vmatpush.msra.mxu0 %v860
        %1386 = vmatpush.msra.mxu0 %v848
        %1387 = vmatpush.msra.mxu0 %v836
        %1388 = vmatpush.msra.mxu0 %v824
        %1389 = vmatpush.msra.mxu0 %v812
        %1390 = vmatpush.msra.mxu0 %v800
        %1391 = vmatpush.msra.mxu0 %v788
        %1392 = vmatpush.msra.mxu0 %v776
        %1393 = vmatpush.msra.mxu0 %v764
        %1394 = vmatmul.f32.gmra.mxu0 %v373
        %v1395 = vpop.f32.mrf.mxu0
        %v1396 = vadd.f32 %v1376, %v1395
        %1397 = vdwg.mxu0
        %1398 = vmatpush.msra.mxu0 %v561
        %1399 = vmatpush.msra.mxu0 %v549
        %1400 = vmatpush.msra.mxu0 %v537
        %1401 = vmatpush.msra.mxu0 %v525
        %1402 = vmatpush.msra.mxu0 %v513
        %1403 = vmatpush.msra.mxu0 %v501
        %1404 = vmatpush.msra.mxu0 %v489
        %1405 = vmatpush.msra.mxu0 %v477
        %1406 = vmatpush.msra.mxu0 %v465
        %1407 = vmatpush.msra.mxu0 %v453
        %1408 = vmatpush.msra.mxu0 %v441
        %1409 = vmatpush.msra.mxu0 %v429
        %1410 = vmatpush.msra.mxu0 %v417
        %1411 = vmatpush.msra.mxu0 %v405
        %1412 = vmatpush.msra.mxu0 %v393
        %1413 = vmatpush.msra.mxu0 %v381
        %1414 = vmatmul.f32.gmra.mxu0 %v371
        %v1415 = vpop.f32.mrf.mxu0
        %v1416 = vadd.f32 %v961, %v1415
        %1417 = vdwg.mxu0
        %1418 = vmatpush.msra.mxu0 %v753
        %1419 = vmatpush.msra.mxu0 %v741
        %1420 = vmatpush.msra.mxu0 %v729
        %1421 = vmatpush.msra.mxu0 %v717
        %1422 = vmatpush.msra.mxu0 %v705
        %1423 = vmatpush.msra.mxu0 %v693
        %1424 = vmatpush.msra.mxu0 %v681
        %1425 = vmatpush.msra.mxu0 %v669
        %1426 = vmatpush.msra.mxu0 %v657
        %1427 = vmatpush.msra.mxu0 %v645
        %1428 = vmatpush.msra.mxu0 %v633
        %1429 = vmatpush.msra.mxu0 %v621
        %1430 = vmatpush.msra.mxu0 %v609
        %1431 = vmatpush.msra.mxu0 %v597
        %1432 = vmatpush.msra.mxu0 %v585
        %1433 = vmatpush.msra.mxu0 %v573
        %1434 = vmatmul.f32.gmra.mxu0 %v372
        %v1435 = vpop.f32.mrf.mxu0
        %v1436 = vadd.f32 %v1416, %v1435
        %1437 = vdwg.mxu0
        %1438 = vmatpush.msra.mxu0 %v945
        %1439 = vmatpush.msra.mxu0 %v933
        %1440 = vmatpush.msra.mxu0 %v921
        %1441 = vmatpush.msra.mxu0 %v909
        %1442 = vmatpush.msra.mxu0 %v897
        %1443 = vmatpush.msra.mxu0 %v885
        %1444 = vmatpush.msra.mxu0 %v873
        %1445 = vmatpush.msra.mxu0 %v861
        %1446 = vmatpush.msra.mxu0 %v849
        %1447 = vmatpush.msra.mxu0 %v837
        %1448 = vmatpush.msra.mxu0 %v825
        %1449 = vmatpush.msra.mxu0 %v813
        %1450 = vmatpush.msra.mxu0 %v801
        %1451 = vmatpush.msra.mxu0 %v789
        %1452 = vmatpush.msra.mxu0 %v777
        %1453 = vmatpush.msra.mxu0 %v765
        %1454 = vmatmul.f32.gmra.mxu0 %v373
        %v1455 = vpop.f32.mrf.mxu0
        %v1456 = vadd.f32 %v1436, %v1455
        %1457 = vdwg.mxu0
        %1458 = vmatpush.msra.mxu0 %v562
        %1459 = vmatpush.msra.mxu0 %v550
        %1460 = vmatpush.msra.mxu0 %v538
        %1461 = vmatpush.msra.mxu0 %v526
        %1462 = vmatpush.msra.mxu0 %v514
        %1463 = vmatpush.msra.mxu0 %v502
        %1464 = vmatpush.msra.mxu0 %v490
        %1465 = vmatpush.msra.mxu0 %v478
        %1466 = vmatpush.msra.mxu0 %v466
        %1467 = vmatpush.msra.mxu0 %v454
        %1468 = vmatpush.msra.mxu0 %v442
        %1469 = vmatpush.msra.mxu0 %v430
        %1470 = vmatpush.msra.mxu0 %v418
        %1471 = vmatpush.msra.mxu0 %v406
        %1472 = vmatpush.msra.mxu0 %v394
        %1473 = vmatpush.msra.mxu0 %v382
        %1474 = vmatmul.f32.gmra.mxu0 %v371
        %v1475 = vpop.f32.mrf.mxu0
        %v1476 = vadd.f32 %v962, %v1475
        %1477 = vdwg.mxu0
        %1478 = vmatpush.msra.mxu0 %v754
        %1479 = vmatpush.msra.mxu0 %v742
        %1480 = vmatpush.msra.mxu0 %v730
        %1481 = vmatpush.msra.mxu0 %v718
        %1482 = vmatpush.msra.mxu0 %v706
        %1483 = vmatpush.msra.mxu0 %v694
        %1484 = vmatpush.msra.mxu0 %v682
        %1485 = vmatpush.msra.mxu0 %v670
        %1486 = vmatpush.msra.mxu0 %v658
        %1487 = vmatpush.msra.mxu0 %v646
        %1488 = vmatpush.msra.mxu0 %v634
        %1489 = vmatpush.msra.mxu0 %v622
        %1490 = vmatpush.msra.mxu0 %v610
        %1491 = vmatpush.msra.mxu0 %v598
        %1492 = vmatpush.msra.mxu0 %v586
        %1493 = vmatpush.msra.mxu0 %v574
        %1494 = vmatmul.f32.gmra.mxu0 %v372
        %v1495 = vpop.f32.mrf.mxu0
        %v1496 = vadd.f32 %v1476, %v1495
        %1497 = vdwg.mxu0
        %1498 = vmatpush.msra.mxu0 %v946
        %1499 = vmatpush.msra.mxu0 %v934
        %1500 = vmatpush.msra.mxu0 %v922
        %1501 = vmatpush.msra.mxu0 %v910
        %1502 = vmatpush.msra.mxu0 %v898
        %1503 = vmatpush.msra.mxu0 %v886
        %1504 = vmatpush.msra.mxu0 %v874
        %1505 = vmatpush.msra.mxu0 %v862
        %1506 = vmatpush.msra.mxu0 %v850
        %1507 = vmatpush.msra.mxu0 %v838
        %1508 = vmatpush.msra.mxu0 %v826
        %1509 = vmatpush.msra.mxu0 %v814
        %1510 = vmatpush.msra.mxu0 %v802
        %1511 = vmatpush.msra.mxu0 %v790
        %1512 = vmatpush.msra.mxu0 %v778
        %1513 = vmatpush.msra.mxu0 %v766
        %1514 = vmatmul.f32.gmra.mxu0 %v373
        %v1515 = vpop.f32.mrf.mxu0
        %v1516 = vadd.f32 %v1496, %v1515
        %1517 = vdwg.mxu0
        %1518 = vmatpush.msra.mxu0 %v563
        %1519 = vmatpush.msra.mxu0 %v551
        %1520 = vmatpush.msra.mxu0 %v539
        %1521 = vmatpush.msra.mxu0 %v527
        %1522 = vmatpush.msra.mxu0 %v515
        %1523 = vmatpush.msra.mxu0 %v503
        %1524 = vmatpush.msra.mxu0 %v491
        %1525 = vmatpush.msra.mxu0 %v479
        %1526 = vmatpush.msra.mxu0 %v467
        %1527 = vmatpush.msra.mxu0 %v455
        %1528 = vmatpush.msra.mxu0 %v443
        %1529 = vmatpush.msra.mxu0 %v431
        %1530 = vmatpush.msra.mxu0 %v419
        %1531 = vmatpush.msra.mxu0 %v407
        %1532 = vmatpush.msra.mxu0 %v395
        %1533 = vmatpush.msra.mxu0 %v383
        %1534 = vmatmul.f32.gmra.mxu0 %v371
        %v1535 = vpop.f32.mrf.mxu0
        %v1536 = vadd.f32 %v963, %v1535
        %1537 = vdwg.mxu0
        %1538 = vmatpush.msra.mxu0 %v755
        %1539 = vmatpush.msra.mxu0 %v743
        %1540 = vmatpush.msra.mxu0 %v731
        %1541 = vmatpush.msra.mxu0 %v719
        %1542 = vmatpush.msra.mxu0 %v707
        %1543 = vmatpush.msra.mxu0 %v695
        %1544 = vmatpush.msra.mxu0 %v683
        %1545 = vmatpush.msra.mxu0 %v671
        %1546 = vmatpush.msra.mxu0 %v659
        %1547 = vmatpush.msra.mxu0 %v647
        %1548 = vmatpush.msra.mxu0 %v635
        %1549 = vmatpush.msra.mxu0 %v623
        %1550 = vmatpush.msra.mxu0 %v611
        %1551 = vmatpush.msra.mxu0 %v599
        %1552 = vmatpush.msra.mxu0 %v587
        %1553 = vmatpush.msra.mxu0 %v575
        %1554 = vmatmul.f32.gmra.mxu0 %v372
        %v1555 = vpop.f32.mrf.mxu0
        %v1556 = vadd.f32 %v1536, %v1555
        %1557 = vdwg.mxu0
        %1558 = vmatpush.msra.mxu0 %v947
        %1559 = vmatpush.msra.mxu0 %v935
        %1560 = vmatpush.msra.mxu0 %v923
        %1561 = vmatpush.msra.mxu0 %v911
        %1562 = vmatpush.msra.mxu0 %v899
        %1563 = vmatpush.msra.mxu0 %v887
        %1564 = vmatpush.msra.mxu0 %v875
        %1565 = vmatpush.msra.mxu0 %v863
        %1566 = vmatpush.msra.mxu0 %v851
        %1567 = vmatpush.msra.mxu0 %v839
        %1568 = vmatpush.msra.mxu0 %v827
        %1569 = vmatpush.msra.mxu0 %v815
        %1570 = vmatpush.msra.mxu0 %v803
        %1571 = vmatpush.msra.mxu0 %v791
        %1572 = vmatpush.msra.mxu0 %v779
        %1573 = vmatpush.msra.mxu0 %v767
        %1574 = vmatmul.f32.gmra.mxu0 %v373
        %v1575 = vpop.f32.mrf.mxu0
        %v1576 = vadd.f32 %v1556, %v1575
        %1577 = vdwg.mxu0
        %1578 = vmatpush.msra.mxu0 %v564
        %1579 = vmatpush.msra.mxu0 %v552
        %1580 = vmatpush.msra.mxu0 %v540
        %1581 = vmatpush.msra.mxu0 %v528
        %1582 = vmatpush.msra.mxu0 %v516
        %1583 = vmatpush.msra.mxu0 %v504
        %1584 = vmatpush.msra.mxu0 %v492
        %1585 = vmatpush.msra.mxu0 %v480
        %1586 = vmatpush.msra.mxu0 %v468
        %1587 = vmatpush.msra.mxu0 %v456
        %1588 = vmatpush.msra.mxu0 %v444
        %1589 = vmatpush.msra.mxu0 %v432
        %1590 = vmatpush.msra.mxu0 %v420
        %1591 = vmatpush.msra.mxu0 %v408
        %1592 = vmatpush.msra.mxu0 %v396
        %1593 = vmatpush.msra.mxu0 %v384
        %1594 = vmatmul.f32.gmra.mxu0 %v371
        %v1595 = vpop.f32.mrf.mxu0
        %v1596 = vadd.f32 %v964, %v1595
        %1597 = vdwg.mxu0
        %1598 = vmatpush.msra.mxu0 %v756
        %1599 = vmatpush.msra.mxu0 %v744
        %1600 = vmatpush.msra.mxu0 %v732
        %1601 = vmatpush.msra.mxu0 %v720
        %1602 = vmatpush.msra.mxu0 %v708
        %1603 = vmatpush.msra.mxu0 %v696
        %1604 = vmatpush.msra.mxu0 %v684
        %1605 = vmatpush.msra.mxu0 %v672
        %1606 = vmatpush.msra.mxu0 %v660
        %1607 = vmatpush.msra.mxu0 %v648
        %1608 = vmatpush.msra.mxu0 %v636
        %1609 = vmatpush.msra.mxu0 %v624
        %1610 = vmatpush.msra.mxu0 %v612
        %1611 = vmatpush.msra.mxu0 %v600
        %1612 = vmatpush.msra.mxu0 %v588
        %1613 = vmatpush.msra.mxu0 %v576
        %1614 = vmatmul.f32.gmra.mxu0 %v372
        %v1615 = vpop.f32.mrf.mxu0
        %v1616 = vadd.f32 %v1596, %v1615
        %1617 = vdwg.mxu0
        %1618 = vmatpush.msra.mxu0 %v948
        %1619 = vmatpush.msra.mxu0 %v936
        %1620 = vmatpush.msra.mxu0 %v924
        %1621 = vmatpush.msra.mxu0 %v912
        %1622 = vmatpush.msra.mxu0 %v900
        %1623 = vmatpush.msra.mxu0 %v888
        %1624 = vmatpush.msra.mxu0 %v876
        %1625 = vmatpush.msra.mxu0 %v864
        %1626 = vmatpush.msra.mxu0 %v852
        %1627 = vmatpush.msra.mxu0 %v840
        %1628 = vmatpush.msra.mxu0 %v828
        %1629 = vmatpush.msra.mxu0 %v816
        %1630 = vmatpush.msra.mxu0 %v804
        %1631 = vmatpush.msra.mxu0 %v792
        %1632 = vmatpush.msra.mxu0 %v780
        %1633 = vmatpush.msra.mxu0 %v768
        %1634 = vmatmul.f32.gmra.mxu0 %v373
        %v1635 = vpop.f32.mrf.mxu0
        %v1636 = vadd.f32 %v1616, %v1635
        %1637 = vdwg.mxu0
        %1638 = vmatpush.msra.mxu0 %v565
        %1639 = vmatpush.msra.mxu0 %v553
        %1640 = vmatpush.msra.mxu0 %v541
        %1641 = vmatpush.msra.mxu0 %v529
        %1642 = vmatpush.msra.mxu0 %v517
        %1643 = vmatpush.msra.mxu0 %v505
        %1644 = vmatpush.msra.mxu0 %v493
        %1645 = vmatpush.msra.mxu0 %v481
        %1646 = vmatpush.msra.mxu0 %v469
        %1647 = vmatpush.msra.mxu0 %v457
        %1648 = vmatpush.msra.mxu0 %v445
        %1649 = vmatpush.msra.mxu0 %v433
        %1650 = vmatpush.msra.mxu0 %v421
        %1651 = vmatpush.msra.mxu0 %v409
        %1652 = vmatpush.msra.mxu0 %v397
        %1653 = vmatpush.msra.mxu0 %v385
        %1654 = vmatmul.f32.gmra.mxu0 %v371
        %v1655 = vpop.f32.mrf.mxu0
        %v1656 = vadd.f32 %v965, %v1655
        %1657 = vdwg.mxu0
        %1658 = vmatpush.msra.mxu0 %v757
        %1659 = vmatpush.msra.mxu0 %v745
        %1660 = vmatpush.msra.mxu0 %v733
        %1661 = vmatpush.msra.mxu0 %v721
        %1662 = vmatpush.msra.mxu0 %v709
        %1663 = vmatpush.msra.mxu0 %v697
        %1664 = vmatpush.msra.mxu0 %v685
        %1665 = vmatpush.msra.mxu0 %v673
        %1666 = vmatpush.msra.mxu0 %v661
        %1667 = vmatpush.msra.mxu0 %v649
        %1668 = vmatpush.msra.mxu0 %v637
        %1669 = vmatpush.msra.mxu0 %v625
        %1670 = vmatpush.msra.mxu0 %v613
        %1671 = vmatpush.msra.mxu0 %v601
        %1672 = vmatpush.msra.mxu0 %v589
        %1673 = vmatpush.msra.mxu0 %v577
        %1674 = vmatmul.f32.gmra.mxu0 %v372
        %v1675 = vpop.f32.mrf.mxu0
        %v1676 = vadd.f32 %v1656, %v1675
        %1677 = vdwg.mxu0
        %1678 = vmatpush.msra.mxu0 %v949
        %1679 = vmatpush.msra.mxu0 %v937
        %1680 = vmatpush.msra.mxu0 %v925
        %1681 = vmatpush.msra.mxu0 %v913
        %1682 = vmatpush.msra.mxu0 %v901
        %1683 = vmatpush.msra.mxu0 %v889
        %1684 = vmatpush.msra.mxu0 %v877
        %1685 = vmatpush.msra.mxu0 %v865
        %1686 = vmatpush.msra.mxu0 %v853
        %1687 = vmatpush.msra.mxu0 %v841
        %1688 = vmatpush.msra.mxu0 %v829
        %1689 = vmatpush.msra.mxu0 %v817
        %1690 = vmatpush.msra.mxu0 %v805
        %1691 = vmatpush.msra.mxu0 %v793
        %1692 = vmatpush.msra.mxu0 %v781
        %1693 = vmatpush.msra.mxu0 %v769
        %1694 = vmatmul.f32.gmra.mxu0 %v373
        %v1695 = vpop.f32.mrf.mxu0
        %v1696 = vadd.f32 %v1676, %v1695
        %1697 = vdwg.mxu0
        %v1698 = vmul.f32 %v1036, 0.10206208
        %1699 = vmatpush.xpose.msra.mxu0 0.0
        %1700 = vmatpush.xpose.msra.mxu0 0.0
        %1701 = vmatpush.xpose.msra.mxu0 0.0
        %1702 = vmatpush.xpose.msra.mxu0 0.0
        %1703 = vmatpush.xpose.msra.mxu0 0.0
        %1704 = vmatpush.xpose.msra.mxu0 0.0
        %1705 = vmatpush.xpose.msra.mxu0 0.0
        %1706 = vmatpush.xpose.msra.mxu0 0.0
        %1707 = vmatpush.xpose.msra.mxu0 0.0
        %1708 = vmatpush.xpose.msra.mxu0 0.0
        %1709 = vmatpush.xpose.msra.mxu0 0.0
        %1710 = vmatpush.xpose.msra.mxu0 0.0
        %1711 = vmatpush.xpose.msra.mxu0 0.0
        %1712 = vmatpush.xpose.msra.mxu0 0.0
        %1713 = vmatpush.xpose.msra.mxu0 0.0
        %1714 = vmatpush.xpose.msra.mxu0 %v1276
        %1715 = vmatmul.f32.gmra.mxu0 %v1698
        %v1716 = vpop.f32.mrf.mxu0
        %v1717 = vadd.f32 0.0, %v1716
        %1718 = vdwg.mxu0
        %vm1719 = vcmask 64512
        %v1720 = vsel %vm1719, %v1717, -inf
        %1721 = vmax.xlane.f32.xlu0 %v1720
        %v1722 = vpop.xlane.xlu0 %1721
        %v1723 = vsub.f32 %v1717, %v1722
        %v1724 = vmul.f32 %v1723, 1.442695
        %v1725 = vpow.pop %v1724
        %v1726 = vsel %vm1719, %v1725, 0.0
        %1727 = vadd.xlane.f32.xlu0 %v1726
        %v1728 = vpop.xlane.xlu0 %1727
        %v1730 = vsel %vm1719, %v1725, 0
        %1732 = vmatpush.msra.mxu0 0.0
        %1733 = vmatpush.msra.mxu0 0.0
        %1734 = vmatpush.msra.mxu0 0.0
        %1735 = vmatpush.msra.mxu0 0.0
        %1736 = vmatpush.msra.mxu0 0.0
        %1737 = vmatpush.msra.mxu0 0.0
        %1738 = vmatpush.msra.mxu0 0.0
        %1739 = vmatpush.msra.mxu0 0.0
        %1740 = vmatpush.msra.mxu0 0.0
        %1741 = vmatpush.msra.mxu0 0.0
        %1742 = vmatpush.msra.mxu0 0.0
        %1743 = vmatpush.msra.mxu0 0.0
        %1744 = vmatpush.msra.mxu0 0.0
        %1745 = vmatpush.msra.mxu0 0.0
        %1746 = vmatpush.msra.mxu0 0.0
        %1747 = vmatpush.msra.mxu0 %v1516
        %1748 = vmatmul.f32.gmra.mxu0 %v1730
        %v1749 = vpop.f32.mrf.mxu0
        %v1750 = vadd.f32 0.0, %v1749
        %1751 = vdwg.mxu0
        %v1752 = vrcp.pop %v1728
        %v1753 = vmul.f32 %v1750, %v1752
        %v1754 = vmul.f32 %v1096, 0.10206208
        %1755 = vmatpush.xpose.msra.mxu0 0.0
        %1756 = vmatpush.xpose.msra.mxu0 0.0
        %1757 = vmatpush.xpose.msra.mxu0 0.0
        %1758 = vmatpush.xpose.msra.mxu0 0.0
        %1759 = vmatpush.xpose.msra.mxu0 0.0
        %1760 = vmatpush.xpose.msra.mxu0 0.0
        %1761 = vmatpush.xpose.msra.mxu0 0.0
        %1762 = vmatpush.xpose.msra.mxu0 0.0
        %1763 = vmatpush.xpose.msra.mxu0 0.0
        %1764 = vmatpush.xpose.msra.mxu0 0.0
        %1765 = vmatpush.xpose.msra.mxu0 0.0
        %1766 = vmatpush.xpose.msra.mxu0 0.0
        %1767 = vmatpush.xpose.msra.mxu0 0.0
        %1768 = vmatpush.xpose.msra.mxu0 0.0
        %1769 = vmatpush.xpose.msra.mxu0 0.0
        %1770 = vmatpush.xpose.msra.mxu0 %v1336
        %1771 = vmatmul.f32.gmra.mxu0 %v1754
        %v1772 = vpop.f32.mrf.mxu0
        %v1773 = vadd.f32 0.0, %v1772
        %1774 = vdwg.mxu0
        %v1775 = vsel %vm1719, %v1773, -inf
        %1776 = vmax.xlane.f32.xlu0 %v1775
        %v1777 = vpop.xlane.xlu0 %1776
        %v1778 = vsub.f32 %v1773, %v1777
        %v1779 = vmul.f32 %v1778, 1.442695
        %v1780 = vpow.pop %v1779
        %v1781 = vsel %vm1719, %v1780, 0.0
        %1782 = vadd.xlane.f32.xlu0 %v1781
        %v1783 = vpop.xlane.xlu0 %1782
        %v1785 = vsel %vm1719, %v1780, 0
        %1787 = vmatpush.msra.mxu0 0.0
        %1788 = vmatpush.msra.mxu0 0.0
        %1789 = vmatpush.msra.mxu0 0.0
        %1790 = vmatpush.msra.mxu0 0.0
        %1791 = vmatpush.msra.mxu0 0.0
        %1792 = vmatpush.msra.mxu0 0.0
        %1793 = vmatpush.msra.mxu0 0.0
        %1794 = vmatpush.msra.mxu0 0.0
        %1795 = vmatpush.msra.mxu0 0.0
        %1796 = vmatpush.msra.mxu0 0.0
        %1797 = vmatpush.msra.mxu0 0.0
        %1798 = vmatpush.msra.mxu0 0.0
        %1799 = vmatpush.msra.mxu0 0.0
        %1800 = vmatpush.msra.mxu0 0.0
        %1801 = vmatpush.msra.mxu0 0.0
        %1802 = vmatpush.msra.mxu0 %v1576
        %1803 = vmatmul.f32.gmra.mxu0 %v1785
        %v1804 = vpop.f32.mrf.mxu0
        %v1805 = vadd.f32 0.0, %v1804
        %1806 = vdwg.mxu0
        %v1807 = vrcp.pop %v1783
        %v1808 = vmul.f32 %v1805, %v1807
        %v1809 = vmul.f32 %v1156, 0.10206208
        %1810 = vmatpush.xpose.msra.mxu0 0.0
        %1811 = vmatpush.xpose.msra.mxu0 0.0
        %1812 = vmatpush.xpose.msra.mxu0 0.0
        %1813 = vmatpush.xpose.msra.mxu0 0.0
        %1814 = vmatpush.xpose.msra.mxu0 0.0
        %1815 = vmatpush.xpose.msra.mxu0 0.0
        %1816 = vmatpush.xpose.msra.mxu0 0.0
        %1817 = vmatpush.xpose.msra.mxu0 0.0
        %1818 = vmatpush.xpose.msra.mxu0 0.0
        %1819 = vmatpush.xpose.msra.mxu0 0.0
        %1820 = vmatpush.xpose.msra.mxu0 0.0
        %1821 = vmatpush.xpose.msra.mxu0 0.0
        %1822 = vmatpush.xpose.msra.mxu0 0.0
        %1823 = vmatpush.xpose.msra.mxu0 0.0
        %1824 = vmatpush.xpose.msra.mxu0 0.0
        %1825 = vmatpush.xpose.msra.mxu0 %v1396
        %1826 = vmatmul.f32.gmra.mxu0 %v1809
        %v1827 = vpop.f32.mrf.mxu0
        %v1828 = vadd.f32 0.0, %v1827
        %1829 = vdwg.mxu0
        %v1830 = vsel %vm1719, %v1828, -inf
        %1831 = vmax.xlane.f32.xlu0 %v1830
        %v1832 = vpop.xlane.xlu0 %1831
        %v1833 = vsub.f32 %v1828, %v1832
        %v1834 = vmul.f32 %v1833, 1.442695
        %v1835 = vpow.pop %v1834
        %v1836 = vsel %vm1719, %v1835, 0.0
        %1837 = vadd.xlane.f32.xlu0 %v1836
        %v1838 = vpop.xlane.xlu0 %1837
        %v1840 = vsel %vm1719, %v1835, 0
        %1842 = vmatpush.msra.mxu0 0.0
        %1843 = vmatpush.msra.mxu0 0.0
        %1844 = vmatpush.msra.mxu0 0.0
        %1845 = vmatpush.msra.mxu0 0.0
        %1846 = vmatpush.msra.mxu0 0.0
        %1847 = vmatpush.msra.mxu0 0.0
        %1848 = vmatpush.msra.mxu0 0.0
        %1849 = vmatpush.msra.mxu0 0.0
        %1850 = vmatpush.msra.mxu0 0.0
        %1851 = vmatpush.msra.mxu0 0.0
        %1852 = vmatpush.msra.mxu0 0.0
        %1853 = vmatpush.msra.mxu0 0.0
        %1854 = vmatpush.msra.mxu0 0.0
        %1855 = vmatpush.msra.mxu0 0.0
        %1856 = vmatpush.msra.mxu0 0.0
        %1857 = vmatpush.msra.mxu0 %v1636
        %1858 = vmatmul.f32.gmra.mxu0 %v1840
        %v1859 = vpop.f32.mrf.mxu0
        %v1860 = vadd.f32 0.0, %v1859
        %1861 = vdwg.mxu0
        %v1862 = vrcp.pop %v1838
        %v1863 = vmul.f32 %v1860, %v1862
        %v1864 = vmul.f32 %v1216, 0.10206208
        %1865 = vmatpush.xpose.msra.mxu0 0.0
        %1866 = vmatpush.xpose.msra.mxu0 0.0
        %1867 = vmatpush.xpose.msra.mxu0 0.0
        %1868 = vmatpush.xpose.msra.mxu0 0.0
        %1869 = vmatpush.xpose.msra.mxu0 0.0
        %1870 = vmatpush.xpose.msra.mxu0 0.0
        %1871 = vmatpush.xpose.msra.mxu0 0.0
        %1872 = vmatpush.xpose.msra.mxu0 0.0
        %1873 = vmatpush.xpose.msra.mxu0 0.0
        %1874 = vmatpush.xpose.msra.mxu0 0.0
        %1875 = vmatpush.xpose.msra.mxu0 0.0
        %1876 = vmatpush.xpose.msra.mxu0 0.0
        %1877 = vmatpush.xpose.msra.mxu0 0.0
        %1878 = vmatpush.xpose.msra.mxu0 0.0
        %1879 = vmatpush.xpose.msra.mxu0 0.0
        %1880 = vmatpush.xpose.msra.mxu0 %v1456
        %1881 = vmatmul.f32.gmra.mxu0 %v1864
        %v1882 = vpop.f32.mrf.mxu0
        %v1883 = vadd.f32 0.0, %v1882
        %1884 = vdwg.mxu0
        %v1885 = vsel %vm1719, %v1883, -inf
        %1886 = vmax.xlane.f32.xlu0 %v1885
        %v1887 = vpop.xlane.xlu0 %1886
        %v1888 = vsub.f32 %v1883, %v1887
        %v1889 = vmul.f32 %v1888, 1.442695
        %v1890 = vpow.pop %v1889
        %v1891 = vsel %vm1719, %v1890, 0.0
        %1892 = vadd.xlane.f32.xlu0 %v1891
        %v1893 = vpop.xlane.xlu0 %1892
        %v1895 = vsel %vm1719, %v1890, 0
        %1897 = vmatpush.msra.mxu0 0.0
        %1898 = vmatpush.msra.mxu0 0.0
        %1899 = vmatpush.msra.mxu0 0.0
        %1900 = vmatpush.msra.mxu0 0.0
        %1901 = vmatpush.msra.mxu0 0.0
        %1902 = vmatpush.msra.mxu0 0.0
        %1903 = vmatpush.msra.mxu0 0.0
        %1904 = vmatpush.msra.mxu0 0.0
        %1905 = vmatpush.msra.mxu0 0.0
        %1906 = vmatpush.msra.mxu0 0.0
        %1907 = vmatpush.msra.mxu0 0.0
        %1908 = vmatpush.msra.mxu0 0.0
        %1909 = vmatpush.msra.mxu0 0.0
        %1910 = vmatpush.msra.mxu0 0.0
        %1911 = vmatpush.msra.mxu0 0.0
        %1912 = vmatpush.msra.mxu0 %v1696
        %1913 = vmatmul.f32.gmra.mxu0 %v1895
        %v1914 = vpop.f32.mrf.mxu0
        %v1915 = vadd.f32 0.0, %v1914
        %1916 = vdwg.mxu0
        %v1917 = vrcp.pop %v1893
        %v1918 = vmul.f32 %v1915, %v1917
        %v1919 = vld [vmem:[#allocation6] sm:$0xff]
        %v1920 = vld [vmem:[#allocation6 + $0x8] sm:$0xff]
        %v1921 = vld [vmem:[#allocation6 + $0x10] sm:$0xff]
        %v1922 = vld [vmem:[#allocation6 + $0x18] sm:$0xff]
        %v1923 = vld [vmem:[#allocation6 + $0x20] sm:$0xff]
        %v1924 = vld [vmem:[#allocation6 + $0x28] sm:$0xff]
        %v1925 = vld [vmem:[#allocation6 + $0x30] sm:$0xff]
        %v1926 = vld [vmem:[#allocation6 + $0x38] sm:$0xff]
        %v1927 = vld [vmem:[#allocation6 + $0x40] sm:$0xff]
        %v1928 = vld [vmem:[#allocation6 + $0x48] sm:$0xff]
        %v1929 = vld [vmem:[#allocation6 + $0x50] sm:$0xff]
        %v1930 = vld [vmem:[#allocation6 + $0x58] sm:$0xff]
        %v1931 = vld [vmem:[#allocation6 + $0x60] sm:$0xff]
        %v1932 = vld [vmem:[#allocation6 + $0x68] sm:$0xff]
        %v1933 = vld [vmem:[#allocation6 + $0x70] sm:$0xff]
        %v1934 = vld [vmem:[#allocation6 + $0x78] sm:$0xff]
        %v1935 = vld [vmem:[#allocation6 + $0x80] sm:$0xff]
        %v1936 = vld [vmem:[#allocation6 + $0x88] sm:$0xff]
        %v1937 = vld [vmem:[#allocation6 + $0x90] sm:$0xff]
        %v1938 = vld [vmem:[#allocation6 + $0x98] sm:$0xff]
        %v1939 = vld [vmem:[#allocation6 + $0xa0] sm:$0xff]
        %v1940 = vld [vmem:[#allocation6 + $0xa8] sm:$0xff]
        %v1941 = vld [vmem:[#allocation6 + $0xb0] sm:$0xff]
        %v1942 = vld [vmem:[#allocation6 + $0xb8] sm:$0xff]
        %v1943 = vld [vmem:[#allocation6 + $0xc0] sm:$0xff]
        %v1944 = vld [vmem:[#allocation6 + $0xc8] sm:$0xff]
        %v1945 = vld [vmem:[#allocation6 + $0xd0] sm:$0xff]
        %v1946 = vld [vmem:[#allocation6 + $0xd8] sm:$0xff]
        %v1947 = vld [vmem:[#allocation6 + $0xe0] sm:$0xff]
        %v1948 = vld [vmem:[#allocation6 + $0xe8] sm:$0xff]
        %v1949 = vld [vmem:[#allocation6 + $0xf0] sm:$0xff]
        %v1950 = vld [vmem:[#allocation6 + $0xf8] sm:$0xff]
        %v1951 = vld [vmem:[#allocation6 + $0x100] sm:$0xff]
        %v1952 = vld [vmem:[#allocation6 + $0x108] sm:$0xff]
        %v1953 = vld [vmem:[#allocation6 + $0x110] sm:$0xff]
        %v1954 = vld [vmem:[#allocation6 + $0x118] sm:$0xff]
        %v1955 = vld [vmem:[#allocation6 + $0x120] sm:$0xff]
        %v1956 = vld [vmem:[#allocation6 + $0x128] sm:$0xff]
        %v1957 = vld [vmem:[#allocation6 + $0x130] sm:$0xff]
        %v1958 = vld [vmem:[#allocation6 + $0x138] sm:$0xff]
        %v1959 = vld [vmem:[#allocation6 + $0x140] sm:$0xff]
        %v1960 = vld [vmem:[#allocation6 + $0x148] sm:$0xff]
        %v1961 = vld [vmem:[#allocation6 + $0x150] sm:$0xff]
        %v1962 = vld [vmem:[#allocation6 + $0x158] sm:$0xff]
        %v1963 = vld [vmem:[#allocation6 + $0x160] sm:$0xff]
        %v1964 = vld [vmem:[#allocation6 + $0x168] sm:$0xff]
        %v1965 = vld [vmem:[#allocation6 + $0x170] sm:$0xff]
        %v1966 = vld [vmem:[#allocation6 + $0x178] sm:$0xff]
        %v1967 = vld [vmem:[#allocation6 + $0x180] sm:$0xff]
        %v1968 = vld [vmem:[#allocation6 + $0x188] sm:$0xff]
        %v1969 = vld [vmem:[#allocation6 + $0x190] sm:$0xff]
        %v1970 = vld [vmem:[#allocation6 + $0x198] sm:$0xff]
        %v1971 = vld [vmem:[#allocation6 + $0x1a0] sm:$0xff]
        %v1972 = vld [vmem:[#allocation6 + $0x1a8] sm:$0xff]
        %v1973 = vld [vmem:[#allocation6 + $0x1b0] sm:$0xff]
        %v1974 = vld [vmem:[#allocation6 + $0x1b8] sm:$0xff]
        %v1975 = vld [vmem:[#allocation6 + $0x1c0] sm:$0xff]
        %v1976 = vld [vmem:[#allocation6 + $0x1c8] sm:$0xff]
        %v1977 = vld [vmem:[#allocation6 + $0x1d0] sm:$0xff]
        %v1978 = vld [vmem:[#allocation6 + $0x1d8] sm:$0xff]
        %v1979 = vld [vmem:[#allocation6 + $0x1e0] sm:$0xff]
        %v1980 = vld [vmem:[#allocation6 + $0x1e8] sm:$0xff]
        %v1981 = vld [vmem:[#allocation6 + $0x1f0] sm:$0xff]
        %v1982 = vld [vmem:[#allocation6 + $0x1f8] sm:$0xff]
        %v1983 = vld [vmem:[#allocation6 + $0x200] sm:$0xff]
        %v1984 = vld [vmem:[#allocation6 + $0x208] sm:$0xff]
        %v1985 = vld [vmem:[#allocation6 + $0x210] sm:$0xff]
        %v1986 = vld [vmem:[#allocation6 + $0x218] sm:$0xff]
        %v1987 = vld [vmem:[#allocation6 + $0x220] sm:$0xff]
        %v1988 = vld [vmem:[#allocation6 + $0x228] sm:$0xff]
        %v1989 = vld [vmem:[#allocation6 + $0x230] sm:$0xff]
        %v1990 = vld [vmem:[#allocation6 + $0x238] sm:$0xff]
        %v1991 = vld [vmem:[#allocation6 + $0x240] sm:$0xff]
        %v1992 = vld [vmem:[#allocation6 + $0x248] sm:$0xff]
        %v1993 = vld [vmem:[#allocation6 + $0x250] sm:$0xff]
        %v1994 = vld [vmem:[#allocation6 + $0x258] sm:$0xff]
        %v1995 = vld [vmem:[#allocation6 + $0x260] sm:$0xff]
        %v1996 = vld [vmem:[#allocation6 + $0x268] sm:$0xff]
        %v1997 = vld [vmem:[#allocation6 + $0x270] sm:$0xff]
        %v1998 = vld [vmem:[#allocation6 + $0x278] sm:$0xff]
        %v1999 = vld [vmem:[#allocation6 + $0x280] sm:$0xff]
        %v2000 = vld [vmem:[#allocation6 + $0x288] sm:$0xff]
        %v2001 = vld [vmem:[#allocation6 + $0x290] sm:$0xff]
        %v2002 = vld [vmem:[#allocation6 + $0x298] sm:$0xff]
        %v2003 = vld [vmem:[#allocation6 + $0x2a0] sm:$0xff]
        %v2004 = vld [vmem:[#allocation6 + $0x2a8] sm:$0xff]
        %v2005 = vld [vmem:[#allocation6 + $0x2b0] sm:$0xff]
        %v2006 = vld [vmem:[#allocation6 + $0x2b8] sm:$0xff]
        %v2007 = vld [vmem:[#allocation6 + $0x2c0] sm:$0xff]
        %v2008 = vld [vmem:[#allocation6 + $0x2c8] sm:$0xff]
        %v2009 = vld [vmem:[#allocation6 + $0x2d0] sm:$0xff]
        %v2010 = vld [vmem:[#allocation6 + $0x2d8] sm:$0xff]
        %v2011 = vld [vmem:[#allocation6 + $0x2e0] sm:$0xff]
        %v2012 = vld [vmem:[#allocation6 + $0x2e8] sm:$0xff]
        %v2013 = vld [vmem:[#allocation6 + $0x2f0] sm:$0xff]
        %v2014 = vld [vmem:[#allocation6 + $0x2f8] sm:$0xff]
        %v2015 = vld [vmem:[#allocation6 + $0x300] sm:$0xff]
        %v2016 = vld [vmem:[#allocation6 + $0x308] sm:$0xff]
        %v2017 = vld [vmem:[#allocation6 + $0x310] sm:$0xff]
        %v2018 = vld [vmem:[#allocation6 + $0x318] sm:$0xff]
        %v2019 = vld [vmem:[#allocation6 + $0x320] sm:$0xff]
        %v2020 = vld [vmem:[#allocation6 + $0x328] sm:$0xff]
        %v2021 = vld [vmem:[#allocation6 + $0x330] sm:$0xff]
        %v2022 = vld [vmem:[#allocation6 + $0x338] sm:$0xff]
        %v2023 = vld [vmem:[#allocation6 + $0x340] sm:$0xff]
        %v2024 = vld [vmem:[#allocation6 + $0x348] sm:$0xff]
        %v2025 = vld [vmem:[#allocation6 + $0x350] sm:$0xff]
        %v2026 = vld [vmem:[#allocation6 + $0x358] sm:$0xff]
        %v2027 = vld [vmem:[#allocation6 + $0x360] sm:$0xff]
        %v2028 = vld [vmem:[#allocation6 + $0x368] sm:$0xff]
        %v2029 = vld [vmem:[#allocation6 + $0x370] sm:$0xff]
        %v2030 = vld [vmem:[#allocation6 + $0x378] sm:$0xff]
        %v2031 = vld [vmem:[#allocation6 + $0x380] sm:$0xff]
        %v2032 = vld [vmem:[#allocation6 + $0x388] sm:$0xff]
        %v2033 = vld [vmem:[#allocation6 + $0x390] sm:$0xff]
        %v2034 = vld [vmem:[#allocation6 + $0x398] sm:$0xff]
        %v2035 = vld [vmem:[#allocation6 + $0x3a0] sm:$0xff]
        %v2036 = vld [vmem:[#allocation6 + $0x3a8] sm:$0xff]
        %v2037 = vld [vmem:[#allocation6 + $0x3b0] sm:$0xff]
        %v2038 = vld [vmem:[#allocation6 + $0x3b8] sm:$0xff]
        %v2039 = vld [vmem:[#allocation6 + $0x3c0] sm:$0xff]
        %v2040 = vld [vmem:[#allocation6 + $0x3c8] sm:$0xff]
        %v2041 = vld [vmem:[#allocation6 + $0x3d0] sm:$0xff]
        %v2042 = vld [vmem:[#allocation6 + $0x3d8] sm:$0xff]
        %v2043 = vld [vmem:[#allocation6 + $0x3e0] sm:$0xff]
        %v2044 = vld [vmem:[#allocation6 + $0x3e8] sm:$0xff]
        %v2045 = vld [vmem:[#allocation6 + $0x3f0] sm:$0xff]
        %v2046 = vld [vmem:[#allocation6 + $0x3f8] sm:$0xff]
        %v2047 = vld [vmem:[#allocation6 + $0x400] sm:$0xff]
        %v2048 = vld [vmem:[#allocation6 + $0x408] sm:$0xff]
        %v2049 = vld [vmem:[#allocation6 + $0x410] sm:$0xff]
        %v2050 = vld [vmem:[#allocation6 + $0x418] sm:$0xff]
        %v2051 = vld [vmem:[#allocation6 + $0x420] sm:$0xff]
        %v2052 = vld [vmem:[#allocation6 + $0x428] sm:$0xff]
        %v2053 = vld [vmem:[#allocation6 + $0x430] sm:$0xff]
        %v2054 = vld [vmem:[#allocation6 + $0x438] sm:$0xff]
        %v2055 = vld [vmem:[#allocation6 + $0x440] sm:$0xff]
        %v2056 = vld [vmem:[#allocation6 + $0x448] sm:$0xff]
        %v2057 = vld [vmem:[#allocation6 + $0x450] sm:$0xff]
        %v2058 = vld [vmem:[#allocation6 + $0x458] sm:$0xff]
        %v2059 = vld [vmem:[#allocation6 + $0x460] sm:$0xff]
        %v2060 = vld [vmem:[#allocation6 + $0x468] sm:$0xff]
        %v2061 = vld [vmem:[#allocation6 + $0x470] sm:$0xff]
        %v2062 = vld [vmem:[#allocation6 + $0x478] sm:$0xff]
        %v2063 = vld [vmem:[#allocation6 + $0x480] sm:$0xff]
        %v2064 = vld [vmem:[#allocation6 + $0x488] sm:$0xff]
        %v2065 = vld [vmem:[#allocation6 + $0x490] sm:$0xff]
        %v2066 = vld [vmem:[#allocation6 + $0x498] sm:$0xff]
        %v2067 = vld [vmem:[#allocation6 + $0x4a0] sm:$0xff]
        %v2068 = vld [vmem:[#allocation6 + $0x4a8] sm:$0xff]
        %v2069 = vld [vmem:[#allocation6 + $0x4b0] sm:$0xff]
        %v2070 = vld [vmem:[#allocation6 + $0x4b8] sm:$0xff]
        %v2071 = vld [vmem:[#allocation6 + $0x4c0] sm:$0xff]
        %v2072 = vld [vmem:[#allocation6 + $0x4c8] sm:$0xff]
        %v2073 = vld [vmem:[#allocation6 + $0x4d0] sm:$0xff]
        %v2074 = vld [vmem:[#allocation6 + $0x4d8] sm:$0xff]
        %v2075 = vld [vmem:[#allocation6 + $0x4e0] sm:$0xff]
        %v2076 = vld [vmem:[#allocation6 + $0x4e8] sm:$0xff]
        %v2077 = vld [vmem:[#allocation6 + $0x4f0] sm:$0xff]
        %v2078 = vld [vmem:[#allocation6 + $0x4f8] sm:$0xff]
        %v2079 = vld [vmem:[#allocation6 + $0x500] sm:$0xff]
        %v2080 = vld [vmem:[#allocation6 + $0x508] sm:$0xff]
        %v2081 = vld [vmem:[#allocation6 + $0x510] sm:$0xff]
        %v2082 = vld [vmem:[#allocation6 + $0x518] sm:$0xff]
        %v2083 = vld [vmem:[#allocation6 + $0x520] sm:$0xff]
        %v2084 = vld [vmem:[#allocation6 + $0x528] sm:$0xff]
        %v2085 = vld [vmem:[#allocation6 + $0x530] sm:$0xff]
        %v2086 = vld [vmem:[#allocation6 + $0x538] sm:$0xff]
        %v2087 = vld [vmem:[#allocation6 + $0x540] sm:$0xff]
        %v2088 = vld [vmem:[#allocation6 + $0x548] sm:$0xff]
        %v2089 = vld [vmem:[#allocation6 + $0x550] sm:$0xff]
        %v2090 = vld [vmem:[#allocation6 + $0x558] sm:$0xff]
        %v2091 = vld [vmem:[#allocation6 + $0x560] sm:$0xff]
        %v2092 = vld [vmem:[#allocation6 + $0x568] sm:$0xff]
        %v2093 = vld [vmem:[#allocation6 + $0x570] sm:$0xff]
        %v2094 = vld [vmem:[#allocation6 + $0x578] sm:$0xff]
        %v2095 = vld [vmem:[#allocation6 + $0x580] sm:$0xff]
        %v2096 = vld [vmem:[#allocation6 + $0x588] sm:$0xff]
        %v2097 = vld [vmem:[#allocation6 + $0x590] sm:$0xff]
        %v2098 = vld [vmem:[#allocation6 + $0x598] sm:$0xff]
        %v2099 = vld [vmem:[#allocation6 + $0x5a0] sm:$0xff]
        %v2100 = vld [vmem:[#allocation6 + $0x5a8] sm:$0xff]
        %v2101 = vld [vmem:[#allocation6 + $0x5b0] sm:$0xff]
        %v2102 = vld [vmem:[#allocation6 + $0x5b8] sm:$0xff]
        %v2103 = vld [vmem:[#allocation6 + $0x5c0] sm:$0xff]
        %v2104 = vld [vmem:[#allocation6 + $0x5c8] sm:$0xff]
        %v2105 = vld [vmem:[#allocation6 + $0x5d0] sm:$0xff]
        %v2106 = vld [vmem:[#allocation6 + $0x5d8] sm:$0xff]
        %v2107 = vld [vmem:[#allocation6 + $0x5e0] sm:$0xff]
        %v2108 = vld [vmem:[#allocation6 + $0x5e8] sm:$0xff]
        %v2109 = vld [vmem:[#allocation6 + $0x5f0] sm:$0xff]
        %v2110 = vld [vmem:[#allocation6 + $0x5f8] sm:$0xff]
        %v2111 = vld [vmem:[#allocation7] sm:$0x7]
        %v2113 = vperm.slane %v2111, 0
        %v2114 = vperm.slane %v2111, 1
        %v2115 = vperm.slane %v2111, 2
        %2119 = vmatpush.msra.mxu0 %v1964
        %2120 = vmatpush.msra.mxu0 %v1961
        %2121 = vmatpush.msra.mxu0 %v1958
        %2122 = vmatpush.msra.mxu0 %v1955
        %2123 = vmatpush.msra.mxu0 %v1952
        %2124 = vmatpush.msra.mxu0 %v1949
        %2125 = vmatpush.msra.mxu0 %v1946
        %2126 = vmatpush.msra.mxu0 %v1943
        %2127 = vmatpush.msra.mxu0 %v1940
        %2128 = vmatpush.msra.mxu0 %v1937
        %2129 = vmatpush.msra.mxu0 %v1934
        %2130 = vmatpush.msra.mxu0 %v1931
        %2131 = vmatpush.msra.mxu0 %v1928
        %2132 = vmatpush.msra.mxu0 %v1925
        %2133 = vmatpush.msra.mxu0 %v1922
        %2134 = vmatpush.msra.mxu0 %v1919
        %2135 = vmatmul.f32.gmra.mxu0 %v1753
        %v2136 = vpop.f32.mrf.mxu0
        %v2137 = vadd.f32 %v2113, %v2136
        %2138 = vdwg.mxu0
        %2139 = vmatpush.msra.mxu0 %v2012
        %2140 = vmatpush.msra.mxu0 %v2009
        %2141 = vmatpush.msra.mxu0 %v2006
        %2142 = vmatpush.msra.mxu0 %v2003
        %2143 = vmatpush.msra.mxu0 %v2000
        %2144 = vmatpush.msra.mxu0 %v1997
        %2145 = vmatpush.msra.mxu0 %v1994
        %2146 = vmatpush.msra.mxu0 %v1991
        %2147 = vmatpush.msra.mxu0 %v1988
        %2148 = vmatpush.msra.mxu0 %v1985
        %2149 = vmatpush.msra.mxu0 %v1982
        %2150 = vmatpush.msra.mxu0 %v1979
        %2151 = vmatpush.msra.mxu0 %v1976
        %2152 = vmatpush.msra.mxu0 %v1973
        %2153 = vmatpush.msra.mxu0 %v1970
        %2154 = vmatpush.msra.mxu0 %v1967
        %2155 = vmatmul.f32.gmra.mxu0 %v1808
        %v2156 = vpop.f32.mrf.mxu0
        %v2157 = vadd.f32 %v2137, %v2156
        %2158 = vdwg.mxu0
        %2159 = vmatpush.msra.mxu0 %v2060
        %2160 = vmatpush.msra.mxu0 %v2057
        %2161 = vmatpush.msra.mxu0 %v2054
        %2162 = vmatpush.msra.mxu0 %v2051
        %2163 = vmatpush.msra.mxu0 %v2048
        %2164 = vmatpush.msra.mxu0 %v2045
        %2165 = vmatpush.msra.mxu0 %v2042
        %2166 = vmatpush.msra.mxu0 %v2039
        %2167 = vmatpush.msra.mxu0 %v2036
        %2168 = vmatpush.msra.mxu0 %v2033
        %2169 = vmatpush.msra.mxu0 %v2030
        %2170 = vmatpush.msra.mxu0 %v2027
        %2171 = vmatpush.msra.mxu0 %v2024
        %2172 = vmatpush.msra.mxu0 %v2021
        %2173 = vmatpush.msra.mxu0 %v2018
        %2174 = vmatpush.msra.mxu0 %v2015
        %2175 = vmatmul.f32.gmra.mxu0 %v1863
        %v2176 = vpop.f32.mrf.mxu0
        %v2177 = vadd.f32 %v2157, %v2176
        %2178 = vdwg.mxu0
        %2179 = vmatpush.msra.mxu0 %v2108
        %2180 = vmatpush.msra.mxu0 %v2105
        %2181 = vmatpush.msra.mxu0 %v2102
        %2182 = vmatpush.msra.mxu0 %v2099
        %2183 = vmatpush.msra.mxu0 %v2096
        %2184 = vmatpush.msra.mxu0 %v2093
        %2185 = vmatpush.msra.mxu0 %v2090
        %2186 = vmatpush.msra.mxu0 %v2087
        %2187 = vmatpush.msra.mxu0 %v2084
        %2188 = vmatpush.msra.mxu0 %v2081
        %2189 = vmatpush.msra.mxu0 %v2078
        %2190 = vmatpush.msra.mxu0 %v2075
        %2191 = vmatpush.msra.mxu0 %v2072
        %2192 = vmatpush.msra.mxu0 %v2069
        %2193 = vmatpush.msra.mxu0 %v2066
        %2194 = vmatpush.msra.mxu0 %v2063
        %2195 = vmatmul.f32.gmra.mxu0 %v1918
        %v2196 = vpop.f32.mrf.mxu0
        %v2197 = vadd.f32 %v2177, %v2196
        %2198 = vdwg.mxu0
        %2199 = vmatpush.msra.mxu0 %v1965
        %2200 = vmatpush.msra.mxu0 %v1962
        %2201 = vmatpush.msra.mxu0 %v1959
        %2202 = vmatpush.msra.mxu0 %v1956
        %2203 = vmatpush.msra.mxu0 %v1953
        %2204 = vmatpush.msra.mxu0 %v1950
        %2205 = vmatpush.msra.mxu0 %v1947
        %2206 = vmatpush.msra.mxu0 %v1944
        %2207 = vmatpush.msra.mxu0 %v1941
        %2208 = vmatpush.msra.mxu0 %v1938
        %2209 = vmatpush.msra.mxu0 %v1935
        %2210 = vmatpush.msra.mxu0 %v1932
        %2211 = vmatpush.msra.mxu0 %v1929
        %2212 = vmatpush.msra.mxu0 %v1926
        %2213 = vmatpush.msra.mxu0 %v1923
        %2214 = vmatpush.msra.mxu0 %v1920
        %2215 = vmatmul.f32.gmra.mxu0 %v1753
        %v2216 = vpop.f32.mrf.mxu0
        %v2217 = vadd.f32 %v2114, %v2216
        %2218 = vdwg.mxu0
        %2219 = vmatpush.msra.mxu0 %v2013
        %2220 = vmatpush.msra.mxu0 %v2010
        %2221 = vmatpush.msra.mxu0 %v2007
        %2222 = vmatpush.msra.mxu0 %v2004
        %2223 = vmatpush.msra.mxu0 %v2001
        %2224 = vmatpush.msra.mxu0 %v1998
        %2225 = vmatpush.msra.mxu0 %v1995
        %2226 = vmatpush.msra.mxu0 %v1992
        %2227 = vmatpush.msra.mxu0 %v1989
        %2228 = vmatpush.msra.mxu0 %v1986
        %2229 = vmatpush.msra.mxu0 %v1983
        %2230 = vmatpush.msra.mxu0 %v1980
        %2231 = vmatpush.msra.mxu0 %v1977
        %2232 = vmatpush.msra.mxu0 %v1974
        %2233 = vmatpush.msra.mxu0 %v1971
        %2234 = vmatpush.msra.mxu0 %v1968
        %2235 = vmatmul.f32.gmra.mxu0 %v1808
        %v2236 = vpop.f32.mrf.mxu0
        %v2237 = vadd.f32 %v2217, %v2236
        %2238 = vdwg.mxu0
        %2239 = vmatpush.msra.mxu0 %v2061
        %2240 = vmatpush.msra.mxu0 %v2058
        %2241 = vmatpush.msra.mxu0 %v2055
        %2242 = vmatpush.msra.mxu0 %v2052
        %2243 = vmatpush.msra.mxu0 %v2049
        %2244 = vmatpush.msra.mxu0 %v2046
        %2245 = vmatpush.msra.mxu0 %v2043
        %2246 = vmatpush.msra.mxu0 %v2040
        %2247 = vmatpush.msra.mxu0 %v2037
        %2248 = vmatpush.msra.mxu0 %v2034
        %2249 = vmatpush.msra.mxu0 %v2031
        %2250 = vmatpush.msra.mxu0 %v2028
        %2251 = vmatpush.msra.mxu0 %v2025
        %2252 = vmatpush.msra.mxu0 %v2022
        %2253 = vmatpush.msra.mxu0 %v2019
        %2254 = vmatpush.msra.mxu0 %v2016
        %2255 = vmatmul.f32.gmra.mxu0 %v1863
        %v2256 = vpop.f32.mrf.mxu0
        %v2257 = vadd.f32 %v2237, %v2256
        %2258 = vdwg.mxu0
        %2259 = vmatpush.msra.mxu0 %v2109
        %2260 = vmatpush.msra.mxu0 %v2106
        %2261 = vmatpush.msra.mxu0 %v2103
        %2262 = vmatpush.msra.mxu0 %v2100
        %2263 = vmatpush.msra.mxu0 %v2097
        %2264 = vmatpush.msra.mxu0 %v2094
        %2265 = vmatpush.msra.mxu0 %v2091
        %2266 = vmatpush.msra.mxu0 %v2088
        %2267 = vmatpush.msra.mxu0 %v2085
        %2268 = vmatpush.msra.mxu0 %v2082
        %2269 = vmatpush.msra.mxu0 %v2079
        %2270 = vmatpush.msra.mxu0 %v2076
        %2271 = vmatpush.msra.mxu0 %v2073
        %2272 = vmatpush.msra.mxu0 %v2070
        %2273 = vmatpush.msra.mxu0 %v2067
        %2274 = vmatpush.msra.mxu0 %v2064
        %2275 = vmatmul.f32.gmra.mxu0 %v1918
        %v2276 = vpop.f32.mrf.mxu0
        %v2277 = vadd.f32 %v2257, %v2276
        %2278 = vdwg.mxu0
        %2279 = vmatpush.msra.mxu0 %v1966
        %2280 = vmatpush.msra.mxu0 %v1963
        %2281 = vmatpush.msra.mxu0 %v1960
        %2282 = vmatpush.msra.mxu0 %v1957
        %2283 = vmatpush.msra.mxu0 %v1954
        %2284 = vmatpush.msra.mxu0 %v1951
        %2285 = vmatpush.msra.mxu0 %v1948
        %2286 = vmatpush.msra.mxu0 %v1945
        %2287 = vmatpush.msra.mxu0 %v1942
        %2288 = vmatpush.msra.mxu0 %v1939
        %2289 = vmatpush.msra.mxu0 %v1936
        %2290 = vmatpush.msra.mxu0 %v1933
        %2291 = vmatpush.msra.mxu0 %v1930
        %2292 = vmatpush.msra.mxu0 %v1927
        %2293 = vmatpush.msra.mxu0 %v1924
        %2294 = vmatpush.msra.mxu0 %v1921
        %2295 = vmatmul.f32.gmra.mxu0 %v1753
        %v2296 = vpop.f32.mrf.mxu0
        %v2297 = vadd.f32 %v2115, %v2296
        %2298 = vdwg.mxu0
        %2299 = vmatpush.msra.mxu0 %v2014
        %2300 = vmatpush.msra.mxu0 %v2011
        %2301 = vmatpush.msra.mxu0 %v2008
        %2302 = vmatpush.msra.mxu0 %v2005
        %2303 = vmatpush.msra.mxu0 %v2002
        %2304 = vmatpush.msra.mxu0 %v1999
        %2305 = vmatpush.msra.mxu0 %v1996
        %2306 = vmatpush.msra.mxu0 %v1993
        %2307 = vmatpush.msra.mxu0 %v1990
        %2308 = vmatpush.msra.mxu0 %v1987
        %2309 = vmatpush.msra.mxu0 %v1984
        %2310 = vmatpush.msra.mxu0 %v1981
        %2311 = vmatpush.msra.mxu0 %v1978
        %2312 = vmatpush.msra.mxu0 %v1975
        %2313 = vmatpush.msra.mxu0 %v1972
        %2314 = vmatpush.msra.mxu0 %v1969
        %2315 = vmatmul.f32.gmra.mxu0 %v1808
        %v2316 = vpop.f32.mrf.mxu0
        %v2317 = vadd.f32 %v2297, %v2316
        %2318 = vdwg.mxu0
        %2319 = vmatpush.msra.mxu0 %v2062
        %2320 = vmatpush.msra.mxu0 %v2059
        %2321 = vmatpush.msra.mxu0 %v2056
        %2322 = vmatpush.msra.mxu0 %v2053
        %2323 = vmatpush.msra.mxu0 %v2050
        %2324 = vmatpush.msra.mxu0 %v2047
        %2325 = vmatpush.msra.mxu0 %v2044
        %2326 = vmatpush.msra.mxu0 %v2041
        %2327 = vmatpush.msra.mxu0 %v2038
        %2328 = vmatpush.msra.mxu0 %v2035
        %2329 = vmatpush.msra.mxu0 %v2032
        %2330 = vmatpush.msra.mxu0 %v2029
        %2331 = vmatpush.msra.mxu0 %v2026
        %2332 = vmatpush.msra.mxu0 %v2023
        %2333 = vmatpush.msra.mxu0 %v2020
        %2334 = vmatpush.msra.mxu0 %v2017
        %2335 = vmatmul.f32.gmra.mxu0 %v1863
        %v2336 = vpop.f32.mrf.mxu0
        %v2337 = vadd.f32 %v2317, %v2336
        %2338 = vdwg.mxu0
        %2339 = vmatpush.msra.mxu0 %v2110
        %2340 = vmatpush.msra.mxu0 %v2107
        %2341 = vmatpush.msra.mxu0 %v2104
        %2342 = vmatpush.msra.mxu0 %v2101
        %2343 = vmatpush.msra.mxu0 %v2098
        %2344 = vmatpush.msra.mxu0 %v2095
        %2345 = vmatpush.msra.mxu0 %v2092
        %2346 = vmatpush.msra.mxu0 %v2089
        %2347 = vmatpush.msra.mxu0 %v2086
        %2348 = vmatpush.msra.mxu0 %v2083
        %2349 = vmatpush.msra.mxu0 %v2080
        %2350 = vmatpush.msra.mxu0 %v2077
        %2351 = vmatpush.msra.mxu0 %v2074
        %2352 = vmatpush.msra.mxu0 %v2071
        %2353 = vmatpush.msra.mxu0 %v2068
        %2354 = vmatpush.msra.mxu0 %v2065
        %2355 = vmatmul.f32.gmra.mxu0 %v1918
        %v2356 = vpop.f32.mrf.mxu0
        %v2357 = vadd.f32 %v2337, %v2356
        %2358 = vdwg.mxu0
        %v2359 = vadd.f32 %v371, %v2197
        %v2360 = vadd.f32 %v372, %v2277
        %v2361 = vadd.f32 %v373, %v2357
        %v2362 = vadd.f32 %v2359, %v2360
        %v2363 = vadd.f32 %v2362, %v2361
        %2364 = vadd.xlane.f32.xlu0 %v2363
        %v2365 = vpop.xlane.xlu0 %2364
        %v2366 = vrcp.pop 384.0
        %v2367 = vmul.f32 384.0, %v2366
        %v2368 = vsub.f32 1.0, %v2367
        %v2369 = vmul.f32 %v2366, %v2368
        %v2370 = vadd.f32 %v2366, %v2369
        %vm2371 = vweird.f32 %v2366
        %v2372 = vsel %vm2371, %v2366, %v2370
        %v2373 = vmul.f32 %v2365, %v2372
        %v2374 = vsub.f32 %v2359, %v2373
        %v2375 = vsub.f32 %v2360, %v2373
        %v2376 = vsub.f32 %v2361, %v2373
        %v2377 = vmul.f32 %v2374, %v2374
        %v2378 = vmul.f32 %v2375, %v2375
        %v2379 = vmul.f32 %v2376, %v2376
        %v2380 = vadd.f32 %v2377, %v2378
        %v2381 = vadd.f32 %v2380, %v2379
        %2382 = vadd.xlane.f32.xlu0 %v2381
        %v2383 = vpop.xlane.xlu0 %2382
        %v2384 = vmul.f32 %v2383, %v2372
        %v2385 = vadd.f32 %v2384, 1e-05
        %v2386 = vrsqrt.pop %v2385
        %v2387 = vmul.f32 %v2386, %v2385
        %v2388 = vmul.f32 %v2387, %v2386
        %v2389 = vmul.f32 0.5, %v2388
        %v2390 = vsub.f32 1.5, %v2389
        %v2391 = vmul.f32 %v2386, %v2390
        %vm2392 = vweird.f32 %v2385
        %vm2393 = vweird.f32 %v2386
        %vm2394 = vmor %vm2392, %vm2393
        %v2395 = vsel %vm2394, %v2386, %v2391
        %v2396 = vmul.f32 %v2374, %v2395
        %v2397 = vmul.f32 %v2375, %v2395
        %v2398 = vmul.f32 %v2376, %v2395
        %v2399 = vld [vmem:[#allocation9] sm:$0x7]
        %v2401 = vperm.slane %v2399, 0
        %v2402 = vperm.slane %v2399, 1
        %v2403 = vperm.slane %v2399, 2
        %v2407 = vmul.f32 %v2396, %v2401
        %v2408 = vmul.f32 %v2397, %v2402
        %v2409 = vmul.f32 %v2398, %v2403
        %v2410 = vld [vmem:[#allocation10] sm:$0x7]
        %v2412 = vperm.slane %v2410, 0
        %v2413 = vperm.slane %v2410, 1
        %v2414 = vperm.slane %v2410, 2
        %v2418 = vadd.f32 %v2407, %v2412
        %v2419 = vadd.f32 %v2408, %v2413
        %v2420 = vadd.f32 %v2409, %v2414
        %2421 = vst [vmem:[%s370] sm:$0xff] %v2418
        %2422 = vst [vmem:[%s370 + $0x8] sm:$0xff] %v2419
        %2423 = vst [vmem:[%s370 + $0x10] sm:$0xff] %v2420
        %p2424 = scmp.lt.s32.totalorder %s22, 1
        %s2425 = scalar_select %p2424, %s22, 1
        %s2426 = smul.addr %s2425, 3
        %s2427 = smul.addr %s2426, 8
        %s2428 = scalar_lea.vmem %s7, %s2427
        // Predicated region
        $region73: #{transformer_forward.15} parent=47 // pred_check
          %p2429 = pneg %p192
        $region74: #{transformer_forward.15} parent=47 // pred_check_branch
          %2431 = sbr.rel (%p2429) target = $region76
        $region75: #{transformer_forward.15} parent=47 // pred_region
          _
        $region76: #{transformer_forward.15} parent=47 // pred_fallthru
          _
      $region48: #{transformer_forward.15} parent=5 // pred_fallthru
        _
      %p2432 = scmp.le.s32.totalorder 2, %s17
      // Predicated region
      $region77: #{transformer_forward.15} parent=5 // pred_check
        %p2433 = pneg %p2432
      $region78: #{transformer_forward.15} parent=5 // pred_check_branch
        %2435 = sbr.rel (%p2433) target = $region80
      $region79: #{transformer_forward.15} parent=5 // pred_region
        %s2436 = ssub.s32 %s17, 2
        // Predicated region
        $region81: #{transformer_forward.15} parent=79 // pred_check
          %p2437 = pneg %p198
        $region82: #{transformer_forward.15} parent=79 // pred_check_branch
          %2439 = sbr.rel (%p2437) target = $region84
        $region83: #{transformer_forward.15} parent=79 // pred_region
          %p2440 = scmp.lt.s32.totalorder %s23, 1
          %s2441 = scalar_select %p2440, %s23, 1
          %s2442 = smul.addr %s2441, 3
          %s2443 = smul.addr %s2442, 8
          %s2444 = scalar_lea.vmem %s7, %s2443
        $region84: #{transformer_forward.15} parent=79 // pred_fallthru
          _
      $region80: #{transformer_forward.15} parent=5 // pred_fallthru
        _
    $region6: #{transformer_forward.15} parent=1 // loop_footer
      %s21 = sadd.s32 1, %s17
    $region7: #{transformer_forward.15} parent=1 // loop_footer_branch
      %16 = sbr.rel target = $region3
    $region8: #{transformer_forward.15} parent=1 // loop_exit
      _
    %2445 = vsyncpa [#allocation3], 1
    %s2446 = scalar_lea.sflag [#allocation3], 1
    %2447 = vsyncpa %s2446, 1
    %2448 = vsyncpa [#allocation5], 1
    %2449 = vsyncpa [#allocation8], 1
    %2450 = vsyncpa [#allocation11], 1

// kernel: transformer_forward.16
$region0: #{transformer_forward.16}
  #allocation0 [shape = 'u32[]', space=smem, size = 0x4, offset = 0x4, fixed_abs, tag = 'smem constant byte address 0x4 - core index']
  #allocation1 [shape = 'u32[72,128]{1,0:T(1,128)}', space=vmem, size = 0x9000, scoped, tag = 'internal scratch']
  %s0 = inlined_call_operand.vmem [shape: f32[16,384], index: 0, kind: input, shape index: {}]
  %s1 = inlined_call_operand.hbm [shape: f32[384,2048], index: 1, kind: input, shape index: {}]
  %s2 = inlined_call_operand.hbm [shape: f32[1,2048], index: 2, kind: input, shape index: {}]
  %s3 = inlined_call_operand.hbm [shape: f32[2048,384], index: 3, kind: input, shape index: {}]
  %s4 = inlined_call_operand.hbm [shape: f32[1,384], index: 4, kind: input, shape index: {}]
  %s5 = inlined_call_operand.hbm [shape: f32[1,384], index: 5, kind: input, shape index: {}]
  %s6 = inlined_call_operand.hbm [shape: f32[1,384], index: 6, kind: input, shape index: {}]
  %s7 = inlined_call_operand.vmem [shape: f32[16,384], index: 7, kind: output, shape index: {}]
  %s8 = sld [smem:[#allocation0]]
  $region85: #{transformer_forward.16} parent=0
    _
  %s10 = ssub.s32 1, %s8
  %s11 = scalar_select 0, %s10, %s8
  $region1: #{transformer_forward.16} parent=0
    #allocation2 [shape = 'u8[3145728]{0}', space=vmem, size = 0x300000, scoped, tag = 'input window, operand 1, single buffered']
    #allocation3 [shape = 's32[2]{0}', space=sflag, size = 0x8, scoped, tag = 'scoped memory for transformer_forward.16']
    #allocation4 [shape = 'u8[8192]{0}', space=vmem, size = 0x2000, scoped, tag = 'input window, operand 2, single buffered']
    #allocation5 [shape = 's32[1]{0}', space=sflag, size = 0x4, scoped, tag = 'scoped memory for transformer_forward.16']
    #allocation6 [shape = 'u8[3145728]{0}', space=vmem, size = 0x300000, scoped, tag = 'input window, operand 3, single buffered']
    #allocation7 [shape = 'u8[1536]{0}', space=vmem, size = 0x800, scoped, tag = 'input window, operand 4, single buffered']
    #allocation8 [shape = 's32[1]{0}', space=sflag, size = 0x4, scoped, tag = 'scoped memory for transformer_forward.16']
    #allocation9 [shape = 'u8[1536]{0}', space=vmem, size = 0x800, scoped, tag = 'input window, operand 5, single buffered']
    #allocation10 [shape = 'u8[1536]{0}', space=vmem, size = 0x800, scoped, tag = 'input window, operand 6, single buffered']
    #allocation11 [shape = 's32[1]{0}', space=sflag, size = 0x4, scoped, tag = 'scoped memory for transformer_forward.16']
    %12 = vsyncpa [#allocation3], 0
    %13 = vsyncpa [#allocation5], 0
    %14 = vsyncpa [#allocation8], 0
    %15 = vsyncpa [#allocation11], 0
    loop: start=0, step=1, limit=4
    $region2: #{transformer_forward.16} parent=1 // loop_pre_header
      _
    $region3: #{transformer_forward.16} parent=1 // loop_header
      %s17 = sphi 0, %s21
      %p18 = scmp.ge.s32.totalorder %s17, 4
      %s27 = sphi 0, %s29
      %s30 = sphi 0, %s27
      %s31 = sphi 0, %s30
      %s47 = sphi 0, %s31
      %s51 = sphi 0, %s51
      %s53 = sphi 0, %s51
      %s54 = sphi 0, %s53
      %s68 = sphi 0, %s54
      %s72 = sphi 0, %s72
      %s74 = sphi 0, %s72
      %s75 = sphi 0, %s74
      %s89 = sphi 0, %s75
      %s93 = sphi 0, %s93
      %s95 = sphi 0, %s93
      %s96 = sphi 0, %s95
      %s110 = sphi 0, %s96
      %s114 = sphi 0, %s114
      %s116 = sphi 0, %s114
      %s117 = sphi 0, %s116
      %s131 = sphi 0, %s117
      %s135 = sphi 0, %s135
      %s137 = sphi 0, %s135
      %s138 = sphi 0, %s137
      %s152 = sphi 0, %s138
      %s156 = sphi 0, %s156
      %s158 = sphi 0, %s156
      %s159 = sphi 0, %s158
      %s173 = sphi 0, %s159
      %s179 = sphi 0, %s181
      %s182 = sphi 0, %s179
      %s183 = sphi 0, %s182
      %s199 = sphi 0, %s183
    $region4: #{transformer_forward.16} parent=1 // loop_header_branch
      %20 = sbr.rel (%p18) target = $region8
    $region5: #{transformer_forward.16} parent=1 // loop_body
      %s22 = ssub.s32 %s17, 1
      %s23 = ssub.s32 %s17, 2
      %s24 = sadd.s32 %s17, 1
      %s25 = ssub.s32 %s17, %s24
      %p26 = scmp.eq.s32.totalorder %s25, 0
      %s28 = sadd.s32 %s27, 1
      %s29 = scalar_select %p26, %s27, %s28
      %p32 = pneg %p26
      %p33 = scmp.eq.s32.totalorder %s17, 1
      %p34 = por %p32, %p33
      %p35 = scmp.ne.s32.totalorder %s27, %s30
      %p36 = scmp.eq.s32.totalorder %s17, 0
      %p37 = por %p35, %p36
      %p38 = scmp.ne.s32.totalorder %s27, %s30
      %p39 = scmp.eq.s32.totalorder %s22, 1
      %p40 = por %p38, %p39
      %p41 = scmp.ne.s32.totalorder %s30, %s31
      %p42 = scmp.eq.s32.totalorder %s22, 0
      %p43 = por %p41, %p42
      %p44 = scmp.ne.s32.totalorder %s30, %s31
      %p45 = scmp.eq.s32.totalorder %s23, 1
      %p46 = por %p44, %p45
      %p48 = scmp.ne.s32.totalorder %s31, %s47
      %p49 = scmp.eq.s32.totalorder %s23, 0
      %p50 = por %p48, %p49
      %s52 = sadd.s32 %s51, 1
      %p55 = scmp.eq.s32.totalorder %s17, 1
      %p56 = scmp.ne.s32.totalorder %s51, %s53
      %p57 = scmp.eq.s32.totalorder %s17, 0
      %p58 = por %p56, %p57
      %p59 = scmp.ne.s32.totalorder %s51, %s53
      %p60 = scmp.eq.s32.totalorder %s22, 1
      %p61 = por %p59, %p60
      %p62 = scmp.ne.s32.totalorder %s53, %s54
      %p63 = scmp.eq.s32.totalorder %s22, 0
      %p64 = por %p62, %p63
      %p65 = scmp.ne.s32.totalorder %s53, %s54
      %p66 = scmp.eq.s32.totalorder %s23, 1
      %p67 = por %p65, %p66
      %p69 = scmp.ne.s32.totalorder %s54, %s68
      %p70 = scmp.eq.s32.totalorder %s23, 0
      %p71 = por %p69, %p70
      %s73 = sadd.s32 %s72, 1
      %p76 = scmp.eq.s32.totalorder %s17, 1
      %p77 = scmp.ne.s32.totalorder %s72, %s74
      %p78 = scmp.eq.s32.totalorder %s17, 0
      %p79 = por %p77, %p78
      %p80 = scmp.ne.s32.totalorder %s72, %s74
      %p81 = scmp.eq.s32.totalorder %s22, 1
      %p82 = por %p80, %p81
      %p83 = scmp.ne.s32.totalorder %s74, %s75
      %p84 = scmp.eq.s32.totalorder %s22, 0
      %p85 = por %p83, %p84
      %p86 = scmp.ne.s32.totalorder %s74, %s75
      %p87 = scmp.eq.s32.totalorder %s23, 1
      %p88 = por %p86, %p87
      %p90 = scmp.ne.s32.totalorder %s75, %s89
      %p91 = scmp.eq.s32.totalorder %s23, 0
      %p92 = por %p90, %p91
      %s94 = sadd.s32 %s93, 1
      %p97 = scmp.eq.s32.totalorder %s17, 1
      %p98 = scmp.ne.s32.totalorder %s93, %s95
      %p99 = scmp.eq.s32.totalorder %s17, 0
      %p100 = por %p98, %p99
      %p101 = scmp.ne.s32.totalorder %s93, %s95
      %p102 = scmp.eq.s32.totalorder %s22, 1
      %p103 = por %p101, %p102
      %p104 = scmp.ne.s32.totalorder %s95, %s96
      %p105 = scmp.eq.s32.totalorder %s22, 0
      %p106 = por %p104, %p105
      %p107 = scmp.ne.s32.totalorder %s95, %s96
      %p108 = scmp.eq.s32.totalorder %s23, 1
      %p109 = por %p107, %p108
      %p111 = scmp.ne.s32.totalorder %s96, %s110
      %p112 = scmp.eq.s32.totalorder %s23, 0
      %p113 = por %p111, %p112
      %s115 = sadd.s32 %s114, 1
      %p118 = scmp.eq.s32.totalorder %s17, 1
      %p119 = scmp.ne.s32.totalorder %s114, %s116
      %p120 = scmp.eq.s32.totalorder %s17, 0
      %p121 = por %p119, %p120
      %p122 = scmp.ne.s32.totalorder %s114, %s116
      %p123 = scmp.eq.s32.totalorder %s22, 1
      %p124 = por %p122, %p123
      %p125 = scmp.ne.s32.totalorder %s116, %s117
      %p126 = scmp.eq.s32.totalorder %s22, 0
      %p127 = por %p125, %p126
      %p128 = scmp.ne.s32.totalorder %s116, %s117
      %p129 = scmp.eq.s32.totalorder %s23, 1
      %p130 = por %p128, %p129
      %p132 = scmp.ne.s32.totalorder %s117, %s131
      %p133 = scmp.eq.s32.totalorder %s23, 0
      %p134 = por %p132, %p133
      %s136 = sadd.s32 %s135, 1
      %p139 = scmp.eq.s32.totalorder %s17, 1
      %p140 = scmp.ne.s32.totalorder %s135, %s137
      %p141 = scmp.eq.s32.totalorder %s17, 0
      %p142 = por %p140, %p141
      %p143 = scmp.ne.s32.totalorder %s135, %s137
      %p144 = scmp.eq.s32.totalorder %s22, 1
      %p145 = por %p143, %p144
      %p146 = scmp.ne.s32.totalorder %s137, %s138
      %p147 = scmp.eq.s32.totalorder %s22, 0
      %p148 = por %p146, %p147
      %p149 = scmp.ne.s32.totalorder %s137, %s138
      %p150 = scmp.eq.s32.totalorder %s23, 1
      %p151 = por %p149, %p150
      %p153 = scmp.ne.s32.totalorder %s138, %s152
      %p154 = scmp.eq.s32.totalorder %s23, 0
      %p155 = por %p153, %p154
      %s157 = sadd.s32 %s156, 1
      %p160 = scmp.eq.s32.totalorder %s17, 1
      %p161 = scmp.ne.s32.totalorder %s156, %s158
      %p162 = scmp.eq.s32.totalorder %s17, 0
      %p163 = por %p161, %p162
      %p164 = scmp.ne.s32.totalorder %s156, %s158
      %p165 = scmp.eq.s32.totalorder %s22, 1
      %p166 = por %p164, %p165
      %p167 = scmp.ne.s32.totalorder %s158, %s159
      %p168 = scmp.eq.s32.totalorder %s22, 0
      %p169 = por %p167, %p168
      %p170 = scmp.ne.s32.totalorder %s158, %s159
      %p171 = scmp.eq.s32.totalorder %s23, 1
      %p172 = por %p170, %p171
      %p174 = scmp.ne.s32.totalorder %s159, %s173
      %p175 = scmp.eq.s32.totalorder %s23, 0
      %p176 = por %p174, %p175
      %s177 = ssub.s32 %s17, %s24
      %p178 = scmp.eq.s32.totalorder %s177, 0
      %s180 = sadd.s32 %s179, 1
      %s181 = scalar_select %p178, %s179, %s180
      %p184 = pneg %p178
      %p185 = scmp.eq.s32.totalorder %s17, 1
      %p186 = por %p184, %p185
      %p187 = scmp.ne.s32.totalorder %s179, %s182
      %p188 = scmp.eq.s32.totalorder %s17, 0
      %p189 = por %p187, %p188
      %p190 = scmp.ne.s32.totalorder %s179, %s182
      %p191 = scmp.eq.s32.totalorder %s22, 1
      %p192 = por %p190, %p191
      %p193 = scmp.ne.s32.totalorder %s182, %s183
      %p194 = scmp.eq.s32.totalorder %s22, 0
      %p195 = por %p193, %p194
      %p196 = scmp.ne.s32.totalorder %s182, %s183
      %p197 = scmp.eq.s32.totalorder %s23, 1
      %p198 = por %p196, %p197
      %p200 = scmp.ne.s32.totalorder %s183, %s199
      %p201 = scmp.eq.s32.totalorder %s23, 0
      %p202 = por %p200, %p201
      %p203 = scmp.le.s32.totalorder 1, %s17
      %p204 = scmp.lt.s32.totalorder %s17, 3
      %p205 = pnand %p203, %p204
      %p206 = pneg %p205
      // Predicated region
      $region9: #{transformer_forward.16} parent=5 // pred_check
        _
      $region10: #{transformer_forward.16} parent=5 // pred_check_branch
        %208 = sbr.rel (%p205) target = $region12
      $region11: #{transformer_forward.16} parent=5 // pred_region
        %s209 = ssub.s32 %s17, 1
        // Predicated region
        $region13: #{transformer_forward.16} parent=11 // pred_check
          %p210 = pneg %p64
        $region14: #{transformer_forward.16} parent=11 // pred_check_branch
          %212 = sbr.rel (%p210) target = $region16
        $region15: #{transformer_forward.16} parent=11 // pred_region
          %214 = vsyncadd [#allocation3], 0
          %s215 = sshll.u32 %s1, 4
          %s216 = int_to_ptr.hbm [resolvable:$true] %s215
          %s217 = sshll.u32 [#allocation2], 4
          %s218 = int_to_ptr.vmem [resolvable:$true] %s217
          %223 = dma.hbm_to_vmem [thread:$0]  %s216, 98304, %s218, [#allocation3], 2048, 2048, 128
        $region16: #{transformer_forward.16} parent=11 // pred_fallthru
          _
        // Predicated region
        $region17: #{transformer_forward.16} parent=11 // pred_check
          %p224 = pneg %p85
        $region18: #{transformer_forward.16} parent=11 // pred_check_branch
          %226 = sbr.rel (%p224) target = $region20
        $region19: #{transformer_forward.16} parent=11 // pred_region
          %228 = vsyncadd [#allocation5], 0
          %s230 = sshll.u32 %s2, 4
          %s231 = int_to_ptr.hbm [resolvable:$true] %s230
          %s232 = sshll.u32 [#allocation4], 4
          %s233 = int_to_ptr.vmem [resolvable:$true] %s232
          %235 = dma.hbm_to_vmem [thread:$0]  %s231, 256, %s233, [#allocation5]
        $region20: #{transformer_forward.16} parent=11 // pred_fallthru
          _
        // Predicated region
        $region21: #{transformer_forward.16} parent=11 // pred_check
          %p236 = pneg %p106
        $region22: #{transformer_forward.16} parent=11 // pred_check_branch
          %238 = sbr.rel (%p236) target = $region24
        $region23: #{transformer_forward.16} parent=11 // pred_region
          %240 = vsyncadd [#allocation5], 0
          %s241 = sshll.u32 %s3, 4
          %s242 = int_to_ptr.hbm [resolvable:$true] %s241
          %s243 = sshll.u32 [#allocation6], 4
          %s244 = int_to_ptr.vmem [resolvable:$true] %s243
          %249 = dma.hbm_to_vmem [thread:$0]  %s242, 98304, %s244, [#allocation5], 384, 384, 24
        $region24: #{transformer_forward.16} parent=11 // pred_fallthru
          _
        // Predicated region
        $region25: #{transformer_forward.16} parent=11 // pred_check
          %p250 = pneg %p127
        $region26: #{transformer_forward.16} parent=11 // pred_check_branch
          %252 = sbr.rel (%p250) target = $region28
        $region27: #{transformer_forward.16} parent=11 // pred_region
          %254 = vsyncadd [#allocation8], 0
          %s256 = sshll.u32 %s4, 4
          %s257 = int_to_ptr.hbm [resolvable:$true] %s256
          %s258 = sshll.u32 [#allocation7], 4
          %s259 = int_to_ptr.vmem [resolvable:$true] %s258
          %261 = dma.hbm_to_vmem [thread:$0]  %s257, 48, %s259, [#allocation8]
        $region28: #{transformer_forward.16} parent=11 // pred_fallthru
          _
        // Predicated region
        $region29: #{transformer_forward.16} parent=11 // pred_check
          %p262 = pneg %p148
        $region30: #{transformer_forward.16} parent=11 // pred_check_branch
          %264 = sbr.rel (%p262) target = $region32
        $region31: #{transformer_forward.16} parent=11 // pred_region
          %266 = vsyncadd [#allocation8], 0
          %s268 = sshll.u32 %s5, 4
          %s269 = int_to_ptr.hbm [resolvable:$true] %s268
          %s270 = sshll.u32 [#allocation9], 4
          %s271 = int_to_ptr.vmem [resolvable:$true] %s270
          %273 = dma.hbm_to_vmem [thread:$0]  %s269, 48, %s271, [#allocation8]
        $region32: #{transformer_forward.16} parent=11 // pred_fallthru
          _
        // Predicated region
        $region33: #{transformer_forward.16} parent=11 // pred_check
          %p274 = pneg %p169
        $region34: #{transformer_forward.16} parent=11 // pred_check_branch
          %276 = sbr.rel (%p274) target = $region36
        $region35: #{transformer_forward.16} parent=11 // pred_region
          %278 = vsyncadd [#allocation11], 0
          %s280 = sshll.u32 %s6, 4
          %s281 = int_to_ptr.hbm [resolvable:$true] %s280
          %s282 = sshll.u32 [#allocation10], 4
          %s283 = int_to_ptr.vmem [resolvable:$true] %s282
          %285 = dma.hbm_to_vmem [thread:$0]  %s281, 48, %s283, [#allocation11]
        $region36: #{transformer_forward.16} parent=11 // pred_fallthru
          _
      $region12: #{transformer_forward.16} parent=5 // pred_fallthru
        _
      %p286 = scmp.lt.s32.totalorder %s17, 2
      // Predicated region
      $region37: #{transformer_forward.16} parent=5 // pred_check
        %p287 = pneg %p286
      $region38: #{transformer_forward.16} parent=5 // pred_check_branch
        %289 = sbr.rel (%p287) target = $region40
      $region39: #{transformer_forward.16} parent=5 // pred_region
        // Predicated region
        $region41: #{transformer_forward.16} parent=39 // pred_check
          %p290 = pneg %p37
        $region42: #{transformer_forward.16} parent=39 // pred_check_branch
          %292 = sbr.rel (%p290) target = $region44
        $region43: #{transformer_forward.16} parent=39 // pred_region
          %p293 = scmp.lt.s32.totalorder %s17, 1
          %s294 = scalar_select %p293, %s17, 1
          %s295 = smul.addr %s294, 3
          %s296 = smul.addr %s295, 8
          %s297 = scalar_lea.vmem %s0, %s296
        $region44: #{transformer_forward.16} parent=39 // pred_fallthru
          _
      $region40: #{transformer_forward.16} parent=5 // pred_fallthru
        _
      %p298 = scmp.le.s32.totalorder 1, %s17
      %p299 = scmp.lt.s32.totalorder %s17, 3
      %p300 = pnand %p298, %p299
      %p301 = pneg %p300
      // Predicated region
      $region45: #{transformer_forward.16} parent=5 // pred_check
        _
      $region46: #{transformer_forward.16} parent=5 // pred_check_branch
        %303 = sbr.rel (%p300) target = $region48
      $region47: #{transformer_forward.16} parent=5 // pred_region
        %s304 = ssub.s32 %s17, 1
        // Predicated region
        $region49: #{transformer_forward.16} parent=47 // pred_check
          %p305 = pneg %p64
        $region50: #{transformer_forward.16} parent=47 // pred_check_branch
          %307 = sbr.rel (%p305) target = $region52
        $region51: #{transformer_forward.16} parent=47 // pred_region
          %309 = dma.done [#allocation3], 98304
        $region52: #{transformer_forward.16} parent=47 // pred_fallthru
          _
        // Predicated region
        $region53: #{transformer_forward.16} parent=47 // pred_check
          %p310 = pneg %p85
        $region54: #{transformer_forward.16} parent=47 // pred_check_branch
          %312 = sbr.rel (%p310) target = $region56
        $region55: #{transformer_forward.16} parent=47 // pred_region
          %314 = dma.done [#allocation5], 256
        $region56: #{transformer_forward.16} parent=47 // pred_fallthru
          _
        // Predicated region
        $region57: #{transformer_forward.16} parent=47 // pred_check
          %p315 = pneg %p106
        $region58: #{transformer_forward.16} parent=47 // pred_check_branch
          %317 = sbr.rel (%p315) target = $region60
        $region59: #{transformer_forward.16} parent=47 // pred_region
          %319 = dma.done [#allocation5], 98304
        $region60: #{transformer_forward.16} parent=47 // pred_fallthru
          _
        // Predicated region
        $region61: #{transformer_forward.16} parent=47 // pred_check
          %p320 = pneg %p127
        $region62: #{transformer_forward.16} parent=47 // pred_check_branch
          %322 = sbr.rel (%p320) target = $region64
        $region63: #{transformer_forward.16} parent=47 // pred_region
          %324 = dma.done [#allocation8], 48
        $region64: #{transformer_forward.16} parent=47 // pred_fallthru
          _
        // Predicated region
        $region65: #{transformer_forward.16} parent=47 // pred_check
          %p325 = pneg %p148
        $region66: #{transformer_forward.16} parent=47 // pred_check_branch
          %327 = sbr.rel (%p325) target = $region68
        $region67: #{transformer_forward.16} parent=47 // pred_region
          %329 = dma.done [#allocation8], 48
        $region68: #{transformer_forward.16} parent=47 // pred_fallthru
          _
        // Predicated region
        $region69: #{transformer_forward.16} parent=47 // pred_check
          %p330 = pneg %p169
        $region70: #{transformer_forward.16} parent=47 // pred_check_branch
          %332 = sbr.rel (%p330) target = $region72
        $region71: #{transformer_forward.16} parent=47 // pred_region
          %334 = dma.done [#allocation11], 48
        $region72: #{transformer_forward.16} parent=47 // pred_fallthru
          _
        %p335 = scmp.lt.s32.totalorder %s22, 1
        %s336 = scalar_select %p335, %s22, 1
        %s337 = smul.addr %s336, 3
        %s338 = smul.addr %s337, 8
        %s339 = scalar_lea.vmem %s0, %s338
        %p340 = pneg %p43
        %p341 = pneg %p40
        %p342 = pneg %p64
        %p343 = pneg %p61
        %p344 = pneg %p85
        %p345 = pneg %p82
        %p346 = pneg %p106
        %p347 = pneg %p103
        %p348 = pneg %p127
        %p349 = pneg %p124
        %p350 = pneg %p148
        %p351 = pneg %p145
        %p352 = pneg %p169
        %p353 = pneg %p166
        %p354 = pneg %p195
        %p355 = pneg %p192
        %p356 = scmp.lt.s32.totalorder %s22, 1
        %s357 = scalar_select %p356, %s22, 1
        %s358 = smul.addr %s357, 3
        %s359 = smul.addr %s358, 8
        %s360 = scalar_lea.vmem %s7, %s359
        %p361 = scmp.lt.s32.totalorder %s22, 1
        %s362 = scalar_select %p361, %s22, 1
        %s363 = smul.addr %s362, 3
        %s364 = smul.addr %s363, 8
        %s365 = scalar_lea.vmem %s0, %s364
        %p366 = scmp.lt.s32.totalorder %s22, 1
        %s367 = scalar_select %p366, %s22, 1
        %s368 = smul.addr %s367, 3
        %s369 = smul.addr %s368, 8
        %s370 = scalar_lea.vmem %s7, %s369
        %v371 = vld [vmem:[%s365] sm:$0xff]
        %v372 = vld [vmem:[%s365 + $0x8] sm:$0xff]
        %v373 = vld [vmem:[%s365 + $0x10] sm:$0xff]
        %v374 = vld [vmem:[#allocation2] sm:$0xff]
        %v375 = vld [vmem:[#allocation2 + $0x8] sm:$0xff]
        %v376 = vld [vmem:[#allocation2 + $0x10] sm:$0xff]
        %v377 = vld [vmem:[#allocation2 + $0x18] sm:$0xff]
        %v378 = vld [vmem:[#allocation2 + $0x20] sm:$0xff]
        %v379 = vld [vmem:[#allocation2 + $0x28] sm:$0xff]
        %v380 = vld [vmem:[#allocation2 + $0x30] sm:$0xff]
        %v381 = vld [vmem:[#allocation2 + $0x38] sm:$0xff]
        %v382 = vld [vmem:[#allocation2 + $0x40] sm:$0xff]
        %v383 = vld [vmem:[#allocation2 + $0x48] sm:$0xff]
        %v384 = vld [vmem:[#allocation2 + $0x50] sm:$0xff]
        %v385 = vld [vmem:[#allocation2 + $0x58] sm:$0xff]
        %v386 = vld [vmem:[#allocation2 + $0x60] sm:$0xff]
        %v387 = vld [vmem:[#allocation2 + $0x68] sm:$0xff]
        %v388 = vld [vmem:[#allocation2 + $0x70] sm:$0xff]
        %v389 = vld [vmem:[#allocation2 + $0x78] sm:$0xff]
        %v390 = vld [vmem:[#allocation2 + $0x80] sm:$0xff]
        %v391 = vld [vmem:[#allocation2 + $0x88] sm:$0xff]
        %v392 = vld [vmem:[#allocation2 + $0x90] sm:$0xff]
        %v393 = vld [vmem:[#allocation2 + $0x98] sm:$0xff]
        %v394 = vld [vmem:[#allocation2 + $0xa0] sm:$0xff]
        %v395 = vld [vmem:[#allocation2 + $0xa8] sm:$0xff]
        %v396 = vld [vmem:[#allocation2 + $0xb0] sm:$0xff]
        %v397 = vld [vmem:[#allocation2 + $0xb8] sm:$0xff]
        %v398 = vld [vmem:[#allocation2 + $0xc0] sm:$0xff]
        %v399 = vld [vmem:[#allocation2 + $0xc8] sm:$0xff]
        %v400 = vld [vmem:[#allocation2 + $0xd0] sm:$0xff]
        %v401 = vld [vmem:[#allocation2 + $0xd8] sm:$0xff]
        %v402 = vld [vmem:[#allocation2 + $0xe0] sm:$0xff]
        %v403 = vld [vmem:[#allocation2 + $0xe8] sm:$0xff]
        %v404 = vld [vmem:[#allocation2 + $0xf0] sm:$0xff]
        %v405 = vld [vmem:[#allocation2 + $0xf8] sm:$0xff]
        %v406 = vld [vmem:[#allocation2 + $0x100] sm:$0xff]
        %v407 = vld [vmem:[#allocation2 + $0x108] sm:$0xff]
        %v408 = vld [vmem:[#allocation2 + $0x110] sm:$0xff]
        %v409 = vld [vmem:[#allocation2 + $0x118] sm:$0xff]
        %v410 = vld [vmem:[#allocation2 + $0x120] sm:$0xff]
        %v411 = vld [vmem:[#allocation2 + $0x128] sm:$0xff]
        %v412 = vld [vmem:[#allocation2 + $0x130] sm:$0xff]
        %v413 = vld [vmem:[#allocation2 + $0x138] sm:$0xff]
        %v414 = vld [vmem:[#allocation2 + $0x140] sm:$0xff]
        %v415 = vld [vmem:[#allocation2 + $0x148] sm:$0xff]
        %v416 = vld [vmem:[#allocation2 + $0x150] sm:$0xff]
        %v417 = vld [vmem:[#allocation2 + $0x158] sm:$0xff]
        %v418 = vld [vmem:[#allocation2 + $0x160] sm:$0xff]
        %v419 = vld [vmem:[#allocation2 + $0x168] sm:$0xff]
        %v420 = vld [vmem:[#allocation2 + $0x170] sm:$0xff]
        %v421 = vld [vmem:[#allocation2 + $0x178] sm:$0xff]
        %v422 = vld [vmem:[#allocation2 + $0x180] sm:$0xff]
        %v423 = vld [vmem:[#allocation2 + $0x188] sm:$0xff]
        %v424 = vld [vmem:[#allocation2 + $0x190] sm:$0xff]
        %v425 = vld [vmem:[#allocation2 + $0x198] sm:$0xff]
        %v426 = vld [vmem:[#allocation2 + $0x1a0] sm:$0xff]
        %v427 = vld [vmem:[#allocation2 + $0x1a8] sm:$0xff]
        %v428 = vld [vmem:[#allocation2 + $0x1b0] sm:$0xff]
        %v429 = vld [vmem:[#allocation2 + $0x1b8] sm:$0xff]
        %v430 = vld [vmem:[#allocation2 + $0x1c0] sm:$0xff]
        %v431 = vld [vmem:[#allocation2 + $0x1c8] sm:$0xff]
        %v432 = vld [vmem:[#allocation2 + $0x1d0] sm:$0xff]
        %v433 = vld [vmem:[#allocation2 + $0x1d8] sm:$0xff]
        %v434 = vld [vmem:[#allocation2 + $0x1e0] sm:$0xff]
        %v435 = vld [vmem:[#allocation2 + $0x1e8] sm:$0xff]
        %v436 = vld [vmem:[#allocation2 + $0x1f0] sm:$0xff]
        %v437 = vld [vmem:[#allocation2 + $0x1f8] sm:$0xff]
        %v438 = vld [vmem:[#allocation2 + $0x200] sm:$0xff]
        %v439 = vld [vmem:[#allocation2 + $0x208] sm:$0xff]
        %v440 = vld [vmem:[#allocation2 + $0x210] sm:$0xff]
        %v441 = vld [vmem:[#allocation2 + $0x218] sm:$0xff]
        %v442 = vld [vmem:[#allocation2 + $0x220] sm:$0xff]
        %v443 = vld [vmem:[#allocation2 + $0x228] sm:$0xff]
        %v444 = vld [vmem:[#allocation2 + $0x230] sm:$0xff]
        %v445 = vld [vmem:[#allocation2 + $0x238] sm:$0xff]
        %v446 = vld [vmem:[#allocation2 + $0x240] sm:$0xff]
        %v447 = vld [vmem:[#allocation2 + $0x248] sm:$0xff]
        %v448 = vld [vmem:[#allocation2 + $0x250] sm:$0xff]
        %v449 = vld [vmem:[#allocation2 + $0x258] sm:$0xff]
        %v450 = vld [vmem:[#allocation2 + $0x260] sm:$0xff]
        %v451 = vld [vmem:[#allocation2 + $0x268] sm:$0xff]
        %v452 = vld [vmem:[#allocation2 + $0x270] sm:$0xff]
        %v453 = vld [vmem:[#allocation2 + $0x278] sm:$0xff]
        %v454 = vld [vmem:[#allocation2 + $0x280] sm:$0xff]
        %v455 = vld [vmem:[#allocation2 + $0x288] sm:$0xff]
        %v456 = vld [vmem:[#allocation2 + $0x290] sm:$0xff]
        %v457 = vld [vmem:[#allocation2 + $0x298] sm:$0xff]
        %v458 = vld [vmem:[#allocation2 + $0x2a0] sm:$0xff]
        %v459 = vld [vmem:[#allocation2 + $0x2a8] sm:$0xff]
        %v460 = vld [vmem:[#allocation2 + $0x2b0] sm:$0xff]
        %v461 = vld [vmem:[#allocation2 + $0x2b8] sm:$0xff]
        %v462 = vld [vmem:[#allocation2 + $0x2c0] sm:$0xff]
        %v463 = vld [vmem:[#allocation2 + $0x2c8] sm:$0xff]
        %v464 = vld [vmem:[#allocation2 + $0x2d0] sm:$0xff]
        %v465 = vld [vmem:[#allocation2 + $0x2d8] sm:$0xff]
        %v466 = vld [vmem:[#allocation2 + $0x2e0] sm:$0xff]
        %v467 = vld [vmem:[#allocation2 + $0x2e8] sm:$0xff]
        %v468 = vld [vmem:[#allocation2 + $0x2f0] sm:$0xff]
        %v469 = vld [vmem:[#allocation2 + $0x2f8] sm:$0xff]
        %v470 = vld [vmem:[#allocation2 + $0x300] sm:$0xff]
        %v471 = vld [vmem:[#allocation2 + $0x308] sm:$0xff]
        %v472 = vld [vmem:[#allocation2 + $0x310] sm:$0xff]
        %v473 = vld [vmem:[#allocation2 + $0x318] sm:$0xff]
        %v474 = vld [vmem:[#allocation2 + $0x320] sm:$0xff]
        %v475 = vld [vmem:[#allocation2 + $0x328] sm:$0xff]
        %v476 = vld [vmem:[#allocation2 + $0x330] sm:$0xff]
        %v477 = vld [vmem:[#allocation2 + $0x338] sm:$0xff]
        %v478 = vld [vmem:[#allocation2 + $0x340] sm:$0xff]
        %v479 = vld [vmem:[#allocation2 + $0x348] sm:$0xff]
        %v480 = vld [vmem:[#allocation2 + $0x350] sm:$0xff]
        %v481 = vld [vmem:[#allocation2 + $0x358] sm:$0xff]
        %v482 = vld [vmem:[#allocation2 + $0x360] sm:$0xff]
        %v483 = vld [vmem:[#allocation2 + $0x368] sm:$0xff]
        %v484 = vld [vmem:[#allocation2 + $0x370] sm:$0xff]
        %v485 = vld [vmem:[#allocation2 + $0x378] sm:$0xff]
        %v486 = vld [vmem:[#allocation2 + $0x380] sm:$0xff]
        %v487 = vld [vmem:[#allocation2 + $0x388] sm:$0xff]
        %v488 = vld [vmem:[#allocation2 + $0x390] sm:$0xff]
        %v489 = vld [vmem:[#allocation2 + $0x398] sm:$0xff]
        %v490 = vld [vmem:[#allocation2 + $0x3a0] sm:$0xff]
        %v491 = vld [vmem:[#allocation2 + $0x3a8] sm:$0xff]
        %v492 = vld [vmem:[#allocation2 + $0x3b0] sm:$0xff]
        %v493 = vld [vmem:[#allocation2 + $0x3b8] sm:$0xff]
        %v494 = vld [vmem:[#allocation2 + $0x3c0] sm:$0xff]
        %v495 = vld [vmem:[#allocation2 + $0x3c8] sm:$0xff]
        %v496 = vld [vmem:[#allocation2 + $0x3d0] sm:$0xff]
        %v497 = vld [vmem:[#allocation2 + $0x3d8] sm:$0xff]
        %v498 = vld [vmem:[#allocation2 + $0x3e0] sm:$0xff]
        %v499 = vld [vmem:[#allocation2 + $0x3e8] sm:$0xff]
        %v500 = vld [vmem:[#allocation2 + $0x3f0] sm:$0xff]
        %v501 = vld [vmem:[#allocation2 + $0x3f8] sm:$0xff]
        %v502 = vld [vmem:[#allocation2 + $0x400] sm:$0xff]
        %v503 = vld [vmem:[#allocation2 + $0x408] sm:$0xff]
        %v504 = vld [vmem:[#allocation2 + $0x410] sm:$0xff]
        %v505 = vld [vmem:[#allocation2 + $0x418] sm:$0xff]
        %v506 = vld [vmem:[#allocation2 + $0x420] sm:$0xff]
        %v507 = vld [vmem:[#allocation2 + $0x428] sm:$0xff]
        %v508 = vld [vmem:[#allocation2 + $0x430] sm:$0xff]
        %v509 = vld [vmem:[#allocation2 + $0x438] sm:$0xff]
        %v510 = vld [vmem:[#allocation2 + $0x440] sm:$0xff]
        %v511 = vld [vmem:[#allocation2 + $0x448] sm:$0xff]
        %v512 = vld [vmem:[#allocation2 + $0x450] sm:$0xff]
        %v513 = vld [vmem:[#allocation2 + $0x458] sm:$0xff]
        %v514 = vld [vmem:[#allocation2 + $0x460] sm:$0xff]
        %v515 = vld [vmem:[#allocation2 + $0x468] sm:$0xff]
        %v516 = vld [vmem:[#allocation2 + $0x470] sm:$0xff]
        %v517 = vld [vmem:[#allocation2 + $0x478] sm:$0xff]
        %v518 = vld [vmem:[#allocation2 + $0x480] sm:$0xff]
        %v519 = vld [vmem:[#allocation2 + $0x488] sm:$0xff]
        %v520 = vld [vmem:[#allocation2 + $0x490] sm:$0xff]
        %v521 = vld [vmem:[#allocation2 + $0x498] sm:$0xff]
        %v522 = vld [vmem:[#allocation2 + $0x4a0] sm:$0xff]
        %v523 = vld [vmem:[#allocation2 + $0x4a8] sm:$0xff]
        %v524 = vld [vmem:[#allocation2 + $0x4b0] sm:$0xff]
        %v525 = vld [vmem:[#allocation2 + $0x4b8] sm:$0xff]
        %v526 = vld [vmem:[#allocation2 + $0x4c0] sm:$0xff]
        %v527 = vld [vmem:[#allocation2 + $0x4c8] sm:$0xff]
        %v528 = vld [vmem:[#allocation2 + $0x4d0] sm:$0xff]
        %v529 = vld [vmem:[#allocation2 + $0x4d8] sm:$0xff]
        %v530 = vld [vmem:[#allocation2 + $0x4e0] sm:$0xff]
        %v531 = vld [vmem:[#allocation2 + $0x4e8] sm:$0xff]
        %v532 = vld [vmem:[#allocation2 + $0x4f0] sm:$0xff]
        %v533 = vld [vmem:[#allocation2 + $0x4f8] sm:$0xff]
        %v534 = vld [vmem:[#allocation2 + $0x500] sm:$0xff]
        %v535 = vld [vmem:[#allocation2 + $0x508] sm:$0xff]
        %v536 = vld [vmem:[#allocation2 + $0x510] sm:$0xff]
        %v537 = vld [vmem:[#allocation2 + $0x518] sm:$0xff]
        %v538 = vld [vmem:[#allocation2 + $0x520] sm:$0xff]
        %v539 = vld [vmem:[#allocation2 + $0x528] sm:$0xff]
        %v540 = vld [vmem:[#allocation2 + $0x530] sm:$0xff]
        %v541 = vld [vmem:[#allocation2 + $0x538] sm:$0xff]
        %v542 = vld [vmem:[#allocation2 + $0x540] sm:$0xff]
        %v543 = vld [vmem:[#allocation2 + $0x548] sm:$0xff]
        %v544 = vld [vmem:[#allocation2 + $0x550] sm:$0xff]
        %v545 = vld [vmem:[#allocation2 + $0x558] sm:$0xff]
        %v546 = vld [vmem:[#allocation2 + $0x560] sm:$0xff]
        %v547 = vld [vmem:[#allocation2 + $0x568] sm:$0xff]
        %v548 = vld [vmem:[#allocation2 + $0x570] sm:$0xff]
        %v549 = vld [vmem:[#allocation2 + $0x578] sm:$0xff]
        %v550 = vld [vmem:[#allocation2 + $0x580] sm:$0xff]
        %v551 = vld [vmem:[#allocation2 + $0x588] sm:$0xff]
        %v552 = vld [vmem:[#allocation2 + $0x590] sm:$0xff]
        %v553 = vld [vmem:[#allocation2 + $0x598] sm:$0xff]
        %v554 = vld [vmem:[#allocation2 + $0x5a0] sm:$0xff]
        %v555 = vld [vmem:[#allocation2 + $0x5a8] sm:$0xff]
        %v556 = vld [vmem:[#allocation2 + $0x5b0] sm:$0xff]
        %v557 = vld [vmem:[#allocation2 + $0x5b8] sm:$0xff]
        %v558 = vld [vmem:[#allocation2 + $0x5c0] sm:$0xff]
        %v559 = vld [vmem:[#allocation2 + $0x5c8] sm:$0xff]
        %v560 = vld [vmem:[#allocation2 + $0x5d0] sm:$0xff]
        %v561 = vld [vmem:[#allocation2 + $0x5d8] sm:$0xff]
        %v562 = vld [vmem:[#allocation2 + $0x5e0] sm:$0xff]
        %v563 = vld [vmem:[#allocation2 + $0x5e8] sm:$0xff]
        %v564 = vld [vmem:[#allocation2 + $0x5f0] sm:$0xff]
        %v565 = vld [vmem:[#allocation2 + $0x5f8] sm:$0xff]
        %v566 = vld [vmem:[#allocation2 + $0x600] sm:$0xff]
        %v567 = vld [vmem:[#allocation2 + $0x608] sm:$0xff]
        %v568 = vld [vmem:[#allocation2 + $0x610] sm:$0xff]
        %v569 = vld [vmem:[#allocation2 + $0x618] sm:$0xff]
        %v570 = vld [vmem:[#allocation2 + $0x620] sm:$0xff]
        %v571 = vld [vmem:[#allocation2 + $0x628] sm:$0xff]
        %v572 = vld [vmem:[#allocation2 + $0x630] sm:$0xff]
        %v573 = vld [vmem:[#allocation2 + $0x638] sm:$0xff]
        %v574 = vld [vmem:[#allocation2 + $0x640] sm:$0xff]
        %v575 = vld [vmem:[#allocation2 + $0x648] sm:$0xff]
        %v576 = vld [vmem:[#allocation2 + $0x650] sm:$0xff]
        %v577 = vld [vmem:[#allocation2 + $0x658] sm:$0xff]
        %v578 = vld [vmem:[#allocation2 + $0x660] sm:$0xff]
        %v579 = vld [vmem:[#allocation2 + $0x668] sm:$0xff]
        %v580 = vld [vmem:[#allocation2 + $0x670] sm:$0xff]
        %v581 = vld [vmem:[#allocation2 + $0x678] sm:$0xff]
        %v582 = vld [vmem:[#allocation2 + $0x680] sm:$0xff]
        %v583 = vld [vmem:[#allocation2 + $0x688] sm:$0xff]
        %v584 = vld [vmem:[#allocation2 + $0x690] sm:$0xff]
        %v585 = vld [vmem:[#allocation2 + $0x698] sm:$0xff]
        %v586 = vld [vmem:[#allocation2 + $0x6a0] sm:$0xff]
        %v587 = vld [vmem:[#allocation2 + $0x6a8] sm:$0xff]
        %v588 = vld [vmem:[#allocation2 + $0x6b0] sm:$0xff]
        %v589 = vld [vmem:[#allocation2 + $0x6b8] sm:$0xff]
        %v590 = vld [vmem:[#allocation2 + $0x6c0] sm:$0xff]
        %v591 = vld [vmem:[#allocation2 + $0x6c8] sm:$0xff]
        %v592 = vld [vmem:[#allocation2 + $0x6d0] sm:$0xff]
        %v593 = vld [vmem:[#allocation2 + $0x6d8] sm:$0xff]
        %v594 = vld [vmem:[#allocation2 + $0x6e0] sm:$0xff]
        %v595 = vld [vmem:[#allocation2 + $0x6e8] sm:$0xff]
        %v596 = vld [vmem:[#allocation2 + $0x6f0] sm:$0xff]
        %v597 = vld [vmem:[#allocation2 + $0x6f8] sm:$0xff]
        %v598 = vld [vmem:[#allocation2 + $0x700] sm:$0xff]
        %v599 = vld [vmem:[#allocation2 + $0x708] sm:$0xff]
        %v600 = vld [vmem:[#allocation2 + $0x710] sm:$0xff]
        %v601 = vld [vmem:[#allocation2 + $0x718] sm:$0xff]
        %v602 = vld [vmem:[#allocation2 + $0x720] sm:$0xff]
        %v603 = vld [vmem:[#allocation2 + $0x728] sm:$0xff]
        %v604 = vld [vmem:[#allocation2 + $0x730] sm:$0xff]
        %v605 = vld [vmem:[#allocation2 + $0x738] sm:$0xff]
        %v606 = vld [vmem:[#allocation2 + $0x740] sm:$0xff]
        %v607 = vld [vmem:[#allocation2 + $0x748] sm:$0xff]
        %v608 = vld [vmem:[#allocation2 + $0x750] sm:$0xff]
        %v609 = vld [vmem:[#allocation2 + $0x758] sm:$0xff]
        %v610 = vld [vmem:[#allocation2 + $0x760] sm:$0xff]
        %v611 = vld [vmem:[#allocation2 + $0x768] sm:$0xff]
        %v612 = vld [vmem:[#allocation2 + $0x770] sm:$0xff]
        %v613 = vld [vmem:[#allocation2 + $0x778] sm:$0xff]
        %v614 = vld [vmem:[#allocation2 + $0x780] sm:$0xff]
        %v615 = vld [vmem:[#allocation2 + $0x788] sm:$0xff]
        %v616 = vld [vmem:[#allocation2 + $0x790] sm:$0xff]
        %v617 = vld [vmem:[#allocation2 + $0x798] sm:$0xff]
        %v618 = vld [vmem:[#allocation2 + $0x7a0] sm:$0xff]
        %v619 = vld [vmem:[#allocation2 + $0x7a8] sm:$0xff]
        %v620 = vld [vmem:[#allocation2 + $0x7b0] sm:$0xff]
        %v621 = vld [vmem:[#allocation2 + $0x7b8] sm:$0xff]
        %v622 = vld [vmem:[#allocation2 + $0x7c0] sm:$0xff]
        %v623 = vld [vmem:[#allocation2 + $0x7c8] sm:$0xff]
        %v624 = vld [vmem:[#allocation2 + $0x7d0] sm:$0xff]
        %v625 = vld [vmem:[#allocation2 + $0x7d8] sm:$0xff]
        %v626 = vld [vmem:[#allocation2 + $0x7e0] sm:$0xff]
        %v627 = vld [vmem:[#allocation2 + $0x7e8] sm:$0xff]
        %v628 = vld [vmem:[#allocation2 + $0x7f0] sm:$0xff]
        %v629 = vld [vmem:[#allocation2 + $0x7f8] sm:$0xff]
        %v630 = vld [vmem:[#allocation2 + $0x800] sm:$0xff]
        %v631 = vld [vmem:[#allocation2 + $0x808] sm:$0xff]
        %v632 = vld [vmem:[#allocation2 + $0x810] sm:$0xff]
        %v633 = vld [vmem:[#allocation2 + $0x818] sm:$0xff]
        %v634 = vld [vmem:[#allocation2 + $0x820] sm:$0xff]
        %v635 = vld [vmem:[#allocation2 + $0x828] sm:$0xff]
        %v636 = vld [vmem:[#allocation2 + $0x830] sm:$0xff]
        %v637 = vld [vmem:[#allocation2 + $0x838] sm:$0xff]
        %v638 = vld [vmem:[#allocation2 + $0x840] sm:$0xff]
        %v639 = vld [vmem:[#allocation2 + $0x848] sm:$0xff]
        %v640 = vld [vmem:[#allocation2 + $0x850] sm:$0xff]
        %v641 = vld [vmem:[#allocation2 + $0x858] sm:$0xff]
        %v642 = vld [vmem:[#allocation2 + $0x860] sm:$0xff]
        %v643 = vld [vmem:[#allocation2 + $0x868] sm:$0xff]
        %v644 = vld [vmem:[#allocation2 + $0x870] sm:$0xff]
        %v645 = vld [vmem:[#allocation2 + $0x878] sm:$0xff]
        %v646 = vld [vmem:[#allocation2 + $0x880] sm:$0xff]
        %v647 = vld [vmem:[#allocation2 + $0x888] sm:$0xff]
        %v648 = vld [vmem:[#allocation2 + $0x890] sm:$0xff]
        %v649 = vld [vmem:[#allocation2 + $0x898] sm:$0xff]
        %v650 = vld [vmem:[#allocation2 + $0x8a0] sm:$0xff]
        %v651 = vld [vmem:[#allocation2 + $0x8a8] sm:$0xff]
        %v652 = vld [vmem:[#allocation2 + $0x8b0] sm:$0xff]
        %v653 = vld [vmem:[#allocation2 + $0x8b8] sm:$0xff]
        %v654 = vld [vmem:[#allocation2 + $0x8c0] sm:$0xff]
        %v655 = vld [vmem:[#allocation2 + $0x8c8] sm:$0xff]
        %v656 = vld [vmem:[#allocation2 + $0x8d0] sm:$0xff]
        %v657 = vld [vmem:[#allocation2 + $0x8d8] sm:$0xff]
        %v658 = vld [vmem:[#allocation2 + $0x8e0] sm:$0xff]
        %v659 = vld [vmem:[#allocation2 + $0x8e8] sm:$0xff]
        %v660 = vld [vmem:[#allocation2 + $0x8f0] sm:$0xff]
        %v661 = vld [vmem:[#allocation2 + $0x8f8] sm:$0xff]
        %v662 = vld [vmem:[#allocation2 + $0x900] sm:$0xff]
        %v663 = vld [vmem:[#allocation2 + $0x908] sm:$0xff]
        %v664 = vld [vmem:[#allocation2 + $0x910] sm:$0xff]
        %v665 = vld [vmem:[#allocation2 + $0x918] sm:$0xff]
        %v666 = vld [vmem:[#allocation2 + $0x920] sm:$0xff]
        %v667 = vld [vmem:[#allocation2 + $0x928] sm:$0xff]
        %v668 = vld [vmem:[#allocation2 + $0x930] sm:$0xff]
        %v669 = vld [vmem:[#allocation2 + $0x938] sm:$0xff]
        %v670 = vld [vmem:[#allocation2 + $0x940] sm:$0xff]
        %v671 = vld [vmem:[#allocation2 + $0x948] sm:$0xff]
        %v672 = vld [vmem:[#allocation2 + $0x950] sm:$0xff]
        %v673 = vld [vmem:[#allocation2 + $0x958] sm:$0xff]
        %v674 = vld [vmem:[#allocation2 + $0x960] sm:$0xff]
        %v675 = vld [vmem:[#allocation2 + $0x968] sm:$0xff]
        %v676 = vld [vmem:[#allocation2 + $0x970] sm:$0xff]
        %v677 = vld [vmem:[#allocation2 + $0x978] sm:$0xff]
        %v678 = vld [vmem:[#allocation2 + $0x980] sm:$0xff]
        %v679 = vld [vmem:[#allocation2 + $0x988] sm:$0xff]
        %v680 = vld [vmem:[#allocation2 + $0x990] sm:$0xff]
        %v681 = vld [vmem:[#allocation2 + $0x998] sm:$0xff]
        %v682 = vld [vmem:[#allocation2 + $0x9a0] sm:$0xff]
        %v683 = vld [vmem:[#allocation2 + $0x9a8] sm:$0xff]
        %v684 = vld [vmem:[#allocation2 + $0x9b0] sm:$0xff]
        %v685 = vld [vmem:[#allocation2 + $0x9b8] sm:$0xff]
        %v686 = vld [vmem:[#allocation2 + $0x9c0] sm:$0xff]
        %v687 = vld [vmem:[#allocation2 + $0x9c8] sm:$0xff]
        %v688 = vld [vmem:[#allocation2 + $0x9d0] sm:$0xff]
        %v689 = vld [vmem:[#allocation2 + $0x9d8] sm:$0xff]
        %v690 = vld [vmem:[#allocation2 + $0x9e0] sm:$0xff]
        %v691 = vld [vmem:[#allocation2 + $0x9e8] sm:$0xff]
        %v692 = vld [vmem:[#allocation2 + $0x9f0] sm:$0xff]
        %v693 = vld [vmem:[#allocation2 + $0x9f8] sm:$0xff]
        %v694 = vld [vmem:[#allocation2 + $0xa00] sm:$0xff]
        %v695 = vld [vmem:[#allocation2 + $0xa08] sm:$0xff]
        %v696 = vld [vmem:[#allocation2 + $0xa10] sm:$0xff]
        %v697 = vld [vmem:[#allocation2 + $0xa18] sm:$0xff]
        %v698 = vld [vmem:[#allocation2 + $0xa20] sm:$0xff]
        %v699 = vld [vmem:[#allocation2 + $0xa28] sm:$0xff]
        %v700 = vld [vmem:[#allocation2 + $0xa30] sm:$0xff]
        %v701 = vld [vmem:[#allocation2 + $0xa38] sm:$0xff]
        %v702 = vld [vmem:[#allocation2 + $0xa40] sm:$0xff]
        %v703 = vld [vmem:[#allocation2 + $0xa48] sm:$0xff]
        %v704 = vld [vmem:[#allocation2 + $0xa50] sm:$0xff]
        %v705 = vld [vmem:[#allocation2 + $0xa58] sm:$0xff]
        %v706 = vld [vmem:[#allocation2 + $0xa60] sm:$0xff]
        %v707 = vld [vmem:[#allocation2 + $0xa68] sm:$0xff]
        %v708 = vld [vmem:[#allocation2 + $0xa70] sm:$0xff]
        %v709 = vld [vmem:[#allocation2 + $0xa78] sm:$0xff]
        %v710 = vld [vmem:[#allocation2 + $0xa80] sm:$0xff]
        %v711 = vld [vmem:[#allocation2 + $0xa88] sm:$0xff]
        %v712 = vld [vmem:[#allocation2 + $0xa90] sm:$0xff]
        %v713 = vld [vmem:[#allocation2 + $0xa98] sm:$0xff]
        %v714 = vld [vmem:[#allocation2 + $0xaa0] sm:$0xff]
        %v715 = vld [vmem:[#allocation2 + $0xaa8] sm:$0xff]
        %v716 = vld [vmem:[#allocation2 + $0xab0] sm:$0xff]
        %v717 = vld [vmem:[#allocation2 + $0xab8] sm:$0xff]
        %v718 = vld [vmem:[#allocation2 + $0xac0] sm:$0xff]
        %v719 = vld [vmem:[#allocation2 + $0xac8] sm:$0xff]
        %v720 = vld [vmem:[#allocation2 + $0xad0] sm:$0xff]
        %v721 = vld [vmem:[#allocation2 + $0xad8] sm:$0xff]
        %v722 = vld [vmem:[#allocation2 + $0xae0] sm:$0xff]
        %v723 = vld [vmem:[#allocation2 + $0xae8] sm:$0xff]
        %v724 = vld [vmem:[#allocation2 + $0xaf0] sm:$0xff]
        %v725 = vld [vmem:[#allocation2 + $0xaf8] sm:$0xff]
        %v726 = vld [vmem:[#allocation2 + $0xb00] sm:$0xff]
        %v727 = vld [vmem:[#allocation2 + $0xb08] sm:$0xff]
        %v728 = vld [vmem:[#allocation2 + $0xb10] sm:$0xff]
        %v729 = vld [vmem:[#allocation2 + $0xb18] sm:$0xff]
        %v730 = vld [vmem:[#allocation2 + $0xb20] sm:$0xff]
        %v731 = vld [vmem:[#allocation2 + $0xb28] sm:$0xff]
        %v732 = vld [vmem:[#allocation2 + $0xb30] sm:$0xff]
        %v733 = vld [vmem:[#allocation2 + $0xb38] sm:$0xff]
        %v734 = vld [vmem:[#allocation2 + $0xb40] sm:$0xff]
        %v735 = vld [vmem:[#allocation2 + $0xb48] sm:$0xff]
        %v736 = vld [vmem:[#allocation2 + $0xb50] sm:$0xff]
        %v737 = vld [vmem:[#allocation2 + $0xb58] sm:$0xff]
        %v738 = vld [vmem:[#allocation2 + $0xb60] sm:$0xff]
        %v739 = vld [vmem:[#allocation2 + $0xb68] sm:$0xff]
        %v740 = vld [vmem:[#allocation2 + $0xb70] sm:$0xff]
        %v741 = vld [vmem:[#allocation2 + $0xb78] sm:$0xff]
        %v742 = vld [vmem:[#allocation2 + $0xb80] sm:$0xff]
        %v743 = vld [vmem:[#allocation2 + $0xb88] sm:$0xff]
        %v744 = vld [vmem:[#allocation2 + $0xb90] sm:$0xff]
        %v745 = vld [vmem:[#allocation2 + $0xb98] sm:$0xff]
        %v746 = vld [vmem:[#allocation2 + $0xba0] sm:$0xff]
        %v747 = vld [vmem:[#allocation2 + $0xba8] sm:$0xff]
        %v748 = vld [vmem:[#allocation2 + $0xbb0] sm:$0xff]
        %v749 = vld [vmem:[#allocation2 + $0xbb8] sm:$0xff]
        %v750 = vld [vmem:[#allocation2 + $0xbc0] sm:$0xff]
        %v751 = vld [vmem:[#allocation2 + $0xbc8] sm:$0xff]
        %v752 = vld [vmem:[#allocation2 + $0xbd0] sm:$0xff]
        %v753 = vld [vmem:[#allocation2 + $0xbd8] sm:$0xff]
        %v754 = vld [vmem:[#allocation2 + $0xbe0] sm:$0xff]
        %v755 = vld [vmem:[#allocation2 + $0xbe8] sm:$0xff]
        %v756 = vld [vmem:[#allocation2 + $0xbf0] sm:$0xff]
        %v757 = vld [vmem:[#allocation2 + $0xbf8] sm:$0xff]
        %v758 = vld [vmem:[#allocation2 + $0xc00] sm:$0xff]
        %v759 = vld [vmem:[#allocation2 + $0xc08] sm:$0xff]
        %v760 = vld [vmem:[#allocation2 + $0xc10] sm:$0xff]
        %v761 = vld [vmem:[#allocation2 + $0xc18] sm:$0xff]
        %v762 = vld [vmem:[#allocation2 + $0xc20] sm:$0xff]
        %v763 = vld [vmem:[#allocation2 + $0xc28] sm:$0xff]
        %v764 = vld [vmem:[#allocation2 + $0xc30] sm:$0xff]
        %v765 = vld [vmem:[#allocation2 + $0xc38] sm:$0xff]
        %v766 = vld [vmem:[#allocation2 + $0xc40] sm:$0xff]
        %v767 = vld [vmem:[#allocation2 + $0xc48] sm:$0xff]
        %v768 = vld [vmem:[#allocation2 + $0xc50] sm:$0xff]
        %v769 = vld [vmem:[#allocation2 + $0xc58] sm:$0xff]
        %v770 = vld [vmem:[#allocation2 + $0xc60] sm:$0xff]
        %v771 = vld [vmem:[#allocation2 + $0xc68] sm:$0xff]
        %v772 = vld [vmem:[#allocation2 + $0xc70] sm:$0xff]
        %v773 = vld [vmem:[#allocation2 + $0xc78] sm:$0xff]
        %v774 = vld [vmem:[#allocation2 + $0xc80] sm:$0xff]
        %v775 = vld [vmem:[#allocation2 + $0xc88] sm:$0xff]
        %v776 = vld [vmem:[#allocation2 + $0xc90] sm:$0xff]
        %v777 = vld [vmem:[#allocation2 + $0xc98] sm:$0xff]
        %v778 = vld [vmem:[#allocation2 + $0xca0] sm:$0xff]
        %v779 = vld [vmem:[#allocation2 + $0xca8] sm:$0xff]
        %v780 = vld [vmem:[#allocation2 + $0xcb0] sm:$0xff]
        %v781 = vld [vmem:[#allocation2 + $0xcb8] sm:$0xff]
        %v782 = vld [vmem:[#allocation2 + $0xcc0] sm:$0xff]
        %v783 = vld [vmem:[#allocation2 + $0xcc8] sm:$0xff]
        %v784 = vld [vmem:[#allocation2 + $0xcd0] sm:$0xff]
        %v785 = vld [vmem:[#allocation2 + $0xcd8] sm:$0xff]
        %v786 = vld [vmem:[#allocation2 + $0xce0] sm:$0xff]
        %v787 = vld [vmem:[#allocation2 + $0xce8] sm:$0xff]
        %v788 = vld [vmem:[#allocation2 + $0xcf0] sm:$0xff]
        %v789 = vld [vmem:[#allocation2 + $0xcf8] sm:$0xff]
        %v790 = vld [vmem:[#allocation2 + $0xd00] sm:$0xff]
        %v791 = vld [vmem:[#allocation2 + $0xd08] sm:$0xff]
        %v792 = vld [vmem:[#allocation2 + $0xd10] sm:$0xff]
        %v793 = vld [vmem:[#allocation2 + $0xd18] sm:$0xff]
        %v794 = vld [vmem:[#allocation2 + $0xd20] sm:$0xff]
        %v795 = vld [vmem:[#allocation2 + $0xd28] sm:$0xff]
        %v796 = vld [vmem:[#allocation2 + $0xd30] sm:$0xff]
        %v797 = vld [vmem:[#allocation2 + $0xd38] sm:$0xff]
        %v798 = vld [vmem:[#allocation2 + $0xd40] sm:$0xff]
        %v799 = vld [vmem:[#allocation2 + $0xd48] sm:$0xff]
        %v800 = vld [vmem:[#allocation2 + $0xd50] sm:$0xff]
        %v801 = vld [vmem:[#allocation2 + $0xd58] sm:$0xff]
        %v802 = vld [vmem:[#allocation2 + $0xd60] sm:$0xff]
        %v803 = vld [vmem:[#allocation2 + $0xd68] sm:$0xff]
        %v804 = vld [vmem:[#allocation2 + $0xd70] sm:$0xff]
        %v805 = vld [vmem:[#allocation2 + $0xd78] sm:$0xff]
        %v806 = vld [vmem:[#allocation2 + $0xd80] sm:$0xff]
        %v807 = vld [vmem:[#allocation2 + $0xd88] sm:$0xff]
        %v808 = vld [vmem:[#allocation2 + $0xd90] sm:$0xff]
        %v809 = vld [vmem:[#allocation2 + $0xd98] sm:$0xff]
        %v810 = vld [vmem:[#allocation2 + $0xda0] sm:$0xff]
        %v811 = vld [vmem:[#allocation2 + $0xda8] sm:$0xff]
        %v812 = vld [vmem:[#allocation2 + $0xdb0] sm:$0xff]
        %v813 = vld [vmem:[#allocation2 + $0xdb8] sm:$0xff]
        %v814 = vld [vmem:[#allocation2 + $0xdc0] sm:$0xff]
        %v815 = vld [vmem:[#allocation2 + $0xdc8] sm:$0xff]
        %v816 = vld [vmem:[#allocation2 + $0xdd0] sm:$0xff]
        %v817 = vld [vmem:[#allocation2 + $0xdd8] sm:$0xff]
        %v818 = vld [vmem:[#allocation2 + $0xde0] sm:$0xff]
        %v819 = vld [vmem:[#allocation2 + $0xde8] sm:$0xff]
        %v820 = vld [vmem:[#allocation2 + $0xdf0] sm:$0xff]
        %v821 = vld [vmem:[#allocation2 + $0xdf8] sm:$0xff]
        %v822 = vld [vmem:[#allocation2 + $0xe00] sm:$0xff]
        %v823 = vld [vmem:[#allocation2 + $0xe08] sm:$0xff]
        %v824 = vld [vmem:[#allocation2 + $0xe10] sm:$0xff]
        %v825 = vld [vmem:[#allocation2 + $0xe18] sm:$0xff]
        %v826 = vld [vmem:[#allocation2 + $0xe20] sm:$0xff]
        %v827 = vld [vmem:[#allocation2 + $0xe28] sm:$0xff]
        %v828 = vld [vmem:[#allocation2 + $0xe30] sm:$0xff]
        %v829 = vld [vmem:[#allocation2 + $0xe38] sm:$0xff]
        %v830 = vld [vmem:[#allocation2 + $0xe40] sm:$0xff]
        %v831 = vld [vmem:[#allocation2 + $0xe48] sm:$0xff]
        %v832 = vld [vmem:[#allocation2 + $0xe50] sm:$0xff]
        %v833 = vld [vmem:[#allocation2 + $0xe58] sm:$0xff]
        %v834 = vld [vmem:[#allocation2 + $0xe60] sm:$0xff]
        %v835 = vld [vmem:[#allocation2 + $0xe68] sm:$0xff]
        %v836 = vld [vmem:[#allocation2 + $0xe70] sm:$0xff]
        %v837 = vld [vmem:[#allocation2 + $0xe78] sm:$0xff]
        %v838 = vld [vmem:[#allocation2 + $0xe80] sm:$0xff]
        %v839 = vld [vmem:[#allocation2 + $0xe88] sm:$0xff]
        %v840 = vld [vmem:[#allocation2 + $0xe90] sm:$0xff]
        %v841 = vld [vmem:[#allocation2 + $0xe98] sm:$0xff]
        %v842 = vld [vmem:[#allocation2 + $0xea0] sm:$0xff]
        %v843 = vld [vmem:[#allocation2 + $0xea8] sm:$0xff]
        %v844 = vld [vmem:[#allocation2 + $0xeb0] sm:$0xff]
        %v845 = vld [vmem:[#allocation2 + $0xeb8] sm:$0xff]
        %v846 = vld [vmem:[#allocation2 + $0xec0] sm:$0xff]
        %v847 = vld [vmem:[#allocation2 + $0xec8] sm:$0xff]
        %v848 = vld [vmem:[#allocation2 + $0xed0] sm:$0xff]
        %v849 = vld [vmem:[#allocation2 + $0xed8] sm:$0xff]
        %v850 = vld [vmem:[#allocation2 + $0xee0] sm:$0xff]
        %v851 = vld [vmem:[#allocation2 + $0xee8] sm:$0xff]
        %v852 = vld [vmem:[#allocation2 + $0xef0] sm:$0xff]
        %v853 = vld [vmem:[#allocation2 + $0xef8] sm:$0xff]
        %v854 = vld [vmem:[#allocation2 + $0xf00] sm:$0xff]
        %v855 = vld [vmem:[#allocation2 + $0xf08] sm:$0xff]
        %v856 = vld [vmem:[#allocation2 + $0xf10] sm:$0xff]
        %v857 = vld [vmem:[#allocation2 + $0xf18] sm:$0xff]
        %v858 = vld [vmem:[#allocation2 + $0xf20] sm:$0xff]
        %v859 = vld [vmem:[#allocation2 + $0xf28] sm:$0xff]
        %v860 = vld [vmem:[#allocation2 + $0xf30] sm:$0xff]
        %v861 = vld [vmem:[#allocation2 + $0xf38] sm:$0xff]
        %v862 = vld [vmem:[#allocation2 + $0xf40] sm:$0xff]
        %v863 = vld [vmem:[#allocation2 + $0xf48] sm:$0xff]
        %v864 = vld [vmem:[#allocation2 + $0xf50] sm:$0xff]
        %v865 = vld [vmem:[#allocation2 + $0xf58] sm:$0xff]
        %v866 = vld [vmem:[#allocation2 + $0xf60] sm:$0xff]
        %v867 = vld [vmem:[#allocation2 + $0xf68] sm:$0xff]
        %v868 = vld [vmem:[#allocation2 + $0xf70] sm:$0xff]
        %v869 = vld [vmem:[#allocation2 + $0xf78] sm:$0xff]
        %v870 = vld [vmem:[#allocation2 + $0xf80] sm:$0xff]
        %v871 = vld [vmem:[#allocation2 + $0xf88] sm:$0xff]
        %v872 = vld [vmem:[#allocation2 + $0xf90] sm:$0xff]
        %v873 = vld [vmem:[#allocation2 + $0xf98] sm:$0xff]
        %v874 = vld [vmem:[#allocation2 + $0xfa0] sm:$0xff]
        %v875 = vld [vmem:[#allocation2 + $0xfa8] sm:$0xff]
        %v876 = vld [vmem:[#allocation2 + $0xfb0] sm:$0xff]
        %v877 = vld [vmem:[#allocation2 + $0xfb8] sm:$0xff]
        %v878 = vld [vmem:[#allocation2 + $0xfc0] sm:$0xff]
        %v879 = vld [vmem:[#allocation2 + $0xfc8] sm:$0xff]
        %v880 = vld [vmem:[#allocation2 + $0xfd0] sm:$0xff]
        %v881 = vld [vmem:[#allocation2 + $0xfd8] sm:$0xff]
        %v882 = vld [vmem:[#allocation2 + $0xfe0] sm:$0xff]
        %v883 = vld [vmem:[#allocation2 + $0xfe8] sm:$0xff]
        %v884 = vld [vmem:[#allocation2 + $0xff0] sm:$0xff]
        %v885 = vld [vmem:[#allocation2 + $0xff8] sm:$0xff]
        %v886 = vld [vmem:[#allocation2 + $0x1000] sm:$0xff]
        %v887 = vld [vmem:[#allocation2 + $0x1008] sm:$0xff]
        %v888 = vld [vmem:[#allocation2 + $0x1010] sm:$0xff]
        %v889 = vld [vmem:[#allocation2 + $0x1018] sm:$0xff]
        %v890 = vld [vmem:[#allocation2 + $0x1020] sm:$0xff]
        %v891 = vld [vmem:[#allocation2 + $0x1028] sm:$0xff]
        %v892 = vld [vmem:[#allocation2 + $0x1030] sm:$0xff]
        %v893 = vld [vmem:[#allocation2 + $0x1038] sm:$0xff]
        %v894 = vld [vmem:[#allocation2 + $0x1040] sm:$0xff]
        %v895 = vld [vmem:[#allocation2 + $0x1048] sm:$0xff]
        %v896 = vld [vmem:[#allocation2 + $0x1050] sm:$0xff]
        %v897 = vld [vmem:[#allocation2 + $0x1058] sm:$0xff]
        %v898 = vld [vmem:[#allocation2 + $0x1060] sm:$0xff]
        %v899 = vld [vmem:[#allocation2 + $0x1068] sm:$0xff]
        %v900 = vld [vmem:[#allocation2 + $0x1070] sm:$0xff]
        %v901 = vld [vmem:[#allocation2 + $0x1078] sm:$0xff]
        %v902 = vld [vmem:[#allocation2 + $0x1080] sm:$0xff]
        %v903 = vld [vmem:[#allocation2 + $0x1088] sm:$0xff]
        %v904 = vld [vmem:[#allocation2 + $0x1090] sm:$0xff]
        %v905 = vld [vmem:[#allocation2 + $0x1098] sm:$0xff]
        %v906 = vld [vmem:[#allocation2 + $0x10a0] sm:$0xff]
        %v907 = vld [vmem:[#allocation2 + $0x10a8] sm:$0xff]
        %v908 = vld [vmem:[#allocation2 + $0x10b0] sm:$0xff]
        %v909 = vld [vmem:[#allocation2 + $0x10b8] sm:$0xff]
        %v910 = vld [vmem:[#allocation2 + $0x10c0] sm:$0xff]
        %v911 = vld [vmem:[#allocation2 + $0x10c8] sm:$0xff]
        %v912 = vld [vmem:[#allocation2 + $0x10d0] sm:$0xff]
        %v913 = vld [vmem:[#allocation2 + $0x10d8] sm:$0xff]
        %v914 = vld [vmem:[#allocation2 + $0x10e0] sm:$0xff]
        %v915 = vld [vmem:[#allocation2 + $0x10e8] sm:$0xff]
        %v916 = vld [vmem:[#allocation2 + $0x10f0] sm:$0xff]
        %v917 = vld [vmem:[#allocation2 + $0x10f8] sm:$0xff]
        %v918 = vld [vmem:[#allocation2 + $0x1100] sm:$0xff]
        %v919 = vld [vmem:[#allocation2 + $0x1108] sm:$0xff]
        %v920 = vld [vmem:[#allocation2 + $0x1110] sm:$0xff]
        %v921 = vld [vmem:[#allocation2 + $0x1118] sm:$0xff]
        %v922 = vld [vmem:[#allocation2 + $0x1120] sm:$0xff]
        %v923 = vld [vmem:[#allocation2 + $0x1128] sm:$0xff]
        %v924 = vld [vmem:[#allocation2 + $0x1130] sm:$0xff]
        %v925 = vld [vmem:[#allocation2 + $0x1138] sm:$0xff]
        %v926 = vld [vmem:[#allocation2 + $0x1140] sm:$0xff]
        %v927 = vld [vmem:[#allocation2 + $0x1148] sm:$0xff]
        %v928 = vld [vmem:[#allocation2 + $0x1150] sm:$0xff]
        %v929 = vld [vmem:[#allocation2 + $0x1158] sm:$0xff]
        %v930 = vld [vmem:[#allocation2 + $0x1160] sm:$0xff]
        %v931 = vld [vmem:[#allocation2 + $0x1168] sm:$0xff]
        %v932 = vld [vmem:[#allocation2 + $0x1170] sm:$0xff]
        %v933 = vld [vmem:[#allocation2 + $0x1178] sm:$0xff]
        %v934 = vld [vmem:[#allocation2 + $0x1180] sm:$0xff]
        %v935 = vld [vmem:[#allocation2 + $0x1188] sm:$0xff]
        %v936 = vld [vmem:[#allocation2 + $0x1190] sm:$0xff]
        %v937 = vld [vmem:[#allocation2 + $0x1198] sm:$0xff]
        %v938 = vld [vmem:[#allocation2 + $0x11a0] sm:$0xff]
        %v939 = vld [vmem:[#allocation2 + $0x11a8] sm:$0xff]
        %v940 = vld [vmem:[#allocation2 + $0x11b0] sm:$0xff]
        %v941 = vld [vmem:[#allocation2 + $0x11b8] sm:$0xff]
        %v942 = vld [vmem:[#allocation2 + $0x11c0] sm:$0xff]
        %v943 = vld [vmem:[#allocation2 + $0x11c8] sm:$0xff]
        %v944 = vld [vmem:[#allocation2 + $0x11d0] sm:$0xff]
        %v945 = vld [vmem:[#allocation2 + $0x11d8] sm:$0xff]
        %v946 = vld [vmem:[#allocation2 + $0x11e0] sm:$0xff]
        %v947 = vld [vmem:[#allocation2 + $0x11e8] sm:$0xff]
        %v948 = vld [vmem:[#allocation2 + $0x11f0] sm:$0xff]
        %v949 = vld [vmem:[#allocation2 + $0x11f8] sm:$0xff]
        %v950 = vld [vmem:[#allocation2 + $0x1200] sm:$0xff]
        %v951 = vld [vmem:[#allocation2 + $0x1208] sm:$0xff]
        %v952 = vld [vmem:[#allocation2 + $0x1210] sm:$0xff]
        %v953 = vld [vmem:[#allocation2 + $0x1218] sm:$0xff]
        %v954 = vld [vmem:[#allocation2 + $0x1220] sm:$0xff]
        %v955 = vld [vmem:[#allocation2 + $0x1228] sm:$0xff]
        %v956 = vld [vmem:[#allocation2 + $0x1230] sm:$0xff]
        %v957 = vld [vmem:[#allocation2 + $0x1238] sm:$0xff]
        %v958 = vld [vmem:[#allocation2 + $0x1240] sm:$0xff]
        %v959 = vld [vmem:[#allocation2 + $0x1248] sm:$0xff]
        %v960 = vld [vmem:[#allocation2 + $0x1250] sm:$0xff]
        %v961 = vld [vmem:[#allocation2 + $0x1258] sm:$0xff]
        %v962 = vld [vmem:[#allocation2 + $0x1260] sm:$0xff]
        %v963 = vld [vmem:[#allocation2 + $0x1268] sm:$0xff]
        %v964 = vld [vmem:[#allocation2 + $0x1270] sm:$0xff]
        %v965 = vld [vmem:[#allocation2 + $0x1278] sm:$0xff]
        %v966 = vld [vmem:[#allocation2 + $0x1280] sm:$0xff]
        %v967 = vld [vmem:[#allocation2 + $0x1288] sm:$0xff]
        %v968 = vld [vmem:[#allocation2 + $0x1290] sm:$0xff]
        %v969 = vld [vmem:[#allocation2 + $0x1298] sm:$0xff]
        %v970 = vld [vmem:[#allocation2 + $0x12a0] sm:$0xff]
        %v971 = vld [vmem:[#allocation2 + $0x12a8] sm:$0xff]
        %v972 = vld [vmem:[#allocation2 + $0x12b0] sm:$0xff]
        %v973 = vld [vmem:[#allocation2 + $0x12b8] sm:$0xff]
        %v974 = vld [vmem:[#allocation2 + $0x12c0] sm:$0xff]
        %v975 = vld [vmem:[#allocation2 + $0x12c8] sm:$0xff]
        %v976 = vld [vmem:[#allocation2 + $0x12d0] sm:$0xff]
        %v977 = vld [vmem:[#allocation2 + $0x12d8] sm:$0xff]
        %v978 = vld [vmem:[#allocation2 + $0x12e0] sm:$0xff]
        %v979 = vld [vmem:[#allocation2 + $0x12e8] sm:$0xff]
        %v980 = vld [vmem:[#allocation2 + $0x12f0] sm:$0xff]
        %v981 = vld [vmem:[#allocation2 + $0x12f8] sm:$0xff]
        %v982 = vld [vmem:[#allocation2 + $0x1300] sm:$0xff]
        %v983 = vld [vmem:[#allocation2 + $0x1308] sm:$0xff]
        %v984 = vld [vmem:[#allocation2 + $0x1310] sm:$0xff]
        %v985 = vld [vmem:[#allocation2 + $0x1318] sm:$0xff]
        %v986 = vld [vmem:[#allocation2 + $0x1320] sm:$0xff]
        %v987 = vld [vmem:[#allocation2 + $0x1328] sm:$0xff]
        %v988 = vld [vmem:[#allocation2 + $0x1330] sm:$0xff]
        %v989 = vld [vmem:[#allocation2 + $0x1338] sm:$0xff]
        %v990 = vld [vmem:[#allocation2 + $0x1340] sm:$0xff]
        %v991 = vld [vmem:[#allocation2 + $0x1348] sm:$0xff]
        %v992 = vld [vmem:[#allocation2 + $0x1350] sm:$0xff]
        %v993 = vld [vmem:[#allocation2 + $0x1358] sm:$0xff]
        %v994 = vld [vmem:[#allocation2 + $0x1360] sm:$0xff]
        %v995 = vld [vmem:[#allocation2 + $0x1368] sm:$0xff]
        %v996 = vld [vmem:[#allocation2 + $0x1370] sm:$0xff]
        %v997 = vld [vmem:[#allocation2 + $0x1378] sm:$0xff]
        %v998 = vld [vmem:[#allocation2 + $0x1380] sm:$0xff]
        %v999 = vld [vmem:[#allocation2 + $0x1388] sm:$0xff]
        %v1000 = vld [vmem:[#allocation2 + $0x1390] sm:$0xff]
        %v1001 = vld [vmem:[#allocation2 + $0x1398] sm:$0xff]
        %v1002 = vld [vmem:[#allocation2 + $0x13a0] sm:$0xff]
        %v1003 = vld [vmem:[#allocation2 + $0x13a8] sm:$0xff]
        %v1004 = vld [vmem:[#allocation2 + $0x13b0] sm:$0xff]
        %v1005 = vld [vmem:[#allocation2 + $0x13b8] sm:$0xff]
        %v1006 = vld [vmem:[#allocation2 + $0x13c0] sm:$0xff]
        %v1007 = vld [vmem:[#allocation2 + $0x13c8] sm:$0xff]
        %v1008 = vld [vmem:[#allocation2 + $0x13d0] sm:$0xff]
        %v1009 = vld [vmem:[#allocation2 + $0x13d8] sm:$0xff]
        %v1010 = vld [vmem:[#allocation2 + $0x13e0] sm:$0xff]
        %v1011 = vld [vmem:[#allocation2 + $0x13e8] sm:$0xff]
        %v1012 = vld [vmem:[#allocation2 + $0x13f0] sm:$0xff]
        %v1013 = vld [vmem:[#allocation2 + $0x13f8] sm:$0xff]
        %v1014 = vld [vmem:[#allocation2 + $0x1400] sm:$0xff]
        %v1015 = vld [vmem:[#allocation2 + $0x1408] sm:$0xff]
        %v1016 = vld [vmem:[#allocation2 + $0x1410] sm:$0xff]
        %v1017 = vld [vmem:[#allocation2 + $0x1418] sm:$0xff]
        %v1018 = vld [vmem:[#allocation2 + $0x1420] sm:$0xff]
        %v1019 = vld [vmem:[#allocation2 + $0x1428] sm:$0xff]
        %v1020 = vld [vmem:[#allocation2 + $0x1430] sm:$0xff]
        %v1021 = vld [vmem:[#allocation2 + $0x1438] sm:$0xff]
        %v1022 = vld [vmem:[#allocation2 + $0x1440] sm:$0xff]
        %v1023 = vld [vmem:[#allocation2 + $0x1448] sm:$0xff]
        %v1024 = vld [vmem:[#allocation2 + $0x1450] sm:$0xff]
        %v1025 = vld [vmem:[#allocation2 + $0x1458] sm:$0xff]
        %v1026 = vld [vmem:[#allocation2 + $0x1460] sm:$0xff]
        %v1027 = vld [vmem:[#allocation2 + $0x1468] sm:$0xff]
        %v1028 = vld [vmem:[#allocation2 + $0x1470] sm:$0xff]
        %v1029 = vld [vmem:[#allocation2 + $0x1478] sm:$0xff]
        %v1030 = vld [vmem:[#allocation2 + $0x1480] sm:$0xff]
        %v1031 = vld [vmem:[#allocation2 + $0x1488] sm:$0xff]
        %v1032 = vld [vmem:[#allocation2 + $0x1490] sm:$0xff]
        %v1033 = vld [vmem:[#allocation2 + $0x1498] sm:$0xff]
        %v1034 = vld [vmem:[#allocation2 + $0x14a0] sm:$0xff]
        %v1035 = vld [vmem:[#allocation2 + $0x14a8] sm:$0xff]
        %v1036 = vld [vmem:[#allocation2 + $0x14b0] sm:$0xff]
        %v1037 = vld [vmem:[#allocation2 + $0x14b8] sm:$0xff]
        %v1038 = vld [vmem:[#allocation2 + $0x14c0] sm:$0xff]
        %v1039 = vld [vmem:[#allocation2 + $0x14c8] sm:$0xff]
        %v1040 = vld [vmem:[#allocation2 + $0x14d0] sm:$0xff]
        %v1041 = vld [vmem:[#allocation2 + $0x14d8] sm:$0xff]
        %v1042 = vld [vmem:[#allocation2 + $0x14e0] sm:$0xff]
        %v1043 = vld [vmem:[#allocation2 + $0x14e8] sm:$0xff]
        %v1044 = vld [vmem:[#allocation2 + $0x14f0] sm:$0xff]
        %v1045 = vld [vmem:[#allocation2 + $0x14f8] sm:$0xff]
        %v1046 = vld [vmem:[#allocation2 + $0x1500] sm:$0xff]
        %v1047 = vld [vmem:[#allocation2 + $0x1508] sm:$0xff]
        %v1048 = vld [vmem:[#allocation2 + $0x1510] sm:$0xff]
        %v1049 = vld [vmem:[#allocation2 + $0x1518] sm:$0xff]
        %v1050 = vld [vmem:[#allocation2 + $0x1520] sm:$0xff]
        %v1051 = vld [vmem:[#allocation2 + $0x1528] sm:$0xff]
        %v1052 = vld [vmem:[#allocation2 + $0x1530] sm:$0xff]
        %v1053 = vld [vmem:[#allocation2 + $0x1538] sm:$0xff]
        %v1054 = vld [vmem:[#allocation2 + $0x1540] sm:$0xff]
        %v1055 = vld [vmem:[#allocation2 + $0x1548] sm:$0xff]
        %v1056 = vld [vmem:[#allocation2 + $0x1550] sm:$0xff]
        %v1057 = vld [vmem:[#allocation2 + $0x1558] sm:$0xff]
        %v1058 = vld [vmem:[#allocation2 + $0x1560] sm:$0xff]
        %v1059 = vld [vmem:[#allocation2 + $0x1568] sm:$0xff]
        %v1060 = vld [vmem:[#allocation2 + $0x1570] sm:$0xff]
        %v1061 = vld [vmem:[#allocation2 + $0x1578] sm:$0xff]
        %v1062 = vld [vmem:[#allocation2 + $0x1580] sm:$0xff]
        %v1063 = vld [vmem:[#allocation2 + $0x1588] sm:$0xff]
        %v1064 = vld [vmem:[#allocation2 + $0x1590] sm:$0xff]
        %v1065 = vld [vmem:[#allocation2 + $0x1598] sm:$0xff]
        %v1066 = vld [vmem:[#allocation2 + $0x15a0] sm:$0xff]
        %v1067 = vld [vmem:[#allocation2 + $0x15a8] sm:$0xff]
        %v1068 = vld [vmem:[#allocation2 + $0x15b0] sm:$0xff]
        %v1069 = vld [vmem:[#allocation2 + $0x15b8] sm:$0xff]
        %v1070 = vld [vmem:[#allocation2 + $0x15c0] sm:$0xff]
        %v1071 = vld [vmem:[#allocation2 + $0x15c8] sm:$0xff]
        %v1072 = vld [vmem:[#allocation2 + $0x15d0] sm:$0xff]
        %v1073 = vld [vmem:[#allocation2 + $0x15d8] sm:$0xff]
        %v1074 = vld [vmem:[#allocation2 + $0x15e0] sm:$0xff]
        %v1075 = vld [vmem:[#allocation2 + $0x15e8] sm:$0xff]
        %v1076 = vld [vmem:[#allocation2 + $0x15f0] sm:$0xff]
        %v1077 = vld [vmem:[#allocation2 + $0x15f8] sm:$0xff]
        %v1078 = vld [vmem:[#allocation2 + $0x1600] sm:$0xff]
        %v1079 = vld [vmem:[#allocation2 + $0x1608] sm:$0xff]
        %v1080 = vld [vmem:[#allocation2 + $0x1610] sm:$0xff]
        %v1081 = vld [vmem:[#allocation2 + $0x1618] sm:$0xff]
        %v1082 = vld [vmem:[#allocation2 + $0x1620] sm:$0xff]
        %v1083 = vld [vmem:[#allocation2 + $0x1628] sm:$0xff]
        %v1084 = vld [vmem:[#allocation2 + $0x1630] sm:$0xff]
        %v1085 = vld [vmem:[#allocation2 + $0x1638] sm:$0xff]
        %v1086 = vld [vmem:[#allocation2 + $0x1640] sm:$0xff]
        %v1087 = vld [vmem:[#allocation2 + $0x1648] sm:$0xff]
        %v1088 = vld [vmem:[#allocation2 + $0x1650] sm:$0xff]
        %v1089 = vld [vmem:[#allocation2 + $0x1658] sm:$0xff]
        %v1090 = vld [vmem:[#allocation2 + $0x1660] sm:$0xff]
        %v1091 = vld [vmem:[#allocation2 + $0x1668] sm:$0xff]
        %v1092 = vld [vmem:[#allocation2 + $0x1670] sm:$0xff]
        %v1093 = vld [vmem:[#allocation2 + $0x1678] sm:$0xff]
        %v1094 = vld [vmem:[#allocation2 + $0x1680] sm:$0xff]
        %v1095 = vld [vmem:[#allocation2 + $0x1688] sm:$0xff]
        %v1096 = vld [vmem:[#allocation2 + $0x1690] sm:$0xff]
        %v1097 = vld [vmem:[#allocation2 + $0x1698] sm:$0xff]
        %v1098 = vld [vmem:[#allocation2 + $0x16a0] sm:$0xff]
        %v1099 = vld [vmem:[#allocation2 + $0x16a8] sm:$0xff]
        %v1100 = vld [vmem:[#allocation2 + $0x16b0] sm:$0xff]
        %v1101 = vld [vmem:[#allocation2 + $0x16b8] sm:$0xff]
        %v1102 = vld [vmem:[#allocation2 + $0x16c0] sm:$0xff]
        %v1103 = vld [vmem:[#allocation2 + $0x16c8] sm:$0xff]
        %v1104 = vld [vmem:[#allocation2 + $0x16d0] sm:$0xff]
        %v1105 = vld [vmem:[#allocation2 + $0x16d8] sm:$0xff]
        %v1106 = vld [vmem:[#allocation2 + $0x16e0] sm:$0xff]
        %v1107 = vld [vmem:[#allocation2 + $0x16e8] sm:$0xff]
        %v1108 = vld [vmem:[#allocation2 + $0x16f0] sm:$0xff]
        %v1109 = vld [vmem:[#allocation2 + $0x16f8] sm:$0xff]
        %v1110 = vld [vmem:[#allocation2 + $0x1700] sm:$0xff]
        %v1111 = vld [vmem:[#allocation2 + $0x1708] sm:$0xff]
        %v1112 = vld [vmem:[#allocation2 + $0x1710] sm:$0xff]
        %v1113 = vld [vmem:[#allocation2 + $0x1718] sm:$0xff]
        %v1114 = vld [vmem:[#allocation2 + $0x1720] sm:$0xff]
        %v1115 = vld [vmem:[#allocation2 + $0x1728] sm:$0xff]
        %v1116 = vld [vmem:[#allocation2 + $0x1730] sm:$0xff]
        %v1117 = vld [vmem:[#allocation2 + $0x1738] sm:$0xff]
        %v1118 = vld [vmem:[#allocation2 + $0x1740] sm:$0xff]
        %v1119 = vld [vmem:[#allocation2 + $0x1748] sm:$0xff]
        %v1120 = vld [vmem:[#allocation2 + $0x1750] sm:$0xff]
        %v1121 = vld [vmem:[#allocation2 + $0x1758] sm:$0xff]
        %v1122 = vld [vmem:[#allocation2 + $0x1760] sm:$0xff]
        %v1123 = vld [vmem:[#allocation2 + $0x1768] sm:$0xff]
        %v1124 = vld [vmem:[#allocation2 + $0x1770] sm:$0xff]
        %v1125 = vld [vmem:[#allocation2 + $0x1778] sm:$0xff]
        %v1126 = vld [vmem:[#allocation2 + $0x1780] sm:$0xff]
        %v1127 = vld [vmem:[#allocation2 + $0x1788] sm:$0xff]
        %v1128 = vld [vmem:[#allocation2 + $0x1790] sm:$0xff]
        %v1129 = vld [vmem:[#allocation2 + $0x1798] sm:$0xff]
        %v1130 = vld [vmem:[#allocation2 + $0x17a0] sm:$0xff]
        %v1131 = vld [vmem:[#allocation2 + $0x17a8] sm:$0xff]
        %v1132 = vld [vmem:[#allocation2 + $0x17b0] sm:$0xff]
        %v1133 = vld [vmem:[#allocation2 + $0x17b8] sm:$0xff]
        %v1134 = vld [vmem:[#allocation2 + $0x17c0] sm:$0xff]
        %v1135 = vld [vmem:[#allocation2 + $0x17c8] sm:$0xff]
        %v1136 = vld [vmem:[#allocation2 + $0x17d0] sm:$0xff]
        %v1137 = vld [vmem:[#allocation2 + $0x17d8] sm:$0xff]
        %v1138 = vld [vmem:[#allocation2 + $0x17e0] sm:$0xff]
        %v1139 = vld [vmem:[#allocation2 + $0x17e8] sm:$0xff]
        %v1140 = vld [vmem:[#allocation2 + $0x17f0] sm:$0xff]
        %v1141 = vld [vmem:[#allocation2 + $0x17f8] sm:$0xff]
        %v1142 = vld [vmem:[#allocation4] sm:$0xff]
        %v1143 = vld [vmem:[#allocation4 + $0x8] sm:$0xff]
        %v1146 = vperm.slane %v1142, 0
        %v1147 = vperm.slane %v1142, 1
        %v1148 = vperm.slane %v1142, 2
        %v1149 = vperm.slane %v1142, 3
        %v1150 = vperm.slane %v1142, 4
        %v1151 = vperm.slane %v1142, 5
        %v1152 = vperm.slane %v1142, 6
        %v1153 = vperm.slane %v1142, 7
        %v1154 = vperm.slane %v1143, 0
        %v1155 = vperm.slane %v1143, 1
        %v1156 = vperm.slane %v1143, 2
        %v1157 = vperm.slane %v1143, 3
        %v1158 = vperm.slane %v1143, 4
        %v1159 = vperm.slane %v1143, 5
        %v1160 = vperm.slane %v1143, 6
        %v1161 = vperm.slane %v1143, 7
        %1178 = vmatpush.msra.mxu0 %v614
        %1179 = vmatpush.msra.mxu0 %v598
        %1180 = vmatpush.msra.mxu0 %v582
        %1181 = vmatpush.msra.mxu0 %v566
        %1182 = vmatpush.msra.mxu0 %v550
        %1183 = vmatpush.msra.mxu0 %v534
        %1184 = vmatpush.msra.mxu0 %v518
        %1185 = vmatpush.msra.mxu0 %v502
        %1186 = vmatpush.msra.mxu0 %v486
        %1187 = vmatpush.msra.mxu0 %v470
        %1188 = vmatpush.msra.mxu0 %v454
        %1189 = vmatpush.msra.mxu0 %v438
        %1190 = vmatpush.msra.mxu0 %v422
        %1191 = vmatpush.msra.mxu0 %v406
        %1192 = vmatpush.msra.mxu0 %v390
        %1193 = vmatpush.msra.mxu0 %v374
        %1194 = vmatmul.f32.gmra.mxu0 %v371
        %v1195 = vpop.f32.mrf.mxu0
        %v1196 = vadd.f32 %v1146, %v1195
        %1197 = vdwg.mxu0
        %1198 = vmatpush.msra.mxu0 %v870
        %1199 = vmatpush.msra.mxu0 %v854
        %1200 = vmatpush.msra.mxu0 %v838
        %1201 = vmatpush.msra.mxu0 %v822
        %1202 = vmatpush.msra.mxu0 %v806
        %1203 = vmatpush.msra.mxu0 %v790
        %1204 = vmatpush.msra.mxu0 %v774
        %1205 = vmatpush.msra.mxu0 %v758
        %1206 = vmatpush.msra.mxu0 %v742
        %1207 = vmatpush.msra.mxu0 %v726
        %1208 = vmatpush.msra.mxu0 %v710
        %1209 = vmatpush.msra.mxu0 %v694
        %1210 = vmatpush.msra.mxu0 %v678
        %1211 = vmatpush.msra.mxu0 %v662
        %1212 = vmatpush.msra.mxu0 %v646
        %1213 = vmatpush.msra.mxu0 %v630
        %1214 = vmatmul.f32.gmra.mxu0 %v372
        %v1215 = vpop.f32.mrf.mxu0
        %v1216 = vadd.f32 %v1196, %v1215
        %1217 = vdwg.mxu0
        %1218 = vmatpush.msra.mxu0 %v1126
        %1219 = vmatpush.msra.mxu0 %v1110
        %1220 = vmatpush.msra.mxu0 %v1094
        %1221 = vmatpush.msra.mxu0 %v1078
        %1222 = vmatpush.msra.mxu0 %v1062
        %1223 = vmatpush.msra.mxu0 %v1046
        %1224 = vmatpush.msra.mxu0 %v1030
        %1225 = vmatpush.msra.mxu0 %v1014
        %1226 = vmatpush.msra.mxu0 %v998
        %1227 = vmatpush.msra.mxu0 %v982
        %1228 = vmatpush.msra.mxu0 %v966
        %1229 = vmatpush.msra.mxu0 %v950
        %1230 = vmatpush.msra.mxu0 %v934
        %1231 = vmatpush.msra.mxu0 %v918
        %1232 = vmatpush.msra.mxu0 %v902
        %1233 = vmatpush.msra.mxu0 %v886
        %1234 = vmatmul.f32.gmra.mxu0 %v373
        %v1235 = vpop.f32.mrf.mxu0
        %v1236 = vadd.f32 %v1216, %v1235
        %1237 = vdwg.mxu0
        %1238 = vmatpush.msra.mxu0 %v615
        %1239 = vmatpush.msra.mxu0 %v599
        %1240 = vmatpush.msra.mxu0 %v583
        %1241 = vmatpush.msra.mxu0 %v567
        %1242 = vmatpush.msra.mxu0 %v551
        %1243 = vmatpush.msra.mxu0 %v535
        %1244 = vmatpush.msra.mxu0 %v519
        %1245 = vmatpush.msra.mxu0 %v503
        %1246 = vmatpush.msra.mxu0 %v487
        %1247 = vmatpush.msra.mxu0 %v471
        %1248 = vmatpush.msra.mxu0 %v455
        %1249 = vmatpush.msra.mxu0 %v439
        %1250 = vmatpush.msra.mxu0 %v423
        %1251 = vmatpush.msra.mxu0 %v407
        %1252 = vmatpush.msra.mxu0 %v391
        %1253 = vmatpush.msra.mxu0 %v375
        %1254 = vmatmul.f32.gmra.mxu0 %v371
        %v1255 = vpop.f32.mrf.mxu0
        %v1256 = vadd.f32 %v1147, %v1255
        %1257 = vdwg.mxu0
        %1258 = vmatpush.msra.mxu0 %v871
        %1259 = vmatpush.msra.mxu0 %v855
        %1260 = vmatpush.msra.mxu0 %v839
        %1261 = vmatpush.msra.mxu0 %v823
        %1262 = vmatpush.msra.mxu0 %v807
        %1263 = vmatpush.msra.mxu0 %v791
        %1264 = vmatpush.msra.mxu0 %v775
        %1265 = vmatpush.msra.mxu0 %v759
        %1266 = vmatpush.msra.mxu0 %v743
        %1267 = vmatpush.msra.mxu0 %v727
        %1268 = vmatpush.msra.mxu0 %v711
        %1269 = vmatpush.msra.mxu0 %v695
        %1270 = vmatpush.msra.mxu0 %v679
        %1271 = vmatpush.msra.mxu0 %v663
        %1272 = vmatpush.msra.mxu0 %v647
        %1273 = vmatpush.msra.mxu0 %v631
        %1274 = vmatmul.f32.gmra.mxu0 %v372
        %v1275 = vpop.f32.mrf.mxu0
        %v1276 = vadd.f32 %v1256, %v1275
        %1277 = vdwg.mxu0
        %1278 = vmatpush.msra.mxu0 %v1127
        %1279 = vmatpush.msra.mxu0 %v1111
        %1280 = vmatpush.msra.mxu0 %v1095
        %1281 = vmatpush.msra.mxu0 %v1079
        %1282 = vmatpush.msra.mxu0 %v1063
        %1283 = vmatpush.msra.mxu0 %v1047
        %1284 = vmatpush.msra.mxu0 %v1031
        %1285 = vmatpush.msra.mxu0 %v1015
        %1286 = vmatpush.msra.mxu0 %v999
        %1287 = vmatpush.msra.mxu0 %v983
        %1288 = vmatpush.msra.mxu0 %v967
        %1289 = vmatpush.msra.mxu0 %v951
        %1290 = vmatpush.msra.mxu0 %v935
        %1291 = vmatpush.msra.mxu0 %v919
        %1292 = vmatpush.msra.mxu0 %v903
        %1293 = vmatpush.msra.mxu0 %v887
        %1294 = vmatmul.f32.gmra.mxu0 %v373
        %v1295 = vpop.f32.mrf.mxu0
        %v1296 = vadd.f32 %v1276, %v1295
        %1297 = vdwg.mxu0
        %1298 = vmatpush.msra.mxu0 %v616
        %1299 = vmatpush.msra.mxu0 %v600
        %1300 = vmatpush.msra.mxu0 %v584
        %1301 = vmatpush.msra.mxu0 %v568
        %1302 = vmatpush.msra.mxu0 %v552
        %1303 = vmatpush.msra.mxu0 %v536
        %1304 = vmatpush.msra.mxu0 %v520
        %1305 = vmatpush.msra.mxu0 %v504
        %1306 = vmatpush.msra.mxu0 %v488
        %1307 = vmatpush.msra.mxu0 %v472
        %1308 = vmatpush.msra.mxu0 %v456
        %1309 = vmatpush.msra.mxu0 %v440
        %1310 = vmatpush.msra.mxu0 %v424
        %1311 = vmatpush.msra.mxu0 %v408
        %1312 = vmatpush.msra.mxu0 %v392
        %1313 = vmatpush.msra.mxu0 %v376
        %1314 = vmatmul.f32.gmra.mxu0 %v371
        %v1315 = vpop.f32.mrf.mxu0
        %v1316 = vadd.f32 %v1148, %v1315
        %1317 = vdwg.mxu0
        %1318 = vmatpush.msra.mxu0 %v872
        %1319 = vmatpush.msra.mxu0 %v856
        %1320 = vmatpush.msra.mxu0 %v840
        %1321 = vmatpush.msra.mxu0 %v824
        %1322 = vmatpush.msra.mxu0 %v808
        %1323 = vmatpush.msra.mxu0 %v792
        %1324 = vmatpush.msra.mxu0 %v776
        %1325 = vmatpush.msra.mxu0 %v760
        %1326 = vmatpush.msra.mxu0 %v744
        %1327 = vmatpush.msra.mxu0 %v728
        %1328 = vmatpush.msra.mxu0 %v712
        %1329 = vmatpush.msra.mxu0 %v696
        %1330 = vmatpush.msra.mxu0 %v680
        %1331 = vmatpush.msra.mxu0 %v664
        %1332 = vmatpush.msra.mxu0 %v648
        %1333 = vmatpush.msra.mxu0 %v632
        %1334 = vmatmul.f32.gmra.mxu0 %v372
        %v1335 = vpop.f32.mrf.mxu0
        %v1336 = vadd.f32 %v1316, %v1335
        %1337 = vdwg.mxu0
        %1338 = vmatpush.msra.mxu0 %v1128
        %1339 = vmatpush.msra.mxu0 %v1112
        %1340 = vmatpush.msra.mxu0 %v1096
        %1341 = vmatpush.msra.mxu0 %v1080
        %1342 = vmatpush.msra.mxu0 %v1064
        %1343 = vmatpush.msra.mxu0 %v1048
        %1344 = vmatpush.msra.mxu0 %v1032
        %1345 = vmatpush.msra.mxu0 %v1016
        %1346 = vmatpush.msra.mxu0 %v1000
        %1347 = vmatpush.msra.mxu0 %v984
        %1348 = vmatpush.msra.mxu0 %v968
        %1349 = vmatpush.msra.mxu0 %v952
        %1350 = vmatpush.msra.mxu0 %v936
        %1351 = vmatpush.msra.mxu0 %v920
        %1352 = vmatpush.msra.mxu0 %v904
        %1353 = vmatpush.msra.mxu0 %v888
        %1354 = vmatmul.f32.gmra.mxu0 %v373
        %v1355 = vpop.f32.mrf.mxu0
        %v1356 = vadd.f32 %v1336, %v1355
        %1357 = vdwg.mxu0
        %1358 = vmatpush.msra.mxu0 %v617
        %1359 = vmatpush.msra.mxu0 %v601
        %1360 = vmatpush.msra.mxu0 %v585
        %1361 = vmatpush.msra.mxu0 %v569
        %1362 = vmatpush.msra.mxu0 %v553
        %1363 = vmatpush.msra.mxu0 %v537
        %1364 = vmatpush.msra.mxu0 %v521
        %1365 = vmatpush.msra.mxu0 %v505
        %1366 = vmatpush.msra.mxu0 %v489
        %1367 = vmatpush.msra.mxu0 %v473
        %1368 = vmatpush.msra.mxu0 %v457
        %1369 = vmatpush.msra.mxu0 %v441
        %1370 = vmatpush.msra.mxu0 %v425
        %1371 = vmatpush.msra.mxu0 %v409
        %1372 = vmatpush.msra.mxu0 %v393
        %1373 = vmatpush.msra.mxu0 %v377
        %1374 = vmatmul.f32.gmra.mxu0 %v371
        %v1375 = vpop.f32.mrf.mxu0
        %v1376 = vadd.f32 %v1149, %v1375
        %1377 = vdwg.mxu0
        %1378 = vmatpush.msra.mxu0 %v873
        %1379 = vmatpush.msra.mxu0 %v857
        %1380 = vmatpush.msra.mxu0 %v841
        %1381 = vmatpush.msra.mxu0 %v825
        %1382 = vmatpush.msra.mxu0 %v809
        %1383 = vmatpush.msra.mxu0 %v793
        %1384 = vmatpush.msra.mxu0 %v777
        %1385 = vmatpush.msra.mxu0 %v761
        %1386 = vmatpush.msra.mxu0 %v745
        %1387 = vmatpush.msra.mxu0 %v729
        %1388 = vmatpush.msra.mxu0 %v713
        %1389 = vmatpush.msra.mxu0 %v697
        %1390 = vmatpush.msra.mxu0 %v681
        %1391 = vmatpush.msra.mxu0 %v665
        %1392 = vmatpush.msra.mxu0 %v649
        %1393 = vmatpush.msra.mxu0 %v633
        %1394 = vmatmul.f32.gmra.mxu0 %v372
        %v1395 = vpop.f32.mrf.mxu0
        %v1396 = vadd.f32 %v1376, %v1395
        %1397 = vdwg.mxu0
        %1398 = vmatpush.msra.mxu0 %v1129
        %1399 = vmatpush.msra.mxu0 %v1113
        %1400 = vmatpush.msra.mxu0 %v1097
        %1401 = vmatpush.msra.mxu0 %v1081
        %1402 = vmatpush.msra.mxu0 %v1065
        %1403 = vmatpush.msra.mxu0 %v1049
        %1404 = vmatpush.msra.mxu0 %v1033
        %1405 = vmatpush.msra.mxu0 %v1017
        %1406 = vmatpush.msra.mxu0 %v1001
        %1407 = vmatpush.msra.mxu0 %v985
        %1408 = vmatpush.msra.mxu0 %v969
        %1409 = vmatpush.msra.mxu0 %v953
        %1410 = vmatpush.msra.mxu0 %v937
        %1411 = vmatpush.msra.mxu0 %v921
        %1412 = vmatpush.msra.mxu0 %v905
        %1413 = vmatpush.msra.mxu0 %v889
        %1414 = vmatmul.f32.gmra.mxu0 %v373
        %v1415 = vpop.f32.mrf.mxu0
        %v1416 = vadd.f32 %v1396, %v1415
        %1417 = vdwg.mxu0
        %1418 = vmatpush.msra.mxu0 %v618
        %1419 = vmatpush.msra.mxu0 %v602
        %1420 = vmatpush.msra.mxu0 %v586
        %1421 = vmatpush.msra.mxu0 %v570
        %1422 = vmatpush.msra.mxu0 %v554
        %1423 = vmatpush.msra.mxu0 %v538
        %1424 = vmatpush.msra.mxu0 %v522
        %1425 = vmatpush.msra.mxu0 %v506
        %1426 = vmatpush.msra.mxu0 %v490
        %1427 = vmatpush.msra.mxu0 %v474
        %1428 = vmatpush.msra.mxu0 %v458
        %1429 = vmatpush.msra.mxu0 %v442
        %1430 = vmatpush.msra.mxu0 %v426
        %1431 = vmatpush.msra.mxu0 %v410
        %1432 = vmatpush.msra.mxu0 %v394
        %1433 = vmatpush.msra.mxu0 %v378
        %1434 = vmatmul.f32.gmra.mxu0 %v371
        %v1435 = vpop.f32.mrf.mxu0
        %v1436 = vadd.f32 %v1150, %v1435
        %1437 = vdwg.mxu0
        %1438 = vmatpush.msra.mxu0 %v874
        %1439 = vmatpush.msra.mxu0 %v858
        %1440 = vmatpush.msra.mxu0 %v842
        %1441 = vmatpush.msra.mxu0 %v826
        %1442 = vmatpush.msra.mxu0 %v810
        %1443 = vmatpush.msra.mxu0 %v794
        %1444 = vmatpush.msra.mxu0 %v778
        %1445 = vmatpush.msra.mxu0 %v762
        %1446 = vmatpush.msra.mxu0 %v746
        %1447 = vmatpush.msra.mxu0 %v730
        %1448 = vmatpush.msra.mxu0 %v714
        %1449 = vmatpush.msra.mxu0 %v698
        %1450 = vmatpush.msra.mxu0 %v682
        %1451 = vmatpush.msra.mxu0 %v666
        %1452 = vmatpush.msra.mxu0 %v650
        %1453 = vmatpush.msra.mxu0 %v634
        %1454 = vmatmul.f32.gmra.mxu0 %v372
        %v1455 = vpop.f32.mrf.mxu0
        %v1456 = vadd.f32 %v1436, %v1455
        %1457 = vdwg.mxu0
        %1458 = vmatpush.msra.mxu0 %v1130
        %1459 = vmatpush.msra.mxu0 %v1114
        %1460 = vmatpush.msra.mxu0 %v1098
        %1461 = vmatpush.msra.mxu0 %v1082
        %1462 = vmatpush.msra.mxu0 %v1066
        %1463 = vmatpush.msra.mxu0 %v1050
        %1464 = vmatpush.msra.mxu0 %v1034
        %1465 = vmatpush.msra.mxu0 %v1018
        %1466 = vmatpush.msra.mxu0 %v1002
        %1467 = vmatpush.msra.mxu0 %v986
        %1468 = vmatpush.msra.mxu0 %v970
        %1469 = vmatpush.msra.mxu0 %v954
        %1470 = vmatpush.msra.mxu0 %v938
        %1471 = vmatpush.msra.mxu0 %v922
        %1472 = vmatpush.msra.mxu0 %v906
        %1473 = vmatpush.msra.mxu0 %v890
        %1474 = vmatmul.f32.gmra.mxu0 %v373
        %v1475 = vpop.f32.mrf.mxu0
        %v1476 = vadd.f32 %v1456, %v1475
        %1477 = vdwg.mxu0
        %1478 = vmatpush.msra.mxu0 %v619
        %1479 = vmatpush.msra.mxu0 %v603
        %1480 = vmatpush.msra.mxu0 %v587
        %1481 = vmatpush.msra.mxu0 %v571
        %1482 = vmatpush.msra.mxu0 %v555
        %1483 = vmatpush.msra.mxu0 %v539
        %1484 = vmatpush.msra.mxu0 %v523
        %1485 = vmatpush.msra.mxu0 %v507
        %1486 = vmatpush.msra.mxu0 %v491
        %1487 = vmatpush.msra.mxu0 %v475
        %1488 = vmatpush.msra.mxu0 %v459
        %1489 = vmatpush.msra.mxu0 %v443
        %1490 = vmatpush.msra.mxu0 %v427
        %1491 = vmatpush.msra.mxu0 %v411
        %1492 = vmatpush.msra.mxu0 %v395
        %1493 = vmatpush.msra.mxu0 %v379
        %1494 = vmatmul.f32.gmra.mxu0 %v371
        %v1495 = vpop.f32.mrf.mxu0
        %v1496 = vadd.f32 %v1151, %v1495
        %1497 = vdwg.mxu0
        %1498 = vmatpush.msra.mxu0 %v875
        %1499 = vmatpush.msra.mxu0 %v859
        %1500 = vmatpush.msra.mxu0 %v843
        %1501 = vmatpush.msra.mxu0 %v827
        %1502 = vmatpush.msra.mxu0 %v811
        %1503 = vmatpush.msra.mxu0 %v795
        %1504 = vmatpush.msra.mxu0 %v779
        %1505 = vmatpush.msra.mxu0 %v763
        %1506 = vmatpush.msra.mxu0 %v747
        %1507 = vmatpush.msra.mxu0 %v731
        %1508 = vmatpush.msra.mxu0 %v715
        %1509 = vmatpush.msra.mxu0 %v699
        %1510 = vmatpush.msra.mxu0 %v683
        %1511 = vmatpush.msra.mxu0 %v667
        %1512 = vmatpush.msra.mxu0 %v651
        %1513 = vmatpush.msra.mxu0 %v635
        %1514 = vmatmul.f32.gmra.mxu0 %v372
        %v1515 = vpop.f32.mrf.mxu0
        %v1516 = vadd.f32 %v1496, %v1515
        %1517 = vdwg.mxu0
        %1518 = vmatpush.msra.mxu0 %v1131
        %1519 = vmatpush.msra.mxu0 %v1115
        %1520 = vmatpush.msra.mxu0 %v1099
        %1521 = vmatpush.msra.mxu0 %v1083
        %1522 = vmatpush.msra.mxu0 %v1067
        %1523 = vmatpush.msra.mxu0 %v1051
        %1524 = vmatpush.msra.mxu0 %v1035
        %1525 = vmatpush.msra.mxu0 %v1019
        %1526 = vmatpush.msra.mxu0 %v1003
        %1527 = vmatpush.msra.mxu0 %v987
        %1528 = vmatpush.msra.mxu0 %v971
        %1529 = vmatpush.msra.mxu0 %v955
        %1530 = vmatpush.msra.mxu0 %v939
        %1531 = vmatpush.msra.mxu0 %v923
        %1532 = vmatpush.msra.mxu0 %v907
        %1533 = vmatpush.msra.mxu0 %v891
        %1534 = vmatmul.f32.gmra.mxu0 %v373
        %v1535 = vpop.f32.mrf.mxu0
        %v1536 = vadd.f32 %v1516, %v1535
        %1537 = vdwg.mxu0
        %1538 = vmatpush.msra.mxu0 %v620
        %1539 = vmatpush.msra.mxu0 %v604
        %1540 = vmatpush.msra.mxu0 %v588
        %1541 = vmatpush.msra.mxu0 %v572
        %1542 = vmatpush.msra.mxu0 %v556
        %1543 = vmatpush.msra.mxu0 %v540
        %1544 = vmatpush.msra.mxu0 %v524
        %1545 = vmatpush.msra.mxu0 %v508
        %1546 = vmatpush.msra.mxu0 %v492
        %1547 = vmatpush.msra.mxu0 %v476
        %1548 = vmatpush.msra.mxu0 %v460
        %1549 = vmatpush.msra.mxu0 %v444
        %1550 = vmatpush.msra.mxu0 %v428
        %1551 = vmatpush.msra.mxu0 %v412
        %1552 = vmatpush.msra.mxu0 %v396
        %1553 = vmatpush.msra.mxu0 %v380
        %1554 = vmatmul.f32.gmra.mxu0 %v371
        %v1555 = vpop.f32.mrf.mxu0
        %v1556 = vadd.f32 %v1152, %v1555
        %1557 = vdwg.mxu0
        %1558 = vmatpush.msra.mxu0 %v876
        %1559 = vmatpush.msra.mxu0 %v860
        %1560 = vmatpush.msra.mxu0 %v844
        %1561 = vmatpush.msra.mxu0 %v828
        %1562 = vmatpush.msra.mxu0 %v812
        %1563 = vmatpush.msra.mxu0 %v796
        %1564 = vmatpush.msra.mxu0 %v780
        %1565 = vmatpush.msra.mxu0 %v764
        %1566 = vmatpush.msra.mxu0 %v748
        %1567 = vmatpush.msra.mxu0 %v732
        %1568 = vmatpush.msra.mxu0 %v716
        %1569 = vmatpush.msra.mxu0 %v700
        %1570 = vmatpush.msra.mxu0 %v684
        %1571 = vmatpush.msra.mxu0 %v668
        %1572 = vmatpush.msra.mxu0 %v652
        %1573 = vmatpush.msra.mxu0 %v636
        %1574 = vmatmul.f32.gmra.mxu0 %v372
        %v1575 = vpop.f32.mrf.mxu0
        %v1576 = vadd.f32 %v1556, %v1575
        %1577 = vdwg.mxu0
        %1578 = vmatpush.msra.mxu0 %v1132
        %1579 = vmatpush.msra.mxu0 %v1116
        %1580 = vmatpush.msra.mxu0 %v1100
        %1581 = vmatpush.msra.mxu0 %v1084
        %1582 = vmatpush.msra.mxu0 %v1068
        %1583 = vmatpush.msra.mxu0 %v1052
        %1584 = vmatpush.msra.mxu0 %v1036
        %1585 = vmatpush.msra.mxu0 %v1020
        %1586 = vmatpush.msra.mxu0 %v1004
        %1587 = vmatpush.msra.mxu0 %v988
        %1588 = vmatpush.msra.mxu0 %v972
        %1589 = vmatpush.msra.mxu0 %v956
        %1590 = vmatpush.msra.mxu0 %v940
        %1591 = vmatpush.msra.mxu0 %v924
        %1592 = vmatpush.msra.mxu0 %v908
        %1593 = vmatpush.msra.mxu0 %v892
        %1594 = vmatmul.f32.gmra.mxu0 %v373
        %v1595 = vpop.f32.mrf.mxu0
        %v1596 = vadd.f32 %v1576, %v1595
        %1597 = vdwg.mxu0
        %1598 = vmatpush.msra.mxu0 %v621
        %1599 = vmatpush.msra.mxu0 %v605
        %1600 = vmatpush.msra.mxu0 %v589
        %1601 = vmatpush.msra.mxu0 %v573
        %1602 = vmatpush.msra.mxu0 %v557
        %1603 = vmatpush.msra.mxu0 %v541
        %1604 = vmatpush.msra.mxu0 %v525
        %1605 = vmatpush.msra.mxu0 %v509
        %1606 = vmatpush.msra.mxu0 %v493
        %1607 = vmatpush.msra.mxu0 %v477
        %1608 = vmatpush.msra.mxu0 %v461
        %1609 = vmatpush.msra.mxu0 %v445
        %1610 = vmatpush.msra.mxu0 %v429
        %1611 = vmatpush.msra.mxu0 %v413
        %1612 = vmatpush.msra.mxu0 %v397
        %1613 = vmatpush.msra.mxu0 %v381
        %1614 = vmatmul.f32.gmra.mxu0 %v371
        %v1615 = vpop.f32.mrf.mxu0
        %v1616 = vadd.f32 %v1153, %v1615
        %1617 = vdwg.mxu0
        %1618 = vmatpush.msra.mxu0 %v877
        %1619 = vmatpush.msra.mxu0 %v861
        %1620 = vmatpush.msra.mxu0 %v845
        %1621 = vmatpush.msra.mxu0 %v829
        %1622 = vmatpush.msra.mxu0 %v813
        %1623 = vmatpush.msra.mxu0 %v797
        %1624 = vmatpush.msra.mxu0 %v781
        %1625 = vmatpush.msra.mxu0 %v765
        %1626 = vmatpush.msra.mxu0 %v749
        %1627 = vmatpush.msra.mxu0 %v733
        %1628 = vmatpush.msra.mxu0 %v717
        %1629 = vmatpush.msra.mxu0 %v701
        %1630 = vmatpush.msra.mxu0 %v685
        %1631 = vmatpush.msra.mxu0 %v669
        %1632 = vmatpush.msra.mxu0 %v653
        %1633 = vmatpush.msra.mxu0 %v637
        %1634 = vmatmul.f32.gmra.mxu0 %v372
        %v1635 = vpop.f32.mrf.mxu0
        %v1636 = vadd.f32 %v1616, %v1635
        %1637 = vdwg.mxu0
        %1638 = vmatpush.msra.mxu0 %v1133
        %1639 = vmatpush.msra.mxu0 %v1117
        %1640 = vmatpush.msra.mxu0 %v1101
        %1641 = vmatpush.msra.mxu0 %v1085
        %1642 = vmatpush.msra.mxu0 %v1069
        %1643 = vmatpush.msra.mxu0 %v1053
        %1644 = vmatpush.msra.mxu0 %v1037
        %1645 = vmatpush.msra.mxu0 %v1021
        %1646 = vmatpush.msra.mxu0 %v1005
        %1647 = vmatpush.msra.mxu0 %v989
        %1648 = vmatpush.msra.mxu0 %v973
        %1649 = vmatpush.msra.mxu0 %v957
        %1650 = vmatpush.msra.mxu0 %v941
        %1651 = vmatpush.msra.mxu0 %v925
        %1652 = vmatpush.msra.mxu0 %v909
        %1653 = vmatpush.msra.mxu0 %v893
        %1654 = vmatmul.f32.gmra.mxu0 %v373
        %v1655 = vpop.f32.mrf.mxu0
        %v1656 = vadd.f32 %v1636, %v1655
        %1657 = vdwg.mxu0
        %1658 = vmatpush.msra.mxu0 %v622
        %1659 = vmatpush.msra.mxu0 %v606
        %1660 = vmatpush.msra.mxu0 %v590
        %1661 = vmatpush.msra.mxu0 %v574
        %1662 = vmatpush.msra.mxu0 %v558
        %1663 = vmatpush.msra.mxu0 %v542
        %1664 = vmatpush.msra.mxu0 %v526
        %1665 = vmatpush.msra.mxu0 %v510
        %1666 = vmatpush.msra.mxu0 %v494
        %1667 = vmatpush.msra.mxu0 %v478
        %1668 = vmatpush.msra.mxu0 %v462
        %1669 = vmatpush.msra.mxu0 %v446
        %1670 = vmatpush.msra.mxu0 %v430
        %1671 = vmatpush.msra.mxu0 %v414
        %1672 = vmatpush.msra.mxu0 %v398
        %1673 = vmatpush.msra.mxu0 %v382
        %1674 = vmatmul.f32.gmra.mxu0 %v371
        %v1675 = vpop.f32.mrf.mxu0
        %v1676 = vadd.f32 %v1154, %v1675
        %1677 = vdwg.mxu0
        %1678 = vmatpush.msra.mxu0 %v878
        %1679 = vmatpush.msra.mxu0 %v862
        %1680 = vmatpush.msra.mxu0 %v846
        %1681 = vmatpush.msra.mxu0 %v830
        %1682 = vmatpush.msra.mxu0 %v814
        %1683 = vmatpush.msra.mxu0 %v798
        %1684 = vmatpush.msra.mxu0 %v782
        %1685 = vmatpush.msra.mxu0 %v766
        %1686 = vmatpush.msra.mxu0 %v750
        %1687 = vmatpush.msra.mxu0 %v734
        %1688 = vmatpush.msra.mxu0 %v718
        %1689 = vmatpush.msra.mxu0 %v702
        %1690 = vmatpush.msra.mxu0 %v686
        %1691 = vmatpush.msra.mxu0 %v670
        %1692 = vmatpush.msra.mxu0 %v654
        %1693 = vmatpush.msra.mxu0 %v638
        %1694 = vmatmul.f32.gmra.mxu0 %v372
        %v1695 = vpop.f32.mrf.mxu0
        %v1696 = vadd.f32 %v1676, %v1695
        %1697 = vdwg.mxu0
        %1698 = vmatpush.msra.mxu0 %v1134
        %1699 = vmatpush.msra.mxu0 %v1118
        %1700 = vmatpush.msra.mxu0 %v1102
        %1701 = vmatpush.msra.mxu0 %v1086
        %1702 = vmatpush.msra.mxu0 %v1070
        %1703 = vmatpush.msra.mxu0 %v1054
        %1704 = vmatpush.msra.mxu0 %v1038
        %1705 = vmatpush.msra.mxu0 %v1022
        %1706 = vmatpush.msra.mxu0 %v1006
        %1707 = vmatpush.msra.mxu0 %v990
        %1708 = vmatpush.msra.mxu0 %v974
        %1709 = vmatpush.msra.mxu0 %v958
        %1710 = vmatpush.msra.mxu0 %v942
        %1711 = vmatpush.msra.mxu0 %v926
        %1712 = vmatpush.msra.mxu0 %v910
        %1713 = vmatpush.msra.mxu0 %v894
        %1714 = vmatmul.f32.gmra.mxu0 %v373
        %v1715 = vpop.f32.mrf.mxu0
        %v1716 = vadd.f32 %v1696, %v1715
        %1717 = vdwg.mxu0
        %1718 = vmatpush.msra.mxu0 %v623
        %1719 = vmatpush.msra.mxu0 %v607
        %1720 = vmatpush.msra.mxu0 %v591
        %1721 = vmatpush.msra.mxu0 %v575
        %1722 = vmatpush.msra.mxu0 %v559
        %1723 = vmatpush.msra.mxu0 %v543
        %1724 = vmatpush.msra.mxu0 %v527
        %1725 = vmatpush.msra.mxu0 %v511
        %1726 = vmatpush.msra.mxu0 %v495
        %1727 = vmatpush.msra.mxu0 %v479
        %1728 = vmatpush.msra.mxu0 %v463
        %1729 = vmatpush.msra.mxu0 %v447
        %1730 = vmatpush.msra.mxu0 %v431
        %1731 = vmatpush.msra.mxu0 %v415
        %1732 = vmatpush.msra.mxu0 %v399
        %1733 = vmatpush.msra.mxu0 %v383
        %1734 = vmatmul.f32.gmra.mxu0 %v371
        %v1735 = vpop.f32.mrf.mxu0
        %v1736 = vadd.f32 %v1155, %v1735
        %1737 = vdwg.mxu0
        %1738 = vmatpush.msra.mxu0 %v879
        %1739 = vmatpush.msra.mxu0 %v863
        %1740 = vmatpush.msra.mxu0 %v847
        %1741 = vmatpush.msra.mxu0 %v831
        %1742 = vmatpush.msra.mxu0 %v815
        %1743 = vmatpush.msra.mxu0 %v799
        %1744 = vmatpush.msra.mxu0 %v783
        %1745 = vmatpush.msra.mxu0 %v767
        %1746 = vmatpush.msra.mxu0 %v751
        %1747 = vmatpush.msra.mxu0 %v735
        %1748 = vmatpush.msra.mxu0 %v719
        %1749 = vmatpush.msra.mxu0 %v703
        %1750 = vmatpush.msra.mxu0 %v687
        %1751 = vmatpush.msra.mxu0 %v671
        %1752 = vmatpush.msra.mxu0 %v655
        %1753 = vmatpush.msra.mxu0 %v639
        %1754 = vmatmul.f32.gmra.mxu0 %v372
        %v1755 = vpop.f32.mrf.mxu0
        %v1756 = vadd.f32 %v1736, %v1755
        %1757 = vdwg.mxu0
        %1758 = vmatpush.msra.mxu0 %v1135
        %1759 = vmatpush.msra.mxu0 %v1119
        %1760 = vmatpush.msra.mxu0 %v1103
        %1761 = vmatpush.msra.mxu0 %v1087
        %1762 = vmatpush.msra.mxu0 %v1071
        %1763 = vmatpush.msra.mxu0 %v1055
        %1764 = vmatpush.msra.mxu0 %v1039
        %1765 = vmatpush.msra.mxu0 %v1023
        %1766 = vmatpush.msra.mxu0 %v1007
        %1767 = vmatpush.msra.mxu0 %v991
        %1768 = vmatpush.msra.mxu0 %v975
        %1769 = vmatpush.msra.mxu0 %v959
        %1770 = vmatpush.msra.mxu0 %v943
        %1771 = vmatpush.msra.mxu0 %v927
        %1772 = vmatpush.msra.mxu0 %v911
        %1773 = vmatpush.msra.mxu0 %v895
        %1774 = vmatmul.f32.gmra.mxu0 %v373
        %v1775 = vpop.f32.mrf.mxu0
        %v1776 = vadd.f32 %v1756, %v1775
        %1777 = vdwg.mxu0
        %1778 = vmatpush.msra.mxu0 %v624
        %1779 = vmatpush.msra.mxu0 %v608
        %1780 = vmatpush.msra.mxu0 %v592
        %1781 = vmatpush.msra.mxu0 %v576
        %1782 = vmatpush.msra.mxu0 %v560
        %1783 = vmatpush.msra.mxu0 %v544
        %1784 = vmatpush.msra.mxu0 %v528
        %1785 = vmatpush.msra.mxu0 %v512
        %1786 = vmatpush.msra.mxu0 %v496
        %1787 = vmatpush.msra.mxu0 %v480
        %1788 = vmatpush.msra.mxu0 %v464
        %1789 = vmatpush.msra.mxu0 %v448
        %1790 = vmatpush.msra.mxu0 %v432
        %1791 = vmatpush.msra.mxu0 %v416
        %1792 = vmatpush.msra.mxu0 %v400
        %1793 = vmatpush.msra.mxu0 %v384
        %1794 = vmatmul.f32.gmra.mxu0 %v371
        %v1795 = vpop.f32.mrf.mxu0
        %v1796 = vadd.f32 %v1156, %v1795
        %1797 = vdwg.mxu0
        %1798 = vmatpush.msra.mxu0 %v880
        %1799 = vmatpush.msra.mxu0 %v864
        %1800 = vmatpush.msra.mxu0 %v848
        %1801 = vmatpush.msra.mxu0 %v832
        %1802 = vmatpush.msra.mxu0 %v816
        %1803 = vmatpush.msra.mxu0 %v800
        %1804 = vmatpush.msra.mxu0 %v784
        %1805 = vmatpush.msra.mxu0 %v768
        %1806 = vmatpush.msra.mxu0 %v752
        %1807 = vmatpush.msra.mxu0 %v736
        %1808 = vmatpush.msra.mxu0 %v720
        %1809 = vmatpush.msra.mxu0 %v704
        %1810 = vmatpush.msra.mxu0 %v688
        %1811 = vmatpush.msra.mxu0 %v672
        %1812 = vmatpush.msra.mxu0 %v656
        %1813 = vmatpush.msra.mxu0 %v640
        %1814 = vmatmul.f32.gmra.mxu0 %v372
        %v1815 = vpop.f32.mrf.mxu0
        %v1816 = vadd.f32 %v1796, %v1815
        %1817 = vdwg.mxu0
        %1818 = vmatpush.msra.mxu0 %v1136
        %1819 = vmatpush.msra.mxu0 %v1120
        %1820 = vmatpush.msra.mxu0 %v1104
        %1821 = vmatpush.msra.mxu0 %v1088
        %1822 = vmatpush.msra.mxu0 %v1072
        %1823 = vmatpush.msra.mxu0 %v1056
        %1824 = vmatpush.msra.mxu0 %v1040
        %1825 = vmatpush.msra.mxu0 %v1024
        %1826 = vmatpush.msra.mxu0 %v1008
        %1827 = vmatpush.msra.mxu0 %v992
        %1828 = vmatpush.msra.mxu0 %v976
        %1829 = vmatpush.msra.mxu0 %v960
        %1830 = vmatpush.msra.mxu0 %v944
        %1831 = vmatpush.msra.mxu0 %v928
        %1832 = vmatpush.msra.mxu0 %v912
        %1833 = vmatpush.msra.mxu0 %v896
        %1834 = vmatmul.f32.gmra.mxu0 %v373
        %v1835 = vpop.f32.mrf.mxu0
        %v1836 = vadd.f32 %v1816, %v1835
        %1837 = vdwg.mxu0
        %1838 = vmatpush.msra.mxu0 %v625
        %1839 = vmatpush.msra.mxu0 %v609
        %1840 = vmatpush.msra.mxu0 %v593
        %1841 = vmatpush.msra.mxu0 %v577
        %1842 = vmatpush.msra.mxu0 %v561
        %1843 = vmatpush.msra.mxu0 %v545
        %1844 = vmatpush.msra.mxu0 %v529
        %1845 = vmatpush.msra.mxu0 %v513
        %1846 = vmatpush.msra.mxu0 %v497
        %1847 = vmatpush.msra.mxu0 %v481
        %1848 = vmatpush.msra.mxu0 %v465
        %1849 = vmatpush.msra.mxu0 %v449
        %1850 = vmatpush.msra.mxu0 %v433
        %1851 = vmatpush.msra.mxu0 %v417
        %1852 = vmatpush.msra.mxu0 %v401
        %1853 = vmatpush.msra.mxu0 %v385
        %1854 = vmatmul.f32.gmra.mxu0 %v371
        %v1855 = vpop.f32.mrf.mxu0
        %v1856 = vadd.f32 %v1157, %v1855
        %1857 = vdwg.mxu0
        %1858 = vmatpush.msra.mxu0 %v881
        %1859 = vmatpush.msra.mxu0 %v865
        %1860 = vmatpush.msra.mxu0 %v849
        %1861 = vmatpush.msra.mxu0 %v833
        %1862 = vmatpush.msra.mxu0 %v817
        %1863 = vmatpush.msra.mxu0 %v801
        %1864 = vmatpush.msra.mxu0 %v785
        %1865 = vmatpush.msra.mxu0 %v769
        %1866 = vmatpush.msra.mxu0 %v753
        %1867 = vmatpush.msra.mxu0 %v737
        %1868 = vmatpush.msra.mxu0 %v721
        %1869 = vmatpush.msra.mxu0 %v705
        %1870 = vmatpush.msra.mxu0 %v689
        %1871 = vmatpush.msra.mxu0 %v673
        %1872 = vmatpush.msra.mxu0 %v657
        %1873 = vmatpush.msra.mxu0 %v641
        %1874 = vmatmul.f32.gmra.mxu0 %v372
        %v1875 = vpop.f32.mrf.mxu0
        %v1876 = vadd.f32 %v1856, %v1875
        %1877 = vdwg.mxu0
        %1878 = vmatpush.msra.mxu0 %v1137
        %1879 = vmatpush.msra.mxu0 %v1121
        %1880 = vmatpush.msra.mxu0 %v1105
        %1881 = vmatpush.msra.mxu0 %v1089
        %1882 = vmatpush.msra.mxu0 %v1073
        %1883 = vmatpush.msra.mxu0 %v1057
        %1884 = vmatpush.msra.mxu0 %v1041
        %1885 = vmatpush.msra.mxu0 %v1025
        %1886 = vmatpush.msra.mxu0 %v1009
        %1887 = vmatpush.msra.mxu0 %v993
        %1888 = vmatpush.msra.mxu0 %v977
        %1889 = vmatpush.msra.mxu0 %v961
        %1890 = vmatpush.msra.mxu0 %v945
        %1891 = vmatpush.msra.mxu0 %v929
        %1892 = vmatpush.msra.mxu0 %v913
        %1893 = vmatpush.msra.mxu0 %v897
        %1894 = vmatmul.f32.gmra.mxu0 %v373
        %v1895 = vpop.f32.mrf.mxu0
        %v1896 = vadd.f32 %v1876, %v1895
        %1897 = vdwg.mxu0
        %1898 = vmatpush.msra.mxu0 %v626
        %1899 = vmatpush.msra.mxu0 %v610
        %1900 = vmatpush.msra.mxu0 %v594
        %1901 = vmatpush.msra.mxu0 %v578
        %1902 = vmatpush.msra.mxu0 %v562
        %1903 = vmatpush.msra.mxu0 %v546
        %1904 = vmatpush.msra.mxu0 %v530
        %1905 = vmatpush.msra.mxu0 %v514
        %1906 = vmatpush.msra.mxu0 %v498
        %1907 = vmatpush.msra.mxu0 %v482
        %1908 = vmatpush.msra.mxu0 %v466
        %1909 = vmatpush.msra.mxu0 %v450
        %1910 = vmatpush.msra.mxu0 %v434
        %1911 = vmatpush.msra.mxu0 %v418
        %1912 = vmatpush.msra.mxu0 %v402
        %1913 = vmatpush.msra.mxu0 %v386
        %1914 = vmatmul.f32.gmra.mxu0 %v371
        %v1915 = vpop.f32.mrf.mxu0
        %v1916 = vadd.f32 %v1158, %v1915
        %1917 = vdwg.mxu0
        %1918 = vmatpush.msra.mxu0 %v882
        %1919 = vmatpush.msra.mxu0 %v866
        %1920 = vmatpush.msra.mxu0 %v850
        %1921 = vmatpush.msra.mxu0 %v834
        %1922 = vmatpush.msra.mxu0 %v818
        %1923 = vmatpush.msra.mxu0 %v802
        %1924 = vmatpush.msra.mxu0 %v786
        %1925 = vmatpush.msra.mxu0 %v770
        %1926 = vmatpush.msra.mxu0 %v754
        %1927 = vmatpush.msra.mxu0 %v738
        %1928 = vmatpush.msra.mxu0 %v722
        %1929 = vmatpush.msra.mxu0 %v706
        %1930 = vmatpush.msra.mxu0 %v690
        %1931 = vmatpush.msra.mxu0 %v674
        %1932 = vmatpush.msra.mxu0 %v658
        %1933 = vmatpush.msra.mxu0 %v642
        %1934 = vmatmul.f32.gmra.mxu0 %v372
        %v1935 = vpop.f32.mrf.mxu0
        %v1936 = vadd.f32 %v1916, %v1935
        %1937 = vdwg.mxu0
        %1938 = vmatpush.msra.mxu0 %v1138
        %1939 = vmatpush.msra.mxu0 %v1122
        %1940 = vmatpush.msra.mxu0 %v1106
        %1941 = vmatpush.msra.mxu0 %v1090
        %1942 = vmatpush.msra.mxu0 %v1074
        %1943 = vmatpush.msra.mxu0 %v1058
        %1944 = vmatpush.msra.mxu0 %v1042
        %1945 = vmatpush.msra.mxu0 %v1026
        %1946 = vmatpush.msra.mxu0 %v1010
        %1947 = vmatpush.msra.mxu0 %v994
        %1948 = vmatpush.msra.mxu0 %v978
        %1949 = vmatpush.msra.mxu0 %v962
        %1950 = vmatpush.msra.mxu0 %v946
        %1951 = vmatpush.msra.mxu0 %v930
        %1952 = vmatpush.msra.mxu0 %v914
        %1953 = vmatpush.msra.mxu0 %v898
        %1954 = vmatmul.f32.gmra.mxu0 %v373
        %v1955 = vpop.f32.mrf.mxu0
        %v1956 = vadd.f32 %v1936, %v1955
        %1957 = vdwg.mxu0
        %1958 = vmatpush.msra.mxu0 %v627
        %1959 = vmatpush.msra.mxu0 %v611
        %1960 = vmatpush.msra.mxu0 %v595
        %1961 = vmatpush.msra.mxu0 %v579
        %1962 = vmatpush.msra.mxu0 %v563
        %1963 = vmatpush.msra.mxu0 %v547
        %1964 = vmatpush.msra.mxu0 %v531
        %1965 = vmatpush.msra.mxu0 %v515
        %1966 = vmatpush.msra.mxu0 %v499
        %1967 = vmatpush.msra.mxu0 %v483
        %1968 = vmatpush.msra.mxu0 %v467
        %1969 = vmatpush.msra.mxu0 %v451
        %1970 = vmatpush.msra.mxu0 %v435
        %1971 = vmatpush.msra.mxu0 %v419
        %1972 = vmatpush.msra.mxu0 %v403
        %1973 = vmatpush.msra.mxu0 %v387
        %1974 = vmatmul.f32.gmra.mxu0 %v371
        %v1975 = vpop.f32.mrf.mxu0
        %v1976 = vadd.f32 %v1159, %v1975
        %1977 = vdwg.mxu0
        %1978 = vmatpush.msra.mxu0 %v883
        %1979 = vmatpush.msra.mxu0 %v867
        %1980 = vmatpush.msra.mxu0 %v851
        %1981 = vmatpush.msra.mxu0 %v835
        %1982 = vmatpush.msra.mxu0 %v819
        %1983 = vmatpush.msra.mxu0 %v803
        %1984 = vmatpush.msra.mxu0 %v787
        %1985 = vmatpush.msra.mxu0 %v771
        %1986 = vmatpush.msra.mxu0 %v755
        %1987 = vmatpush.msra.mxu0 %v739
        %1988 = vmatpush.msra.mxu0 %v723
        %1989 = vmatpush.msra.mxu0 %v707
        %1990 = vmatpush.msra.mxu0 %v691
        %1991 = vmatpush.msra.mxu0 %v675
        %1992 = vmatpush.msra.mxu0 %v659
        %1993 = vmatpush.msra.mxu0 %v643
        %1994 = vmatmul.f32.gmra.mxu0 %v372
        %v1995 = vpop.f32.mrf.mxu0
        %v1996 = vadd.f32 %v1976, %v1995
        %1997 = vdwg.mxu0
        %1998 = vmatpush.msra.mxu0 %v1139
        %1999 = vmatpush.msra.mxu0 %v1123
        %2000 = vmatpush.msra.mxu0 %v1107
        %2001 = vmatpush.msra.mxu0 %v1091
        %2002 = vmatpush.msra.mxu0 %v1075
        %2003 = vmatpush.msra.mxu0 %v1059
        %2004 = vmatpush.msra.mxu0 %v1043
        %2005 = vmatpush.msra.mxu0 %v1027
        %2006 = vmatpush.msra.mxu0 %v1011
        %2007 = vmatpush.msra.mxu0 %v995
        %2008 = vmatpush.msra.mxu0 %v979
        %2009 = vmatpush.msra.mxu0 %v963
        %2010 = vmatpush.msra.mxu0 %v947
        %2011 = vmatpush.msra.mxu0 %v931
        %2012 = vmatpush.msra.mxu0 %v915
        %2013 = vmatpush.msra.mxu0 %v899
        %2014 = vmatmul.f32.gmra.mxu0 %v373
        %v2015 = vpop.f32.mrf.mxu0
        %v2016 = vadd.f32 %v1996, %v2015
        %2017 = vdwg.mxu0
        %2018 = vmatpush.msra.mxu0 %v628
        %2019 = vmatpush.msra.mxu0 %v612
        %2020 = vmatpush.msra.mxu0 %v596
        %2021 = vmatpush.msra.mxu0 %v580
        %2022 = vmatpush.msra.mxu0 %v564
        %2023 = vmatpush.msra.mxu0 %v548
        %2024 = vmatpush.msra.mxu0 %v532
        %2025 = vmatpush.msra.mxu0 %v516
        %2026 = vmatpush.msra.mxu0 %v500
        %2027 = vmatpush.msra.mxu0 %v484
        %2028 = vmatpush.msra.mxu0 %v468
        %2029 = vmatpush.msra.mxu0 %v452
        %2030 = vmatpush.msra.mxu0 %v436
        %2031 = vmatpush.msra.mxu0 %v420
        %2032 = vmatpush.msra.mxu0 %v404
        %2033 = vmatpush.msra.mxu0 %v388
        %2034 = vmatmul.f32.gmra.mxu0 %v371
        %v2035 = vpop.f32.mrf.mxu0
        %v2036 = vadd.f32 %v1160, %v2035
        %2037 = vdwg.mxu0
        %2038 = vmatpush.msra.mxu0 %v884
        %2039 = vmatpush.msra.mxu0 %v868
        %2040 = vmatpush.msra.mxu0 %v852
        %2041 = vmatpush.msra.mxu0 %v836
        %2042 = vmatpush.msra.mxu0 %v820
        %2043 = vmatpush.msra.mxu0 %v804
        %2044 = vmatpush.msra.mxu0 %v788
        %2045 = vmatpush.msra.mxu0 %v772
        %2046 = vmatpush.msra.mxu0 %v756
        %2047 = vmatpush.msra.mxu0 %v740
        %2048 = vmatpush.msra.mxu0 %v724
        %2049 = vmatpush.msra.mxu0 %v708
        %2050 = vmatpush.msra.mxu0 %v692
        %2051 = vmatpush.msra.mxu0 %v676
        %2052 = vmatpush.msra.mxu0 %v660
        %2053 = vmatpush.msra.mxu0 %v644
        %2054 = vmatmul.f32.gmra.mxu0 %v372
        %v2055 = vpop.f32.mrf.mxu0
        %v2056 = vadd.f32 %v2036, %v2055
        %2057 = vdwg.mxu0
        %2058 = vmatpush.msra.mxu0 %v1140
        %2059 = vmatpush.msra.mxu0 %v1124
        %2060 = vmatpush.msra.mxu0 %v1108
        %2061 = vmatpush.msra.mxu0 %v1092
        %2062 = vmatpush.msra.mxu0 %v1076
        %2063 = vmatpush.msra.mxu0 %v1060
        %2064 = vmatpush.msra.mxu0 %v1044
        %2065 = vmatpush.msra.mxu0 %v1028
        %2066 = vmatpush.msra.mxu0 %v1012
        %2067 = vmatpush.msra.mxu0 %v996
        %2068 = vmatpush.msra.mxu0 %v980
        %2069 = vmatpush.msra.mxu0 %v964
        %2070 = vmatpush.msra.mxu0 %v948
        %2071 = vmatpush.msra.mxu0 %v932
        %2072 = vmatpush.msra.mxu0 %v916
        %2073 = vmatpush.msra.mxu0 %v900
        %2074 = vmatmul.f32.gmra.mxu0 %v373
        %v2075 = vpop.f32.mrf.mxu0
        %v2076 = vadd.f32 %v2056, %v2075
        %2077 = vdwg.mxu0
        %2078 = vmatpush.msra.mxu0 %v629
        %2079 = vmatpush.msra.mxu0 %v613
        %2080 = vmatpush.msra.mxu0 %v597
        %2081 = vmatpush.msra.mxu0 %v581
        %2082 = vmatpush.msra.mxu0 %v565
        %2083 = vmatpush.msra.mxu0 %v549
        %2084 = vmatpush.msra.mxu0 %v533
        %2085 = vmatpush.msra.mxu0 %v517
        %2086 = vmatpush.msra.mxu0 %v501
        %2087 = vmatpush.msra.mxu0 %v485
        %2088 = vmatpush.msra.mxu0 %v469
        %2089 = vmatpush.msra.mxu0 %v453
        %2090 = vmatpush.msra.mxu0 %v437
        %2091 = vmatpush.msra.mxu0 %v421
        %2092 = vmatpush.msra.mxu0 %v405
        %2093 = vmatpush.msra.mxu0 %v389
        %2094 = vmatmul.f32.gmra.mxu0 %v371
        %v2095 = vpop.f32.mrf.mxu0
        %v2096 = vadd.f32 %v1161, %v2095
        %2097 = vdwg.mxu0
        %2098 = vmatpush.msra.mxu0 %v885
        %2099 = vmatpush.msra.mxu0 %v869
        %2100 = vmatpush.msra.mxu0 %v853
        %2101 = vmatpush.msra.mxu0 %v837
        %2102 = vmatpush.msra.mxu0 %v821
        %2103 = vmatpush.msra.mxu0 %v805
        %2104 = vmatpush.msra.mxu0 %v789
        %2105 = vmatpush.msra.mxu0 %v773
        %2106 = vmatpush.msra.mxu0 %v757
        %2107 = vmatpush.msra.mxu0 %v741
        %2108 = vmatpush.msra.mxu0 %v725
        %2109 = vmatpush.msra.mxu0 %v709
        %2110 = vmatpush.msra.mxu0 %v693
        %2111 = vmatpush.msra.mxu0 %v677
        %2112 = vmatpush.msra.mxu0 %v661
        %2113 = vmatpush.msra.mxu0 %v645
        %2114 = vmatmul.f32.gmra.mxu0 %v372
        %v2115 = vpop.f32.mrf.mxu0
        %v2116 = vadd.f32 %v2096, %v2115
        %2117 = vdwg.mxu0
        %2118 = vmatpush.msra.mxu0 %v1141
        %2119 = vmatpush.msra.mxu0 %v1125
        %2120 = vmatpush.msra.mxu0 %v1109
        %2121 = vmatpush.msra.mxu0 %v1093
        %2122 = vmatpush.msra.mxu0 %v1077
        %2123 = vmatpush.msra.mxu0 %v1061
        %2124 = vmatpush.msra.mxu0 %v1045
        %2125 = vmatpush.msra.mxu0 %v1029
        %2126 = vmatpush.msra.mxu0 %v1013
        %2127 = vmatpush.msra.mxu0 %v997
        %2128 = vmatpush.msra.mxu0 %v981
        %2129 = vmatpush.msra.mxu0 %v965
        %2130 = vmatpush.msra.mxu0 %v949
        %2131 = vmatpush.msra.mxu0 %v933
        %2132 = vmatpush.msra.mxu0 %v917
        %2133 = vmatpush.msra.mxu0 %v901
        %2134 = vmatmul.f32.gmra.mxu0 %v373
        %v2135 = vpop.f32.mrf.mxu0
        %v2136 = vadd.f32 %v2116, %v2135
        %2137 = vdwg.mxu0
        %v2138 = vmax.f32 %v1236, 0.0
        %v2139 = vmax.f32 %v1296, 0.0
        %v2140 = vmax.f32 %v1356, 0.0
        %v2141 = vmax.f32 %v1416, 0.0
        %v2142 = vmax.f32 %v1476, 0.0
        %v2143 = vmax.f32 %v1536, 0.0
        %v2144 = vmax.f32 %v1596, 0.0
        %v2145 = vmax.f32 %v1656, 0.0
        %v2146 = vmax.f32 %v1716, 0.0
        %v2147 = vmax.f32 %v1776, 0.0
        %v2148 = vmax.f32 %v1836, 0.0
        %v2149 = vmax.f32 %v1896, 0.0
        %v2150 = vmax.f32 %v1956, 0.0
        %v2151 = vmax.f32 %v2016, 0.0
        %v2152 = vmax.f32 %v2076, 0.0
        %v2153 = vmax.f32 %v2136, 0.0
        %v2154 = vld [vmem:[#allocation6] sm:$0xff]
        %v2155 = vld [vmem:[#allocation6 + $0x8] sm:$0xff]
        %v2156 = vld [vmem:[#allocation6 + $0x10] sm:$0xff]
        %v2157 = vld [vmem:[#allocation6 + $0x18] sm:$0xff]
        %v2158 = vld [vmem:[#allocation6 + $0x20] sm:$0xff]
        %v2159 = vld [vmem:[#allocation6 + $0x28] sm:$0xff]
        %v2160 = vld [vmem:[#allocation6 + $0x30] sm:$0xff]
        %v2161 = vld [vmem:[#allocation6 + $0x38] sm:$0xff]
        %v2162 = vld [vmem:[#allocation6 + $0x40] sm:$0xff]
        %v2163 = vld [vmem:[#allocation6 + $0x48] sm:$0xff]
        %v2164 = vld [vmem:[#allocation6 + $0x50] sm:$0xff]
        %v2165 = vld [vmem:[#allocation6 + $0x58] sm:$0xff]
        %v2166 = vld [vmem:[#allocation6 + $0x60] sm:$0xff]
        %v2167 = vld [vmem:[#allocation6 + $0x68] sm:$0xff]
        %v2168 = vld [vmem:[#allocation6 + $0x70] sm:$0xff]
        %v2169 = vld [vmem:[#allocation6 + $0x78] sm:$0xff]
        %v2170 = vld [vmem:[#allocation6 + $0x80] sm:$0xff]
        %v2171 = vld [vmem:[#allocation6 + $0x88] sm:$0xff]
        %v2172 = vld [vmem:[#allocation6 + $0x90] sm:$0xff]
        %v2173 = vld [vmem:[#allocation6 + $0x98] sm:$0xff]
        %v2174 = vld [vmem:[#allocation6 + $0xa0] sm:$0xff]
        %v2175 = vld [vmem:[#allocation6 + $0xa8] sm:$0xff]
        %v2176 = vld [vmem:[#allocation6 + $0xb0] sm:$0xff]
        %v2177 = vld [vmem:[#allocation6 + $0xb8] sm:$0xff]
        %v2178 = vld [vmem:[#allocation6 + $0xc0] sm:$0xff]
        %v2179 = vld [vmem:[#allocation6 + $0xc8] sm:$0xff]
        %v2180 = vld [vmem:[#allocation6 + $0xd0] sm:$0xff]
        %v2181 = vld [vmem:[#allocation6 + $0xd8] sm:$0xff]
        %v2182 = vld [vmem:[#allocation6 + $0xe0] sm:$0xff]
        %v2183 = vld [vmem:[#allocation6 + $0xe8] sm:$0xff]
        %v2184 = vld [vmem:[#allocation6 + $0xf0] sm:$0xff]
        %v2185 = vld [vmem:[#allocation6 + $0xf8] sm:$0xff]
        %v2186 = vld [vmem:[#allocation6 + $0x100] sm:$0xff]
        %v2187 = vld [vmem:[#allocation6 + $0x108] sm:$0xff]
        %v2188 = vld [vmem:[#allocation6 + $0x110] sm:$0xff]
        %v2189 = vld [vmem:[#allocation6 + $0x118] sm:$0xff]
        %v2190 = vld [vmem:[#allocation6 + $0x120] sm:$0xff]
        %v2191 = vld [vmem:[#allocation6 + $0x128] sm:$0xff]
        %v2192 = vld [vmem:[#allocation6 + $0x130] sm:$0xff]
        %v2193 = vld [vmem:[#allocation6 + $0x138] sm:$0xff]
        %v2194 = vld [vmem:[#allocation6 + $0x140] sm:$0xff]
        %v2195 = vld [vmem:[#allocation6 + $0x148] sm:$0xff]
        %v2196 = vld [vmem:[#allocation6 + $0x150] sm:$0xff]
        %v2197 = vld [vmem:[#allocation6 + $0x158] sm:$0xff]
        %v2198 = vld [vmem:[#allocation6 + $0x160] sm:$0xff]
        %v2199 = vld [vmem:[#allocation6 + $0x168] sm:$0xff]
        %v2200 = vld [vmem:[#allocation6 + $0x170] sm:$0xff]
        %v2201 = vld [vmem:[#allocation6 + $0x178] sm:$0xff]
        %v2202 = vld [vmem:[#allocation6 + $0x180] sm:$0xff]
        %v2203 = vld [vmem:[#allocation6 + $0x188] sm:$0xff]
        %v2204 = vld [vmem:[#allocation6 + $0x190] sm:$0xff]
        %v2205 = vld [vmem:[#allocation6 + $0x198] sm:$0xff]
        %v2206 = vld [vmem:[#allocation6 + $0x1a0] sm:$0xff]
        %v2207 = vld [vmem:[#allocation6 + $0x1a8] sm:$0xff]
        %v2208 = vld [vmem:[#allocation6 + $0x1b0] sm:$0xff]
        %v2209 = vld [vmem:[#allocation6 + $0x1b8] sm:$0xff]
        %v2210 = vld [vmem:[#allocation6 + $0x1c0] sm:$0xff]
        %v2211 = vld [vmem:[#allocation6 + $0x1c8] sm:$0xff]
        %v2212 = vld [vmem:[#allocation6 + $0x1d0] sm:$0xff]
        %v2213 = vld [vmem:[#allocation6 + $0x1d8] sm:$0xff]
        %v2214 = vld [vmem:[#allocation6 + $0x1e0] sm:$0xff]
        %v2215 = vld [vmem:[#allocation6 + $0x1e8] sm:$0xff]
        %v2216 = vld [vmem:[#allocation6 + $0x1f0] sm:$0xff]
        %v2217 = vld [vmem:[#allocation6 + $0x1f8] sm:$0xff]
        %v2218 = vld [vmem:[#allocation6 + $0x200] sm:$0xff]
        %v2219 = vld [vmem:[#allocation6 + $0x208] sm:$0xff]
        %v2220 = vld [vmem:[#allocation6 + $0x210] sm:$0xff]
        %v2221 = vld [vmem:[#allocation6 + $0x218] sm:$0xff]
        %v2222 = vld [vmem:[#allocation6 + $0x220] sm:$0xff]
        %v2223 = vld [vmem:[#allocation6 + $0x228] sm:$0xff]
        %v2224 = vld [vmem:[#allocation6 + $0x230] sm:$0xff]
        %v2225 = vld [vmem:[#allocation6 + $0x238] sm:$0xff]
        %v2226 = vld [vmem:[#allocation6 + $0x240] sm:$0xff]
        %v2227 = vld [vmem:[#allocation6 + $0x248] sm:$0xff]
        %v2228 = vld [vmem:[#allocation6 + $0x250] sm:$0xff]
        %v2229 = vld [vmem:[#allocation6 + $0x258] sm:$0xff]
        %v2230 = vld [vmem:[#allocation6 + $0x260] sm:$0xff]
        %v2231 = vld [vmem:[#allocation6 + $0x268] sm:$0xff]
        %v2232 = vld [vmem:[#allocation6 + $0x270] sm:$0xff]
        %v2233 = vld [vmem:[#allocation6 + $0x278] sm:$0xff]
        %v2234 = vld [vmem:[#allocation6 + $0x280] sm:$0xff]
        %v2235 = vld [vmem:[#allocation6 + $0x288] sm:$0xff]
        %v2236 = vld [vmem:[#allocation6 + $0x290] sm:$0xff]
        %v2237 = vld [vmem:[#allocation6 + $0x298] sm:$0xff]
        %v2238 = vld [vmem:[#allocation6 + $0x2a0] sm:$0xff]
        %v2239 = vld [vmem:[#allocation6 + $0x2a8] sm:$0xff]
        %v2240 = vld [vmem:[#allocation6 + $0x2b0] sm:$0xff]
        %v2241 = vld [vmem:[#allocation6 + $0x2b8] sm:$0xff]
        %v2242 = vld [vmem:[#allocation6 + $0x2c0] sm:$0xff]
        %v2243 = vld [vmem:[#allocation6 + $0x2c8] sm:$0xff]
        %v2244 = vld [vmem:[#allocation6 + $0x2d0] sm:$0xff]
        %v2245 = vld [vmem:[#allocation6 + $0x2d8] sm:$0xff]
        %v2246 = vld [vmem:[#allocation6 + $0x2e0] sm:$0xff]
        %v2247 = vld [vmem:[#allocation6 + $0x2e8] sm:$0xff]
        %v2248 = vld [vmem:[#allocation6 + $0x2f0] sm:$0xff]
        %v2249 = vld [vmem:[#allocation6 + $0x2f8] sm:$0xff]
        %v2250 = vld [vmem:[#allocation6 + $0x300] sm:$0xff]
        %v2251 = vld [vmem:[#allocation6 + $0x308] sm:$0xff]
        %v2252 = vld [vmem:[#allocation6 + $0x310] sm:$0xff]
        %v2253 = vld [vmem:[#allocation6 + $0x318] sm:$0xff]
        %v2254 = vld [vmem:[#allocation6 + $0x320] sm:$0xff]
        %v2255 = vld [vmem:[#allocation6 + $0x328] sm:$0xff]
        %v2256 = vld [vmem:[#allocation6 + $0x330] sm:$0xff]
        %v2257 = vld [vmem:[#allocation6 + $0x338] sm:$0xff]
        %v2258 = vld [vmem:[#allocation6 + $0x340] sm:$0xff]
        %v2259 = vld [vmem:[#allocation6 + $0x348] sm:$0xff]
        %v2260 = vld [vmem:[#allocation6 + $0x350] sm:$0xff]
        %v2261 = vld [vmem:[#allocation6 + $0x358] sm:$0xff]
        %v2262 = vld [vmem:[#allocation6 + $0x360] sm:$0xff]
        %v2263 = vld [vmem:[#allocation6 + $0x368] sm:$0xff]
        %v2264 = vld [vmem:[#allocation6 + $0x370] sm:$0xff]
        %v2265 = vld [vmem:[#allocation6 + $0x378] sm:$0xff]
        %v2266 = vld [vmem:[#allocation6 + $0x380] sm:$0xff]
        %v2267 = vld [vmem:[#allocation6 + $0x388] sm:$0xff]
        %v2268 = vld [vmem:[#allocation6 + $0x390] sm:$0xff]
        %v2269 = vld [vmem:[#allocation6 + $0x398] sm:$0xff]
        %v2270 = vld [vmem:[#allocation6 + $0x3a0] sm:$0xff]
        %v2271 = vld [vmem:[#allocation6 + $0x3a8] sm:$0xff]
        %v2272 = vld [vmem:[#allocation6 + $0x3b0] sm:$0xff]
        %v2273 = vld [vmem:[#allocation6 + $0x3b8] sm:$0xff]
        %v2274 = vld [vmem:[#allocation6 + $0x3c0] sm:$0xff]
        %v2275 = vld [vmem:[#allocation6 + $0x3c8] sm:$0xff]
        %v2276 = vld [vmem:[#allocation6 + $0x3d0] sm:$0xff]
        %v2277 = vld [vmem:[#allocation6 + $0x3d8] sm:$0xff]
        %v2278 = vld [vmem:[#allocation6 + $0x3e0] sm:$0xff]
        %v2279 = vld [vmem:[#allocation6 + $0x3e8] sm:$0xff]
        %v2280 = vld [vmem:[#allocation6 + $0x3f0] sm:$0xff]
        %v2281 = vld [vmem:[#allocation6 + $0x3f8] sm:$0xff]
        %v2282 = vld [vmem:[#allocation6 + $0x400] sm:$0xff]
        %v2283 = vld [vmem:[#allocation6 + $0x408] sm:$0xff]
        %v2284 = vld [vmem:[#allocation6 + $0x410] sm:$0xff]
        %v2285 = vld [vmem:[#allocation6 + $0x418] sm:$0xff]
        %v2286 = vld [vmem:[#allocation6 + $0x420] sm:$0xff]
        %v2287 = vld [vmem:[#allocation6 + $0x428] sm:$0xff]
        %v2288 = vld [vmem:[#allocation6 + $0x430] sm:$0xff]
        %v2289 = vld [vmem:[#allocation6 + $0x438] sm:$0xff]
        %v2290 = vld [vmem:[#allocation6 + $0x440] sm:$0xff]
        %v2291 = vld [vmem:[#allocation6 + $0x448] sm:$0xff]
        %v2292 = vld [vmem:[#allocation6 + $0x450] sm:$0xff]
        %v2293 = vld [vmem:[#allocation6 + $0x458] sm:$0xff]
        %v2294 = vld [vmem:[#allocation6 + $0x460] sm:$0xff]
        %v2295 = vld [vmem:[#allocation6 + $0x468] sm:$0xff]
        %v2296 = vld [vmem:[#allocation6 + $0x470] sm:$0xff]
        %v2297 = vld [vmem:[#allocation6 + $0x478] sm:$0xff]
        %v2298 = vld [vmem:[#allocation6 + $0x480] sm:$0xff]
        %v2299 = vld [vmem:[#allocation6 + $0x488] sm:$0xff]
        %v2300 = vld [vmem:[#allocation6 + $0x490] sm:$0xff]
        %v2301 = vld [vmem:[#allocation6 + $0x498] sm:$0xff]
        %v2302 = vld [vmem:[#allocation6 + $0x4a0] sm:$0xff]
        %v2303 = vld [vmem:[#allocation6 + $0x4a8] sm:$0xff]
        %v2304 = vld [vmem:[#allocation6 + $0x4b0] sm:$0xff]
        %v2305 = vld [vmem:[#allocation6 + $0x4b8] sm:$0xff]
        %v2306 = vld [vmem:[#allocation6 + $0x4c0] sm:$0xff]
        %v2307 = vld [vmem:[#allocation6 + $0x4c8] sm:$0xff]
        %v2308 = vld [vmem:[#allocation6 + $0x4d0] sm:$0xff]
        %v2309 = vld [vmem:[#allocation6 + $0x4d8] sm:$0xff]
        %v2310 = vld [vmem:[#allocation6 + $0x4e0] sm:$0xff]
        %v2311 = vld [vmem:[#allocation6 + $0x4e8] sm:$0xff]
        %v2312 = vld [vmem:[#allocation6 + $0x4f0] sm:$0xff]
        %v2313 = vld [vmem:[#allocation6 + $0x4f8] sm:$0xff]
        %v2314 = vld [vmem:[#allocation6 + $0x500] sm:$0xff]
        %v2315 = vld [vmem:[#allocation6 + $0x508] sm:$0xff]
        %v2316 = vld [vmem:[#allocation6 + $0x510] sm:$0xff]
        %v2317 = vld [vmem:[#allocation6 + $0x518] sm:$0xff]
        %v2318 = vld [vmem:[#allocation6 + $0x520] sm:$0xff]
        %v2319 = vld [vmem:[#allocation6 + $0x528] sm:$0xff]
        %v2320 = vld [vmem:[#allocation6 + $0x530] sm:$0xff]
        %v2321 = vld [vmem:[#allocation6 + $0x538] sm:$0xff]
        %v2322 = vld [vmem:[#allocation6 + $0x540] sm:$0xff]
        %v2323 = vld [vmem:[#allocation6 + $0x548] sm:$0xff]
        %v2324 = vld [vmem:[#allocation6 + $0x550] sm:$0xff]
        %v2325 = vld [vmem:[#allocation6 + $0x558] sm:$0xff]
        %v2326 = vld [vmem:[#allocation6 + $0x560] sm:$0xff]
        %v2327 = vld [vmem:[#allocation6 + $0x568] sm:$0xff]
        %v2328 = vld [vmem:[#allocation6 + $0x570] sm:$0xff]
        %v2329 = vld [vmem:[#allocation6 + $0x578] sm:$0xff]
        %v2330 = vld [vmem:[#allocation6 + $0x580] sm:$0xff]
        %v2331 = vld [vmem:[#allocation6 + $0x588] sm:$0xff]
        %v2332 = vld [vmem:[#allocation6 + $0x590] sm:$0xff]
        %v2333 = vld [vmem:[#allocation6 + $0x598] sm:$0xff]
        %v2334 = vld [vmem:[#allocation6 + $0x5a0] sm:$0xff]
        %v2335 = vld [vmem:[#allocation6 + $0x5a8] sm:$0xff]
        %v2336 = vld [vmem:[#allocation6 + $0x5b0] sm:$0xff]
        %v2337 = vld [vmem:[#allocation6 + $0x5b8] sm:$0xff]
        %v2338 = vld [vmem:[#allocation6 + $0x5c0] sm:$0xff]
        %v2339 = vld [vmem:[#allocation6 + $0x5c8] sm:$0xff]
        %v2340 = vld [vmem:[#allocation6 + $0x5d0] sm:$0xff]
        %v2341 = vld [vmem:[#allocation6 + $0x5d8] sm:$0xff]
        %v2342 = vld [vmem:[#allocation6 + $0x5e0] sm:$0xff]
        %v2343 = vld [vmem:[#allocation6 + $0x5e8] sm:$0xff]
        %v2344 = vld [vmem:[#allocation6 + $0x5f0] sm:$0xff]
        %v2345 = vld [vmem:[#allocation6 + $0x5f8] sm:$0xff]
        %v2346 = vld [vmem:[#allocation6 + $0x600] sm:$0xff]
        %v2347 = vld [vmem:[#allocation6 + $0x608] sm:$0xff]
        %v2348 = vld [vmem:[#allocation6 + $0x610] sm:$0xff]
        %v2349 = vld [vmem:[#allocation6 + $0x618] sm:$0xff]
        %v2350 = vld [vmem:[#allocation6 + $0x620] sm:$0xff]
        %v2351 = vld [vmem:[#allocation6 + $0x628] sm:$0xff]
        %v2352 = vld [vmem:[#allocation6 + $0x630] sm:$0xff]
        %v2353 = vld [vmem:[#allocation6 + $0x638] sm:$0xff]
        %v2354 = vld [vmem:[#allocation6 + $0x640] sm:$0xff]
        %v2355 = vld [vmem:[#allocation6 + $0x648] sm:$0xff]
        %v2356 = vld [vmem:[#allocation6 + $0x650] sm:$0xff]
        %v2357 = vld [vmem:[#allocation6 + $0x658] sm:$0xff]
        %v2358 = vld [vmem:[#allocation6 + $0x660] sm:$0xff]
        %v2359 = vld [vmem:[#allocation6 + $0x668] sm:$0xff]
        %v2360 = vld [vmem:[#allocation6 + $0x670] sm:$0xff]
        %v2361 = vld [vmem:[#allocation6 + $0x678] sm:$0xff]
        %v2362 = vld [vmem:[#allocation6 + $0x680] sm:$0xff]
        %v2363 = vld [vmem:[#allocation6 + $0x688] sm:$0xff]
        %v2364 = vld [vmem:[#allocation6 + $0x690] sm:$0xff]
        %v2365 = vld [vmem:[#allocation6 + $0x698] sm:$0xff]
        %v2366 = vld [vmem:[#allocation6 + $0x6a0] sm:$0xff]
        %v2367 = vld [vmem:[#allocation6 + $0x6a8] sm:$0xff]
        %v2368 = vld [vmem:[#allocation6 + $0x6b0] sm:$0xff]
        %v2369 = vld [vmem:[#allocation6 + $0x6b8] sm:$0xff]
        %v2370 = vld [vmem:[#allocation6 + $0x6c0] sm:$0xff]
        %v2371 = vld [vmem:[#allocation6 + $0x6c8] sm:$0xff]
        %v2372 = vld [vmem:[#allocation6 + $0x6d0] sm:$0xff]
        %v2373 = vld [vmem:[#allocation6 + $0x6d8] sm:$0xff]
        %v2374 = vld [vmem:[#allocation6 + $0x6e0] sm:$0xff]
        %v2375 = vld [vmem:[#allocation6 + $0x6e8] sm:$0xff]
        %v2376 = vld [vmem:[#allocation6 + $0x6f0] sm:$0xff]
        %v2377 = vld [vmem:[#allocation6 + $0x6f8] sm:$0xff]
        %v2378 = vld [vmem:[#allocation6 + $0x700] sm:$0xff]
        %v2379 = vld [vmem:[#allocation6 + $0x708] sm:$0xff]
        %v2380 = vld [vmem:[#allocation6 + $0x710] sm:$0xff]
        %v2381 = vld [vmem:[#allocation6 + $0x718] sm:$0xff]
        %v2382 = vld [vmem:[#allocation6 + $0x720] sm:$0xff]
        %v2383 = vld [vmem:[#allocation6 + $0x728] sm:$0xff]
        %v2384 = vld [vmem:[#allocation6 + $0x730] sm:$0xff]
        %v2385 = vld [vmem:[#allocation6 + $0x738] sm:$0xff]
        %v2386 = vld [vmem:[#allocation6 + $0x740] sm:$0xff]
        %v2387 = vld [vmem:[#allocation6 + $0x748] sm:$0xff]
        %v2388 = vld [vmem:[#allocation6 + $0x750] sm:$0xff]
        %v2389 = vld [vmem:[#allocation6 + $0x758] sm:$0xff]
        %v2390 = vld [vmem:[#allocation6 + $0x760] sm:$0xff]
        %v2391 = vld [vmem:[#allocation6 + $0x768] sm:$0xff]
        %v2392 = vld [vmem:[#allocation6 + $0x770] sm:$0xff]
        %v2393 = vld [vmem:[#allocation6 + $0x778] sm:$0xff]
        %v2394 = vld [vmem:[#allocation6 + $0x780] sm:$0xff]
        %v2395 = vld [vmem:[#allocation6 + $0x788] sm:$0xff]
        %v2396 = vld [vmem:[#allocation6 + $0x790] sm:$0xff]
        %v2397 = vld [vmem:[#allocation6 + $0x798] sm:$0xff]
        %v2398 = vld [vmem:[#allocation6 + $0x7a0] sm:$0xff]
        %v2399 = vld [vmem:[#allocation6 + $0x7a8] sm:$0xff]
        %v2400 = vld [vmem:[#allocation6 + $0x7b0] sm:$0xff]
        %v2401 = vld [vmem:[#allocation6 + $0x7b8] sm:$0xff]
        %v2402 = vld [vmem:[#allocation6 + $0x7c0] sm:$0xff]
        %v2403 = vld [vmem:[#allocation6 + $0x7c8] sm:$0xff]
        %v2404 = vld [vmem:[#allocation6 + $0x7d0] sm:$0xff]
        %v2405 = vld [vmem:[#allocation6 + $0x7d8] sm:$0xff]
        %v2406 = vld [vmem:[#allocation6 + $0x7e0] sm:$0xff]
        %v2407 = vld [vmem:[#allocation6 + $0x7e8] sm:$0xff]
        %v2408 = vld [vmem:[#allocation6 + $0x7f0] sm:$0xff]
        %v2409 = vld [vmem:[#allocation6 + $0x7f8] sm:$0xff]
        %v2410 = vld [vmem:[#allocation6 + $0x800] sm:$0xff]
        %v2411 = vld [vmem:[#allocation6 + $0x808] sm:$0xff]
        %v2412 = vld [vmem:[#allocation6 + $0x810] sm:$0xff]
        %v2413 = vld [vmem:[#allocation6 + $0x818] sm:$0xff]
        %v2414 = vld [vmem:[#allocation6 + $0x820] sm:$0xff]
        %v2415 = vld [vmem:[#allocation6 + $0x828] sm:$0xff]
        %v2416 = vld [vmem:[#allocation6 + $0x830] sm:$0xff]
        %v2417 = vld [vmem:[#allocation6 + $0x838] sm:$0xff]
        %v2418 = vld [vmem:[#allocation6 + $0x840] sm:$0xff]
        %v2419 = vld [vmem:[#allocation6 + $0x848] sm:$0xff]
        %v2420 = vld [vmem:[#allocation6 + $0x850] sm:$0xff]
        %v2421 = vld [vmem:[#allocation6 + $0x858] sm:$0xff]
        %v2422 = vld [vmem:[#allocation6 + $0x860] sm:$0xff]
        %v2423 = vld [vmem:[#allocation6 + $0x868] sm:$0xff]
        %v2424 = vld [vmem:[#allocation6 + $0x870] sm:$0xff]
        %v2425 = vld [vmem:[#allocation6 + $0x878] sm:$0xff]
        %v2426 = vld [vmem:[#allocation6 + $0x880] sm:$0xff]
        %v2427 = vld [vmem:[#allocation6 + $0x888] sm:$0xff]
        %v2428 = vld [vmem:[#allocation6 + $0x890] sm:$0xff]
        %v2429 = vld [vmem:[#allocation6 + $0x898] sm:$0xff]
        %v2430 = vld [vmem:[#allocation6 + $0x8a0] sm:$0xff]
        %v2431 = vld [vmem:[#allocation6 + $0x8a8] sm:$0xff]
        %v2432 = vld [vmem:[#allocation6 + $0x8b0] sm:$0xff]
        %v2433 = vld [vmem:[#allocation6 + $0x8b8] sm:$0xff]
        %v2434 = vld [vmem:[#allocation6 + $0x8c0] sm:$0xff]
        %v2435 = vld [vmem:[#allocation6 + $0x8c8] sm:$0xff]
        %v2436 = vld [vmem:[#allocation6 + $0x8d0] sm:$0xff]
        %v2437 = vld [vmem:[#allocation6 + $0x8d8] sm:$0xff]
        %v2438 = vld [vmem:[#allocation6 + $0x8e0] sm:$0xff]
        %v2439 = vld [vmem:[#allocation6 + $0x8e8] sm:$0xff]
        %v2440 = vld [vmem:[#allocation6 + $0x8f0] sm:$0xff]
        %v2441 = vld [vmem:[#allocation6 + $0x8f8] sm:$0xff]
        %v2442 = vld [vmem:[#allocation6 + $0x900] sm:$0xff]
        %v2443 = vld [vmem:[#allocation6 + $0x908] sm:$0xff]
        %v2444 = vld [vmem:[#allocation6 + $0x910] sm:$0xff]
        %v2445 = vld [vmem:[#allocation6 + $0x918] sm:$0xff]
        %v2446 = vld [vmem:[#allocation6 + $0x920] sm:$0xff]
        %v2447 = vld [vmem:[#allocation6 + $0x928] sm:$0xff]
        %v2448 = vld [vmem:[#allocation6 + $0x930] sm:$0xff]
        %v2449 = vld [vmem:[#allocation6 + $0x938] sm:$0xff]
        %v2450 = vld [vmem:[#allocation6 + $0x940] sm:$0xff]
        %v2451 = vld [vmem:[#allocation6 + $0x948] sm:$0xff]
        %v2452 = vld [vmem:[#allocation6 + $0x950] sm:$0xff]
        %v2453 = vld [vmem:[#allocation6 + $0x958] sm:$0xff]
        %v2454 = vld [vmem:[#allocation6 + $0x960] sm:$0xff]
        %v2455 = vld [vmem:[#allocation6 + $0x968] sm:$0xff]
        %v2456 = vld [vmem:[#allocation6 + $0x970] sm:$0xff]
        %v2457 = vld [vmem:[#allocation6 + $0x978] sm:$0xff]
        %v2458 = vld [vmem:[#allocation6 + $0x980] sm:$0xff]
        %v2459 = vld [vmem:[#allocation6 + $0x988] sm:$0xff]
        %v2460 = vld [vmem:[#allocation6 + $0x990] sm:$0xff]
        %v2461 = vld [vmem:[#allocation6 + $0x998] sm:$0xff]
        %v2462 = vld [vmem:[#allocation6 + $0x9a0] sm:$0xff]
        %v2463 = vld [vmem:[#allocation6 + $0x9a8] sm:$0xff]
        %v2464 = vld [vmem:[#allocation6 + $0x9b0] sm:$0xff]
        %v2465 = vld [vmem:[#allocation6 + $0x9b8] sm:$0xff]
        %v2466 = vld [vmem:[#allocation6 + $0x9c0] sm:$0xff]
        %v2467 = vld [vmem:[#allocation6 + $0x9c8] sm:$0xff]
        %v2468 = vld [vmem:[#allocation6 + $0x9d0] sm:$0xff]
        %v2469 = vld [vmem:[#allocation6 + $0x9d8] sm:$0xff]
        %v2470 = vld [vmem:[#allocation6 + $0x9e0] sm:$0xff]
        %v2471 = vld [vmem:[#allocation6 + $0x9e8] sm:$0xff]
        %v2472 = vld [vmem:[#allocation6 + $0x9f0] sm:$0xff]
        %v2473 = vld [vmem:[#allocation6 + $0x9f8] sm:$0xff]
        %v2474 = vld [vmem:[#allocation6 + $0xa00] sm:$0xff]
        %v2475 = vld [vmem:[#allocation6 + $0xa08] sm:$0xff]
        %v2476 = vld [vmem:[#allocation6 + $0xa10] sm:$0xff]
        %v2477 = vld [vmem:[#allocation6 + $0xa18] sm:$0xff]
        %v2478 = vld [vmem:[#allocation6 + $0xa20] sm:$0xff]
        %v2479 = vld [vmem:[#allocation6 + $0xa28] sm:$0xff]
        %v2480 = vld [vmem:[#allocation6 + $0xa30] sm:$0xff]
        %v2481 = vld [vmem:[#allocation6 + $0xa38] sm:$0xff]
        %v2482 = vld [vmem:[#allocation6 + $0xa40] sm:$0xff]
        %v2483 = vld [vmem:[#allocation6 + $0xa48] sm:$0xff]
        %v2484 = vld [vmem:[#allocation6 + $0xa50] sm:$0xff]
        %v2485 = vld [vmem:[#allocation6 + $0xa58] sm:$0xff]
        %v2486 = vld [vmem:[#allocation6 + $0xa60] sm:$0xff]
        %v2487 = vld [vmem:[#allocation6 + $0xa68] sm:$0xff]
        %v2488 = vld [vmem:[#allocation6 + $0xa70] sm:$0xff]
        %v2489 = vld [vmem:[#allocation6 + $0xa78] sm:$0xff]
        %v2490 = vld [vmem:[#allocation6 + $0xa80] sm:$0xff]
        %v2491 = vld [vmem:[#allocation6 + $0xa88] sm:$0xff]
        %v2492 = vld [vmem:[#allocation6 + $0xa90] sm:$0xff]
        %v2493 = vld [vmem:[#allocation6 + $0xa98] sm:$0xff]
        %v2494 = vld [vmem:[#allocation6 + $0xaa0] sm:$0xff]
        %v2495 = vld [vmem:[#allocation6 + $0xaa8] sm:$0xff]
        %v2496 = vld [vmem:[#allocation6 + $0xab0] sm:$0xff]
        %v2497 = vld [vmem:[#allocation6 + $0xab8] sm:$0xff]
        %v2498 = vld [vmem:[#allocation6 + $0xac0] sm:$0xff]
        %v2499 = vld [vmem:[#allocation6 + $0xac8] sm:$0xff]
        %v2500 = vld [vmem:[#allocation6 + $0xad0] sm:$0xff]
        %v2501 = vld [vmem:[#allocation6 + $0xad8] sm:$0xff]
        %v2502 = vld [vmem:[#allocation6 + $0xae0] sm:$0xff]
        %v2503 = vld [vmem:[#allocation6 + $0xae8] sm:$0xff]
        %v2504 = vld [vmem:[#allocation6 + $0xaf0] sm:$0xff]
        %v2505 = vld [vmem:[#allocation6 + $0xaf8] sm:$0xff]
        %v2506 = vld [vmem:[#allocation6 + $0xb00] sm:$0xff]
        %v2507 = vld [vmem:[#allocation6 + $0xb08] sm:$0xff]
        %v2508 = vld [vmem:[#allocation6 + $0xb10] sm:$0xff]
        %v2509 = vld [vmem:[#allocation6 + $0xb18] sm:$0xff]
        %v2510 = vld [vmem:[#allocation6 + $0xb20] sm:$0xff]
        %v2511 = vld [vmem:[#allocation6 + $0xb28] sm:$0xff]
        %v2512 = vld [vmem:[#allocation6 + $0xb30] sm:$0xff]
        %v2513 = vld [vmem:[#allocation6 + $0xb38] sm:$0xff]
        %v2514 = vld [vmem:[#allocation6 + $0xb40] sm:$0xff]
        %v2515 = vld [vmem:[#allocation6 + $0xb48] sm:$0xff]
        %v2516 = vld [vmem:[#allocation6 + $0xb50] sm:$0xff]
        %v2517 = vld [vmem:[#allocation6 + $0xb58] sm:$0xff]
        %v2518 = vld [vmem:[#allocation6 + $0xb60] sm:$0xff]
        %v2519 = vld [vmem:[#allocation6 + $0xb68] sm:$0xff]
        %v2520 = vld [vmem:[#allocation6 + $0xb70] sm:$0xff]
        %v2521 = vld [vmem:[#allocation6 + $0xb78] sm:$0xff]
        %v2522 = vld [vmem:[#allocation6 + $0xb80] sm:$0xff]
        %v2523 = vld [vmem:[#allocation6 + $0xb88] sm:$0xff]
        %v2524 = vld [vmem:[#allocation6 + $0xb90] sm:$0xff]
        %v2525 = vld [vmem:[#allocation6 + $0xb98] sm:$0xff]
        %v2526 = vld [vmem:[#allocation6 + $0xba0] sm:$0xff]
        %v2527 = vld [vmem:[#allocation6 + $0xba8] sm:$0xff]
        %v2528 = vld [vmem:[#allocation6 + $0xbb0] sm:$0xff]
        %v2529 = vld [vmem:[#allocation6 + $0xbb8] sm:$0xff]
        %v2530 = vld [vmem:[#allocation6 + $0xbc0] sm:$0xff]
        %v2531 = vld [vmem:[#allocation6 + $0xbc8] sm:$0xff]
        %v2532 = vld [vmem:[#allocation6 + $0xbd0] sm:$0xff]
        %v2533 = vld [vmem:[#allocation6 + $0xbd8] sm:$0xff]
        %v2534 = vld [vmem:[#allocation6 + $0xbe0] sm:$0xff]
        %v2535 = vld [vmem:[#allocation6 + $0xbe8] sm:$0xff]
        %v2536 = vld [vmem:[#allocation6 + $0xbf0] sm:$0xff]
        %v2537 = vld [vmem:[#allocation6 + $0xbf8] sm:$0xff]
        %v2538 = vld [vmem:[#allocation6 + $0xc00] sm:$0xff]
        %v2539 = vld [vmem:[#allocation6 + $0xc08] sm:$0xff]
        %v2540 = vld [vmem:[#allocation6 + $0xc10] sm:$0xff]
        %v2541 = vld [vmem:[#allocation6 + $0xc18] sm:$0xff]
        %v2542 = vld [vmem:[#allocation6 + $0xc20] sm:$0xff]
        %v2543 = vld [vmem:[#allocation6 + $0xc28] sm:$0xff]
        %v2544 = vld [vmem:[#allocation6 + $0xc30] sm:$0xff]
        %v2545 = vld [vmem:[#allocation6 + $0xc38] sm:$0xff]
        %v2546 = vld [vmem:[#allocation6 + $0xc40] sm:$0xff]
        %v2547 = vld [vmem:[#allocation6 + $0xc48] sm:$0xff]
        %v2548 = vld [vmem:[#allocation6 + $0xc50] sm:$0xff]
        %v2549 = vld [vmem:[#allocation6 + $0xc58] sm:$0xff]
        %v2550 = vld [vmem:[#allocation6 + $0xc60] sm:$0xff]
        %v2551 = vld [vmem:[#allocation6 + $0xc68] sm:$0xff]
        %v2552 = vld [vmem:[#allocation6 + $0xc70] sm:$0xff]
        %v2553 = vld [vmem:[#allocation6 + $0xc78] sm:$0xff]
        %v2554 = vld [vmem:[#allocation6 + $0xc80] sm:$0xff]
        %v2555 = vld [vmem:[#allocation6 + $0xc88] sm:$0xff]
        %v2556 = vld [vmem:[#allocation6 + $0xc90] sm:$0xff]
        %v2557 = vld [vmem:[#allocation6 + $0xc98] sm:$0xff]
        %v2558 = vld [vmem:[#allocation6 + $0xca0] sm:$0xff]
        %v2559 = vld [vmem:[#allocation6 + $0xca8] sm:$0xff]
        %v2560 = vld [vmem:[#allocation6 + $0xcb0] sm:$0xff]
        %v2561 = vld [vmem:[#allocation6 + $0xcb8] sm:$0xff]
        %v2562 = vld [vmem:[#allocation6 + $0xcc0] sm:$0xff]
        %v2563 = vld [vmem:[#allocation6 + $0xcc8] sm:$0xff]
        %v2564 = vld [vmem:[#allocation6 + $0xcd0] sm:$0xff]
        %v2565 = vld [vmem:[#allocation6 + $0xcd8] sm:$0xff]
        %v2566 = vld [vmem:[#allocation6 + $0xce0] sm:$0xff]
        %v2567 = vld [vmem:[#allocation6 + $0xce8] sm:$0xff]
        %v2568 = vld [vmem:[#allocation6 + $0xcf0] sm:$0xff]
        %v2569 = vld [vmem:[#allocation6 + $0xcf8] sm:$0xff]
        %v2570 = vld [vmem:[#allocation6 + $0xd00] sm:$0xff]
        %v2571 = vld [vmem:[#allocation6 + $0xd08] sm:$0xff]
        %v2572 = vld [vmem:[#allocation6 + $0xd10] sm:$0xff]
        %v2573 = vld [vmem:[#allocation6 + $0xd18] sm:$0xff]
        %v2574 = vld [vmem:[#allocation6 + $0xd20] sm:$0xff]
        %v2575 = vld [vmem:[#allocation6 + $0xd28] sm:$0xff]
        %v2576 = vld [vmem:[#allocation6 + $0xd30] sm:$0xff]
        %v2577 = vld [vmem:[#allocation6 + $0xd38] sm:$0xff]
        %v2578 = vld [vmem:[#allocation6 + $0xd40] sm:$0xff]
        %v2579 = vld [vmem:[#allocation6 + $0xd48] sm:$0xff]
        %v2580 = vld [vmem:[#allocation6 + $0xd50] sm:$0xff]
        %v2581 = vld [vmem:[#allocation6 + $0xd58] sm:$0xff]
        %v2582 = vld [vmem:[#allocation6 + $0xd60] sm:$0xff]
        %v2583 = vld [vmem:[#allocation6 + $0xd68] sm:$0xff]
        %v2584 = vld [vmem:[#allocation6 + $0xd70] sm:$0xff]
        %v2585 = vld [vmem:[#allocation6 + $0xd78] sm:$0xff]
        %v2586 = vld [vmem:[#allocation6 + $0xd80] sm:$0xff]
        %v2587 = vld [vmem:[#allocation6 + $0xd88] sm:$0xff]
        %v2588 = vld [vmem:[#allocation6 + $0xd90] sm:$0xff]
        %v2589 = vld [vmem:[#allocation6 + $0xd98] sm:$0xff]
        %v2590 = vld [vmem:[#allocation6 + $0xda0] sm:$0xff]
        %v2591 = vld [vmem:[#allocation6 + $0xda8] sm:$0xff]
        %v2592 = vld [vmem:[#allocation6 + $0xdb0] sm:$0xff]
        %v2593 = vld [vmem:[#allocation6 + $0xdb8] sm:$0xff]
        %v2594 = vld [vmem:[#allocation6 + $0xdc0] sm:$0xff]
        %v2595 = vld [vmem:[#allocation6 + $0xdc8] sm:$0xff]
        %v2596 = vld [vmem:[#allocation6 + $0xdd0] sm:$0xff]
        %v2597 = vld [vmem:[#allocation6 + $0xdd8] sm:$0xff]
        %v2598 = vld [vmem:[#allocation6 + $0xde0] sm:$0xff]
        %v2599 = vld [vmem:[#allocation6 + $0xde8] sm:$0xff]
        %v2600 = vld [vmem:[#allocation6 + $0xdf0] sm:$0xff]
        %v2601 = vld [vmem:[#allocation6 + $0xdf8] sm:$0xff]
        %v2602 = vld [vmem:[#allocation6 + $0xe00] sm:$0xff]
        %v2603 = vld [vmem:[#allocation6 + $0xe08] sm:$0xff]
        %v2604 = vld [vmem:[#allocation6 + $0xe10] sm:$0xff]
        %v2605 = vld [vmem:[#allocation6 + $0xe18] sm:$0xff]
        %v2606 = vld [vmem:[#allocation6 + $0xe20] sm:$0xff]
        %v2607 = vld [vmem:[#allocation6 + $0xe28] sm:$0xff]
        %v2608 = vld [vmem:[#allocation6 + $0xe30] sm:$0xff]
        %v2609 = vld [vmem:[#allocation6 + $0xe38] sm:$0xff]
        %v2610 = vld [vmem:[#allocation6 + $0xe40] sm:$0xff]
        %v2611 = vld [vmem:[#allocation6 + $0xe48] sm:$0xff]
        %v2612 = vld [vmem:[#allocation6 + $0xe50] sm:$0xff]
        %v2613 = vld [vmem:[#allocation6 + $0xe58] sm:$0xff]
        %v2614 = vld [vmem:[#allocation6 + $0xe60] sm:$0xff]
        %v2615 = vld [vmem:[#allocation6 + $0xe68] sm:$0xff]
        %v2616 = vld [vmem:[#allocation6 + $0xe70] sm:$0xff]
        %v2617 = vld [vmem:[#allocation6 + $0xe78] sm:$0xff]
        %v2618 = vld [vmem:[#allocation6 + $0xe80] sm:$0xff]
        %v2619 = vld [vmem:[#allocation6 + $0xe88] sm:$0xff]
        %v2620 = vld [vmem:[#allocation6 + $0xe90] sm:$0xff]
        %v2621 = vld [vmem:[#allocation6 + $0xe98] sm:$0xff]
        %v2622 = vld [vmem:[#allocation6 + $0xea0] sm:$0xff]
        %v2623 = vld [vmem:[#allocation6 + $0xea8] sm:$0xff]
        %v2624 = vld [vmem:[#allocation6 + $0xeb0] sm:$0xff]
        %v2625 = vld [vmem:[#allocation6 + $0xeb8] sm:$0xff]
        %v2626 = vld [vmem:[#allocation6 + $0xec0] sm:$0xff]
        %v2627 = vld [vmem:[#allocation6 + $0xec8] sm:$0xff]
        %v2628 = vld [vmem:[#allocation6 + $0xed0] sm:$0xff]
        %v2629 = vld [vmem:[#allocation6 + $0xed8] sm:$0xff]
        %v2630 = vld [vmem:[#allocation6 + $0xee0] sm:$0xff]
        %v2631 = vld [vmem:[#allocation6 + $0xee8] sm:$0xff]
        %v2632 = vld [vmem:[#allocation6 + $0xef0] sm:$0xff]
        %v2633 = vld [vmem:[#allocation6 + $0xef8] sm:$0xff]
        %v2634 = vld [vmem:[#allocation6 + $0xf00] sm:$0xff]
        %v2635 = vld [vmem:[#allocation6 + $0xf08] sm:$0xff]
        %v2636 = vld [vmem:[#allocation6 + $0xf10] sm:$0xff]
        %v2637 = vld [vmem:[#allocation6 + $0xf18] sm:$0xff]
        %v2638 = vld [vmem:[#allocation6 + $0xf20] sm:$0xff]
        %v2639 = vld [vmem:[#allocation6 + $0xf28] sm:$0xff]
        %v2640 = vld [vmem:[#allocation6 + $0xf30] sm:$0xff]
        %v2641 = vld [vmem:[#allocation6 + $0xf38] sm:$0xff]
        %v2642 = vld [vmem:[#allocation6 + $0xf40] sm:$0xff]
        %v2643 = vld [vmem:[#allocation6 + $0xf48] sm:$0xff]
        %v2644 = vld [vmem:[#allocation6 + $0xf50] sm:$0xff]
        %v2645 = vld [vmem:[#allocation6 + $0xf58] sm:$0xff]
        %v2646 = vld [vmem:[#allocation6 + $0xf60] sm:$0xff]
        %v2647 = vld [vmem:[#allocation6 + $0xf68] sm:$0xff]
        %v2648 = vld [vmem:[#allocation6 + $0xf70] sm:$0xff]
        %v2649 = vld [vmem:[#allocation6 + $0xf78] sm:$0xff]
        %v2650 = vld [vmem:[#allocation6 + $0xf80] sm:$0xff]
        %v2651 = vld [vmem:[#allocation6 + $0xf88] sm:$0xff]
        %v2652 = vld [vmem:[#allocation6 + $0xf90] sm:$0xff]
        %v2653 = vld [vmem:[#allocation6 + $0xf98] sm:$0xff]
        %v2654 = vld [vmem:[#allocation6 + $0xfa0] sm:$0xff]
        %v2655 = vld [vmem:[#allocation6 + $0xfa8] sm:$0xff]
        %v2656 = vld [vmem:[#allocation6 + $0xfb0] sm:$0xff]
        %v2657 = vld [vmem:[#allocation6 + $0xfb8] sm:$0xff]
        %v2658 = vld [vmem:[#allocation6 + $0xfc0] sm:$0xff]
        %v2659 = vld [vmem:[#allocation6 + $0xfc8] sm:$0xff]
        %v2660 = vld [vmem:[#allocation6 + $0xfd0] sm:$0xff]
        %v2661 = vld [vmem:[#allocation6 + $0xfd8] sm:$0xff]
        %v2662 = vld [vmem:[#allocation6 + $0xfe0] sm:$0xff]
        %v2663 = vld [vmem:[#allocation6 + $0xfe8] sm:$0xff]
        %v2664 = vld [vmem:[#allocation6 + $0xff0] sm:$0xff]
        %v2665 = vld [vmem:[#allocation6 + $0xff8] sm:$0xff]
        %v2666 = vld [vmem:[#allocation6 + $0x1000] sm:$0xff]
        %v2667 = vld [vmem:[#allocation6 + $0x1008] sm:$0xff]
        %v2668 = vld [vmem:[#allocation6 + $0x1010] sm:$0xff]
        %v2669 = vld [vmem:[#allocation6 + $0x1018] sm:$0xff]
        %v2670 = vld [vmem:[#allocation6 + $0x1020] sm:$0xff]
        %v2671 = vld [vmem:[#allocation6 + $0x1028] sm:$0xff]
        %v2672 = vld [vmem:[#allocation6 + $0x1030] sm:$0xff]
        %v2673 = vld [vmem:[#allocation6 + $0x1038] sm:$0xff]
        %v2674 = vld [vmem:[#allocation6 + $0x1040] sm:$0xff]
        %v2675 = vld [vmem:[#allocation6 + $0x1048] sm:$0xff]
        %v2676 = vld [vmem:[#allocation6 + $0x1050] sm:$0xff]
        %v2677 = vld [vmem:[#allocation6 + $0x1058] sm:$0xff]
        %v2678 = vld [vmem:[#allocation6 + $0x1060] sm:$0xff]
        %v2679 = vld [vmem:[#allocation6 + $0x1068] sm:$0xff]
        %v2680 = vld [vmem:[#allocation6 + $0x1070] sm:$0xff]
        %v2681 = vld [vmem:[#allocation6 + $0x1078] sm:$0xff]
        %v2682 = vld [vmem:[#allocation6 + $0x1080] sm:$0xff]
        %v2683 = vld [vmem:[#allocation6 + $0x1088] sm:$0xff]
        %v2684 = vld [vmem:[#allocation6 + $0x1090] sm:$0xff]
        %v2685 = vld [vmem:[#allocation6 + $0x1098] sm:$0xff]
        %v2686 = vld [vmem:[#allocation6 + $0x10a0] sm:$0xff]
        %v2687 = vld [vmem:[#allocation6 + $0x10a8] sm:$0xff]
        %v2688 = vld [vmem:[#allocation6 + $0x10b0] sm:$0xff]
        %v2689 = vld [vmem:[#allocation6 + $0x10b8] sm:$0xff]
        %v2690 = vld [vmem:[#allocation6 + $0x10c0] sm:$0xff]
        %v2691 = vld [vmem:[#allocation6 + $0x10c8] sm:$0xff]
        %v2692 = vld [vmem:[#allocation6 + $0x10d0] sm:$0xff]
        %v2693 = vld [vmem:[#allocation6 + $0x10d8] sm:$0xff]
        %v2694 = vld [vmem:[#allocation6 + $0x10e0] sm:$0xff]
        %v2695 = vld [vmem:[#allocation6 + $0x10e8] sm:$0xff]
        %v2696 = vld [vmem:[#allocation6 + $0x10f0] sm:$0xff]
        %v2697 = vld [vmem:[#allocation6 + $0x10f8] sm:$0xff]
        %v2698 = vld [vmem:[#allocation6 + $0x1100] sm:$0xff]
        %v2699 = vld [vmem:[#allocation6 + $0x1108] sm:$0xff]
        %v2700 = vld [vmem:[#allocation6 + $0x1110] sm:$0xff]
        %v2701 = vld [vmem:[#allocation6 + $0x1118] sm:$0xff]
        %v2702 = vld [vmem:[#allocation6 + $0x1120] sm:$0xff]
        %v2703 = vld [vmem:[#allocation6 + $0x1128] sm:$0xff]
        %v2704 = vld [vmem:[#allocation6 + $0x1130] sm:$0xff]
        %v2705 = vld [vmem:[#allocation6 + $0x1138] sm:$0xff]
        %v2706 = vld [vmem:[#allocation6 + $0x1140] sm:$0xff]
        %v2707 = vld [vmem:[#allocation6 + $0x1148] sm:$0xff]
        %v2708 = vld [vmem:[#allocation6 + $0x1150] sm:$0xff]
        %v2709 = vld [vmem:[#allocation6 + $0x1158] sm:$0xff]
        %v2710 = vld [vmem:[#allocation6 + $0x1160] sm:$0xff]
        %v2711 = vld [vmem:[#allocation6 + $0x1168] sm:$0xff]
        %v2712 = vld [vmem:[#allocation6 + $0x1170] sm:$0xff]
        %v2713 = vld [vmem:[#allocation6 + $0x1178] sm:$0xff]
        %v2714 = vld [vmem:[#allocation6 + $0x1180] sm:$0xff]
        %v2715 = vld [vmem:[#allocation6 + $0x1188] sm:$0xff]
        %v2716 = vld [vmem:[#allocation6 + $0x1190] sm:$0xff]
        %v2717 = vld [vmem:[#allocation6 + $0x1198] sm:$0xff]
        %v2718 = vld [vmem:[#allocation6 + $0x11a0] sm:$0xff]
        %v2719 = vld [vmem:[#allocation6 + $0x11a8] sm:$0xff]
        %v2720 = vld [vmem:[#allocation6 + $0x11b0] sm:$0xff]
        %v2721 = vld [vmem:[#allocation6 + $0x11b8] sm:$0xff]
        %v2722 = vld [vmem:[#allocation6 + $0x11c0] sm:$0xff]
        %v2723 = vld [vmem:[#allocation6 + $0x11c8] sm:$0xff]
        %v2724 = vld [vmem:[#allocation6 + $0x11d0] sm:$0xff]
        %v2725 = vld [vmem:[#allocation6 + $0x11d8] sm:$0xff]
        %v2726 = vld [vmem:[#allocation6 + $0x11e0] sm:$0xff]
        %v2727 = vld [vmem:[#allocation6 + $0x11e8] sm:$0xff]
        %v2728 = vld [vmem:[#allocation6 + $0x11f0] sm:$0xff]
        %v2729 = vld [vmem:[#allocation6 + $0x11f8] sm:$0xff]
        %v2730 = vld [vmem:[#allocation6 + $0x1200] sm:$0xff]
        %v2731 = vld [vmem:[#allocation6 + $0x1208] sm:$0xff]
        %v2732 = vld [vmem:[#allocation6 + $0x1210] sm:$0xff]
        %v2733 = vld [vmem:[#allocation6 + $0x1218] sm:$0xff]
        %v2734 = vld [vmem:[#allocation6 + $0x1220] sm:$0xff]
        %v2735 = vld [vmem:[#allocation6 + $0x1228] sm:$0xff]
        %v2736 = vld [vmem:[#allocation6 + $0x1230] sm:$0xff]
        %v2737 = vld [vmem:[#allocation6 + $0x1238] sm:$0xff]
        %v2738 = vld [vmem:[#allocation6 + $0x1240] sm:$0xff]
        %v2739 = vld [vmem:[#allocation6 + $0x1248] sm:$0xff]
        %v2740 = vld [vmem:[#allocation6 + $0x1250] sm:$0xff]
        %v2741 = vld [vmem:[#allocation6 + $0x1258] sm:$0xff]
        %v2742 = vld [vmem:[#allocation6 + $0x1260] sm:$0xff]
        %v2743 = vld [vmem:[#allocation6 + $0x1268] sm:$0xff]
        %v2744 = vld [vmem:[#allocation6 + $0x1270] sm:$0xff]
        %v2745 = vld [vmem:[#allocation6 + $0x1278] sm:$0xff]
        %v2746 = vld [vmem:[#allocation6 + $0x1280] sm:$0xff]
        %v2747 = vld [vmem:[#allocation6 + $0x1288] sm:$0xff]
        %v2748 = vld [vmem:[#allocation6 + $0x1290] sm:$0xff]
        %v2749 = vld [vmem:[#allocation6 + $0x1298] sm:$0xff]
        %v2750 = vld [vmem:[#allocation6 + $0x12a0] sm:$0xff]
        %v2751 = vld [vmem:[#allocation6 + $0x12a8] sm:$0xff]
        %v2752 = vld [vmem:[#allocation6 + $0x12b0] sm:$0xff]
        %v2753 = vld [vmem:[#allocation6 + $0x12b8] sm:$0xff]
        %v2754 = vld [vmem:[#allocation6 + $0x12c0] sm:$0xff]
        %v2755 = vld [vmem:[#allocation6 + $0x12c8] sm:$0xff]
        %v2756 = vld [vmem:[#allocation6 + $0x12d0] sm:$0xff]
        %v2757 = vld [vmem:[#allocation6 + $0x12d8] sm:$0xff]
        %v2758 = vld [vmem:[#allocation6 + $0x12e0] sm:$0xff]
        %v2759 = vld [vmem:[#allocation6 + $0x12e8] sm:$0xff]
        %v2760 = vld [vmem:[#allocation6 + $0x12f0] sm:$0xff]
        %v2761 = vld [vmem:[#allocation6 + $0x12f8] sm:$0xff]
        %v2762 = vld [vmem:[#allocation6 + $0x1300] sm:$0xff]
        %v2763 = vld [vmem:[#allocation6 + $0x1308] sm:$0xff]
        %v2764 = vld [vmem:[#allocation6 + $0x1310] sm:$0xff]
        %v2765 = vld [vmem:[#allocation6 + $0x1318] sm:$0xff]
        %v2766 = vld [vmem:[#allocation6 + $0x1320] sm:$0xff]
        %v2767 = vld [vmem:[#allocation6 + $0x1328] sm:$0xff]
        %v2768 = vld [vmem:[#allocation6 + $0x1330] sm:$0xff]
        %v2769 = vld [vmem:[#allocation6 + $0x1338] sm:$0xff]
        %v2770 = vld [vmem:[#allocation6 + $0x1340] sm:$0xff]
        %v2771 = vld [vmem:[#allocation6 + $0x1348] sm:$0xff]
        %v2772 = vld [vmem:[#allocation6 + $0x1350] sm:$0xff]
        %v2773 = vld [vmem:[#allocation6 + $0x1358] sm:$0xff]
        %v2774 = vld [vmem:[#allocation6 + $0x1360] sm:$0xff]
        %v2775 = vld [vmem:[#allocation6 + $0x1368] sm:$0xff]
        %v2776 = vld [vmem:[#allocation6 + $0x1370] sm:$0xff]
        %v2777 = vld [vmem:[#allocation6 + $0x1378] sm:$0xff]
        %v2778 = vld [vmem:[#allocation6 + $0x1380] sm:$0xff]
        %v2779 = vld [vmem:[#allocation6 + $0x1388] sm:$0xff]
        %v2780 = vld [vmem:[#allocation6 + $0x1390] sm:$0xff]
        %v2781 = vld [vmem:[#allocation6 + $0x1398] sm:$0xff]
        %v2782 = vld [vmem:[#allocation6 + $0x13a0] sm:$0xff]
        %v2783 = vld [vmem:[#allocation6 + $0x13a8] sm:$0xff]
        %v2784 = vld [vmem:[#allocation6 + $0x13b0] sm:$0xff]
        %v2785 = vld [vmem:[#allocation6 + $0x13b8] sm:$0xff]
        %v2786 = vld [vmem:[#allocation6 + $0x13c0] sm:$0xff]
        %v2787 = vld [vmem:[#allocation6 + $0x13c8] sm:$0xff]
        %v2788 = vld [vmem:[#allocation6 + $0x13d0] sm:$0xff]
        %v2789 = vld [vmem:[#allocation6 + $0x13d8] sm:$0xff]
        %v2790 = vld [vmem:[#allocation6 + $0x13e0] sm:$0xff]
        %v2791 = vld [vmem:[#allocation6 + $0x13e8] sm:$0xff]
        %v2792 = vld [vmem:[#allocation6 + $0x13f0] sm:$0xff]
        %v2793 = vld [vmem:[#allocation6 + $0x13f8] sm:$0xff]
        %v2794 = vld [vmem:[#allocation6 + $0x1400] sm:$0xff]
        %v2795 = vld [vmem:[#allocation6 + $0x1408] sm:$0xff]
        %v2796 = vld [vmem:[#allocation6 + $0x1410] sm:$0xff]
        %v2797 = vld [vmem:[#allocation6 + $0x1418] sm:$0xff]
        %v2798 = vld [vmem:[#allocation6 + $0x1420] sm:$0xff]
        %v2799 = vld [vmem:[#allocation6 + $0x1428] sm:$0xff]
        %v2800 = vld [vmem:[#allocation6 + $0x1430] sm:$0xff]
        %v2801 = vld [vmem:[#allocation6 + $0x1438] sm:$0xff]
        %v2802 = vld [vmem:[#allocation6 + $0x1440] sm:$0xff]
        %v2803 = vld [vmem:[#allocation6 + $0x1448] sm:$0xff]
        %v2804 = vld [vmem:[#allocation6 + $0x1450] sm:$0xff]
        %v2805 = vld [vmem:[#allocation6 + $0x1458] sm:$0xff]
        %v2806 = vld [vmem:[#allocation6 + $0x1460] sm:$0xff]
        %v2807 = vld [vmem:[#allocation6 + $0x1468] sm:$0xff]
        %v2808 = vld [vmem:[#allocation6 + $0x1470] sm:$0xff]
        %v2809 = vld [vmem:[#allocation6 + $0x1478] sm:$0xff]
        %v2810 = vld [vmem:[#allocation6 + $0x1480] sm:$0xff]
        %v2811 = vld [vmem:[#allocation6 + $0x1488] sm:$0xff]
        %v2812 = vld [vmem:[#allocation6 + $0x1490] sm:$0xff]
        %v2813 = vld [vmem:[#allocation6 + $0x1498] sm:$0xff]
        %v2814 = vld [vmem:[#allocation6 + $0x14a0] sm:$0xff]
        %v2815 = vld [vmem:[#allocation6 + $0x14a8] sm:$0xff]
        %v2816 = vld [vmem:[#allocation6 + $0x14b0] sm:$0xff]
        %v2817 = vld [vmem:[#allocation6 + $0x14b8] sm:$0xff]
        %v2818 = vld [vmem:[#allocation6 + $0x14c0] sm:$0xff]
        %v2819 = vld [vmem:[#allocation6 + $0x14c8] sm:$0xff]
        %v2820 = vld [vmem:[#allocation6 + $0x14d0] sm:$0xff]
        %v2821 = vld [vmem:[#allocation6 + $0x14d8] sm:$0xff]
        %v2822 = vld [vmem:[#allocation6 + $0x14e0] sm:$0xff]
        %v2823 = vld [vmem:[#allocation6 + $0x14e8] sm:$0xff]
        %v2824 = vld [vmem:[#allocation6 + $0x14f0] sm:$0xff]
        %v2825 = vld [vmem:[#allocation6 + $0x14f8] sm:$0xff]
        %v2826 = vld [vmem:[#allocation6 + $0x1500] sm:$0xff]
        %v2827 = vld [vmem:[#allocation6 + $0x1508] sm:$0xff]
        %v2828 = vld [vmem:[#allocation6 + $0x1510] sm:$0xff]
        %v2829 = vld [vmem:[#allocation6 + $0x1518] sm:$0xff]
        %v2830 = vld [vmem:[#allocation6 + $0x1520] sm:$0xff]
        %v2831 = vld [vmem:[#allocation6 + $0x1528] sm:$0xff]
        %v2832 = vld [vmem:[#allocation6 + $0x1530] sm:$0xff]
        %v2833 = vld [vmem:[#allocation6 + $0x1538] sm:$0xff]
        %v2834 = vld [vmem:[#allocation6 + $0x1540] sm:$0xff]
        %v2835 = vld [vmem:[#allocation6 + $0x1548] sm:$0xff]
        %v2836 = vld [vmem:[#allocation6 + $0x1550] sm:$0xff]
        %v2837 = vld [vmem:[#allocation6 + $0x1558] sm:$0xff]
        %v2838 = vld [vmem:[#allocation6 + $0x1560] sm:$0xff]
        %v2839 = vld [vmem:[#allocation6 + $0x1568] sm:$0xff]
        %v2840 = vld [vmem:[#allocation6 + $0x1570] sm:$0xff]
        %v2841 = vld [vmem:[#allocation6 + $0x1578] sm:$0xff]
        %v2842 = vld [vmem:[#allocation6 + $0x1580] sm:$0xff]
        %v2843 = vld [vmem:[#allocation6 + $0x1588] sm:$0xff]
        %v2844 = vld [vmem:[#allocation6 + $0x1590] sm:$0xff]
        %v2845 = vld [vmem:[#allocation6 + $0x1598] sm:$0xff]
        %v2846 = vld [vmem:[#allocation6 + $0x15a0] sm:$0xff]
        %v2847 = vld [vmem:[#allocation6 + $0x15a8] sm:$0xff]
        %v2848 = vld [vmem:[#allocation6 + $0x15b0] sm:$0xff]
        %v2849 = vld [vmem:[#allocation6 + $0x15b8] sm:$0xff]
        %v2850 = vld [vmem:[#allocation6 + $0x15c0] sm:$0xff]
        %v2851 = vld [vmem:[#allocation6 + $0x15c8] sm:$0xff]
        %v2852 = vld [vmem:[#allocation6 + $0x15d0] sm:$0xff]
        %v2853 = vld [vmem:[#allocation6 + $0x15d8] sm:$0xff]
        %v2854 = vld [vmem:[#allocation6 + $0x15e0] sm:$0xff]
        %v2855 = vld [vmem:[#allocation6 + $0x15e8] sm:$0xff]
        %v2856 = vld [vmem:[#allocation6 + $0x15f0] sm:$0xff]
        %v2857 = vld [vmem:[#allocation6 + $0x15f8] sm:$0xff]
        %v2858 = vld [vmem:[#allocation6 + $0x1600] sm:$0xff]
        %v2859 = vld [vmem:[#allocation6 + $0x1608] sm:$0xff]
        %v2860 = vld [vmem:[#allocation6 + $0x1610] sm:$0xff]
        %v2861 = vld [vmem:[#allocation6 + $0x1618] sm:$0xff]
        %v2862 = vld [vmem:[#allocation6 + $0x1620] sm:$0xff]
        %v2863 = vld [vmem:[#allocation6 + $0x1628] sm:$0xff]
        %v2864 = vld [vmem:[#allocation6 + $0x1630] sm:$0xff]
        %v2865 = vld [vmem:[#allocation6 + $0x1638] sm:$0xff]
        %v2866 = vld [vmem:[#allocation6 + $0x1640] sm:$0xff]
        %v2867 = vld [vmem:[#allocation6 + $0x1648] sm:$0xff]
        %v2868 = vld [vmem:[#allocation6 + $0x1650] sm:$0xff]
        %v2869 = vld [vmem:[#allocation6 + $0x1658] sm:$0xff]
        %v2870 = vld [vmem:[#allocation6 + $0x1660] sm:$0xff]
        %v2871 = vld [vmem:[#allocation6 + $0x1668] sm:$0xff]
        %v2872 = vld [vmem:[#allocation6 + $0x1670] sm:$0xff]
        %v2873 = vld [vmem:[#allocation6 + $0x1678] sm:$0xff]
        %v2874 = vld [vmem:[#allocation6 + $0x1680] sm:$0xff]
        %v2875 = vld [vmem:[#allocation6 + $0x1688] sm:$0xff]
        %v2876 = vld [vmem:[#allocation6 + $0x1690] sm:$0xff]
        %v2877 = vld [vmem:[#allocation6 + $0x1698] sm:$0xff]
        %v2878 = vld [vmem:[#allocation6 + $0x16a0] sm:$0xff]
        %v2879 = vld [vmem:[#allocation6 + $0x16a8] sm:$0xff]
        %v2880 = vld [vmem:[#allocation6 + $0x16b0] sm:$0xff]
        %v2881 = vld [vmem:[#allocation6 + $0x16b8] sm:$0xff]
        %v2882 = vld [vmem:[#allocation6 + $0x16c0] sm:$0xff]
        %v2883 = vld [vmem:[#allocation6 + $0x16c8] sm:$0xff]
        %v2884 = vld [vmem:[#allocation6 + $0x16d0] sm:$0xff]
        %v2885 = vld [vmem:[#allocation6 + $0x16d8] sm:$0xff]
        %v2886 = vld [vmem:[#allocation6 + $0x16e0] sm:$0xff]
        %v2887 = vld [vmem:[#allocation6 + $0x16e8] sm:$0xff]
        %v2888 = vld [vmem:[#allocation6 + $0x16f0] sm:$0xff]
        %v2889 = vld [vmem:[#allocation6 + $0x16f8] sm:$0xff]
        %v2890 = vld [vmem:[#allocation6 + $0x1700] sm:$0xff]
        %v2891 = vld [vmem:[#allocation6 + $0x1708] sm:$0xff]
        %v2892 = vld [vmem:[#allocation6 + $0x1710] sm:$0xff]
        %v2893 = vld [vmem:[#allocation6 + $0x1718] sm:$0xff]
        %v2894 = vld [vmem:[#allocation6 + $0x1720] sm:$0xff]
        %v2895 = vld [vmem:[#allocation6 + $0x1728] sm:$0xff]
        %v2896 = vld [vmem:[#allocation6 + $0x1730] sm:$0xff]
        %v2897 = vld [vmem:[#allocation6 + $0x1738] sm:$0xff]
        %v2898 = vld [vmem:[#allocation6 + $0x1740] sm:$0xff]
        %v2899 = vld [vmem:[#allocation6 + $0x1748] sm:$0xff]
        %v2900 = vld [vmem:[#allocation6 + $0x1750] sm:$0xff]
        %v2901 = vld [vmem:[#allocation6 + $0x1758] sm:$0xff]
        %v2902 = vld [vmem:[#allocation6 + $0x1760] sm:$0xff]
        %v2903 = vld [vmem:[#allocation6 + $0x1768] sm:$0xff]
        %v2904 = vld [vmem:[#allocation6 + $0x1770] sm:$0xff]
        %v2905 = vld [vmem:[#allocation6 + $0x1778] sm:$0xff]
        %v2906 = vld [vmem:[#allocation6 + $0x1780] sm:$0xff]
        %v2907 = vld [vmem:[#allocation6 + $0x1788] sm:$0xff]
        %v2908 = vld [vmem:[#allocation6 + $0x1790] sm:$0xff]
        %v2909 = vld [vmem:[#allocation6 + $0x1798] sm:$0xff]
        %v2910 = vld [vmem:[#allocation6 + $0x17a0] sm:$0xff]
        %v2911 = vld [vmem:[#allocation6 + $0x17a8] sm:$0xff]
        %v2912 = vld [vmem:[#allocation6 + $0x17b0] sm:$0xff]
        %v2913 = vld [vmem:[#allocation6 + $0x17b8] sm:$0xff]
        %v2914 = vld [vmem:[#allocation6 + $0x17c0] sm:$0xff]
        %v2915 = vld [vmem:[#allocation6 + $0x17c8] sm:$0xff]
        %v2916 = vld [vmem:[#allocation6 + $0x17d0] sm:$0xff]
        %v2917 = vld [vmem:[#allocation6 + $0x17d8] sm:$0xff]
        %v2918 = vld [vmem:[#allocation6 + $0x17e0] sm:$0xff]
        %v2919 = vld [vmem:[#allocation6 + $0x17e8] sm:$0xff]
        %v2920 = vld [vmem:[#allocation6 + $0x17f0] sm:$0xff]
        %v2921 = vld [vmem:[#allocation6 + $0x17f8] sm:$0xff]
        %v2922 = vld [vmem:[#allocation7] sm:$0x7]
        %v2924 = vperm.slane %v2922, 0
        %v2925 = vperm.slane %v2922, 1
        %v2926 = vperm.slane %v2922, 2
        %2930 = vmatpush.msra.mxu0 %v2199
        %2931 = vmatpush.msra.mxu0 %v2196
        %2932 = vmatpush.msra.mxu0 %v2193
        %2933 = vmatpush.msra.mxu0 %v2190
        %2934 = vmatpush.msra.mxu0 %v2187
        %2935 = vmatpush.msra.mxu0 %v2184
        %2936 = vmatpush.msra.mxu0 %v2181
        %2937 = vmatpush.msra.mxu0 %v2178
        %2938 = vmatpush.msra.mxu0 %v2175
        %2939 = vmatpush.msra.mxu0 %v2172
        %2940 = vmatpush.msra.mxu0 %v2169
        %2941 = vmatpush.msra.mxu0 %v2166
        %2942 = vmatpush.msra.mxu0 %v2163
        %2943 = vmatpush.msra.mxu0 %v2160
        %2944 = vmatpush.msra.mxu0 %v2157
        %2945 = vmatpush.msra.mxu0 %v2154
        %2946 = vmatmul.f32.gmra.mxu0 %v2138
        %v2947 = vpop.f32.mrf.mxu0
        %v2948 = vadd.f32 %v2924, %v2947
        %2949 = vdwg.mxu0
        %2950 = vmatpush.msra.mxu0 %v2247
        %2951 = vmatpush.msra.mxu0 %v2244
        %2952 = vmatpush.msra.mxu0 %v2241
        %2953 = vmatpush.msra.mxu0 %v2238
        %2954 = vmatpush.msra.mxu0 %v2235
        %2955 = vmatpush.msra.mxu0 %v2232
        %2956 = vmatpush.msra.mxu0 %v2229
        %2957 = vmatpush.msra.mxu0 %v2226
        %2958 = vmatpush.msra.mxu0 %v2223
        %2959 = vmatpush.msra.mxu0 %v2220
        %2960 = vmatpush.msra.mxu0 %v2217
        %2961 = vmatpush.msra.mxu0 %v2214
        %2962 = vmatpush.msra.mxu0 %v2211
        %2963 = vmatpush.msra.mxu0 %v2208
        %2964 = vmatpush.msra.mxu0 %v2205
        %2965 = vmatpush.msra.mxu0 %v2202
        %2966 = vmatmul.f32.gmra.mxu0 %v2139
        %v2967 = vpop.f32.mrf.mxu0
        %v2968 = vadd.f32 %v2948, %v2967
        %2969 = vdwg.mxu0
        %2970 = vmatpush.msra.mxu0 %v2295
        %2971 = vmatpush.msra.mxu0 %v2292
        %2972 = vmatpush.msra.mxu0 %v2289
        %2973 = vmatpush.msra.mxu0 %v2286
        %2974 = vmatpush.msra.mxu0 %v2283
        %2975 = vmatpush.msra.mxu0 %v2280
        %2976 = vmatpush.msra.mxu0 %v2277
        %2977 = vmatpush.msra.mxu0 %v2274
        %2978 = vmatpush.msra.mxu0 %v2271
        %2979 = vmatpush.msra.mxu0 %v2268
        %2980 = vmatpush.msra.mxu0 %v2265
        %2981 = vmatpush.msra.mxu0 %v2262
        %2982 = vmatpush.msra.mxu0 %v2259
        %2983 = vmatpush.msra.mxu0 %v2256
        %2984 = vmatpush.msra.mxu0 %v2253
        %2985 = vmatpush.msra.mxu0 %v2250
        %2986 = vmatmul.f32.gmra.mxu0 %v2140
        %v2987 = vpop.f32.mrf.mxu0
        %v2988 = vadd.f32 %v2968, %v2987
        %2989 = vdwg.mxu0
        %2990 = vmatpush.msra.mxu0 %v2343
        %2991 = vmatpush.msra.mxu0 %v2340
        %2992 = vmatpush.msra.mxu0 %v2337
        %2993 = vmatpush.msra.mxu0 %v2334
        %2994 = vmatpush.msra.mxu0 %v2331
        %2995 = vmatpush.msra.mxu0 %v2328
        %2996 = vmatpush.msra.mxu0 %v2325
        %2997 = vmatpush.msra.mxu0 %v2322
        %2998 = vmatpush.msra.mxu0 %v2319
        %2999 = vmatpush.msra.mxu0 %v2316
        %3000 = vmatpush.msra.mxu0 %v2313
        %3001 = vmatpush.msra.mxu0 %v2310
        %3002 = vmatpush.msra.mxu0 %v2307
        %3003 = vmatpush.msra.mxu0 %v2304
        %3004 = vmatpush.msra.mxu0 %v2301
        %3005 = vmatpush.msra.mxu0 %v2298
        %3006 = vmatmul.f32.gmra.mxu0 %v2141
        %v3007 = vpop.f32.mrf.mxu0
        %v3008 = vadd.f32 %v2988, %v3007
        %3009 = vdwg.mxu0
        %3010 = vmatpush.msra.mxu0 %v2391
        %3011 = vmatpush.msra.mxu0 %v2388
        %3012 = vmatpush.msra.mxu0 %v2385
        %3013 = vmatpush.msra.mxu0 %v2382
        %3014 = vmatpush.msra.mxu0 %v2379
        %3015 = vmatpush.msra.mxu0 %v2376
        %3016 = vmatpush.msra.mxu0 %v2373
        %3017 = vmatpush.msra.mxu0 %v2370
        %3018 = vmatpush.msra.mxu0 %v2367
        %3019 = vmatpush.msra.mxu0 %v2364
        %3020 = vmatpush.msra.mxu0 %v2361
        %3021 = vmatpush.msra.mxu0 %v2358
        %3022 = vmatpush.msra.mxu0 %v2355
        %3023 = vmatpush.msra.mxu0 %v2352
        %3024 = vmatpush.msra.mxu0 %v2349
        %3025 = vmatpush.msra.mxu0 %v2346
        %3026 = vmatmul.f32.gmra.mxu0 %v2142
        %v3027 = vpop.f32.mrf.mxu0
        %v3028 = vadd.f32 %v3008, %v3027
        %3029 = vdwg.mxu0
        %3030 = vmatpush.msra.mxu0 %v2439
        %3031 = vmatpush.msra.mxu0 %v2436
        %3032 = vmatpush.msra.mxu0 %v2433
        %3033 = vmatpush.msra.mxu0 %v2430
        %3034 = vmatpush.msra.mxu0 %v2427
        %3035 = vmatpush.msra.mxu0 %v2424
        %3036 = vmatpush.msra.mxu0 %v2421
        %3037 = vmatpush.msra.mxu0 %v2418
        %3038 = vmatpush.msra.mxu0 %v2415
        %3039 = vmatpush.msra.mxu0 %v2412
        %3040 = vmatpush.msra.mxu0 %v2409
        %3041 = vmatpush.msra.mxu0 %v2406
        %3042 = vmatpush.msra.mxu0 %v2403
        %3043 = vmatpush.msra.mxu0 %v2400
        %3044 = vmatpush.msra.mxu0 %v2397
        %3045 = vmatpush.msra.mxu0 %v2394
        %3046 = vmatmul.f32.gmra.mxu0 %v2143
        %v3047 = vpop.f32.mrf.mxu0
        %v3048 = vadd.f32 %v3028, %v3047
        %3049 = vdwg.mxu0
        %3050 = vmatpush.msra.mxu0 %v2487
        %3051 = vmatpush.msra.mxu0 %v2484
        %3052 = vmatpush.msra.mxu0 %v2481
        %3053 = vmatpush.msra.mxu0 %v2478
        %3054 = vmatpush.msra.mxu0 %v2475
        %3055 = vmatpush.msra.mxu0 %v2472
        %3056 = vmatpush.msra.mxu0 %v2469
        %3057 = vmatpush.msra.mxu0 %v2466
        %3058 = vmatpush.msra.mxu0 %v2463
        %3059 = vmatpush.msra.mxu0 %v2460
        %3060 = vmatpush.msra.mxu0 %v2457
        %3061 = vmatpush.msra.mxu0 %v2454
        %3062 = vmatpush.msra.mxu0 %v2451
        %3063 = vmatpush.msra.mxu0 %v2448
        %3064 = vmatpush.msra.mxu0 %v2445
        %3065 = vmatpush.msra.mxu0 %v2442
        %3066 = vmatmul.f32.gmra.mxu0 %v2144
        %v3067 = vpop.f32.mrf.mxu0
        %v3068 = vadd.f32 %v3048, %v3067
        %3069 = vdwg.mxu0
        %3070 = vmatpush.msra.mxu0 %v2535
        %3071 = vmatpush.msra.mxu0 %v2532
        %3072 = vmatpush.msra.mxu0 %v2529
        %3073 = vmatpush.msra.mxu0 %v2526
        %3074 = vmatpush.msra.mxu0 %v2523
        %3075 = vmatpush.msra.mxu0 %v2520
        %3076 = vmatpush.msra.mxu0 %v2517
        %3077 = vmatpush.msra.mxu0 %v2514
        %3078 = vmatpush.msra.mxu0 %v2511
        %3079 = vmatpush.msra.mxu0 %v2508
        %3080 = vmatpush.msra.mxu0 %v2505
        %3081 = vmatpush.msra.mxu0 %v2502
        %3082 = vmatpush.msra.mxu0 %v2499
        %3083 = vmatpush.msra.mxu0 %v2496
        %3084 = vmatpush.msra.mxu0 %v2493
        %3085 = vmatpush.msra.mxu0 %v2490
        %3086 = vmatmul.f32.gmra.mxu0 %v2145
        %v3087 = vpop.f32.mrf.mxu0
        %v3088 = vadd.f32 %v3068, %v3087
        %3089 = vdwg.mxu0
        %3090 = vmatpush.msra.mxu0 %v2583
        %3091 = vmatpush.msra.mxu0 %v2580
        %3092 = vmatpush.msra.mxu0 %v2577
        %3093 = vmatpush.msra.mxu0 %v2574
        %3094 = vmatpush.msra.mxu0 %v2571
        %3095 = vmatpush.msra.mxu0 %v2568
        %3096 = vmatpush.msra.mxu0 %v2565
        %3097 = vmatpush.msra.mxu0 %v2562
        %3098 = vmatpush.msra.mxu0 %v2559
        %3099 = vmatpush.msra.mxu0 %v2556
        %3100 = vmatpush.msra.mxu0 %v2553
        %3101 = vmatpush.msra.mxu0 %v2550
        %3102 = vmatpush.msra.mxu0 %v2547
        %3103 = vmatpush.msra.mxu0 %v2544
        %3104 = vmatpush.msra.mxu0 %v2541
        %3105 = vmatpush.msra.mxu0 %v2538
        %3106 = vmatmul.f32.gmra.mxu0 %v2146
        %v3107 = vpop.f32.mrf.mxu0
        %v3108 = vadd.f32 %v3088, %v3107
        %3109 = vdwg.mxu0
        %3110 = vmatpush.msra.mxu0 %v2631
        %3111 = vmatpush.msra.mxu0 %v2628
        %3112 = vmatpush.msra.mxu0 %v2625
        %3113 = vmatpush.msra.mxu0 %v2622
        %3114 = vmatpush.msra.mxu0 %v2619
        %3115 = vmatpush.msra.mxu0 %v2616
        %3116 = vmatpush.msra.mxu0 %v2613
        %3117 = vmatpush.msra.mxu0 %v2610
        %3118 = vmatpush.msra.mxu0 %v2607
        %3119 = vmatpush.msra.mxu0 %v2604
        %3120 = vmatpush.msra.mxu0 %v2601
        %3121 = vmatpush.msra.mxu0 %v2598
        %3122 = vmatpush.msra.mxu0 %v2595
        %3123 = vmatpush.msra.mxu0 %v2592
        %3124 = vmatpush.msra.mxu0 %v2589
        %3125 = vmatpush.msra.mxu0 %v2586
        %3126 = vmatmul.f32.gmra.mxu0 %v2147
        %v3127 = vpop.f32.mrf.mxu0
        %v3128 = vadd.f32 %v3108, %v3127
        %3129 = vdwg.mxu0
        %3130 = vmatpush.msra.mxu0 %v2679
        %3131 = vmatpush.msra.mxu0 %v2676
        %3132 = vmatpush.msra.mxu0 %v2673
        %3133 = vmatpush.msra.mxu0 %v2670
        %3134 = vmatpush.msra.mxu0 %v2667
        %3135 = vmatpush.msra.mxu0 %v2664
        %3136 = vmatpush.msra.mxu0 %v2661
        %3137 = vmatpush.msra.mxu0 %v2658
        %3138 = vmatpush.msra.mxu0 %v2655
        %3139 = vmatpush.msra.mxu0 %v2652
        %3140 = vmatpush.msra.mxu0 %v2649
        %3141 = vmatpush.msra.mxu0 %v2646
        %3142 = vmatpush.msra.mxu0 %v2643
        %3143 = vmatpush.msra.mxu0 %v2640
        %3144 = vmatpush.msra.mxu0 %v2637
        %3145 = vmatpush.msra.mxu0 %v2634
        %3146 = vmatmul.f32.gmra.mxu0 %v2148
        %v3147 = vpop.f32.mrf.mxu0
        %v3148 = vadd.f32 %v3128, %v3147
        %3149 = vdwg.mxu0
        %3150 = vmatpush.msra.mxu0 %v2727
        %3151 = vmatpush.msra.mxu0 %v2724
        %3152 = vmatpush.msra.mxu0 %v2721
        %3153 = vmatpush.msra.mxu0 %v2718
        %3154 = vmatpush.msra.mxu0 %v2715
        %3155 = vmatpush.msra.mxu0 %v2712
        %3156 = vmatpush.msra.mxu0 %v2709
        %3157 = vmatpush.msra.mxu0 %v2706
        %3158 = vmatpush.msra.mxu0 %v2703
        %3159 = vmatpush.msra.mxu0 %v2700
        %3160 = vmatpush.msra.mxu0 %v2697
        %3161 = vmatpush.msra.mxu0 %v2694
        %3162 = vmatpush.msra.mxu0 %v2691
        %3163 = vmatpush.msra.mxu0 %v2688
        %3164 = vmatpush.msra.mxu0 %v2685
        %3165 = vmatpush.msra.mxu0 %v2682
        %3166 = vmatmul.f32.gmra.mxu0 %v2149
        %v3167 = vpop.f32.mrf.mxu0
        %v3168 = vadd.f32 %v3148, %v3167
        %3169 = vdwg.mxu0
        %3170 = vmatpush.msra.mxu0 %v2775
        %3171 = vmatpush.msra.mxu0 %v2772
        %3172 = vmatpush.msra.mxu0 %v2769
        %3173 = vmatpush.msra.mxu0 %v2766
        %3174 = vmatpush.msra.mxu0 %v2763
        %3175 = vmatpush.msra.mxu0 %v2760
        %3176 = vmatpush.msra.mxu0 %v2757
        %3177 = vmatpush.msra.mxu0 %v2754
        %3178 = vmatpush.msra.mxu0 %v2751
        %3179 = vmatpush.msra.mxu0 %v2748
        %3180 = vmatpush.msra.mxu0 %v2745
        %3181 = vmatpush.msra.mxu0 %v2742
        %3182 = vmatpush.msra.mxu0 %v2739
        %3183 = vmatpush.msra.mxu0 %v2736
        %3184 = vmatpush.msra.mxu0 %v2733
        %3185 = vmatpush.msra.mxu0 %v2730
        %3186 = vmatmul.f32.gmra.mxu0 %v2150
        %v3187 = vpop.f32.mrf.mxu0
        %v3188 = vadd.f32 %v3168, %v3187
        %3189 = vdwg.mxu0
        %3190 = vmatpush.msra.mxu0 %v2823
        %3191 = vmatpush.msra.mxu0 %v2820
        %3192 = vmatpush.msra.mxu0 %v2817
        %3193 = vmatpush.msra.mxu0 %v2814
        %3194 = vmatpush.msra.mxu0 %v2811
        %3195 = vmatpush.msra.mxu0 %v2808
        %3196 = vmatpush.msra.mxu0 %v2805
        %3197 = vmatpush.msra.mxu0 %v2802
        %3198 = vmatpush.msra.mxu0 %v2799
        %3199 = vmatpush.msra.mxu0 %v2796
        %3200 = vmatpush.msra.mxu0 %v2793
        %3201 = vmatpush.msra.mxu0 %v2790
        %3202 = vmatpush.msra.mxu0 %v2787
        %3203 = vmatpush.msra.mxu0 %v2784
        %3204 = vmatpush.msra.mxu0 %v2781
        %3205 = vmatpush.msra.mxu0 %v2778
        %3206 = vmatmul.f32.gmra.mxu0 %v2151
        %v3207 = vpop.f32.mrf.mxu0
        %v3208 = vadd.f32 %v3188, %v3207
        %3209 = vdwg.mxu0
        %3210 = vmatpush.msra.mxu0 %v2871
        %3211 = vmatpush.msra.mxu0 %v2868
        %3212 = vmatpush.msra.mxu0 %v2865
        %3213 = vmatpush.msra.mxu0 %v2862
        %3214 = vmatpush.msra.mxu0 %v2859
        %3215 = vmatpush.msra.mxu0 %v2856
        %3216 = vmatpush.msra.mxu0 %v2853
        %3217 = vmatpush.msra.mxu0 %v2850
        %3218 = vmatpush.msra.mxu0 %v2847
        %3219 = vmatpush.msra.mxu0 %v2844
        %3220 = vmatpush.msra.mxu0 %v2841
        %3221 = vmatpush.msra.mxu0 %v2838
        %3222 = vmatpush.msra.mxu0 %v2835
        %3223 = vmatpush.msra.mxu0 %v2832
        %3224 = vmatpush.msra.mxu0 %v2829
        %3225 = vmatpush.msra.mxu0 %v2826
        %3226 = vmatmul.f32.gmra.mxu0 %v2152
        %v3227 = vpop.f32.mrf.mxu0
        %v3228 = vadd.f32 %v3208, %v3227
        %3229 = vdwg.mxu0
        %3230 = vmatpush.msra.mxu0 %v2919
        %3231 = vmatpush.msra.mxu0 %v2916
        %3232 = vmatpush.msra.mxu0 %v2913
        %3233 = vmatpush.msra.mxu0 %v2910
        %3234 = vmatpush.msra.mxu0 %v2907
        %3235 = vmatpush.msra.mxu0 %v2904
        %3236 = vmatpush.msra.mxu0 %v2901
        %3237 = vmatpush.msra.mxu0 %v2898
        %3238 = vmatpush.msra.mxu0 %v2895
        %3239 = vmatpush.msra.mxu0 %v2892
        %3240 = vmatpush.msra.mxu0 %v2889
        %3241 = vmatpush.msra.mxu0 %v2886
        %3242 = vmatpush.msra.mxu0 %v2883
        %3243 = vmatpush.msra.mxu0 %v2880
        %3244 = vmatpush.msra.mxu0 %v2877
        %3245 = vmatpush.msra.mxu0 %v2874
        %3246 = vmatmul.f32.gmra.mxu0 %v2153
        %v3247 = vpop.f32.mrf.mxu0
        %v3248 = vadd.f32 %v3228, %v3247
        %3249 = vdwg.mxu0
        %3250 = vmatpush.msra.mxu0 %v2200
        %3251 = vmatpush.msra.mxu0 %v2197
        %3252 = vmatpush.msra.mxu0 %v2194
        %3253 = vmatpush.msra.mxu0 %v2191
        %3254 = vmatpush.msra.mxu0 %v2188
        %3255 = vmatpush.msra.mxu0 %v2185
        %3256 = vmatpush.msra.mxu0 %v2182
        %3257 = vmatpush.msra.mxu0 %v2179
        %3258 = vmatpush.msra.mxu0 %v2176
        %3259 = vmatpush.msra.mxu0 %v2173
        %3260 = vmatpush.msra.mxu0 %v2170
        %3261 = vmatpush.msra.mxu0 %v2167
        %3262 = vmatpush.msra.mxu0 %v2164
        %3263 = vmatpush.msra.mxu0 %v2161
        %3264 = vmatpush.msra.mxu0 %v2158
        %3265 = vmatpush.msra.mxu0 %v2155
        %3266 = vmatmul.f32.gmra.mxu0 %v2138
        %v3267 = vpop.f32.mrf.mxu0
        %v3268 = vadd.f32 %v2925, %v3267
        %3269 = vdwg.mxu0
        %3270 = vmatpush.msra.mxu0 %v2248
        %3271 = vmatpush.msra.mxu0 %v2245
        %3272 = vmatpush.msra.mxu0 %v2242
        %3273 = vmatpush.msra.mxu0 %v2239
        %3274 = vmatpush.msra.mxu0 %v2236
        %3275 = vmatpush.msra.mxu0 %v2233
        %3276 = vmatpush.msra.mxu0 %v2230
        %3277 = vmatpush.msra.mxu0 %v2227
        %3278 = vmatpush.msra.mxu0 %v2224
        %3279 = vmatpush.msra.mxu0 %v2221
        %3280 = vmatpush.msra.mxu0 %v2218
        %3281 = vmatpush.msra.mxu0 %v2215
        %3282 = vmatpush.msra.mxu0 %v2212
        %3283 = vmatpush.msra.mxu0 %v2209
        %3284 = vmatpush.msra.mxu0 %v2206
        %3285 = vmatpush.msra.mxu0 %v2203
        %3286 = vmatmul.f32.gmra.mxu0 %v2139
        %v3287 = vpop.f32.mrf.mxu0
        %v3288 = vadd.f32 %v3268, %v3287
        %3289 = vdwg.mxu0
        %3290 = vmatpush.msra.mxu0 %v2296
        %3291 = vmatpush.msra.mxu0 %v2293
        %3292 = vmatpush.msra.mxu0 %v2290
        %3293 = vmatpush.msra.mxu0 %v2287
        %3294 = vmatpush.msra.mxu0 %v2284
        %3295 = vmatpush.msra.mxu0 %v2281
        %3296 = vmatpush.msra.mxu0 %v2278
        %3297 = vmatpush.msra.mxu0 %v2275
        %3298 = vmatpush.msra.mxu0 %v2272
        %3299 = vmatpush.msra.mxu0 %v2269
        %3300 = vmatpush.msra.mxu0 %v2266
        %3301 = vmatpush.msra.mxu0 %v2263
        %3302 = vmatpush.msra.mxu0 %v2260
        %3303 = vmatpush.msra.mxu0 %v2257
        %3304 = vmatpush.msra.mxu0 %v2254
        %3305 = vmatpush.msra.mxu0 %v2251
        %3306 = vmatmul.f32.gmra.mxu0 %v2140
        %v3307 = vpop.f32.mrf.mxu0
        %v3308 = vadd.f32 %v3288, %v3307
        %3309 = vdwg.mxu0
        %3310 = vmatpush.msra.mxu0 %v2344
        %3311 = vmatpush.msra.mxu0 %v2341
        %3312 = vmatpush.msra.mxu0 %v2338
        %3313 = vmatpush.msra.mxu0 %v2335
        %3314 = vmatpush.msra.mxu0 %v2332
        %3315 = vmatpush.msra.mxu0 %v2329
        %3316 = vmatpush.msra.mxu0 %v2326
        %3317 = vmatpush.msra.mxu0 %v2323
        %3318 = vmatpush.msra.mxu0 %v2320
        %3319 = vmatpush.msra.mxu0 %v2317
        %3320 = vmatpush.msra.mxu0 %v2314
        %3321 = vmatpush.msra.mxu0 %v2311
        %3322 = vmatpush.msra.mxu0 %v2308
        %3323 = vmatpush.msra.mxu0 %v2305
        %3324 = vmatpush.msra.mxu0 %v2302
        %3325 = vmatpush.msra.mxu0 %v2299
        %3326 = vmatmul.f32.gmra.mxu0 %v2141
        %v3327 = vpop.f32.mrf.mxu0
        %v3328 = vadd.f32 %v3308, %v3327
        %3329 = vdwg.mxu0
        %3330 = vmatpush.msra.mxu0 %v2392
        %3331 = vmatpush.msra.mxu0 %v2389
        %3332 = vmatpush.msra.mxu0 %v2386
        %3333 = vmatpush.msra.mxu0 %v2383
        %3334 = vmatpush.msra.mxu0 %v2380
        %3335 = vmatpush.msra.mxu0 %v2377
        %3336 = vmatpush.msra.mxu0 %v2374
        %3337 = vmatpush.msra.mxu0 %v2371
        %3338 = vmatpush.msra.mxu0 %v2368
        %3339 = vmatpush.msra.mxu0 %v2365
        %3340 = vmatpush.msra.mxu0 %v2362
        %3341 = vmatpush.msra.mxu0 %v2359
        %3342 = vmatpush.msra.mxu0 %v2356
        %3343 = vmatpush.msra.mxu0 %v2353
        %3344 = vmatpush.msra.mxu0 %v2350
        %3345 = vmatpush.msra.mxu0 %v2347
        %3346 = vmatmul.f32.gmra.mxu0 %v2142
        %v3347 = vpop.f32.mrf.mxu0
        %v3348 = vadd.f32 %v3328, %v3347
        %3349 = vdwg.mxu0
        %3350 = vmatpush.msra.mxu0 %v2440
        %3351 = vmatpush.msra.mxu0 %v2437
        %3352 = vmatpush.msra.mxu0 %v2434
        %3353 = vmatpush.msra.mxu0 %v2431
        %3354 = vmatpush.msra.mxu0 %v2428
        %3355 = vmatpush.msra.mxu0 %v2425
        %3356 = vmatpush.msra.mxu0 %v2422
        %3357 = vmatpush.msra.mxu0 %v2419
        %3358 = vmatpush.msra.mxu0 %v2416
        %3359 = vmatpush.msra.mxu0 %v2413
        %3360 = vmatpush.msra.mxu0 %v2410
        %3361 = vmatpush.msra.mxu0 %v2407
        %3362 = vmatpush.msra.mxu0 %v2404
        %3363 = vmatpush.msra.mxu0 %v2401
        %3364 = vmatpush.msra.mxu0 %v2398
        %3365 = vmatpush.msra.mxu0 %v2395
        %3366 = vmatmul.f32.gmra.mxu0 %v2143
        %v3367 = vpop.f32.mrf.mxu0
        %v3368 = vadd.f32 %v3348, %v3367
        %3369 = vdwg.mxu0
        %3370 = vmatpush.msra.mxu0 %v2488
        %3371 = vmatpush.msra.mxu0 %v2485
        %3372 = vmatpush.msra.mxu0 %v2482
        %3373 = vmatpush.msra.mxu0 %v2479
        %3374 = vmatpush.msra.mxu0 %v2476
        %3375 = vmatpush.msra.mxu0 %v2473
        %3376 = vmatpush.msra.mxu0 %v2470
        %3377 = vmatpush.msra.mxu0 %v2467
        %3378 = vmatpush.msra.mxu0 %v2464
        %3379 = vmatpush.msra.mxu0 %v2461
        %3380 = vmatpush.msra.mxu0 %v2458
        %3381 = vmatpush.msra.mxu0 %v2455
        %3382 = vmatpush.msra.mxu0 %v2452
        %3383 = vmatpush.msra.mxu0 %v2449
        %3384 = vmatpush.msra.mxu0 %v2446
        %3385 = vmatpush.msra.mxu0 %v2443
        %3386 = vmatmul.f32.gmra.mxu0 %v2144
        %v3387 = vpop.f32.mrf.mxu0
        %v3388 = vadd.f32 %v3368, %v3387
        %3389 = vdwg.mxu0
        %3390 = vmatpush.msra.mxu0 %v2536
        %3391 = vmatpush.msra.mxu0 %v2533
        %3392 = vmatpush.msra.mxu0 %v2530
        %3393 = vmatpush.msra.mxu0 %v2527
        %3394 = vmatpush.msra.mxu0 %v2524
        %3395 = vmatpush.msra.mxu0 %v2521
        %3396 = vmatpush.msra.mxu0 %v2518
        %3397 = vmatpush.msra.mxu0 %v2515
        %3398 = vmatpush.msra.mxu0 %v2512
        %3399 = vmatpush.msra.mxu0 %v2509
        %3400 = vmatpush.msra.mxu0 %v2506
        %3401 = vmatpush.msra.mxu0 %v2503
        %3402 = vmatpush.msra.mxu0 %v2500
        %3403 = vmatpush.msra.mxu0 %v2497
        %3404 = vmatpush.msra.mxu0 %v2494
        %3405 = vmatpush.msra.mxu0 %v2491
        %3406 = vmatmul.f32.gmra.mxu0 %v2145
        %v3407 = vpop.f32.mrf.mxu0
        %v3408 = vadd.f32 %v3388, %v3407
        %3409 = vdwg.mxu0
        %3410 = vmatpush.msra.mxu0 %v2584
        %3411 = vmatpush.msra.mxu0 %v2581
        %3412 = vmatpush.msra.mxu0 %v2578
        %3413 = vmatpush.msra.mxu0 %v2575
        %3414 = vmatpush.msra.mxu0 %v2572
        %3415 = vmatpush.msra.mxu0 %v2569
        %3416 = vmatpush.msra.mxu0 %v2566
        %3417 = vmatpush.msra.mxu0 %v2563
        %3418 = vmatpush.msra.mxu0 %v2560
        %3419 = vmatpush.msra.mxu0 %v2557
        %3420 = vmatpush.msra.mxu0 %v2554
        %3421 = vmatpush.msra.mxu0 %v2551
        %3422 = vmatpush.msra.mxu0 %v2548
        %3423 = vmatpush.msra.mxu0 %v2545
        %3424 = vmatpush.msra.mxu0 %v2542
        %3425 = vmatpush.msra.mxu0 %v2539
        %3426 = vmatmul.f32.gmra.mxu0 %v2146
        %v3427 = vpop.f32.mrf.mxu0
        %v3428 = vadd.f32 %v3408, %v3427
        %3429 = vdwg.mxu0
        %3430 = vmatpush.msra.mxu0 %v2632
        %3431 = vmatpush.msra.mxu0 %v2629
        %3432 = vmatpush.msra.mxu0 %v2626
        %3433 = vmatpush.msra.mxu0 %v2623
        %3434 = vmatpush.msra.mxu0 %v2620
        %3435 = vmatpush.msra.mxu0 %v2617
        %3436 = vmatpush.msra.mxu0 %v2614
        %3437 = vmatpush.msra.mxu0 %v2611
        %3438 = vmatpush.msra.mxu0 %v2608
        %3439 = vmatpush.msra.mxu0 %v2605
        %3440 = vmatpush.msra.mxu0 %v2602
        %3441 = vmatpush.msra.mxu0 %v2599
        %3442 = vmatpush.msra.mxu0 %v2596
        %3443 = vmatpush.msra.mxu0 %v2593
        %3444 = vmatpush.msra.mxu0 %v2590
        %3445 = vmatpush.msra.mxu0 %v2587
        %3446 = vmatmul.f32.gmra.mxu0 %v2147
        %v3447 = vpop.f32.mrf.mxu0
        %v3448 = vadd.f32 %v3428, %v3447
        %3449 = vdwg.mxu0
        %3450 = vmatpush.msra.mxu0 %v2680
        %3451 = vmatpush.msra.mxu0 %v2677
        %3452 = vmatpush.msra.mxu0 %v2674
        %3453 = vmatpush.msra.mxu0 %v2671
        %3454 = vmatpush.msra.mxu0 %v2668
        %3455 = vmatpush.msra.mxu0 %v2665
        %3456 = vmatpush.msra.mxu0 %v2662
        %3457 = vmatpush.msra.mxu0 %v2659
        %3458 = vmatpush.msra.mxu0 %v2656
        %3459 = vmatpush.msra.mxu0 %v2653
        %3460 = vmatpush.msra.mxu0 %v2650
        %3461 = vmatpush.msra.mxu0 %v2647
        %3462 = vmatpush.msra.mxu0 %v2644
        %3463 = vmatpush.msra.mxu0 %v2641
        %3464 = vmatpush.msra.mxu0 %v2638
        %3465 = vmatpush.msra.mxu0 %v2635
        %3466 = vmatmul.f32.gmra.mxu0 %v2148
        %v3467 = vpop.f32.mrf.mxu0
        %v3468 = vadd.f32 %v3448, %v3467
        %3469 = vdwg.mxu0
        %3470 = vmatpush.msra.mxu0 %v2728
        %3471 = vmatpush.msra.mxu0 %v2725
        %3472 = vmatpush.msra.mxu0 %v2722
        %3473 = vmatpush.msra.mxu0 %v2719
        %3474 = vmatpush.msra.mxu0 %v2716
        %3475 = vmatpush.msra.mxu0 %v2713
        %3476 = vmatpush.msra.mxu0 %v2710
        %3477 = vmatpush.msra.mxu0 %v2707
        %3478 = vmatpush.msra.mxu0 %v2704
        %3479 = vmatpush.msra.mxu0 %v2701
        %3480 = vmatpush.msra.mxu0 %v2698
        %3481 = vmatpush.msra.mxu0 %v2695
        %3482 = vmatpush.msra.mxu0 %v2692
        %3483 = vmatpush.msra.mxu0 %v2689
        %3484 = vmatpush.msra.mxu0 %v2686
        %3485 = vmatpush.msra.mxu0 %v2683
        %3486 = vmatmul.f32.gmra.mxu0 %v2149
        %v3487 = vpop.f32.mrf.mxu0
        %v3488 = vadd.f32 %v3468, %v3487
        %3489 = vdwg.mxu0
        %3490 = vmatpush.msra.mxu0 %v2776
        %3491 = vmatpush.msra.mxu0 %v2773
        %3492 = vmatpush.msra.mxu0 %v2770
        %3493 = vmatpush.msra.mxu0 %v2767
        %3494 = vmatpush.msra.mxu0 %v2764
        %3495 = vmatpush.msra.mxu0 %v2761
        %3496 = vmatpush.msra.mxu0 %v2758
        %3497 = vmatpush.msra.mxu0 %v2755
        %3498 = vmatpush.msra.mxu0 %v2752
        %3499 = vmatpush.msra.mxu0 %v2749
        %3500 = vmatpush.msra.mxu0 %v2746
        %3501 = vmatpush.msra.mxu0 %v2743
        %3502 = vmatpush.msra.mxu0 %v2740
        %3503 = vmatpush.msra.mxu0 %v2737
        %3504 = vmatpush.msra.mxu0 %v2734
        %3505 = vmatpush.msra.mxu0 %v2731
        %3506 = vmatmul.f32.gmra.mxu0 %v2150
        %v3507 = vpop.f32.mrf.mxu0
        %v3508 = vadd.f32 %v3488, %v3507
        %3509 = vdwg.mxu0
        %3510 = vmatpush.msra.mxu0 %v2824
        %3511 = vmatpush.msra.mxu0 %v2821
        %3512 = vmatpush.msra.mxu0 %v2818
        %3513 = vmatpush.msra.mxu0 %v2815
        %3514 = vmatpush.msra.mxu0 %v2812
        %3515 = vmatpush.msra.mxu0 %v2809
        %3516 = vmatpush.msra.mxu0 %v2806
        %3517 = vmatpush.msra.mxu0 %v2803
        %3518 = vmatpush.msra.mxu0 %v2800
        %3519 = vmatpush.msra.mxu0 %v2797
        %3520 = vmatpush.msra.mxu0 %v2794
        %3521 = vmatpush.msra.mxu0 %v2791
        %3522 = vmatpush.msra.mxu0 %v2788
        %3523 = vmatpush.msra.mxu0 %v2785
        %3524 = vmatpush.msra.mxu0 %v2782
        %3525 = vmatpush.msra.mxu0 %v2779
        %3526 = vmatmul.f32.gmra.mxu0 %v2151
        %v3527 = vpop.f32.mrf.mxu0
        %v3528 = vadd.f32 %v3508, %v3527
        %3529 = vdwg.mxu0
        %3530 = vmatpush.msra.mxu0 %v2872
        %3531 = vmatpush.msra.mxu0 %v2869
        %3532 = vmatpush.msra.mxu0 %v2866
        %3533 = vmatpush.msra.mxu0 %v2863
        %3534 = vmatpush.msra.mxu0 %v2860
        %3535 = vmatpush.msra.mxu0 %v2857
        %3536 = vmatpush.msra.mxu0 %v2854
        %3537 = vmatpush.msra.mxu0 %v2851
        %3538 = vmatpush.msra.mxu0 %v2848
        %3539 = vmatpush.msra.mxu0 %v2845
        %3540 = vmatpush.msra.mxu0 %v2842
        %3541 = vmatpush.msra.mxu0 %v2839
        %3542 = vmatpush.msra.mxu0 %v2836
        %3543 = vmatpush.msra.mxu0 %v2833
        %3544 = vmatpush.msra.mxu0 %v2830
        %3545 = vmatpush.msra.mxu0 %v2827
        %3546 = vmatmul.f32.gmra.mxu0 %v2152
        %v3547 = vpop.f32.mrf.mxu0
        %v3548 = vadd.f32 %v3528, %v3547
        %3549 = vdwg.mxu0
        %3550 = vmatpush.msra.mxu0 %v2920
        %3551 = vmatpush.msra.mxu0 %v2917
        %3552 = vmatpush.msra.mxu0 %v2914
        %3553 = vmatpush.msra.mxu0 %v2911
        %3554 = vmatpush.msra.mxu0 %v2908
        %3555 = vmatpush.msra.mxu0 %v2905
        %3556 = vmatpush.msra.mxu0 %v2902
        %3557 = vmatpush.msra.mxu0 %v2899
        %3558 = vmatpush.msra.mxu0 %v2896
        %3559 = vmatpush.msra.mxu0 %v2893
        %3560 = vmatpush.msra.mxu0 %v2890
        %3561 = vmatpush.msra.mxu0 %v2887
        %3562 = vmatpush.msra.mxu0 %v2884
        %3563 = vmatpush.msra.mxu0 %v2881
        %3564 = vmatpush.msra.mxu0 %v2878
        %3565 = vmatpush.msra.mxu0 %v2875
        %3566 = vmatmul.f32.gmra.mxu0 %v2153
        %v3567 = vpop.f32.mrf.mxu0
        %v3568 = vadd.f32 %v3548, %v3567
        %3569 = vdwg.mxu0
        %3570 = vmatpush.msra.mxu0 %v2201
        %3571 = vmatpush.msra.mxu0 %v2198
        %3572 = vmatpush.msra.mxu0 %v2195
        %3573 = vmatpush.msra.mxu0 %v2192
        %3574 = vmatpush.msra.mxu0 %v2189
        %3575 = vmatpush.msra.mxu0 %v2186
        %3576 = vmatpush.msra.mxu0 %v2183
        %3577 = vmatpush.msra.mxu0 %v2180
        %3578 = vmatpush.msra.mxu0 %v2177
        %3579 = vmatpush.msra.mxu0 %v2174
        %3580 = vmatpush.msra.mxu0 %v2171
        %3581 = vmatpush.msra.mxu0 %v2168
        %3582 = vmatpush.msra.mxu0 %v2165
        %3583 = vmatpush.msra.mxu0 %v2162
        %3584 = vmatpush.msra.mxu0 %v2159
        %3585 = vmatpush.msra.mxu0 %v2156
        %3586 = vmatmul.f32.gmra.mxu0 %v2138
        %v3587 = vpop.f32.mrf.mxu0
        %v3588 = vadd.f32 %v2926, %v3587
        %3589 = vdwg.mxu0
        %3590 = vmatpush.msra.mxu0 %v2249
        %3591 = vmatpush.msra.mxu0 %v2246
        %3592 = vmatpush.msra.mxu0 %v2243
        %3593 = vmatpush.msra.mxu0 %v2240
        %3594 = vmatpush.msra.mxu0 %v2237
        %3595 = vmatpush.msra.mxu0 %v2234
        %3596 = vmatpush.msra.mxu0 %v2231
        %3597 = vmatpush.msra.mxu0 %v2228
        %3598 = vmatpush.msra.mxu0 %v2225
        %3599 = vmatpush.msra.mxu0 %v2222
        %3600 = vmatpush.msra.mxu0 %v2219
        %3601 = vmatpush.msra.mxu0 %v2216
        %3602 = vmatpush.msra.mxu0 %v2213
        %3603 = vmatpush.msra.mxu0 %v2210
        %3604 = vmatpush.msra.mxu0 %v2207
        %3605 = vmatpush.msra.mxu0 %v2204
        %3606 = vmatmul.f32.gmra.mxu0 %v2139
        %v3607 = vpop.f32.mrf.mxu0
        %v3608 = vadd.f32 %v3588, %v3607
        %3609 = vdwg.mxu0
        %3610 = vmatpush.msra.mxu0 %v2297
        %3611 = vmatpush.msra.mxu0 %v2294
        %3612 = vmatpush.msra.mxu0 %v2291
        %3613 = vmatpush.msra.mxu0 %v2288
        %3614 = vmatpush.msra.mxu0 %v2285
        %3615 = vmatpush.msra.mxu0 %v2282
        %3616 = vmatpush.msra.mxu0 %v2279
        %3617 = vmatpush.msra.mxu0 %v2276
        %3618 = vmatpush.msra.mxu0 %v2273
        %3619 = vmatpush.msra.mxu0 %v2270
        %3620 = vmatpush.msra.mxu0 %v2267
        %3621 = vmatpush.msra.mxu0 %v2264
        %3622 = vmatpush.msra.mxu0 %v2261
        %3623 = vmatpush.msra.mxu0 %v2258
        %3624 = vmatpush.msra.mxu0 %v2255
        %3625 = vmatpush.msra.mxu0 %v2252
        %3626 = vmatmul.f32.gmra.mxu0 %v2140
        %v3627 = vpop.f32.mrf.mxu0
        %v3628 = vadd.f32 %v3608, %v3627
        %3629 = vdwg.mxu0
        %3630 = vmatpush.msra.mxu0 %v2345
        %3631 = vmatpush.msra.mxu0 %v2342
        %3632 = vmatpush.msra.mxu0 %v2339
        %3633 = vmatpush.msra.mxu0 %v2336
        %3634 = vmatpush.msra.mxu0 %v2333
        %3635 = vmatpush.msra.mxu0 %v2330
        %3636 = vmatpush.msra.mxu0 %v2327
        %3637 = vmatpush.msra.mxu0 %v2324
        %3638 = vmatpush.msra.mxu0 %v2321
        %3639 = vmatpush.msra.mxu0 %v2318
        %3640 = vmatpush.msra.mxu0 %v2315
        %3641 = vmatpush.msra.mxu0 %v2312
        %3642 = vmatpush.msra.mxu0 %v2309
        %3643 = vmatpush.msra.mxu0 %v2306
        %3644 = vmatpush.msra.mxu0 %v2303
        %3645 = vmatpush.msra.mxu0 %v2300
        %3646 = vmatmul.f32.gmra.mxu0 %v2141
        %v3647 = vpop.f32.mrf.mxu0
        %v3648 = vadd.f32 %v3628, %v3647
        %3649 = vdwg.mxu0
        %3650 = vmatpush.msra.mxu0 %v2393
        %3651 = vmatpush.msra.mxu0 %v2390
        %3652 = vmatpush.msra.mxu0 %v2387
        %3653 = vmatpush.msra.mxu0 %v2384
        %3654 = vmatpush.msra.mxu0 %v2381
        %3655 = vmatpush.msra.mxu0 %v2378
        %3656 = vmatpush.msra.mxu0 %v2375
        %3657 = vmatpush.msra.mxu0 %v2372
        %3658 = vmatpush.msra.mxu0 %v2369
        %3659 = vmatpush.msra.mxu0 %v2366
        %3660 = vmatpush.msra.mxu0 %v2363
        %3661 = vmatpush.msra.mxu0 %v2360
        %3662 = vmatpush.msra.mxu0 %v2357
        %3663 = vmatpush.msra.mxu0 %v2354
        %3664 = vmatpush.msra.mxu0 %v2351
        %3665 = vmatpush.msra.mxu0 %v2348
        %3666 = vmatmul.f32.gmra.mxu0 %v2142
        %v3667 = vpop.f32.mrf.mxu0
        %v3668 = vadd.f32 %v3648, %v3667
        %3669 = vdwg.mxu0
        %3670 = vmatpush.msra.mxu0 %v2441
        %3671 = vmatpush.msra.mxu0 %v2438
        %3672 = vmatpush.msra.mxu0 %v2435
        %3673 = vmatpush.msra.mxu0 %v2432
        %3674 = vmatpush.msra.mxu0 %v2429
        %3675 = vmatpush.msra.mxu0 %v2426
        %3676 = vmatpush.msra.mxu0 %v2423
        %3677 = vmatpush.msra.mxu0 %v2420
        %3678 = vmatpush.msra.mxu0 %v2417
        %3679 = vmatpush.msra.mxu0 %v2414
        %3680 = vmatpush.msra.mxu0 %v2411
        %3681 = vmatpush.msra.mxu0 %v2408
        %3682 = vmatpush.msra.mxu0 %v2405
        %3683 = vmatpush.msra.mxu0 %v2402
        %3684 = vmatpush.msra.mxu0 %v2399
        %3685 = vmatpush.msra.mxu0 %v2396
        %3686 = vmatmul.f32.gmra.mxu0 %v2143
        %v3687 = vpop.f32.mrf.mxu0
        %v3688 = vadd.f32 %v3668, %v3687
        %3689 = vdwg.mxu0
        %3690 = vmatpush.msra.mxu0 %v2489
        %3691 = vmatpush.msra.mxu0 %v2486
        %3692 = vmatpush.msra.mxu0 %v2483
        %3693 = vmatpush.msra.mxu0 %v2480
        %3694 = vmatpush.msra.mxu0 %v2477
        %3695 = vmatpush.msra.mxu0 %v2474
        %3696 = vmatpush.msra.mxu0 %v2471
        %3697 = vmatpush.msra.mxu0 %v2468
        %3698 = vmatpush.msra.mxu0 %v2465
        %3699 = vmatpush.msra.mxu0 %v2462
        %3700 = vmatpush.msra.mxu0 %v2459
        %3701 = vmatpush.msra.mxu0 %v2456
        %3702 = vmatpush.msra.mxu0 %v2453
        %3703 = vmatpush.msra.mxu0 %v2450
        %3704 = vmatpush.msra.mxu0 %v2447
        %3705 = vmatpush.msra.mxu0 %v2444
        %3706 = vmatmul.f32.gmra.mxu0 %v2144
        %v3707 = vpop.f32.mrf.mxu0
        %v3708 = vadd.f32 %v3688, %v3707
        %3709 = vdwg.mxu0
        %3710 = vmatpush.msra.mxu0 %v2537
        %3711 = vmatpush.msra.mxu0 %v2534
        %3712 = vmatpush.msra.mxu0 %v2531
        %3713 = vmatpush.msra.mxu0 %v2528
        %3714 = vmatpush.msra.mxu0 %v2525
        %3715 = vmatpush.msra.mxu0 %v2522
        %3716 = vmatpush.msra.mxu0 %v2519
        %3717 = vmatpush.msra.mxu0 %v2516
        %3718 = vmatpush.msra.mxu0 %v2513
        %3719 = vmatpush.msra.mxu0 %v2510
        %3720 = vmatpush.msra.mxu0 %v2507
        %3721 = vmatpush.msra.mxu0 %v2504
        %3722 = vmatpush.msra.mxu0 %v2501
        %3723 = vmatpush.msra.mxu0 %v2498
        %3724 = vmatpush.msra.mxu0 %v2495
        %3725 = vmatpush.msra.mxu0 %v2492
        %3726 = vmatmul.f32.gmra.mxu0 %v2145
        %v3727 = vpop.f32.mrf.mxu0
        %v3728 = vadd.f32 %v3708, %v3727
        %3729 = vdwg.mxu0
        %3730 = vmatpush.msra.mxu0 %v2585
        %3731 = vmatpush.msra.mxu0 %v2582
        %3732 = vmatpush.msra.mxu0 %v2579
        %3733 = vmatpush.msra.mxu0 %v2576
        %3734 = vmatpush.msra.mxu0 %v2573
        %3735 = vmatpush.msra.mxu0 %v2570
        %3736 = vmatpush.msra.mxu0 %v2567
        %3737 = vmatpush.msra.mxu0 %v2564
        %3738 = vmatpush.msra.mxu0 %v2561
        %3739 = vmatpush.msra.mxu0 %v2558
        %3740 = vmatpush.msra.mxu0 %v2555
        %3741 = vmatpush.msra.mxu0 %v2552
        %3742 = vmatpush.msra.mxu0 %v2549
        %3743 = vmatpush.msra.mxu0 %v2546
        %3744 = vmatpush.msra.mxu0 %v2543
        %3745 = vmatpush.msra.mxu0 %v2540
        %3746 = vmatmul.f32.gmra.mxu0 %v2146
        %v3747 = vpop.f32.mrf.mxu0
        %v3748 = vadd.f32 %v3728, %v3747
        %3749 = vdwg.mxu0
        %3750 = vmatpush.msra.mxu0 %v2633
        %3751 = vmatpush.msra.mxu0 %v2630
        %3752 = vmatpush.msra.mxu0 %v2627
        %3753 = vmatpush.msra.mxu0 %v2624
        %3754 = vmatpush.msra.mxu0 %v2621
        %3755 = vmatpush.msra.mxu0 %v2618
        %3756 = vmatpush.msra.mxu0 %v2615
        %3757 = vmatpush.msra.mxu0 %v2612
        %3758 = vmatpush.msra.mxu0 %v2609
        %3759 = vmatpush.msra.mxu0 %v2606
        %3760 = vmatpush.msra.mxu0 %v2603
        %3761 = vmatpush.msra.mxu0 %v2600
        %3762 = vmatpush.msra.mxu0 %v2597
        %3763 = vmatpush.msra.mxu0 %v2594
        %3764 = vmatpush.msra.mxu0 %v2591
        %3765 = vmatpush.msra.mxu0 %v2588
        %3766 = vmatmul.f32.gmra.mxu0 %v2147
        %v3767 = vpop.f32.mrf.mxu0
        %v3768 = vadd.f32 %v3748, %v3767
        %3769 = vdwg.mxu0
        %3770 = vmatpush.msra.mxu0 %v2681
        %3771 = vmatpush.msra.mxu0 %v2678
        %3772 = vmatpush.msra.mxu0 %v2675
        %3773 = vmatpush.msra.mxu0 %v2672
        %3774 = vmatpush.msra.mxu0 %v2669
        %3775 = vmatpush.msra.mxu0 %v2666
        %3776 = vmatpush.msra.mxu0 %v2663
        %3777 = vmatpush.msra.mxu0 %v2660
        %3778 = vmatpush.msra.mxu0 %v2657
        %3779 = vmatpush.msra.mxu0 %v2654
        %3780 = vmatpush.msra.mxu0 %v2651
        %3781 = vmatpush.msra.mxu0 %v2648
        %3782 = vmatpush.msra.mxu0 %v2645
        %3783 = vmatpush.msra.mxu0 %v2642
        %3784 = vmatpush.msra.mxu0 %v2639
        %3785 = vmatpush.msra.mxu0 %v2636
        %3786 = vmatmul.f32.gmra.mxu0 %v2148
        %v3787 = vpop.f32.mrf.mxu0
        %v3788 = vadd.f32 %v3768, %v3787
        %3789 = vdwg.mxu0
        %3790 = vmatpush.msra.mxu0 %v2729
        %3791 = vmatpush.msra.mxu0 %v2726
        %3792 = vmatpush.msra.mxu0 %v2723
        %3793 = vmatpush.msra.mxu0 %v2720
        %3794 = vmatpush.msra.mxu0 %v2717
        %3795 = vmatpush.msra.mxu0 %v2714
        %3796 = vmatpush.msra.mxu0 %v2711
        %3797 = vmatpush.msra.mxu0 %v2708
        %3798 = vmatpush.msra.mxu0 %v2705
        %3799 = vmatpush.msra.mxu0 %v2702
        %3800 = vmatpush.msra.mxu0 %v2699
        %3801 = vmatpush.msra.mxu0 %v2696
        %3802 = vmatpush.msra.mxu0 %v2693
        %3803 = vmatpush.msra.mxu0 %v2690
        %3804 = vmatpush.msra.mxu0 %v2687
        %3805 = vmatpush.msra.mxu0 %v2684
        %3806 = vmatmul.f32.gmra.mxu0 %v2149
        %v3807 = vpop.f32.mrf.mxu0
        %v3808 = vadd.f32 %v3788, %v3807
        %3809 = vdwg.mxu0
        %3810 = vmatpush.msra.mxu0 %v2777
        %3811 = vmatpush.msra.mxu0 %v2774
        %3812 = vmatpush.msra.mxu0 %v2771
        %3813 = vmatpush.msra.mxu0 %v2768
        %3814 = vmatpush.msra.mxu0 %v2765
        %3815 = vmatpush.msra.mxu0 %v2762
        %3816 = vmatpush.msra.mxu0 %v2759
        %3817 = vmatpush.msra.mxu0 %v2756
        %3818 = vmatpush.msra.mxu0 %v2753
        %3819 = vmatpush.msra.mxu0 %v2750
        %3820 = vmatpush.msra.mxu0 %v2747
        %3821 = vmatpush.msra.mxu0 %v2744
        %3822 = vmatpush.msra.mxu0 %v2741
        %3823 = vmatpush.msra.mxu0 %v2738
        %3824 = vmatpush.msra.mxu0 %v2735
        %3825 = vmatpush.msra.mxu0 %v2732
        %3826 = vmatmul.f32.gmra.mxu0 %v2150
        %v3827 = vpop.f32.mrf.mxu0
        %v3828 = vadd.f32 %v3808, %v3827
        %3829 = vdwg.mxu0
        %3830 = vmatpush.msra.mxu0 %v2825
        %3831 = vmatpush.msra.mxu0 %v2822
        %3832 = vmatpush.msra.mxu0 %v2819
        %3833 = vmatpush.msra.mxu0 %v2816
        %3834 = vmatpush.msra.mxu0 %v2813
        %3835 = vmatpush.msra.mxu0 %v2810
        %3836 = vmatpush.msra.mxu0 %v2807
        %3837 = vmatpush.msra.mxu0 %v2804
        %3838 = vmatpush.msra.mxu0 %v2801
        %3839 = vmatpush.msra.mxu0 %v2798
        %3840 = vmatpush.msra.mxu0 %v2795
        %3841 = vmatpush.msra.mxu0 %v2792
        %3842 = vmatpush.msra.mxu0 %v2789
        %3843 = vmatpush.msra.mxu0 %v2786
        %3844 = vmatpush.msra.mxu0 %v2783
        %3845 = vmatpush.msra.mxu0 %v2780
        %3846 = vmatmul.f32.gmra.mxu0 %v2151
        %v3847 = vpop.f32.mrf.mxu0
        %v3848 = vadd.f32 %v3828, %v3847
        %3849 = vdwg.mxu0
        %3850 = vmatpush.msra.mxu0 %v2873
        %3851 = vmatpush.msra.mxu0 %v2870
        %3852 = vmatpush.msra.mxu0 %v2867
        %3853 = vmatpush.msra.mxu0 %v2864
        %3854 = vmatpush.msra.mxu0 %v2861
        %3855 = vmatpush.msra.mxu0 %v2858
        %3856 = vmatpush.msra.mxu0 %v2855
        %3857 = vmatpush.msra.mxu0 %v2852
        %3858 = vmatpush.msra.mxu0 %v2849
        %3859 = vmatpush.msra.mxu0 %v2846
        %3860 = vmatpush.msra.mxu0 %v2843
        %3861 = vmatpush.msra.mxu0 %v2840
        %3862 = vmatpush.msra.mxu0 %v2837
        %3863 = vmatpush.msra.mxu0 %v2834
        %3864 = vmatpush.msra.mxu0 %v2831
        %3865 = vmatpush.msra.mxu0 %v2828
        %3866 = vmatmul.f32.gmra.mxu0 %v2152
        %v3867 = vpop.f32.mrf.mxu0
        %v3868 = vadd.f32 %v3848, %v3867
        %3869 = vdwg.mxu0
        %3870 = vmatpush.msra.mxu0 %v2921
        %3871 = vmatpush.msra.mxu0 %v2918
        %3872 = vmatpush.msra.mxu0 %v2915
        %3873 = vmatpush.msra.mxu0 %v2912
        %3874 = vmatpush.msra.mxu0 %v2909
        %3875 = vmatpush.msra.mxu0 %v2906
        %3876 = vmatpush.msra.mxu0 %v2903
        %3877 = vmatpush.msra.mxu0 %v2900
        %3878 = vmatpush.msra.mxu0 %v2897
        %3879 = vmatpush.msra.mxu0 %v2894
        %3880 = vmatpush.msra.mxu0 %v2891
        %3881 = vmatpush.msra.mxu0 %v2888
        %3882 = vmatpush.msra.mxu0 %v2885
        %3883 = vmatpush.msra.mxu0 %v2882
        %3884 = vmatpush.msra.mxu0 %v2879
        %3885 = vmatpush.msra.mxu0 %v2876
        %3886 = vmatmul.f32.gmra.mxu0 %v2153
        %v3887 = vpop.f32.mrf.mxu0
        %v3888 = vadd.f32 %v3868, %v3887
        %3889 = vdwg.mxu0
        %v3890 = vadd.f32 %v371, %v3248
        %v3891 = vadd.f32 %v372, %v3568
        %v3892 = vadd.f32 %v373, %v3888
        %v3893 = vadd.f32 %v3890, %v3891
        %v3894 = vadd.f32 %v3893, %v3892
        %3895 = vadd.xlane.f32.xlu0 %v3894
        %v3896 = vpop.xlane.xlu0 %3895
        %v3897 = vrcp.pop 384.0
        %v3898 = vmul.f32 384.0, %v3897
        %v3899 = vsub.f32 1.0, %v3898
        %v3900 = vmul.f32 %v3897, %v3899
        %v3901 = vadd.f32 %v3897, %v3900
        %vm3902 = vweird.f32 %v3897
        %v3903 = vsel %vm3902, %v3897, %v3901
        %v3904 = vmul.f32 %v3896, %v3903
        %v3905 = vsub.f32 %v3890, %v3904
        %v3906 = vsub.f32 %v3891, %v3904
        %v3907 = vsub.f32 %v3892, %v3904
        %v3908 = vmul.f32 %v3905, %v3905
        %v3909 = vmul.f32 %v3906, %v3906
        %v3910 = vmul.f32 %v3907, %v3907
        %v3911 = vadd.f32 %v3908, %v3909
        %v3912 = vadd.f32 %v3911, %v3910
        %3913 = vadd.xlane.f32.xlu0 %v3912
        %v3914 = vpop.xlane.xlu0 %3913
        %v3915 = vmul.f32 %v3914, %v3903
        %v3916 = vadd.f32 %v3915, 1e-05
        %v3917 = vrsqrt.pop %v3916
        %v3918 = vmul.f32 %v3917, %v3916
        %v3919 = vmul.f32 %v3918, %v3917
        %v3920 = vmul.f32 0.5, %v3919
        %v3921 = vsub.f32 1.5, %v3920
        %v3922 = vmul.f32 %v3917, %v3921
        %vm3923 = vweird.f32 %v3916
        %vm3924 = vweird.f32 %v3917
        %vm3925 = vmor %vm3923, %vm3924
        %v3926 = vsel %vm3925, %v3917, %v3922
        %v3927 = vmul.f32 %v3905, %v3926
        %v3928 = vmul.f32 %v3906, %v3926
        %v3929 = vmul.f32 %v3907, %v3926
        %v3930 = vld [vmem:[#allocation9] sm:$0x7]
        %v3932 = vperm.slane %v3930, 0
        %v3933 = vperm.slane %v3930, 1
        %v3934 = vperm.slane %v3930, 2
        %v3938 = vmul.f32 %v3927, %v3932
        %v3939 = vmul.f32 %v3928, %v3933
        %v3940 = vmul.f32 %v3929, %v3934
        %v3941 = vld [vmem:[#allocation10] sm:$0x7]
        %v3943 = vperm.slane %v3941, 0
        %v3944 = vperm.slane %v3941, 1
        %v3945 = vperm.slane %v3941, 2
        %v3949 = vadd.f32 %v3938, %v3943
        %v3950 = vadd.f32 %v3939, %v3944
        %v3951 = vadd.f32 %v3940, %v3945
        %3952 = vst [vmem:[%s370] sm:$0xff] %v3949
        %3953 = vst [vmem:[%s370 + $0x8] sm:$0xff] %v3950
        %3954 = vst [vmem:[%s370 + $0x10] sm:$0xff] %v3951
        %p3955 = scmp.lt.s32.totalorder %s22, 1
        %s3956 = scalar_select %p3955, %s22, 1
        %s3957 = smul.addr %s3956, 3
        %s3958 = smul.addr %s3957, 8
        %s3959 = scalar_lea.vmem %s7, %s3958
        // Predicated region
        $region73: #{transformer_forward.16} parent=47 // pred_check
          %p3960 = pneg %p192
        $region74: #{transformer_forward.16} parent=47 // pred_check_branch
          %3962 = sbr.rel (%p3960) target = $region76
        $region75: #{transformer_forward.16} parent=47 // pred_region
          _
        $region76: #{transformer_forward.16} parent=47 // pred_fallthru
          _
      $region48: #{transformer_forward.16} parent=5 // pred_fallthru
        _
      %p3963 = scmp.le.s32.totalorder 2, %s17
      // Predicated region
      $region77: #{transformer_forward.16} parent=5 // pred_check
        %p3964 = pneg %p3963
      $region78: #{transformer_forward.16} parent=5 // pred_check_branch
        %3966 = sbr.rel (%p3964) target = $region80
      $region79: #{transformer_forward.16} parent=5 // pred_region
        %s3967 = ssub.s32 %s17, 2
        // Predicated region
        $region81: #{transformer_forward.16} parent=79 // pred_check
          %p3968 = pneg %p198
        $region82: #{transformer_forward.16} parent=79 // pred_check_branch
          %3970 = sbr.rel (%p3968) target = $region84
        $region83: #{transformer_forward.16} parent=79 // pred_region
          %p3971 = scmp.lt.s32.totalorder %s23, 1
          %s3972 = scalar_select %p3971, %s23, 1
          %s3973 = smul.addr %s3972, 3
          %s3974 = smul.addr %s3973, 8
          %s3975 = scalar_lea.vmem %s7, %s3974
        $region84: #{transformer_forward.16} parent=79 // pred_fallthru
          _
      $region80: #{transformer_forward.16} parent=5 // pred_fallthru
        _
    $region6: #{transformer_forward.16} parent=1 // loop_footer
      %s21 = sadd.s32 1, %s17
    $region7: #{transformer_forward.16} parent=1 // loop_footer_branch
      %16 = sbr.rel target = $region3
    $region8: #{transformer_forward.16} parent=1 // loop_exit
      _
    %3976 = vsyncpa [#allocation3], 1
    %s3977 = scalar_lea.sflag [#allocation3], 1
    %3978 = vsyncpa %s3977, 1
    %3979 = vsyncpa [#allocation5], 1
    %3980 = vsyncpa [#allocation8], 1
    %3981 = vsyncpa [#allocation11], 1

</llo_original>
